<compile_context>
chip_gen: v7x
topology: tpu7x:2x2x1
jax: 0.10.0
libtpu: 0.0.40
codegen_flags: <defaults>
</compile_context>

<pallas_src>
import math
from functools import partial

import jax
import jax.numpy as jnp
from jax.experimental import pallas as pl
from jax.experimental.pallas import tpu as pltpu

HEADS = 8
RES_KERNEL = 33
PINV_ITERS = 6
LN_EPS = 1e-5
_TILE_M = 512
_VMEM_LIMIT = 64 * 1024 * 1024


def _row_tile(m_rows):
    return m_rows if m_rows <= _TILE_M else _TILE_M


# ----------------------------------------------------------------------------
# Small shared helpers
# ----------------------------------------------------------------------------
def _layernorm(x, g, b):
    mu = jnp.mean(x, axis=-1, keepdims=True)
    xc = x - mu
    var = jnp.mean(xc * xc, axis=-1, keepdims=True)
    return xc * jax.lax.rsqrt(var + LN_EPS) * g + b


def _softmax_rows(x):
    x = x - jnp.max(x, axis=-1, keepdims=True)
    e = jnp.exp(x)
    return e / jnp.sum(e, axis=-1, keepdims=True)


def _dot_nt(a, b):  # a @ b.T (contract last dims), f32 accumulation on the MXU
    return jax.lax.dot_general(a, b, (((1,), (1,)), ((), ())),
                               preferred_element_type=jnp.float32)


# ----------------------------------------------------------------------------
# Dense kernels: linear (+relu), fused LayerNorm+matmul, fused LN+classifier
# ----------------------------------------------------------------------------
def _linear_kernel(x_ref, w_ref, b_ref, o_ref, *, relu):
    y = jnp.dot(x_ref[...].astype(jnp.bfloat16), w_ref[...],
                preferred_element_type=jnp.float32) + b_ref[...]
    if relu:
        y = jnp.maximum(y, 0.0)
    o_ref[...] = y.astype(o_ref.dtype)


def pallas_linear(x, w, b, relu=False):
    M, K = x.shape
    N = w.shape[1]
    tm = _row_tile(M)
    return pl.pallas_call(
        partial(_linear_kernel, relu=relu),
        out_shape=jax.ShapeDtypeStruct((M, N), jnp.float32),
        grid=(pl.cdiv(M, tm),),
        in_specs=[pl.BlockSpec((tm, K), lambda i: (i, 0)),
                  pl.BlockSpec((K, N), lambda i: (0, 0)),
                  pl.BlockSpec((1, N), lambda i: (0, 0))],
        out_specs=pl.BlockSpec((tm, N), lambda i: (i, 0)),
        compiler_params=pltpu.CompilerParams(dimension_semantics=("parallel",)),
    )(x, w.astype(jnp.bfloat16), b.reshape(1, N))


def _ln_matmul_kernel(x_ref, g_ref, b_ref, w_ref, o_ref):
    xn = _layernorm(x_ref[...], g_ref[...], b_ref[...])
    y = jnp.dot(xn.astype(jnp.bfloat16), w_ref[...],
                preferred_element_type=jnp.float32)
    o_ref[...] = y.astype(o_ref.dtype)


def pallas_ln_matmul(x, g, b, w):
    """rows -> LayerNorm -> (rows @ w), bias-free (to_qkv); bf16 output."""
    M, D = x.shape
    N = w.shape[1]
    tm = _row_tile(M)
    return pl.pallas_call(
        _ln_matmul_kernel,
        out_shape=jax.ShapeDtypeStruct((M, N), jnp.bfloat16),
        grid=(pl.cdiv(M, tm),),
        in_specs=[pl.BlockSpec((tm, D), lambda i: (i, 0)),
                  pl.BlockSpec((1, D), lambda i: (0, 0)),
                  pl.BlockSpec((1, D), lambda i: (0, 0)),
                  pl.BlockSpec((D, N), lambda i: (0, 0))],
        out_specs=pl.BlockSpec((tm, N), lambda i: (i, 0)),
        compiler_params=pltpu.CompilerParams(dimension_semantics=("parallel",)),
    )(x, g.reshape(1, D), b.reshape(1, D), w.astype(jnp.bfloat16))


def _ln_head_kernel(x_ref, g_ref, b_ref, w_ref, wb_ref, f_ref, o_ref):
    xn = _layernorm(x_ref[...], g_ref[...], b_ref[...])
    f_ref[...] = xn
    o_ref[...] = jnp.dot(xn.astype(jnp.bfloat16), w_ref[...],
                         preferred_element_type=jnp.float32) + wb_ref[...]


def pallas_ln_head(x, g, b, w, wb):
    """Final LayerNorm on the cls rows fused with the classifier linear."""
    M, D = x.shape
    N = w.shape[1]
    return pl.pallas_call(
        _ln_head_kernel,
        out_shape=(jax.ShapeDtypeStruct((M, D), jnp.float32),
                   jax.ShapeDtypeStruct((M, N), jnp.float32)),
        grid=(1,),
        in_specs=[pl.BlockSpec((M, D), lambda i: (0, 0)),
                  pl.BlockSpec((1, D), lambda i: (0, 0)),
                  pl.BlockSpec((1, D), lambda i: (0, 0)),
                  pl.BlockSpec((D, N), lambda i: (0, 0)),
                  pl.BlockSpec((1, N), lambda i: (0, 0))],
        out_specs=(pl.BlockSpec((M, D), lambda i: (0, 0)),
                   pl.BlockSpec((M, N), lambda i: (0, 0))),
    )(x, g.reshape(1, D), b.reshape(1, D), w.astype(jnp.bfloat16),
      wb.reshape(1, N))


# ----------------------------------------------------------------------------
# Nystrom attention: landmark kernel -> pinv kernel -> fused attention kernel
# ----------------------------------------------------------------------------
def _make_landmark_kernel(scale, l_group, m):
    inv_l = 1.0 / float(l_group)

    def kernel(q_ref, k_ref, pool_ref, ql_ref, kl_ref, a2_ref):
        pool = pool_ref[...]                       # (m, n_pad) bf16, 0/1 entries
        q = q_ref[0, 0]                            # (n_pad, dh) bf16 (unscaled)
        k = k_ref[0, 0]
        ql32 = jnp.dot(pool, q, preferred_element_type=jnp.float32) * inv_l
        kl32 = jnp.dot(pool, k, preferred_element_type=jnp.float32) * inv_l
        qlb = ql32.astype(jnp.bfloat16)
        klb = kl32.astype(jnp.bfloat16)
        ql_ref[0, 0] = qlb
        kl_ref[0, 0] = klb
        sim2 = _dot_nt(qlb, klb) * scale           # scale applied in f32
        a2_ref[0, 0] = _softmax_rows(sim2)
    return kernel


def _make_pinv_kernel(m, iters):
    def kernel(a2_ref, a2t_ref, den_ref, z_ref):
        x = a2_ref[0, 0]                                    # (m, m) f32
        z = a2t_ref[0, 0] * (1.0 / den_ref[...])            # z0 = attn2^T / denom
        row = jax.lax.broadcasted_iota(jnp.int32, (m, m), 0)
        col = jax.lax.broadcasted_iota(jnp.int32, (m, m), 1)
        eye = jnp.where(row == col, 1.0, 0.0).astype(jnp.float32)
        xb = x.astype(jnp.bfloat16)
        for _ in range(iters):                              # Moore-Penrose
            zb = z.astype(jnp.bfloat16)
            xz = jnp.dot(xb, zb, preferred_element_type=jnp.float32)
            xzb = xz.astype(jnp.bfloat16)
            t1 = 7.0 * eye - xz
            t2 = 15.0 * eye - jnp.dot(xzb, t1.astype(jnp.bfloat16),
                                      preferred_element_type=jnp.float32)
            t3 = 13.0 * eye - jnp.dot(xzb, t2.astype(jnp.bfloat16),
                                      preferred_element_type=jnp.float32)
            z = 0.25 * jnp.dot(zb, t3.astype(jnp.bfloat16),
                               preferred_element_type=jnp.float32)
        z_ref[0, 0] = z.astype(jnp.bfloat16)
    return kernel


def _make_fused_attn_kernel(scale, m, n_pad, half_k, l_group, padding, n_tok,
                            heads):
    def kernel(q_ref, k_ref, vp_ref, ql_ref, kl_ref, z_ref, band_ref,
               wout_ref, bout_ref, o_ref, acc_ref):
        h = pl.program_id(1)

        @pl.when(h == 0)
        def _():
            acc_ref[...] = jnp.zeros_like(acc_ref)

        q = q_ref[0, 0]                                     # (n_pad, dh) bf16
        k = k_ref[0, 0]
        ql = ql_ref[0, 0]                                   # (m, dh) bf16
        kl = kl_ref[0, 0]
        v = vp_ref[0, 0, half_k:half_k + n_pad, :]          # (n_pad, dh) bf16

        # attn1 = softmax(scale * q @ k_l^T); attn3 = softmax(scale * q_l @ k^T)
        attn1 = _softmax_rows(_dot_nt(q, kl) * scale).astype(jnp.bfloat16)
        attn3 = _softmax_rows(_dot_nt(ql, k) * scale).astype(jnp.bfloat16)
        a3v = jnp.dot(attn3, v, preferred_element_type=jnp.float32)     # (m, dh)
        a1z = jnp.dot(attn1, z_ref[0, 0],
                      preferred_element_type=jnp.float32)               # (n_pad, m)
        out_h = jnp.dot(a1z.astype(jnp.bfloat16), a3v.astype(jnp.bfloat16),
                        preferred_element_type=jnp.float32)             # (n_pad, dh)

        # depthwise residual conv along the sequence as a banded-Toeplitz MXU
        # matmul over m-row tiles (band is tile-invariant, lives in VMEM once).
        band = band_ref[0]                                  # (m, m+32) bf16
        tiles = []
        for t in range(l_group):
            vt = vp_ref[0, 0, t * m: t * m + m + 2 * half_k, :]
            tiles.append(jnp.dot(band, vt, preferred_element_type=jnp.float32))
        conv = tiles[0] if l_group == 1 else jnp.concatenate(tiles, axis=0)
        out_h = out_h + conv

        # fused to_out: accumulate this head's contribution into the lane-dense
        # (n_pad, D) accumulator.
        acc_ref[...] += jnp.dot(out_h.astype(jnp.bfloat16), wout_ref[0],
                                preferred_element_type=jnp.float32)

        @pl.when(h == heads - 1)
        def _():
            # out[:, -N:] of the padded sequence, plus the to_out bias.
            o_ref[0] = acc_ref[padding:padding + n_tok, :] + bout_ref[...]
    return kernel


def nystrom_attention(x, p):
    """x: (B, N, D) pre-norm input.  Returns attn(norm(x)) of shape (B, N, D)."""
    B, N, D = x.shape
    heads = HEADS
    dh = D // heads
    m = D // 2                       # num_landmarks
    scale = dh ** -0.5
    padding = (m - N % m) % m
    n_pad = N + padding
    l_group = n_pad // m
    half_k = RES_KERNEL // 2

    # fused LayerNorm + qkv projection (bias-free), bf16 output, tiled over rows
    qkv = pallas_ln_matmul(x.reshape(B * N, D), p["ln_g"], p["ln_b"], p["w_qkv"])
    qkv = qkv.reshape(B, N, 3, heads, dh)
    q = jnp.transpose(qkv[:, :, 0], (0, 2, 1, 3))           # (B, H, N, dh) bf16
    k = jnp.transpose(qkv[:, :, 1], (0, 2, 1, 3))
    v = jnp.transpose(qkv[:, :, 2], (0, 2, 1, 3))
    # front-pad tokens with zeros (to_qkv has no bias, so projecting then
    # zero-padding equals padding then projecting); pad v for the 33-tap conv.
    q = jnp.pad(q, ((0, 0), (0, 0), (padding, 0), (0, 0)))
    k = jnp.pad(k, ((0, 0), (0, 0), (padding, 0), (0, 0)))
    vp = jnp.pad(v, ((0, 0), (0, 0), (padding + half_k, half_k), (0, 0)))

    # landmark pooling matrix (m, n_pad): ones where column belongs to group row
    pool = (jnp.arange(n_pad)[None, :] // l_group ==
            jnp.arange(m)[:, None]).astype(jnp.bfloat16)

    # --- stage 1: landmarks + attn2 only ------------------------------------
    ql, kl, attn2 = pl.pallas_call(
        _make_landmark_kernel(scale, l_group, m),
        out_shape=(jax.ShapeDtypeStruct((B, heads, m, dh), jnp.bfloat16),
                   jax.ShapeDtypeStruct((B, heads, m, dh), jnp.bfloat16),
                   jax.ShapeDtypeStruct((B, heads, m, m), jnp.float32)),
        grid=(B, heads),
        in_specs=[pl.BlockSpec((1, 1, n_pad, dh), lambda b, h: (b, h, 0, 0)),
                  pl.BlockSpec((1, 1, n_pad, dh), lambda b, h: (b, h, 0, 0)),
                  pl.BlockSpec((m, n_pad), lambda b, h: (0, 0))],
        out_specs=(pl.BlockSpec((1, 1, m, dh), lambda b, h: (b, h, 0, 0)),
                   pl.BlockSpec((1, 1, m, dh), lambda b, h: (b, h, 0, 0)),
                   pl.BlockSpec((1, 1, m, m), lambda b, h: (b, h, 0, 0))),
        compiler_params=pltpu.CompilerParams(
            dimension_semantics=("parallel", "parallel"),
            vmem_limit_bytes=_VMEM_LIMIT),
    )(q, k, pool)

    # Faithful pinv init scale: torch.max() is GLOBAL over (B, H, m, m).
    absa = jnp.abs(attn2)
    denom = jnp.max(jnp.sum(absa, axis=-1)) * jnp.max(jnp.sum(absa, axis=-2))
    denom = denom.reshape(1, 1)
    attn2t = jnp.swapaxes(attn2, -1, -2)          # exact transpose (tiny array)

    # --- stage 2: per-(b, h) Newton-Schulz pseudo-inverse --------------------
    z = pl.pallas_call(
        _make_pinv_kernel(m, PINV_ITERS),
        out_shape=jax.ShapeDtypeStruct((B, heads, m, m), jnp.bfloat16),
        grid=(B, heads),
        in_specs=[pl.BlockSpec((1, 1, m, m), lambda b, h: (b, h, 0, 0)),
                  pl.BlockSpec((1, 1, m, m), lambda b, h: (b, h, 0, 0)),
                  pl.BlockSpec((1, 1), lambda b, h: (0, 0))],
        out_specs=pl.BlockSpec((1, 1, m, m), lambda b, h: (b, h, 0, 0)),
        compiler_params=pltpu.CompilerParams(
            dimension_semantics=("parallel", "parallel")),
    )(attn2, attn2t, denom)

    # banded-Toeplitz matrix for the 33-tap residual conv (per head)
    off = jnp.arange(m + 2 * half_k)[None, :] - jnp.arange(m)[:, None]
    in_band = (off >= 0) & (off <= 2 * half_k)
    band = jnp.where(in_band[None, :, :],
                     p["w_res"][:, jnp.clip(off, 0, 2 * half_k)],
                     0.0).astype(jnp.bfloat16)               # (H, m, m+32)

    wout = p["w_out"].reshape(heads, dh, D).astype(jnp.bfloat16)
    bout = p["b_out"].reshape(1, D)

    # --- stage 3: fused attention + residual conv + to_out (head reduction) --
    out = pl.pallas_call(
        _make_fused_attn_kernel(scale, m, n_pad, half_k, l_group, padding, N,
                                heads),
        out_shape=jax.ShapeDtypeStruct((B, N, D), jnp.float32),
        grid=(B, heads),
        in_specs=[
            pl.BlockSpec((1, 1, n_pad, dh), lambda b, h: (b, h, 0, 0)),
            pl.BlockSpec((1, 1, n_pad, dh), lambda b, h: (b, h, 0, 0)),
            pl.BlockSpec((1, 1, n_pad + 2 * half_k, dh),
                         lambda b, h: (b, h, 0, 0)),
            pl.BlockSpec((1, 1, m, dh), lambda b, h: (b, h, 0, 0)),
            pl.BlockSpec((1, 1, m, dh), lambda b, h: (b, h, 0, 0)),
            pl.BlockSpec((1, 1, m, m), lambda b, h: (b, h, 0, 0)),
            pl.BlockSpec((1, m, m + 2 * half_k), lambda b, h: (h, 0, 0)),
            pl.BlockSpec((1, dh, D), lambda b, h: (h, 0, 0)),
            pl.BlockSpec((1, D), lambda b, h: (0, 0)),
        ],
        out_specs=pl.BlockSpec((1, N, D), lambda b, h: (b, 0, 0)),
        scratch_shapes=[pltpu.VMEM((n_pad, D), jnp.float32)],
        compiler_params=pltpu.CompilerParams(
            dimension_semantics=("parallel", "arbitrary"),
            vmem_limit_bytes=_VMEM_LIMIT),
    )(q, k, vp, ql, kl, z, band, wout, bout)
    # TODO(synk): nn.Dropout(0.1) inside to_out runs in eval mode (identity).
    return out


def trans_layer(x, p):
    return x + nystrom_attention(x, p)


# ----------------------------------------------------------------------------
# PPEG: identity + 7/5/3 depthwise convs combined into one 7x7 per-channel
# kernel -> 49 taps, only 7 sublane-unaligned W-shifts per block.
# ----------------------------------------------------------------------------
def _make_ppeg_kernel(Hs, Ws):
    def kernel(x_ref, taps_ref, bias_ref, o_ref):
        C = x_ref.shape[-1]
        taps = taps_ref[...]                                # (49, C)
        acc = jnp.zeros((Hs, Ws, C), jnp.float32) + bias_ref[...]
        for dj in range(7):
            xj = x_ref[0, :, dj:dj + Ws, :]                 # (Hs+6, Ws, C)
            for di in range(7):
                acc = acc + taps[di * 7 + dj] * xj[di:di + Hs]
        o_ref[0] = acc
    return kernel


def _ppeg_taps(p):
    """Combine 7x7 + 5x5 + 3x3 depthwise kernels (+ identity) into 49 taps."""
    C = p["w7"].shape[0]
    comb = (p["w7"]
            + jnp.pad(p["w5"], ((0, 0), (1, 1), (1, 1)))
            + jnp.pad(p["w3"], ((0, 0), (2, 2), (2, 2))))   # (C, 7, 7)
    comb = comb.at[:, 3, 3].add(1.0)                        # identity term
    taps = jnp.transpose(comb, (1, 2, 0)).reshape(49, C)    # taps[di*7+dj]
    bias = (p["b7"] + p["b5"] + p["b3"]).reshape(1, C)
    return taps, bias


def ppeg(x, p, Hs, Ws):
    B, _, C = x.shape
    cls_tok = x[:, :1]
    feat = x[:, 1:].reshape(B, Hs, Ws, C)           # row-major (H, W) == NCHW view
    pad = 3
    xpad = jnp.pad(feat, ((0, 0), (pad, pad), (pad, pad), (0, 0)))
    taps, bias = _ppeg_taps(p)
    # TODO(synk): for very large H*W*C, tile over H with a 6-row halo (v7x VMEM).
    conv = pl.pallas_call(
        _make_ppeg_kernel(Hs, Ws),
        out_shape=jax.ShapeDtypeStruct((B, Hs, Ws, C), jnp.float32),
        grid=(B,),
        in_specs=[pl.BlockSpec((1, Hs + 2 * pad, Ws + 2 * pad, C),
                               lambda b: (b, 0, 0, 0)),
                  pl.BlockSpec((49, C), lambda b: (0, 0)),
                  pl.BlockSpec((1, C), lambda b: (0, 0))],
        out_specs=pl.BlockSpec((1, Hs, Ws, C), lambda b: (b, 0, 0, 0)),
        compiler_params=pltpu.CompilerParams(
            dimension_semantics=("parallel",),
            vmem_limit_bytes=_VMEM_LIMIT),
    )(xpad, taps, bias)
    return jnp.concatenate([cls_tok, conv.reshape(B, Hs * Ws, C)], axis=1)


# ----------------------------------------------------------------------------
# Parameter init (deterministic, synthetic) and full forward
# ----------------------------------------------------------------------------
def _rnd(key, shape, scale=0.02):
    return jax.random.normal(key, shape, jnp.float32) * scale


def init_translayer(key, d_model, heads=HEADS):
    ks = jax.random.split(key, 3)
    return {
        "ln_g": jnp.ones((d_model,), jnp.float32),
        "ln_b": jnp.zeros((d_model,), jnp.float32),
        "w_qkv": _rnd(ks[0], (d_model, 3 * d_model)),
        "w_out": _rnd(ks[1], (d_model, d_model)),
        "b_out": jnp.zeros((d_model,), jnp.float32),
        "w_res": _rnd(ks[2], (heads, RES_KERNEL)),
    }


def init_params(key, d_in, d_model, n_classes):
    ks = jax.random.split(key, 12)
    return {
        "fc1_w": _rnd(ks[0], (d_in, d_model)),
        "fc1_b": jnp.zeros((d_model,), jnp.float32),
        "cls_token": jax.random.normal(ks[1], (1, 1, d_model), jnp.float32),
        "pos": {
            "w7": _rnd(ks[2], (d_model, 7, 7)), "b7": _rnd(ks[3], (d_model,), 0.01),
            "w5": _rnd(ks[4], (d_model, 5, 5)), "b5": _rnd(ks[5], (d_model,), 0.01),
            "w3": _rnd(ks[6], (d_model, 3, 3)), "b3": _rnd(ks[7], (d_model,), 0.01),
        },
        "layer1": init_translayer(ks[8], d_model),
        "layer2": init_translayer(ks[9], d_model),
        "norm_g": jnp.ones((d_model,), jnp.float32),
        "norm_b": jnp.zeros((d_model,), jnp.float32),
        "cls_w": _rnd(ks[10], (d_model, n_classes)),
        "cls_b": jnp.zeros((n_classes,), jnp.float32),
    }


def transmil_forward(x, params):
    """task='cls' forward.  x: (B, S, d_in) float32."""
    B, S, d_in = x.shape
    D = params["fc1_w"].shape[1]
    # _fc1: Linear + ReLU (tiled rows, bf16 MXU operands, f32 accumulate)
    h = pallas_linear(x.reshape(B * S, d_in), params["fc1_w"], params["fc1_b"],
                      relu=True).reshape(B, S, D)
    # pad tokens to a square grid
    Hs = Ws = int(math.ceil(math.sqrt(S)))
    add_len = Hs * Ws - S
    if add_len > 0:
        h = jnp.concatenate([h, h[:, :add_len, :]], axis=1)
    # prepend cls token
    cls = jnp.broadcast_to(params["cls_token"], (B, 1, D))
    h = jnp.concatenate([cls, h], axis=1)
    # TransLayer 1 -> PPEG -> TransLayer 2
    h = trans_layer(h, params["layer1"])
    h = ppeg(h, params["pos"], Hs, Ws)
    h = trans_layer(h, params["layer2"])
    # final LayerNorm on the cls token fused with the classifier head
    features, logits = pallas_ln_head(h[:, 0], params["norm_g"], params["norm_b"],
                                      params["cls_w"], params["cls_b"])
    y_prob = jax.nn.softmax(logits, axis=1)
    y_hat = jnp.argmax(logits, axis=1)
    return {"features": features, "logits": logits, "y_hat": y_hat, "y_prob": y_prob}


if __name__ == "__main__":
    key = jax.random.PRNGKey(0)
    B, S, d_in, d_model, n_classes = 2, 8, 48, 64, 4
    kx, kp = jax.random.split(key)
    x = jax.random.normal(kx, (B, S, d_in), jnp.float32)
    params = init_params(kp, d_in, d_model, n_classes)

    fwd = jax.jit(transmil_forward)
    out = jax.block_until_ready(fwd(x, params))

    assert out["features"].shape == (B, d_model)
    assert out["logits"].shape == (B, n_classes)
    assert out["y_prob"].shape == (B, n_classes)
    assert out["y_hat"].shape == (B,)
    assert bool(jnp.all(jnp.isfinite(out["logits"])))
    print("KERNEL_OK")
</pallas_src>

<mosaic_0001>
module attributes {stable_mosaic.version = 11 : i64} {
  func.func @_linear_kernel(%arg0: i32, %arg1: memref<16x48xf32, #tpu.memory_space<vmem>>, %arg2: memref<48x64xbf16, #tpu.memory_space<vmem>>, %arg3: memref<1x64xf32, #tpu.memory_space<vmem>>, %arg4: memref<16x64xf32, #tpu.memory_space<vmem>>) attributes {dimension_semantics = [#tpu.dimension_semantics<parallel>], iteration_bounds = array<i64: 1>, scalar_prefetch = 0 : i64, scratch_operands = 0 : i64, tpu.core_type = #tpu.core_type<tc>, window_params = [{transform_indices = @transform_0, window_bounds = array<i64: 16, 48>}, {pipeline_mode = #tpu.pipeline_mode<synchronous>, transform_indices = @transform_1, window_bounds = array<i64: 48, 64>}, {pipeline_mode = #tpu.pipeline_mode<synchronous>, transform_indices = @transform_2, window_bounds = array<i64: 1, 64>}, {transform_indices = @transform_3, window_bounds = array<i64: 16, 64>}]} {
    %c0 = arith.constant 0 : index
    %c0_0 = arith.constant 0 : index
    %0 = vector.load %arg1[%c0, %c0_0] : memref<16x48xf32, #tpu.memory_space<vmem>>, vector<16x48xf32>
    %1 = arith.truncf %0 : vector<16x48xf32> to vector<16x48xbf16>
    %c0_1 = arith.constant 0 : index
    %c0_2 = arith.constant 0 : index
    %2 = vector.load %arg2[%c0_1, %c0_2] : memref<48x64xbf16, #tpu.memory_space<vmem>>, vector<48x64xbf16>
    %cst = arith.constant dense<0.000000e+00> : vector<16x64xf32>
    %3 = tpu.matmul %1, %2, %cst {dimension_numbers = #tpu.dot_dimension_numbers<[1], [0], [0], [1], [0, 0, 1, 1], [], []>} : vector<16x48xbf16>, vector<48x64xbf16>, vector<16x64xf32> -> vector<16x64xf32>
    %c0_3 = arith.constant 0 : index
    %c0_4 = arith.constant 0 : index
    %4 = vector.load %arg3[%c0_3, %c0_4] : memref<1x64xf32, #tpu.memory_space<vmem>>, vector<1x64xf32>
    %5 = vector.broadcast %4 : vector<1x64xf32> to vector<16x64xf32>
    %6 = arith.addf %3, %5 : vector<16x64xf32>
    %cst_5 = arith.constant 0.000000e+00 : f32
    %7 = vector.broadcast %cst_5 : f32 to vector<16x64xf32>
    %8 = arith.maximumf %6, %7 : vector<16x64xf32>
    %c0_6 = arith.constant 0 : index
    %c0_7 = arith.constant 0 : index
    %9 = vector.load %arg4[%c0_6, %c0_7] : memref<16x64xf32, #tpu.memory_space<vmem>>, vector<16x64xf32>
    tpu.vector_store %arg4[%c0_6, %c0_7], %8 {strides = array<i32>} : memref<16x64xf32, #tpu.memory_space<vmem>>, vector<16x64xf32>,
    return
  }
  func.func @transform_0(%arg0: i32) -> (i32, i32) {
    %c0_i32 = arith.constant 0 : i32
    %c0_i32_0 = arith.constant 0 : i32
    return %arg0, %c0_i32 : i32, i32
  }
  func.func @transform_1(%arg0: i32) -> (i32, i32) {
    %c0_i32 = arith.constant 0 : i32
    %c0_i32_0 = arith.constant 0 : i32
    %c0_i32_1 = arith.constant 0 : i32
    return %c0_i32, %c0_i32_0 : i32, i32
  }
  func.func @transform_2(%arg0: i32) -> (i32, i32) {
    %c0_i32 = arith.constant 0 : i32
    %c0_i32_0 = arith.constant 0 : i32
    %c0_i32_1 = arith.constant 0 : i32
    return %c0_i32, %c0_i32_0 : i32, i32
  }
  func.func @transform_3(%arg0: i32) -> (i32, i32) {
    %c0_i32 = arith.constant 0 : i32
    %c0_i32_0 = arith.constant 0 : i32
    return %arg0, %c0_i32 : i32, i32
  }
}

module attributes {stable_mosaic.version = 11 : i64} {
  func.func @_ln_matmul_kernel(%arg0: i32, %arg1: memref<20x64xf32, #tpu.memory_space<vmem>>, %arg2: memref<1x64xf32, #tpu.memory_space<vmem>>, %arg3: memref<1x64xf32, #tpu.memory_space<vmem>>, %arg4: memref<64x192xbf16, #tpu.memory_space<vmem>>, %arg5: memref<20x192xbf16, #tpu.memory_space<vmem>>) attributes {dimension_semantics = [#tpu.dimension_semantics<parallel>], iteration_bounds = array<i64: 1>, scalar_prefetch = 0 : i64, scratch_operands = 0 : i64, tpu.core_type = #tpu.core_type<tc>, window_params = [{transform_indices = @transform_0, window_bounds = array<i64: 20, 64>}, {pipeline_mode = #tpu.pipeline_mode<synchronous>, transform_indices = @transform_1, window_bounds = array<i64: 1, 64>}, {pipeline_mode = #tpu.pipeline_mode<synchronous>, transform_indices = @transform_2, window_bounds = array<i64: 1, 64>}, {pipeline_mode = #tpu.pipeline_mode<synchronous>, transform_indices = @transform_3, window_bounds = array<i64: 64, 192>}, {transform_indices = @transform_4, window_bounds = array<i64: 20, 192>}]} {
    %c0 = arith.constant 0 : index
    %c0_0 = arith.constant 0 : index
    %0 = vector.load %arg1[%c0, %c0_0] : memref<20x64xf32, #tpu.memory_space<vmem>>, vector<20x64xf32>
    %c0_1 = arith.constant 0 : index
    %c0_2 = arith.constant 0 : index
    %1 = vector.load %arg2[%c0_1, %c0_2] : memref<1x64xf32, #tpu.memory_space<vmem>>, vector<1x64xf32>
    %c0_3 = arith.constant 0 : index
    %c0_4 = arith.constant 0 : index
    %2 = vector.load %arg3[%c0_3, %c0_4] : memref<1x64xf32, #tpu.memory_space<vmem>>, vector<1x64xf32>
    %cst = arith.constant dense<0.000000e+00> : vector<20xf32>
    %3 = vector.multi_reduction <add>, %0, %cst [1] : vector<20x64xf32> to vector<20xf32>
    %4 = vector.shape_cast %3 : vector<20xf32> to vector<20x1xf32>
    %cst_5 = arith.constant 6.400000e+01 : f32
    %5 = vector.broadcast %cst_5 : f32 to vector<20x1xf32>
    %6 = arith.divf %4, %5 : vector<20x1xf32>
    %7 = vector.broadcast %6 : vector<20x1xf32> to vector<20x64xf32>
    %8 = arith.subf %0, %7 : vector<20x64xf32>
    %9 = arith.mulf %8, %8 : vector<20x64xf32>
    %cst_6 = arith.constant dense<0.000000e+00> : vector<20xf32>
    %10 = vector.multi_reduction <add>, %9, %cst_6 [1] : vector<20x64xf32> to vector<20xf32>
    %11 = vector.shape_cast %10 : vector<20xf32> to vector<20x1xf32>
    %cst_7 = arith.constant 6.400000e+01 : f32
    %12 = vector.broadcast %cst_7 : f32 to vector<20x1xf32>
    %13 = arith.divf %11, %12 : vector<20x1xf32>
    %cst_8 = arith.constant 9.99999974E-6 : f32
    %14 = vector.broadcast %cst_8 : f32 to vector<20x1xf32>
    %15 = arith.addf %13, %14 : vector<20x1xf32>
    %16 = math.rsqrt %15 : vector<20x1xf32>
    %17 = vector.broadcast %16 : vector<20x1xf32> to vector<20x64xf32>
    %18 = arith.mulf %8, %17 : vector<20x64xf32>
    %19 = vector.broadcast %1 : vector<1x64xf32> to vector<20x64xf32>
    %20 = arith.mulf %18, %19 : vector<20x64xf32>
    %21 = vector.broadcast %2 : vector<1x64xf32> to vector<20x64xf32>
    %22 = arith.addf %20, %21 : vector<20x64xf32>
    %23 = arith.truncf %22 : vector<20x64xf32> to vector<20x64xbf16>
    %c0_9 = arith.constant 0 : index
    %c0_10 = arith.constant 0 : index
    %24 = vector.load %arg4[%c0_9, %c0_10] : memref<64x192xbf16, #tpu.memory_space<vmem>>, vector<64x192xbf16>
    %cst_11 = arith.constant dense<0.000000e+00> : vector<20x192xf32>
    %25 = tpu.matmul %23, %24, %cst_11 {dimension_numbers = #tpu.dot_dimension_numbers<[1], [0], [0], [1], [0, 0, 1, 1], [], []>} : vector<20x64xbf16>, vector<64x192xbf16>, vector<20x192xf32> -> vector<20x192xf32>
    %26 = arith.truncf %25 : vector<20x192xf32> to vector<20x192xbf16>
    %c0_12 = arith.constant 0 : index
    %c0_13 = arith.constant 0 : index
    %27 = vector.load %arg5[%c0_12, %c0_13] : memref<20x192xbf16, #tpu.memory_space<vmem>>, vector<20x192xbf16>
    tpu.vector_store %arg5[%c0_12, %c0_13], %26 {strides = array<i32>} : memref<20x192xbf16, #tpu.memory_space<vmem>>, vector<20x192xbf16>,
    return
  }
  func.func @transform_0(%arg0: i32) -> (i32, i32) {
    %c0_i32 = arith.constant 0 : i32
    %c0_i32_0 = arith.constant 0 : i32
    return %arg0, %c0_i32 : i32, i32
  }
  func.func @transform_1(%arg0: i32) -> (i32, i32) {
    %c0_i32 = arith.constant 0 : i32
    %c0_i32_0 = arith.constant 0 : i32
    %c0_i32_1 = arith.constant 0 : i32
    return %c0_i32, %c0_i32_0 : i32, i32
  }
  func.func @transform_2(%arg0: i32) -> (i32, i32) {
    %c0_i32 = arith.constant 0 : i32
    %c0_i32_0 = arith.constant 0 : i32
    %c0_i32_1 = arith.constant 0 : i32
    return %c0_i32, %c0_i32_0 : i32, i32
  }
  func.func @transform_3(%arg0: i32) -> (i32, i32) {
    %c0_i32 = arith.constant 0 : i32
    %c0_i32_0 = arith.constant 0 : i32
    %c0_i32_1 = arith.constant 0 : i32
    return %c0_i32, %c0_i32_0 : i32, i32
  }
  func.func @transform_4(%arg0: i32) -> (i32, i32) {
    %c0_i32 = arith.constant 0 : i32
    %c0_i32_0 = arith.constant 0 : i32
    return %arg0, %c0_i32 : i32, i32
  }
}

module attributes {stable_mosaic.version = 11 : i64} {
  func.func @kernel(%arg0: i32, %arg1: i32, %arg2: memref<1x1x32x8xbf16, #tpu.memory_space<vmem>>, %arg3: memref<1x1x32x8xbf16, #tpu.memory_space<vmem>>, %arg4: memref<32x32xbf16, #tpu.memory_space<vmem>>, %arg5: memref<1x1x32x8xbf16, #tpu.memory_space<vmem>>, %arg6: memref<1x1x32x8xbf16, #tpu.memory_space<vmem>>, %arg7: memref<1x1x32x32xf32, #tpu.memory_space<vmem>>) attributes {dimension_semantics = [#tpu.dimension_semantics<parallel>, #tpu.dimension_semantics<parallel>], iteration_bounds = array<i64: 2, 8>, scalar_prefetch = 0 : i64, scratch_operands = 0 : i64, tpu.core_type = #tpu.core_type<tc>, window_params = [{transform_indices = @transform_0, window_bounds = array<i64: 1, 1, 32, 8>}, {transform_indices = @transform_1, window_bounds = array<i64: 1, 1, 32, 8>}, {pipeline_mode = #tpu.pipeline_mode<synchronous>, transform_indices = @transform_2, window_bounds = array<i64: 32, 32>}, {transform_indices = @transform_3, window_bounds = array<i64: 1, 1, 32, 8>}, {transform_indices = @transform_4, window_bounds = array<i64: 1, 1, 32, 8>}, {transform_indices = @transform_5, window_bounds = array<i64: 1, 1, 32, 32>}]} {
    %c0 = arith.constant 0 : index
    %c0_0 = arith.constant 0 : index
    %0 = vector.load %arg4[%c0, %c0_0] : memref<32x32xbf16, #tpu.memory_space<vmem>>, vector<32x32xbf16>
    %c0_1 = arith.constant 0 : index
    %c0_2 = arith.constant 0 : index
    %c0_3 = arith.constant 0 : index
    %c0_4 = arith.constant 0 : index
    %1 = vector.load %arg2[%c0_1, %c0_2, %c0_3, %c0_4] : memref<1x1x32x8xbf16, #tpu.memory_space<vmem>>, vector<1x1x32x8xbf16>
    %2 = vector.shape_cast %1 : vector<1x1x32x8xbf16> to vector<32x8xbf16>
    %c0_5 = arith.constant 0 : index
    %c0_6 = arith.constant 0 : index
    %c0_7 = arith.constant 0 : index
    %c0_8 = arith.constant 0 : index
    %3 = vector.load %arg3[%c0_5, %c0_6, %c0_7, %c0_8] : memref<1x1x32x8xbf16, #tpu.memory_space<vmem>>, vector<1x1x32x8xbf16>
    %4 = vector.shape_cast %3 : vector<1x1x32x8xbf16> to vector<32x8xbf16>
    %cst = arith.constant dense<0.000000e+00> : vector<32x8xf32>
    %5 = tpu.matmul %0, %2, %cst {dimension_numbers = #tpu.dot_dimension_numbers<[1], [0], [0], [1], [0, 0, 1, 1], [], []>} : vector<32x32xbf16>, vector<32x8xbf16>, vector<32x8xf32> -> vector<32x8xf32>
    %cst_9 = arith.constant 1.000000e+00 : f32
    %6 = vector.broadcast %cst_9 : f32 to vector<32x8xf32>
    %7 = arith.mulf %5, %6 : vector<32x8xf32>
    %cst_10 = arith.constant dense<0.000000e+00> : vector<32x8xf32>
    %8 = tpu.matmul %0, %4, %cst_10 {dimension_numbers = #tpu.dot_dimension_numbers<[1], [0], [0], [1], [0, 0, 1, 1], [], []>} : vector<32x32xbf16>, vector<32x8xbf16>, vector<32x8xf32> -> vector<32x8xf32>
    %cst_11 = arith.constant 1.000000e+00 : f32
    %9 = vector.broadcast %cst_11 : f32 to vector<32x8xf32>
    %10 = arith.mulf %8, %9 : vector<32x8xf32>
    %11 = arith.truncf %7 : vector<32x8xf32> to vector<32x8xbf16>
    %12 = arith.truncf %10 : vector<32x8xf32> to vector<32x8xbf16>
    %c0_12 = arith.constant 0 : index
    %c0_13 = arith.constant 0 : index
    %c0_14 = arith.constant 0 : index
    %c0_15 = arith.constant 0 : index
    %13 = vector.load %arg5[%c0_12, %c0_13, %c0_14, %c0_15] : memref<1x1x32x8xbf16, #tpu.memory_space<vmem>>, vector<1x1x32x8xbf16>
    %14 = vector.shape_cast %13 : vector<1x1x32x8xbf16> to vector<32x8xbf16>
    %15 = vector.shape_cast %11 : vector<32x8xbf16> to vector<1x1x32x8xbf16>
    tpu.vector_store %arg5[%c0_12, %c0_13, %c0_14, %c0_15], %15 {strides = array<i32>} : memref<1x1x32x8xbf16, #tpu.memory_space<vmem>>, vector<1x1x32x8xbf16>,
    %c0_16 = arith.constant 0 : index
    %c0_17 = arith.constant 0 : index
    %c0_18 = arith.constant 0 : index
    %c0_19 = arith.constant 0 : index
    %16 = vector.load %arg6[%c0_16, %c0_17, %c0_18, %c0_19] : memref<1x1x32x8xbf16, #tpu.memory_space<vmem>>, vector<1x1x32x8xbf16>
    %17 = vector.shape_cast %16 : vector<1x1x32x8xbf16> to vector<32x8xbf16>
    %18 = vector.shape_cast %12 : vector<32x8xbf16> to vector<1x1x32x8xbf16>
    tpu.vector_store %arg6[%c0_16, %c0_17, %c0_18, %c0_19], %18 {strides = array<i32>} : memref<1x1x32x8xbf16, #tpu.memory_space<vmem>>, vector<1x1x32x8xbf16>,
    %cst_20 = arith.constant dense<0.000000e+00> : vector<32x32xf32>
    %19 = tpu.matmul %11, %12, %cst_20 {dimension_numbers = #tpu.dot_dimension_numbers<[1], [1], [0], [0], [0, 0, 1, 0], [], []>} : vector<32x8xbf16>, vector<32x8xbf16>, vector<32x32xf32> -> vector<32x32xf32>
    %cst_21 = arith.constant 0.353553385 : f32
    %20 = vector.broadcast %cst_21 : f32 to vector<32x32xf32>
    %21 = arith.mulf %19, %20 : vector<32x32xf32>
    %cst_22 = arith.constant dense<0xFF800000> : vector<32xf32>
    %22 = vector.multi_reduction <maximumf>, %21, %cst_22 [1] : vector<32x32xf32> to vector<32xf32>
    %23 = vector.shape_cast %22 : vector<32xf32> to vector<32x1xf32>
    %24 = vector.broadcast %23 : vector<32x1xf32> to vector<32x32xf32>
    %25 = arith.subf %21, %24 : vector<32x32xf32>
    %26 = math.exp %25 : vector<32x32xf32>
    %cst_23 = arith.constant dense<0.000000e+00> : vector<32xf32>
    %27 = vector.multi_reduction <add>, %26, %cst_23 [1] : vector<32x32xf32> to vector<32xf32>
    %28 = vector.shape_cast %27 : vector<32xf32> to vector<32x1xf32>
    %29 = vector.broadcast %28 : vector<32x1xf32> to vector<32x32xf32>
    %30 = arith.divf %26, %29 : vector<32x32xf32>
    %c0_24 = arith.constant 0 : index
    %c0_25 = arith.constant 0 : index
    %c0_26 = arith.constant 0 : index
    %c0_27 = arith.constant 0 : index
    %31 = vector.load %arg7[%c0_24, %c0_25, %c0_26, %c0_27] : memref<1x1x32x32xf32, #tpu.memory_space<vmem>>, vector<1x1x32x32xf32>
    %32 = vector.shape_cast %31 : vector<1x1x32x32xf32> to vector<32x32xf32>
    %33 = vector.shape_cast %30 : vector<32x32xf32> to vector<1x1x32x32xf32>
    tpu.vector_store %arg7[%c0_24, %c0_25, %c0_26, %c0_27], %33 {strides = array<i32>} : memref<1x1x32x32xf32, #tpu.memory_space<vmem>>, vector<1x1x32x32xf32>,
    return
  }
  func.func @transform_0(%arg0: i32, %arg1: i32) -> (i32, i32, i32, i32) {
    %c0_i32 = arith.constant 0 : i32
    %c0_i32_0 = arith.constant 0 : i32
    %c0_i32_1 = arith.constant 0 : i32
    return %arg0, %arg1, %c0_i32, %c0_i32_0 : i32, i32, i32, i32
  }
  func.func @transform_1(%arg0: i32, %arg1: i32) -> (i32, i32, i32, i32) {
    %c0_i32 = arith.constant 0 : i32
    %c0_i32_0 = arith.constant 0 : i32
    %c0_i32_1 = arith.constant 0 : i32
    return %arg0, %arg1, %c0_i32, %c0_i32_0 : i32, i32, i32, i32
  }
  func.func @transform_2(%arg0: i32, %arg1: i32) -> (i32, i32) {
    %c0_i32 = arith.constant 0 : i32
    %c0_i32_0 = arith.constant 0 : i32
    %c0_i32_1 = arith.constant 0 : i32
    return %c0_i32, %c0_i32_0 : i32, i32
  }
  func.func @transform_3(%arg0: i32, %arg1: i32) -> (i32, i32, i32, i32) {
    %c0_i32 = arith.constant 0 : i32
    %c0_i32_0 = arith.constant 0 : i32
    %c0_i32_1 = arith.constant 0 : i32
    return %arg0, %arg1, %c0_i32, %c0_i32_0 : i32, i32, i32, i32
  }
  func.func @transform_4(%arg0: i32, %arg1: i32) -> (i32, i32, i32, i32) {
    %c0_i32 = arith.constant 0 : i32
    %c0_i32_0 = arith.constant 0 : i32
    %c0_i32_1 = arith.constant 0 : i32
    return %arg0, %arg1, %c0_i32, %c0_i32_0 : i32, i32, i32, i32
  }
  func.func @transform_5(%arg0: i32, %arg1: i32) -> (i32, i32, i32, i32) {
    %c0_i32 = arith.constant 0 : i32
    %c0_i32_0 = arith.constant 0 : i32
    %c0_i32_1 = arith.constant 0 : i32
    return %arg0, %arg1, %c0_i32, %c0_i32_0 : i32, i32, i32, i32
  }
}

module attributes {stable_mosaic.version = 11 : i64} {
  func.func @kernel(%arg0: i32, %arg1: i32, %arg2: memref<1x1x32x32xf32, #tpu.memory_space<vmem>>, %arg3: memref<1x1x32x32xf32, #tpu.memory_space<vmem>>, %arg4: memref<1x1xf32, #tpu.memory_space<vmem>>, %arg5: memref<1x1x32x32xbf16, #tpu.memory_space<vmem>>) attributes {dimension_semantics = [#tpu.dimension_semantics<parallel>, #tpu.dimension_semantics<parallel>], iteration_bounds = array<i64: 2, 8>, scalar_prefetch = 0 : i64, scratch_operands = 0 : i64, tpu.core_type = #tpu.core_type<tc>, window_params = [{transform_indices = @transform_0, window_bounds = array<i64: 1, 1, 32, 32>}, {transform_indices = @transform_1, window_bounds = array<i64: 1, 1, 32, 32>}, {pipeline_mode = #tpu.pipeline_mode<synchronous>, transform_indices = @transform_2, window_bounds = array<i64: 1, 1>}, {transform_indices = @transform_3, window_bounds = array<i64: 1, 1, 32, 32>}]} {
    %c0 = arith.constant 0 : index
    %c0_0 = arith.constant 0 : index
    %c0_1 = arith.constant 0 : index
    %c0_2 = arith.constant 0 : index
    %0 = vector.load %arg2[%c0, %c0_0, %c0_1, %c0_2] : memref<1x1x32x32xf32, #tpu.memory_space<vmem>>, vector<1x1x32x32xf32>
    %1 = vector.shape_cast %0 : vector<1x1x32x32xf32> to vector<32x32xf32>
    %c0_3 = arith.constant 0 : index
    %c0_4 = arith.constant 0 : index
    %c0_5 = arith.constant 0 : index
    %c0_6 = arith.constant 0 : index
    %2 = vector.load %arg3[%c0_3, %c0_4, %c0_5, %c0_6] : memref<1x1x32x32xf32, #tpu.memory_space<vmem>>, vector<1x1x32x32xf32>
    %3 = vector.shape_cast %2 : vector<1x1x32x32xf32> to vector<32x32xf32>
    %c0_7 = arith.constant 0 : index
    %c0_8 = arith.constant 0 : index
    %4 = vector.load %arg4[%c0_7, %c0_8] : memref<1x1xf32, #tpu.memory_space<vmem>>, vector<1x1xf32>
    %cst = arith.constant 1.000000e+00 : f32
    %5 = vector.broadcast %cst : f32 to vector<1x1xf32>
    %6 = arith.divf %5, %4 : vector<1x1xf32>
    %7 = vector.broadcast %6 : vector<1x1xf32> to vector<32x32xf32>
    %8 = arith.mulf %3, %7 : vector<32x32xf32>
    %9 = tpu.iota {dimensions = array<i32: 0>} : vector<32x32xi32>
    %10 = tpu.iota {dimensions = array<i32: 1>} : vector<32x32xi32>
    %11 = arith.cmpi eq, %9, %10 : vector<32x32xi32>
    %cst_9 = arith.constant 1.000000e+00 : f32
    %cst_10 = arith.constant 0.000000e+00 : f32
    %12 = vector.broadcast %cst_9 : f32 to vector<32x32xf32>
    %13 = vector.broadcast %cst_10 : f32 to vector<32x32xf32>
    %14 = arith.select %11, %12, %13 : vector<32x32xi1>, vector<32x32xf32>
    %15 = arith.truncf %1 : vector<32x32xf32> to vector<32x32xbf16>
    %16 = arith.truncf %8 : vector<32x32xf32> to vector<32x32xbf16>
    %cst_11 = arith.constant dense<0.000000e+00> : vector<32x32xf32>
    %17 = tpu.matmul %15, %16, %cst_11 {dimension_numbers = #tpu.dot_dimension_numbers<[1], [0], [0], [1], [0, 0, 1, 1], [], []>} : vector<32x32xbf16>, vector<32x32xbf16>, vector<32x32xf32> -> vector<32x32xf32>
    %18 = arith.truncf %17 : vector<32x32xf32> to vector<32x32xbf16>
    %cst_12 = arith.constant 7.000000e+00 : f32
    %19 = vector.broadcast %cst_12 : f32 to vector<32x32xf32>
    %20 = arith.mulf %19, %14 : vector<32x32xf32>
    %21 = arith.subf %20, %17 : vector<32x32xf32>
    %cst_13 = arith.constant 1.500000e+01 : f32
    %22 = vector.broadcast %cst_13 : f32 to vector<32x32xf32>
    %23 = arith.mulf %22, %14 : vector<32x32xf32>
    %24 = arith.truncf %21 : vector<32x32xf32> to vector<32x32xbf16>
    %cst_14 = arith.constant dense<0.000000e+00> : vector<32x32xf32>
    %25 = tpu.matmul %18, %24, %cst_14 {dimension_numbers = #tpu.dot_dimension_numbers<[1], [0], [0], [1], [0, 0, 1, 1], [], []>} : vector<32x32xbf16>, vector<32x32xbf16>, vector<32x32xf32> -> vector<32x32xf32>
    %26 = arith.subf %23, %25 : vector<32x32xf32>
    %cst_15 = arith.constant 1.300000e+01 : f32
    %27 = vector.broadcast %cst_15 : f32 to vector<32x32xf32>
    %28 = arith.mulf %27, %14 : vector<32x32xf32>
    %29 = arith.truncf %26 : vector<32x32xf32> to vector<32x32xbf16>
    %cst_16 = arith.constant dense<0.000000e+00> : vector<32x32xf32>
    %30 = tpu.matmul %18, %29, %cst_16 {dimension_numbers = #tpu.dot_dimension_numbers<[1], [0], [0], [1], [0, 0, 1, 1], [], []>} : vector<32x32xbf16>, vector<32x32xbf16>, vector<32x32xf32> -> vector<32x32xf32>
    %31 = arith.subf %28, %30 : vector<32x32xf32>
    %32 = arith.truncf %31 : vector<32x32xf32> to vector<32x32xbf16>
    %cst_17 = arith.constant dense<0.000000e+00> : vector<32x32xf32>
    %33 = tpu.matmul %16, %32, %cst_17 {dimension_numbers = #tpu.dot_dimension_numbers<[1], [0], [0], [1], [0, 0, 1, 1], [], []>} : vector<32x32xbf16>, vector<32x32xbf16>, vector<32x32xf32> -> vector<32x32xf32>
    %cst_18 = arith.constant 2.500000e-01 : f32
    %34 = vector.broadcast %cst_18 : f32 to vector<32x32xf32>
    %35 = arith.mulf %34, %33 : vector<32x32xf32>
    %36 = arith.truncf %35 : vector<32x32xf32> to vector<32x32xbf16>
    %cst_19 = arith.constant dense<0.000000e+00> : vector<32x32xf32>
    %37 = tpu.matmul %15, %36, %cst_19 {dimension_numbers = #tpu.dot_dimension_numbers<[1], [0], [0], [1], [0, 0, 1, 1], [], []>} : vector<32x32xbf16>, vector<32x32xbf16>, vector<32x32xf32> -> vector<32x32xf32>
    %38 = arith.truncf %37 : vector<32x32xf32> to vector<32x32xbf16>
    %cst_20 = arith.constant 7.000000e+00 : f32
    %39 = vector.broadcast %cst_20 : f32 to vector<32x32xf32>
    %40 = arith.mulf %39, %14 : vector<32x32xf32>
    %41 = arith.subf %40, %37 : vector<32x32xf32>
    %cst_21 = arith.constant 1.500000e+01 : f32
    %42 = vector.broadcast %cst_21 : f32 to vector<32x32xf32>
    %43 = arith.mulf %42, %14 : vector<32x32xf32>
    %44 = arith.truncf %41 : vector<32x32xf32> to vector<32x32xbf16>
    %cst_22 = arith.constant dense<0.000000e+00> : vector<32x32xf32>
    %45 = tpu.matmul %38, %44, %cst_22 {dimension_numbers = #tpu.dot_dimension_numbers<[1], [0], [0], [1], [0, 0, 1, 1], [], []>} : vector<32x32xbf16>, vector<32x32xbf16>, vector<32x32xf32> -> vector<32x32xf32>
    %46 = arith.subf %43, %45 : vector<32x32xf32>
    %cst_23 = arith.constant 1.300000e+01 : f32
    %47 = vector.broadcast %cst_23 : f32 to vector<32x32xf32>
    %48 = arith.mulf %47, %14 : vector<32x32xf32>
    %49 = arith.truncf %46 : vector<32x32xf32> to vector<32x32xbf16>
    %cst_24 = arith.constant dense<0.000000e+00> : vector<32x32xf32>
    %50 = tpu.matmul %38, %49, %cst_24 {dimension_numbers = #tpu.dot_dimension_numbers<[1], [0], [0], [1], [0, 0, 1, 1], [], []>} : vector<32x32xbf16>, vector<32x32xbf16>, vector<32x32xf32> -> vector<32x32xf32>
    %51 = arith.subf %48, %50 : vector<32x32xf32>
    %52 = arith.truncf %51 : vector<32x32xf32> to vector<32x32xbf16>
    %cst_25 = arith.constant dense<0.000000e+00> : vector<32x32xf32>
    %53 = tpu.matmul %36, %52, %cst_25 {dimension_numbers = #tpu.dot_dimension_numbers<[1], [0], [0], [1], [0, 0, 1, 1], [], []>} : vector<32x32xbf16>, vector<32x32xbf16>, vector<32x32xf32> -> vector<32x32xf32>
    %cst_26 = arith.constant 2.500000e-01 : f32
    %54 = vector.broadcast %cst_26 : f32 to vector<32x32xf32>
    %55 = arith.mulf %54, %53 : vector<32x32xf32>
    %56 = arith.truncf %55 : vector<32x32xf32> to vector<32x32xbf16>
    %cst_27 = arith.constant dense<0.000000e+00> : vector<32x32xf32>
    %57 = tpu.matmul %15, %56, %cst_27 {dimension_numbers = #tpu.dot_dimension_numbers<[1], [0], [0], [1], [0, 0, 1, 1], [], []>} : vector<32x32xbf16>, vector<32x32xbf16>, vector<32x32xf32> -> vector<32x32xf32>
    %58 = arith.truncf %57 : vector<32x32xf32> to vector<32x32xbf16>
    %cst_28 = arith.constant 7.000000e+00 : f32
    %59 = vector.broadcast %cst_28 : f32 to vector<32x32xf32>
    %60 = arith.mulf %59, %14 : vector<32x32xf32>
    %61 = arith.subf %60, %57 : vector<32x32xf32>
    %cst_29 = arith.constant 1.500000e+01 : f32
    %62 = vector.broadcast %cst_29 : f32 to vector<32x32xf32>
    %63 = arith.mulf %62, %14 : vector<32x32xf32>
    %64 = arith.truncf %61 : vector<32x32xf32> to vector<32x32xbf16>
    %cst_30 = arith.constant dense<0.000000e+00> : vector<32x32xf32>
    %65 = tpu.matmul %58, %64, %cst_30 {dimension_numbers = #tpu.dot_dimension_numbers<[1], [0], [0], [1], [0, 0, 1, 1], [], []>} : vector<32x32xbf16>, vector<32x32xbf16>, vector<32x32xf32> -> vector<32x32xf32>
    %66 = arith.subf %63, %65 : vector<32x32xf32>
    %cst_31 = arith.constant 1.300000e+01 : f32
    %67 = vector.broadcast %cst_31 : f32 to vector<32x32xf32>
    %68 = arith.mulf %67, %14 : vector<32x32xf32>
    %69 = arith.truncf %66 : vector<32x32xf32> to vector<32x32xbf16>
    %cst_32 = arith.constant dense<0.000000e+00> : vector<32x32xf32>
    %70 = tpu.matmul %58, %69, %cst_32 {dimension_numbers = #tpu.dot_dimension_numbers<[1], [0], [0], [1], [0, 0, 1, 1], [], []>} : vector<32x32xbf16>, vector<32x32xbf16>, vector<32x32xf32> -> vector<32x32xf32>
    %71 = arith.subf %68, %70 : vector<32x32xf32>
    %72 = arith.truncf %71 : vector<32x32xf32> to vector<32x32xbf16>
    %cst_33 = arith.constant dense<0.000000e+00> : vector<32x32xf32>
    %73 = tpu.matmul %56, %72, %cst_33 {dimension_numbers = #tpu.dot_dimension_numbers<[1], [0], [0], [1], [0, 0, 1, 1], [], []>} : vector<32x32xbf16>, vector<32x32xbf16>, vector<32x32xf32> -> vector<32x32xf32>
    %cst_34 = arith.constant 2.500000e-01 : f32
    %74 = vector.broadcast %cst_34 : f32 to vector<32x32xf32>
    %75 = arith.mulf %74, %73 : vector<32x32xf32>
    %76 = arith.truncf %75 : vector<32x32xf32> to vector<32x32xbf16>
    %cst_35 = arith.constant dense<0.000000e+00> : vector<32x32xf32>
    %77 = tpu.matmul %15, %76, %cst_35 {dimension_numbers = #tpu.dot_dimension_numbers<[1], [0], [0], [1], [0, 0, 1, 1], [], []>} : vector<32x32xbf16>, vector<32x32xbf16>, vector<32x32xf32> -> vector<32x32xf32>
    %78 = arith.truncf %77 : vector<32x32xf32> to vector<32x32xbf16>
    %cst_36 = arith.constant 7.000000e+00 : f32
    %79 = vector.broadcast %cst_36 : f32 to vector<32x32xf32>
    %80 = arith.mulf %79, %14 : vector<32x32xf32>
    %81 = arith.subf %80, %77 : vector<32x32xf32>
    %cst_37 = arith.constant 1.500000e+01 : f32
    %82 = vector.broadcast %cst_37 : f32 to vector<32x32xf32>
    %83 = arith.mulf %82, %14 : vector<32x32xf32>
    %84 = arith.truncf %81 : vector<32x32xf32> to vector<32x32xbf16>
    %cst_38 = arith.constant dense<0.000000e+00> : vector<32x32xf32>
    %85 = tpu.matmul %78, %84, %cst_38 {dimension_numbers = #tpu.dot_dimension_numbers<[1], [0], [0], [1], [0, 0, 1, 1], [], []>} : vector<32x32xbf16>, vector<32x32xbf16>, vector<32x32xf32> -> vector<32x32xf32>
    %86 = arith.subf %83, %85 : vector<32x32xf32>
    %cst_39 = arith.constant 1.300000e+01 : f32
    %87 = vector.broadcast %cst_39 : f32 to vector<32x32xf32>
    %88 = arith.mulf %87, %14 : vector<32x32xf32>
    %89 = arith.truncf %86 : vector<32x32xf32> to vector<32x32xbf16>
    %cst_40 = arith.constant dense<0.000000e+00> : vector<32x32xf32>
    %90 = tpu.matmul %78, %89, %cst_40 {dimension_numbers = #tpu.dot_dimension_numbers<[1], [0], [0], [1], [0, 0, 1, 1], [], []>} : vector<32x32xbf16>, vector<32x32xbf16>, vector<32x32xf32> -> vector<32x32xf32>
    %91 = arith.subf %88, %90 : vector<32x32xf32>
    %92 = arith.truncf %91 : vector<32x32xf32> to vector<32x32xbf16>
    %cst_41 = arith.constant dense<0.000000e+00> : vector<32x32xf32>
    %93 = tpu.matmul %76, %92, %cst_41 {dimension_numbers = #tpu.dot_dimension_numbers<[1], [0], [0], [1], [0, 0, 1, 1], [], []>} : vector<32x32xbf16>, vector<32x32xbf16>, vector<32x32xf32> -> vector<32x32xf32>
    %cst_42 = arith.constant 2.500000e-01 : f32
    %94 = vector.broadcast %cst_42 : f32 to vector<32x32xf32>
    %95 = arith.mulf %94, %93 : vector<32x32xf32>
    %96 = arith.truncf %95 : vector<32x32xf32> to vector<32x32xbf16>
    %cst_43 = arith.constant dense<0.000000e+00> : vector<32x32xf32>
    %97 = tpu.matmul %15, %96, %cst_43 {dimension_numbers = #tpu.dot_dimension_numbers<[1], [0], [0], [1], [0, 0, 1, 1], [], []>} : vector<32x32xbf16>, vector<32x32xbf16>, vector<32x32xf32> -> vector<32x32xf32>
    %98 = arith.truncf %97 : vector<32x32xf32> to vector<32x32xbf16>
    %cst_44 = arith.constant 7.000000e+00 : f32
    %99 = vector.broadcast %cst_44 : f32 to vector<32x32xf32>
    %100 = arith.mulf %99, %14 : vector<32x32xf32>
    %101 = arith.subf %100, %97 : vector<32x32xf32>
    %cst_45 = arith.constant 1.500000e+01 : f32
    %102 = vector.broadcast %cst_45 : f32 to vector<32x32xf32>
    %103 = arith.mulf %102, %14 : vector<32x32xf32>
    %104 = arith.truncf %101 : vector<32x32xf32> to vector<32x32xbf16>
    %cst_46 = arith.constant dense<0.000000e+00> : vector<32x32xf32>
    %105 = tpu.matmul %98, %104, %cst_46 {dimension_numbers = #tpu.dot_dimension_numbers<[1], [0], [0], [1], [0, 0, 1, 1], [], []>} : vector<32x32xbf16>, vector<32x32xbf16>, vector<32x32xf32> -> vector<32x32xf32>
    %106 = arith.subf %103, %105 : vector<32x32xf32>
    %cst_47 = arith.constant 1.300000e+01 : f32
    %107 = vector.broadcast %cst_47 : f32 to vector<32x32xf32>
    %108 = arith.mulf %107, %14 : vector<32x32xf32>
    %109 = arith.truncf %106 : vector<32x32xf32> to vector<32x32xbf16>
    %cst_48 = arith.constant dense<0.000000e+00> : vector<32x32xf32>
    %110 = tpu.matmul %98, %109, %cst_48 {dimension_numbers = #tpu.dot_dimension_numbers<[1], [0], [0], [1], [0, 0, 1, 1], [], []>} : vector<32x32xbf16>, vector<32x32xbf16>, vector<32x32xf32> -> vector<32x32xf32>
    %111 = arith.subf %108, %110 : vector<32x32xf32>
    %112 = arith.truncf %111 : vector<32x32xf32> to vector<32x32xbf16>
    %cst_49 = arith.constant dense<0.000000e+00> : vector<32x32xf32>
    %113 = tpu.matmul %96, %112, %cst_49 {dimension_numbers = #tpu.dot_dimension_numbers<[1], [0], [0], [1], [0, 0, 1, 1], [], []>} : vector<32x32xbf16>, vector<32x32xbf16>, vector<32x32xf32> -> vector<32x32xf32>
    %cst_50 = arith.constant 2.500000e-01 : f32
    %114 = vector.broadcast %cst_50 : f32 to vector<32x32xf32>
    %115 = arith.mulf %114, %113 : vector<32x32xf32>
    %116 = arith.truncf %115 : vector<32x32xf32> to vector<32x32xbf16>
    %cst_51 = arith.constant dense<0.000000e+00> : vector<32x32xf32>
    %117 = tpu.matmul %15, %116, %cst_51 {dimension_numbers = #tpu.dot_dimension_numbers<[1], [0], [0], [1], [0, 0, 1, 1], [], []>} : vector<32x32xbf16>, vector<32x32xbf16>, vector<32x32xf32> -> vector<32x32xf32>
    %118 = arith.truncf %117 : vector<32x32xf32> to vector<32x32xbf16>
    %cst_52 = arith.constant 7.000000e+00 : f32
    %119 = vector.broadcast %cst_52 : f32 to vector<32x32xf32>
    %120 = arith.mulf %119, %14 : vector<32x32xf32>
    %121 = arith.subf %120, %117 : vector<32x32xf32>
    %cst_53 = arith.constant 1.500000e+01 : f32
    %122 = vector.broadcast %cst_53 : f32 to vector<32x32xf32>
    %123 = arith.mulf %122, %14 : vector<32x32xf32>
    %124 = arith.truncf %121 : vector<32x32xf32> to vector<32x32xbf16>
    %cst_54 = arith.constant dense<0.000000e+00> : vector<32x32xf32>
    %125 = tpu.matmul %118, %124, %cst_54 {dimension_numbers = #tpu.dot_dimension_numbers<[1], [0], [0], [1], [0, 0, 1, 1], [], []>} : vector<32x32xbf16>, vector<32x32xbf16>, vector<32x32xf32> -> vector<32x32xf32>
    %126 = arith.subf %123, %125 : vector<32x32xf32>
    %cst_55 = arith.constant 1.300000e+01 : f32
    %127 = vector.broadcast %cst_55 : f32 to vector<32x32xf32>
    %128 = arith.mulf %127, %14 : vector<32x32xf32>
    %129 = arith.truncf %126 : vector<32x32xf32> to vector<32x32xbf16>
    %cst_56 = arith.constant dense<0.000000e+00> : vector<32x32xf32>
    %130 = tpu.matmul %118, %129, %cst_56 {dimension_numbers = #tpu.dot_dimension_numbers<[1], [0], [0], [1], [0, 0, 1, 1], [], []>} : vector<32x32xbf16>, vector<32x32xbf16>, vector<32x32xf32> -> vector<32x32xf32>
    %131 = arith.subf %128, %130 : vector<32x32xf32>
    %132 = arith.truncf %131 : vector<32x32xf32> to vector<32x32xbf16>
    %cst_57 = arith.constant dense<0.000000e+00> : vector<32x32xf32>
    %133 = tpu.matmul %116, %132, %cst_57 {dimension_numbers = #tpu.dot_dimension_numbers<[1], [0], [0], [1], [0, 0, 1, 1], [], []>} : vector<32x32xbf16>, vector<32x32xbf16>, vector<32x32xf32> -> vector<32x32xf32>
    %cst_58 = arith.constant 2.500000e-01 : f32
    %134 = vector.broadcast %cst_58 : f32 to vector<32x32xf32>
    %135 = arith.mulf %134, %133 : vector<32x32xf32>
    %136 = arith.truncf %135 : vector<32x32xf32> to vector<32x32xbf16>
    %c0_59 = arith.constant 0 : index
    %c0_60 = arith.constant 0 : index
    %c0_61 = arith.constant 0 : index
    %c0_62 = arith.constant 0 : index
    %137 = vector.load %arg5[%c0_59, %c0_60, %c0_61, %c0_62] : memref<1x1x32x32xbf16, #tpu.memory_space<vmem>>, vector<1x1x32x32xbf16>
    %138 = vector.shape_cast %137 : vector<1x1x32x32xbf16> to vector<32x32xbf16>
    %139 = vector.shape_cast %136 : vector<32x32xbf16> to vector<1x1x32x32xbf16>
    tpu.vector_store %arg5[%c0_59, %c0_60, %c0_61, %c0_62], %139 {strides = array<i32>} : memref<1x1x32x32xbf16, #tpu.memory_space<vmem>>, vector<1x1x32x32xbf16>,
    return
  }
  func.func @transform_0(%arg0: i32, %arg1: i32) -> (i32, i32, i32, i32) {
    %c0_i32 = arith.constant 0 : i32
    %c0_i32_0 = arith.constant 0 : i32
    %c0_i32_1 = arith.constant 0 : i32
    return %arg0, %arg1, %c0_i32, %c0_i32_0 : i32, i32, i32, i32
  }
  func.func @transform_1(%arg0: i32, %arg1: i32) -> (i32, i32, i32, i32) {
    %c0_i32 = arith.constant 0 : i32
    %c0_i32_0 = arith.constant 0 : i32
    %c0_i32_1 = arith.constant 0 : i32
    return %arg0, %arg1, %c0_i32, %c0_i32_0 : i32, i32, i32, i32
  }
  func.func @transform_2(%arg0: i32, %arg1: i32) -> (i32, i32) {
    %c0_i32 = arith.constant 0 : i32
    %c0_i32_0 = arith.constant 0 : i32
    %c0_i32_1 = arith.constant 0 : i32
    return %c0_i32, %c0_i32_0 : i32, i32
  }
  func.func @transform_3(%arg0: i32, %arg1: i32) -> (i32, i32, i32, i32) {
    %c0_i32 = arith.constant 0 : i32
    %c0_i32_0 = arith.constant 0 : i32
    %c0_i32_1 = arith.constant 0 : i32
    return %arg0, %arg1, %c0_i32, %c0_i32_0 : i32, i32, i32, i32
  }
}

module attributes {stable_mosaic.version = 11 : i64} {
  func.func @kernel(%arg0: i32, %arg1: i32, %arg2: memref<1x1x32x8xbf16, #tpu.memory_space<vmem>>, %arg3: memref<1x1x32x8xbf16, #tpu.memory_space<vmem>>, %arg4: memref<1x1x64x8xbf16, #tpu.memory_space<vmem>>, %arg5: memref<1x1x32x8xbf16, #tpu.memory_space<vmem>>, %arg6: memref<1x1x32x8xbf16, #tpu.memory_space<vmem>>, %arg7: memref<1x1x32x32xbf16, #tpu.memory_space<vmem>>, %arg8: memref<1x32x64xbf16, #tpu.memory_space<vmem>>, %arg9: memref<1x8x64xbf16, #tpu.memory_space<vmem>>, %arg10: memref<1x64xf32, #tpu.memory_space<vmem>>, %arg11: memref<1x10x64xf32, #tpu.memory_space<vmem>>, %arg12: memref<32x64xf32, #tpu.memory_space<vmem>>) attributes {dimension_semantics = [#tpu.dimension_semantics<parallel>, #tpu.dimension_semantics<arbitrary>], iteration_bounds = array<i64: 2, 8>, scalar_prefetch = 0 : i64, scratch_operands = 1 : i64, tpu.core_type = #tpu.core_type<tc>, window_params = [{transform_indices = @transform_0, window_bounds = array<i64: 1, 1, 32, 8>}, {transform_indices = @transform_1, window_bounds = array<i64: 1, 1, 32, 8>}, {transform_indices = @transform_2, window_bounds = array<i64: 1, 1, 64, 8>}, {transform_indices = @transform_3, window_bounds = array<i64: 1, 1, 32, 8>}, {transform_indices = @transform_4, window_bounds = array<i64: 1, 1, 32, 8>}, {transform_indices = @transform_5, window_bounds = array<i64: 1, 1, 32, 32>}, {transform_indices = @transform_6, window_bounds = array<i64: 1, 32, 64>}, {transform_indices = @transform_7, window_bounds = array<i64: 1, 8, 64>}, {pipeline_mode = #tpu.pipeline_mode<synchronous>, transform_indices = @transform_8, window_bounds = array<i64: 1, 64>}, {transform_indices = @transform_9, window_bounds = array<i64: 1, 10, 64>}]} {
    %c0_i32 = arith.constant 0 : i32
    %0 = arith.cmpi eq, %arg1, %c0_i32 : i32
    %1 = arith.extui %0 : i1 to i32
    %c0_i32_0 = arith.constant 0 : i32
    %2 = arith.cmpi ne, %1, %c0_i32_0 : i32
    scf.if %2 {
      %cst_50 = arith.constant 0.000000e+00 : f32
      %62 = vector.broadcast %cst_50 : f32 to vector<32x64xf32>
      %c0_51 = arith.constant 0 : index
      %c0_52 = arith.constant 0 : index
      %63 = vector.load %arg12[%c0_51, %c0_52] : memref<32x64xf32, #tpu.memory_space<vmem>>, vector<32x64xf32>
      tpu.vector_store %arg12[%c0_51, %c0_52], %62 {strides = array<i32>} : memref<32x64xf32, #tpu.memory_space<vmem>>, vector<32x64xf32>,
    } else {
    }
    %c0 = arith.constant 0 : index
    %c0_1 = arith.constant 0 : index
    %c0_2 = arith.constant 0 : index
    %c0_3 = arith.constant 0 : index
    %3 = vector.load %arg2[%c0, %c0_1, %c0_2, %c0_3] : memref<1x1x32x8xbf16, #tpu.memory_space<vmem>>, vector<1x1x32x8xbf16>
    %4 = vector.shape_cast %3 : vector<1x1x32x8xbf16> to vector<32x8xbf16>
    %c0_4 = arith.constant 0 : index
    %c0_5 = arith.constant 0 : index
    %c0_6 = arith.constant 0 : index
    %c0_7 = arith.constant 0 : index
    %5 = vector.load %arg3[%c0_4, %c0_5, %c0_6, %c0_7] : memref<1x1x32x8xbf16, #tpu.memory_space<vmem>>, vector<1x1x32x8xbf16>
    %6 = vector.shape_cast %5 : vector<1x1x32x8xbf16> to vector<32x8xbf16>
    %c0_8 = arith.constant 0 : index
    %c0_9 = arith.constant 0 : index
    %c0_10 = arith.constant 0 : index
    %c0_11 = arith.constant 0 : index
    %7 = vector.load %arg5[%c0_8, %c0_9, %c0_10, %c0_11] : memref<1x1x32x8xbf16, #tpu.memory_space<vmem>>, vector<1x1x32x8xbf16>
    %8 = vector.shape_cast %7 : vector<1x1x32x8xbf16> to vector<32x8xbf16>
    %c0_12 = arith.constant 0 : index
    %c0_13 = arith.constant 0 : index
    %c0_14 = arith.constant 0 : index
    %c0_15 = arith.constant 0 : index
    %9 = vector.load %arg6[%c0_12, %c0_13, %c0_14, %c0_15] : memref<1x1x32x8xbf16, #tpu.memory_space<vmem>>, vector<1x1x32x8xbf16>
    %10 = vector.shape_cast %9 : vector<1x1x32x8xbf16> to vector<32x8xbf16>
    %c0_16 = arith.constant 0 : index
    %c0_17 = arith.constant 0 : index
    %c16 = arith.constant 16 : index
    %c0_18 = arith.constant 0 : index
    %11 = vector.load %arg4[%c0_16, %c0_17, %c16, %c0_18] : memref<1x1x64x8xbf16, #tpu.memory_space<vmem>>, vector<1x1x32x8xbf16>
    %12 = vector.shape_cast %11 : vector<1x1x32x8xbf16> to vector<32x8xbf16>
    %cst = arith.constant dense<0.000000e+00> : vector<32x32xf32>
    %13 = tpu.matmul %4, %10, %cst {dimension_numbers = #tpu.dot_dimension_numbers<[1], [1], [0], [0], [0, 0, 1, 0], [], []>} : vector<32x8xbf16>, vector<32x8xbf16>, vector<32x32xf32> -> vector<32x32xf32>
    %cst_19 = arith.constant 0.353553385 : f32
    %14 = vector.broadcast %cst_19 : f32 to vector<32x32xf32>
    %15 = arith.mulf %13, %14 : vector<32x32xf32>
    %cst_20 = arith.constant dense<0xFF800000> : vector<32xf32>
    %16 = vector.multi_reduction <maximumf>, %15, %cst_20 [1] : vector<32x32xf32> to vector<32xf32>
    %17 = vector.shape_cast %16 : vector<32xf32> to vector<32x1xf32>
    %18 = vector.broadcast %17 : vector<32x1xf32> to vector<32x32xf32>
    %19 = arith.subf %15, %18 : vector<32x32xf32>
    %20 = math.exp %19 : vector<32x32xf32>
    %cst_21 = arith.constant dense<0.000000e+00> : vector<32xf32>
    %21 = vector.multi_reduction <add>, %20, %cst_21 [1] : vector<32x32xf32> to vector<32xf32>
    %22 = vector.shape_cast %21 : vector<32xf32> to vector<32x1xf32>
    %23 = vector.broadcast %22 : vector<32x1xf32> to vector<32x32xf32>
    %24 = arith.divf %20, %23 : vector<32x32xf32>
    %25 = arith.truncf %24 : vector<32x32xf32> to vector<32x32xbf16>
    %cst_22 = arith.constant dense<0.000000e+00> : vector<32x32xf32>
    %26 = tpu.matmul %8, %6, %cst_22 {dimension_numbers = #tpu.dot_dimension_numbers<[1], [1], [0], [0], [0, 0, 1, 0], [], []>} : vector<32x8xbf16>, vector<32x8xbf16>, vector<32x32xf32> -> vector<32x32xf32>
    %cst_23 = arith.constant 0.353553385 : f32
    %27 = vector.broadcast %cst_23 : f32 to vector<32x32xf32>
    %28 = arith.mulf %26, %27 : vector<32x32xf32>
    %cst_24 = arith.constant dense<0xFF800000> : vector<32xf32>
    %29 = vector.multi_reduction <maximumf>, %28, %cst_24 [1] : vector<32x32xf32> to vector<32xf32>
    %30 = vector.shape_cast %29 : vector<32xf32> to vector<32x1xf32>
    %31 = vector.broadcast %30 : vector<32x1xf32> to vector<32x32xf32>
    %32 = arith.subf %28, %31 : vector<32x32xf32>
    %33 = math.exp %32 : vector<32x32xf32>
    %cst_25 = arith.constant dense<0.000000e+00> : vector<32xf32>
    %34 = vector.multi_reduction <add>, %33, %cst_25 [1] : vector<32x32xf32> to vector<32xf32>
    %35 = vector.shape_cast %34 : vector<32xf32> to vector<32x1xf32>
    %36 = vector.broadcast %35 : vector<32x1xf32> to vector<32x32xf32>
    %37 = arith.divf %33, %36 : vector<32x32xf32>
    %38 = arith.truncf %37 : vector<32x32xf32> to vector<32x32xbf16>
    %cst_26 = arith.constant dense<0.000000e+00> : vector<32x8xf32>
    %39 = tpu.matmul %38, %12, %cst_26 {dimension_numbers = #tpu.dot_dimension_numbers<[1], [0], [0], [1], [0, 0, 1, 1], [], []>} : vector<32x32xbf16>, vector<32x8xbf16>, vector<32x8xf32> -> vector<32x8xf32>
    %c0_27 = arith.constant 0 : index
    %c0_28 = arith.constant 0 : index
    %c0_29 = arith.constant 0 : index
    %c0_30 = arith.constant 0 : index
    %40 = vector.load %arg7[%c0_27, %c0_28, %c0_29, %c0_30] : memref<1x1x32x32xbf16, #tpu.memory_space<vmem>>, vector<1x1x32x32xbf16>
    %41 = vector.shape_cast %40 : vector<1x1x32x32xbf16> to vector<32x32xbf16>
    %cst_31 = arith.constant dense<0.000000e+00> : vector<32x32xf32>
    %42 = tpu.matmul %25, %41, %cst_31 {dimension_numbers = #tpu.dot_dimension_numbers<[1], [0], [0], [1], [0, 0, 1, 1], [], []>} : vector<32x32xbf16>, vector<32x32xbf16>, vector<32x32xf32> -> vector<32x32xf32>
    %43 = arith.truncf %42 : vector<32x32xf32> to vector<32x32xbf16>
    %44 = arith.truncf %39 : vector<32x8xf32> to vector<32x8xbf16>
    %cst_32 = arith.constant dense<0.000000e+00> : vector<32x8xf32>
    %45 = tpu.matmul %43, %44, %cst_32 {dimension_numbers = #tpu.dot_dimension_numbers<[1], [0], [0], [1], [0, 0, 1, 1], [], []>} : vector<32x32xbf16>, vector<32x8xbf16>, vector<32x8xf32> -> vector<32x8xf32>
    %c0_33 = arith.constant 0 : index
    %c0_34 = arith.constant 0 : index
    %c0_35 = arith.constant 0 : index
    %46 = vector.load %arg8[%c0_33, %c0_34, %c0_35] : memref<1x32x64xbf16, #tpu.memory_space<vmem>>, vector<1x32x64xbf16>
    %47 = vector.shape_cast %46 : vector<1x32x64xbf16> to vector<32x64xbf16>
    %c0_36 = arith.constant 0 : index
    %c0_37 = arith.constant 0 : index
    %c0_38 = arith.constant 0 : index
    %c0_39 = arith.constant 0 : index
    %48 = vector.load %arg4[%c0_36, %c0_37, %c0_38, %c0_39] : memref<1x1x64x8xbf16, #tpu.memory_space<vmem>>, vector<1x1x64x8xbf16>
    %49 = vector.shape_cast %48 : vector<1x1x64x8xbf16> to vector<64x8xbf16>
    %cst_40 = arith.constant dense<0.000000e+00> : vector<32x8xf32>
    %50 = tpu.matmul %47, %49, %cst_40 {dimension_numbers = #tpu.dot_dimension_numbers<[1], [0], [0], [1], [0, 0, 1, 1], [], []>} : vector<32x64xbf16>, vector<64x8xbf16>, vector<32x8xf32> -> vector<32x8xf32>
    %51 = arith.addf %45, %50 : vector<32x8xf32>
    %c0_41 = arith.constant 0 : index
    %c0_42 = arith.constant 0 : index
    %52 = vector.load %arg12[%c0_41, %c0_42] : memref<32x64xf32, #tpu.memory_space<vmem>>, vector<32x64xf32>
    %53 = arith.truncf %51 : vector<32x8xf32> to vector<32x8xbf16>
    %c0_43 = arith.constant 0 : index
    %c0_44 = arith.constant 0 : index
    %c0_45 = arith.constant 0 : index
    %54 = vector.load %arg9[%c0_43, %c0_44, %c0_45] : memref<1x8x64xbf16, #tpu.memory_space<vmem>>, vector<1x8x64xbf16>
    %55 = vector.shape_cast %54 : vector<1x8x64xbf16> to vector<8x64xbf16>
    %cst_46 = arith.constant dense<0.000000e+00> : vector<32x64xf32>
    %56 = tpu.matmul %53, %55, %cst_46 {dimension_numbers = #tpu.dot_dimension_numbers<[1], [0], [0], [1], [0, 0, 1, 1], [], []>} : vector<32x8xbf16>, vector<8x64xbf16>, vector<32x64xf32> -> vector<32x64xf32>
    %57 = arith.addf %52, %56 : vector<32x64xf32>
    %c0_47 = arith.constant 0 : index
    %c0_48 = arith.constant 0 : index
    %58 = vector.load %arg12[%c0_47, %c0_48] : memref<32x64xf32, #tpu.memory_space<vmem>>, vector<32x64xf32>
    tpu.vector_store %arg12[%c0_47, %c0_48], %57 {strides = array<i32>} : memref<32x64xf32, #tpu.memory_space<vmem>>, vector<32x64xf32>,
    %c7_i32 = arith.constant 7 : i32
    %59 = arith.cmpi eq, %arg1, %c7_i32 : i32
    %60 = arith.extui %59 : i1 to i32
    %c0_i32_49 = arith.constant 0 : i32
    %61 = arith.cmpi ne, %60, %c0_i32_49 : i32
    scf.if %61 {
      %c22 = arith.constant 22 : index
      %c0_50 = arith.constant 0 : index
      %62 = vector.load %arg12[%c22, %c0_50] : memref<32x64xf32, #tpu.memory_space<vmem>>, vector<10x64xf32>
      %c0_51 = arith.constant 0 : index
      %c0_52 = arith.constant 0 : index
      %63 = vector.load %arg10[%c0_51, %c0_52] : memref<1x64xf32, #tpu.memory_space<vmem>>, vector<1x64xf32>
      %64 = vector.broadcast %63 : vector<1x64xf32> to vector<10x64xf32>
      %65 = arith.addf %62, %64 : vector<10x64xf32>
      %c0_53 = arith.constant 0 : index
      %c0_54 = arith.constant 0 : index
      %c0_55 = arith.constant 0 : index
      %66 = vector.load %arg11[%c0_53, %c0_54, %c0_55] : memref<1x10x64xf32, #tpu.memory_space<vmem>>, vector<1x10x64xf32>
      %67 = vector.shape_cast %66 : vector<1x10x64xf32> to vector<10x64xf32>
      %68 = vector.shape_cast %65 : vector<10x64xf32> to vector<1x10x64xf32>
      tpu.vector_store %arg11[%c0_53, %c0_54, %c0_55], %68 {strides = array<i32>} : memref<1x10x64xf32, #tpu.memory_space<vmem>>, vector<1x10x64xf32>,
    } else {
    }
    return
  }
  func.func @transform_0(%arg0: i32, %arg1: i32) -> (i32, i32, i32, i32) {
    %c0_i32 = arith.constant 0 : i32
    %c0_i32_0 = arith.constant 0 : i32
    %c0_i32_1 = arith.constant 0 : i32
    return %arg0, %arg1, %c0_i32, %c0_i32_0 : i32, i32, i32, i32
  }
  func.func @transform_1(%arg0: i32, %arg1: i32) -> (i32, i32, i32, i32) {
    %c0_i32 = arith.constant 0 : i32
    %c0_i32_0 = arith.constant 0 : i32
    %c0_i32_1 = arith.constant 0 : i32
    return %arg0, %arg1, %c0_i32, %c0_i32_0 : i32, i32, i32, i32
  }
  func.func @transform_2(%arg0: i32, %arg1: i32) -> (i32, i32, i32, i32) {
    %c0_i32 = arith.constant 0 : i32
    %c0_i32_0 = arith.constant 0 : i32
    %c0_i32_1 = arith.constant 0 : i32
    return %arg0, %arg1, %c0_i32, %c0_i32_0 : i32, i32, i32, i32
  }
  func.func @transform_3(%arg0: i32, %arg1: i32) -> (i32, i32, i32, i32) {
    %c0_i32 = arith.constant 0 : i32
    %c0_i32_0 = arith.constant 0 : i32
    %c0_i32_1 = arith.constant 0 : i32
    return %arg0, %arg1, %c0_i32, %c0_i32_0 : i32, i32, i32, i32
  }
  func.func @transform_4(%arg0: i32, %arg1: i32) -> (i32, i32, i32, i32) {
    %c0_i32 = arith.constant 0 : i32
    %c0_i32_0 = arith.constant 0 : i32
    %c0_i32_1 = arith.constant 0 : i32
    return %arg0, %arg1, %c0_i32, %c0_i32_0 : i32, i32, i32, i32
  }
  func.func @transform_5(%arg0: i32, %arg1: i32) -> (i32, i32, i32, i32) {
    %c0_i32 = arith.constant 0 : i32
    %c0_i32_0 = arith.constant 0 : i32
    %c0_i32_1 = arith.constant 0 : i32
    return %arg0, %arg1, %c0_i32, %c0_i32_0 : i32, i32, i32, i32
  }
  func.func @transform_6(%arg0: i32, %arg1: i32) -> (i32, i32, i32) {
    %c0_i32 = arith.constant 0 : i32
    %c0_i32_0 = arith.constant 0 : i32
    %c0_i32_1 = arith.constant 0 : i32
    return %arg1, %c0_i32, %c0_i32_0 : i32, i32, i32
  }
  func.func @transform_7(%arg0: i32, %arg1: i32) -> (i32, i32, i32) {
    %c0_i32 = arith.constant 0 : i32
    %c0_i32_0 = arith.constant 0 : i32
    %c0_i32_1 = arith.constant 0 : i32
    return %arg1, %c0_i32, %c0_i32_0 : i32, i32, i32
  }
  func.func @transform_8(%arg0: i32, %arg1: i32) -> (i32, i32) {
    %c0_i32 = arith.constant 0 : i32
    %c0_i32_0 = arith.constant 0 : i32
    %c0_i32_1 = arith.constant 0 : i32
    return %c0_i32, %c0_i32_0 : i32, i32
  }
  func.func @transform_9(%arg0: i32, %arg1: i32) -> (i32, i32, i32) {
    %c0_i32 = arith.constant 0 : i32
    %c0_i32_0 = arith.constant 0 : i32
    %c0_i32_1 = arith.constant 0 : i32
    return %arg0, %c0_i32, %c0_i32_0 : i32, i32, i32
  }
}

module attributes {stable_mosaic.version = 11 : i64} {
  func.func @_ln_head_kernel(%arg0: i32, %arg1: memref<2x64xf32, #tpu.memory_space<vmem>>, %arg2: memref<1x64xf32, #tpu.memory_space<vmem>>, %arg3: memref<1x64xf32, #tpu.memory_space<vmem>>, %arg4: memref<64x4xbf16, #tpu.memory_space<vmem>>, %arg5: memref<1x4xf32, #tpu.memory_space<vmem>>, %arg6: memref<2x64xf32, #tpu.memory_space<vmem>>, %arg7: memref<2x4xf32, #tpu.memory_space<vmem>>) attributes {dimension_semantics = [#tpu.dimension_semantics<arbitrary>], iteration_bounds = array<i64: 1>, scalar_prefetch = 0 : i64, scratch_operands = 0 : i64, tpu.core_type = #tpu.core_type<tc>, window_params = [{pipeline_mode = #tpu.pipeline_mode<synchronous>, transform_indices = @transform_0, window_bounds = array<i64: 2, 64>}, {pipeline_mode = #tpu.pipeline_mode<synchronous>, transform_indices = @transform_1, window_bounds = array<i64: 1, 64>}, {pipeline_mode = #tpu.pipeline_mode<synchronous>, transform_indices = @transform_2, window_bounds = array<i64: 1, 64>}, {pipeline_mode = #tpu.pipeline_mode<synchronous>, transform_indices = @transform_3, window_bounds = array<i64: 64, 4>}, {pipeline_mode = #tpu.pipeline_mode<synchronous>, transform_indices = @transform_4, window_bounds = array<i64: 1, 4>}, {pipeline_mode = #tpu.pipeline_mode<synchronous>, transform_indices = @transform_5, window_bounds = array<i64: 2, 64>}, {pipeline_mode = #tpu.pipeline_mode<synchronous>, transform_indices = @transform_6, window_bounds = array<i64: 2, 4>}]} {
    %c0 = arith.constant 0 : index
    %c0_0 = arith.constant 0 : index
    %0 = vector.load %arg1[%c0, %c0_0] : memref<2x64xf32, #tpu.memory_space<vmem>>, vector<2x64xf32>
    %c0_1 = arith.constant 0 : index
    %c0_2 = arith.constant 0 : index
    %1 = vector.load %arg2[%c0_1, %c0_2] : memref<1x64xf32, #tpu.memory_space<vmem>>, vector<1x64xf32>
    %c0_3 = arith.constant 0 : index
    %c0_4 = arith.constant 0 : index
    %2 = vector.load %arg3[%c0_3, %c0_4] : memref<1x64xf32, #tpu.memory_space<vmem>>, vector<1x64xf32>
    %cst = arith.constant dense<0.000000e+00> : vector<2xf32>
    %3 = vector.multi_reduction <add>, %0, %cst [1] : vector<2x64xf32> to vector<2xf32>
    %4 = vector.shape_cast %3 : vector<2xf32> to vector<2x1xf32>
    %cst_5 = arith.constant 6.400000e+01 : f32
    %5 = vector.broadcast %cst_5 : f32 to vector<2x1xf32>
    %6 = arith.divf %4, %5 : vector<2x1xf32>
    %7 = vector.broadcast %6 : vector<2x1xf32> to vector<2x64xf32>
    %8 = arith.subf %0, %7 : vector<2x64xf32>
    %9 = arith.mulf %8, %8 : vector<2x64xf32>
    %cst_6 = arith.constant dense<0.000000e+00> : vector<2xf32>
    %10 = vector.multi_reduction <add>, %9, %cst_6 [1] : vector<2x64xf32> to vector<2xf32>
    %11 = vector.shape_cast %10 : vector<2xf32> to vector<2x1xf32>
    %cst_7 = arith.constant 6.400000e+01 : f32
    %12 = vector.broadcast %cst_7 : f32 to vector<2x1xf32>
    %13 = arith.divf %11, %12 : vector<2x1xf32>
    %cst_8 = arith.constant 9.99999974E-6 : f32
    %14 = vector.broadcast %cst_8 : f32 to vector<2x1xf32>
    %15 = arith.addf %13, %14 : vector<2x1xf32>
    %16 = math.rsqrt %15 : vector<2x1xf32>
    %17 = vector.broadcast %16 : vector<2x1xf32> to vector<2x64xf32>
    %18 = arith.mulf %8, %17 : vector<2x64xf32>
    %19 = vector.broadcast %1 : vector<1x64xf32> to vector<2x64xf32>
    %20 = arith.mulf %18, %19 : vector<2x64xf32>
    %21 = vector.broadcast %2 : vector<1x64xf32> to vector<2x64xf32>
    %22 = arith.addf %20, %21 : vector<2x64xf32>
    %c0_9 = arith.constant 0 : index
    %c0_10 = arith.constant 0 : index
    %23 = vector.load %arg6[%c0_9, %c0_10] : memref<2x64xf32, #tpu.memory_space<vmem>>, vector<2x64xf32>
    tpu.vector_store %arg6[%c0_9, %c0_10], %22 {strides = array<i32>} : memref<2x64xf32, #tpu.memory_space<vmem>>, vector<2x64xf32>,
    %24 = arith.truncf %22 : vector<2x64xf32> to vector<2x64xbf16>
    %c0_11 = arith.constant 0 : index
    %c0_12 = arith.constant 0 : index
    %25 = vector.load %arg4[%c0_11, %c0_12] : memref<64x4xbf16, #tpu.memory_space<vmem>>, vector<64x4xbf16>
    %cst_13 = arith.constant dense<0.000000e+00> : vector<2x4xf32>
    %26 = tpu.matmul %24, %25, %cst_13 {dimension_numbers = #tpu.dot_dimension_numbers<[1], [0], [0], [1], [0, 0, 1, 1], [], []>} : vector<2x64xbf16>, vector<64x4xbf16>, vector<2x4xf32> -> vector<2x4xf32>
    %c0_14 = arith.constant 0 : index
    %c0_15 = arith.constant 0 : index
    %27 = vector.load %arg5[%c0_14, %c0_15] : memref<1x4xf32, #tpu.memory_space<vmem>>, vector<1x4xf32>
    %28 = vector.broadcast %27 : vector<1x4xf32> to vector<2x4xf32>
    %29 = arith.addf %26, %28 : vector<2x4xf32>
    %c0_16 = arith.constant 0 : index
    %c0_17 = arith.constant 0 : index
    %30 = vector.load %arg7[%c0_16, %c0_17] : memref<2x4xf32, #tpu.memory_space<vmem>>, vector<2x4xf32>
    tpu.vector_store %arg7[%c0_16, %c0_17], %29 {strides = array<i32>} : memref<2x4xf32, #tpu.memory_space<vmem>>, vector<2x4xf32>,
    return
  }
  func.func @transform_0(%arg0: i32) -> (i32, i32) {
    %c0_i32 = arith.constant 0 : i32
    %c0_i32_0 = arith.constant 0 : i32
    %c0_i32_1 = arith.constant 0 : i32
    return %c0_i32, %c0_i32_0 : i32, i32
  }
  func.func @transform_1(%arg0: i32) -> (i32, i32) {
    %c0_i32 = arith.constant 0 : i32
    %c0_i32_0 = arith.constant 0 : i32
    %c0_i32_1 = arith.constant 0 : i32
    return %c0_i32, %c0_i32_0 : i32, i32
  }
  func.func @transform_2(%arg0: i32) -> (i32, i32) {
    %c0_i32 = arith.constant 0 : i32
    %c0_i32_0 = arith.constant 0 : i32
    %c0_i32_1 = arith.constant 0 : i32
    return %c0_i32, %c0_i32_0 : i32, i32
  }
  func.func @transform_3(%arg0: i32) -> (i32, i32) {
    %c0_i32 = arith.constant 0 : i32
    %c0_i32_0 = arith.constant 0 : i32
    %c0_i32_1 = arith.constant 0 : i32
    return %c0_i32, %c0_i32_0 : i32, i32
  }
  func.func @transform_4(%arg0: i32) -> (i32, i32) {
    %c0_i32 = arith.constant 0 : i32
    %c0_i32_0 = arith.constant 0 : i32
    %c0_i32_1 = arith.constant 0 : i32
    return %c0_i32, %c0_i32_0 : i32, i32
  }
  func.func @transform_5(%arg0: i32) -> (i32, i32) {
    %c0_i32 = arith.constant 0 : i32
    %c0_i32_0 = arith.constant 0 : i32
    %c0_i32_1 = arith.constant 0 : i32
    return %c0_i32, %c0_i32_0 : i32, i32
  }
  func.func @transform_6(%arg0: i32) -> (i32, i32) {
    %c0_i32 = arith.constant 0 : i32
    %c0_i32_0 = arith.constant 0 : i32
    %c0_i32_1 = arith.constant 0 : i32
    return %c0_i32, %c0_i32_0 : i32, i32
  }
}

module attributes {stable_mosaic.version = 11 : i64} {
  func.func @kernel(%arg0: i32, %arg1: memref<1x9x9x64xf32, #tpu.memory_space<vmem>>, %arg2: memref<49x64xf32, #tpu.memory_space<vmem>>, %arg3: memref<1x64xf32, #tpu.memory_space<vmem>>, %arg4: memref<1x3x3x64xf32, #tpu.memory_space<vmem>>) attributes {dimension_semantics = [#tpu.dimension_semantics<parallel>], iteration_bounds = array<i64: 2>, scalar_prefetch = 0 : i64, scratch_operands = 0 : i64, tpu.core_type = #tpu.core_type<tc>, window_params = [{transform_indices = @transform_0, window_bounds = array<i64: 1, 9, 9, 64>}, {pipeline_mode = #tpu.pipeline_mode<synchronous>, transform_indices = @transform_1, window_bounds = array<i64: 49, 64>}, {pipeline_mode = #tpu.pipeline_mode<synchronous>, transform_indices = @transform_2, window_bounds = array<i64: 1, 64>}, {transform_indices = @transform_3, window_bounds = array<i64: 1, 3, 3, 64>}]} {
    %c0 = arith.constant 0 : index
    %c0_0 = arith.constant 0 : index
    %0 = vector.load %arg2[%c0, %c0_0] : memref<49x64xf32, #tpu.memory_space<vmem>>, vector<49x64xf32>
    %cst = arith.constant 0.000000e+00 : f32
    %1 = vector.broadcast %cst : f32 to vector<3x3x64xf32>
    %c0_1 = arith.constant 0 : index
    %c0_2 = arith.constant 0 : index
    %2 = vector.load %arg3[%c0_1, %c0_2] : memref<1x64xf32, #tpu.memory_space<vmem>>, vector<1x64xf32>
    %3 = vector.shape_cast %2 : vector<1x64xf32> to vector<1x1x64xf32>
    %4 = vector.broadcast %3 : vector<1x1x64xf32> to vector<3x3x64xf32>
    %5 = arith.addf %1, %4 : vector<3x3x64xf32>
    %c0_3 = arith.constant 0 : index
    %c0_4 = arith.constant 0 : index
    %c0_5 = arith.constant 0 : index
    %c0_6 = arith.constant 0 : index
    %6 = vector.load %arg1[%c0_3, %c0_4, %c0_5, %c0_6] : memref<1x9x9x64xf32, #tpu.memory_space<vmem>>, vector<1x9x3x64xf32>
    %7 = vector.shape_cast %6 : vector<1x9x3x64xf32> to vector<9x3x64xf32>
    %8 = vector.extract_strided_slice %0 {offsets = [0, 0], sizes = [1, 64], strides = [1, 1]} : vector<49x64xf32> to vector<1x64xf32>
    %9 = vector.shape_cast %8 : vector<1x64xf32> to vector<64xf32>
    %10 = vector.extract_strided_slice %7 {offsets = [0, 0, 0], sizes = [3, 3, 64], strides = [1, 1, 1]} : vector<9x3x64xf32> to vector<3x3x64xf32>
    %11 = vector.shape_cast %9 : vector<64xf32> to vector<1x1x64xf32>
    %12 = vector.broadcast %11 : vector<1x1x64xf32> to vector<3x3x64xf32>
    %13 = arith.mulf %12, %10 : vector<3x3x64xf32>
    %14 = arith.addf %5, %13 : vector<3x3x64xf32>
    %15 = vector.extract_strided_slice %0 {offsets = [7, 0], sizes = [1, 64], strides = [1, 1]} : vector<49x64xf32> to vector<1x64xf32>
    %16 = vector.shape_cast %15 : vector<1x64xf32> to vector<64xf32>
    %17 = vector.extract_strided_slice %7 {offsets = [1, 0, 0], sizes = [3, 3, 64], strides = [1, 1, 1]} : vector<9x3x64xf32> to vector<3x3x64xf32>
    %18 = vector.shape_cast %16 : vector<64xf32> to vector<1x1x64xf32>
    %19 = vector.broadcast %18 : vector<1x1x64xf32> to vector<3x3x64xf32>
    %20 = arith.mulf %19, %17 : vector<3x3x64xf32>
    %21 = arith.addf %14, %20 : vector<3x3x64xf32>
    %22 = vector.extract_strided_slice %0 {offsets = [14, 0], sizes = [1, 64], strides = [1, 1]} : vector<49x64xf32> to vector<1x64xf32>
    %23 = vector.shape_cast %22 : vector<1x64xf32> to vector<64xf32>
    %24 = vector.extract_strided_slice %7 {offsets = [2, 0, 0], sizes = [3, 3, 64], strides = [1, 1, 1]} : vector<9x3x64xf32> to vector<3x3x64xf32>
    %25 = vector.shape_cast %23 : vector<64xf32> to vector<1x1x64xf32>
    %26 = vector.broadcast %25 : vector<1x1x64xf32> to vector<3x3x64xf32>
    %27 = arith.mulf %26, %24 : vector<3x3x64xf32>
    %28 = arith.addf %21, %27 : vector<3x3x64xf32>
    %29 = vector.extract_strided_slice %0 {offsets = [21, 0], sizes = [1, 64], strides = [1, 1]} : vector<49x64xf32> to vector<1x64xf32>
    %30 = vector.shape_cast %29 : vector<1x64xf32> to vector<64xf32>
    %31 = vector.extract_strided_slice %7 {offsets = [3, 0, 0], sizes = [3, 3, 64], strides = [1, 1, 1]} : vector<9x3x64xf32> to vector<3x3x64xf32>
    %32 = vector.shape_cast %30 : vector<64xf32> to vector<1x1x64xf32>
    %33 = vector.broadcast %32 : vector<1x1x64xf32> to vector<3x3x64xf32>
    %34 = arith.mulf %33, %31 : vector<3x3x64xf32>
    %35 = arith.addf %28, %34 : vector<3x3x64xf32>
    %36 = vector.extract_strided_slice %0 {offsets = [28, 0], sizes = [1, 64], strides = [1, 1]} : vector<49x64xf32> to vector<1x64xf32>
    %37 = vector.shape_cast %36 : vector<1x64xf32> to vector<64xf32>
    %38 = vector.extract_strided_slice %7 {offsets = [4, 0, 0], sizes = [3, 3, 64], strides = [1, 1, 1]} : vector<9x3x64xf32> to vector<3x3x64xf32>
    %39 = vector.shape_cast %37 : vector<64xf32> to vector<1x1x64xf32>
    %40 = vector.broadcast %39 : vector<1x1x64xf32> to vector<3x3x64xf32>
    %41 = arith.mulf %40, %38 : vector<3x3x64xf32>
    %42 = arith.addf %35, %41 : vector<3x3x64xf32>
    %43 = vector.extract_strided_slice %0 {offsets = [35, 0], sizes = [1, 64], strides = [1, 1]} : vector<49x64xf32> to vector<1x64xf32>
    %44 = vector.shape_cast %43 : vector<1x64xf32> to vector<64xf32>
    %45 = vector.extract_strided_slice %7 {offsets = [5, 0, 0], sizes = [3, 3, 64], strides = [1, 1, 1]} : vector<9x3x64xf32> to vector<3x3x64xf32>
    %46 = vector.shape_cast %44 : vector<64xf32> to vector<1x1x64xf32>
    %47 = vector.broadcast %46 : vector<1x1x64xf32> to vector<3x3x64xf32>
    %48 = arith.mulf %47, %45 : vector<3x3x64xf32>
    %49 = arith.addf %42, %48 : vector<3x3x64xf32>
    %50 = vector.extract_strided_slice %0 {offsets = [42, 0], sizes = [1, 64], strides = [1, 1]} : vector<49x64xf32> to vector<1x64xf32>
    %51 = vector.shape_cast %50 : vector<1x64xf32> to vector<64xf32>
    %52 = vector.extract_strided_slice %7 {offsets = [6, 0, 0], sizes = [3, 3, 64], strides = [1, 1, 1]} : vector<9x3x64xf32> to vector<3x3x64xf32>
    %53 = vector.shape_cast %51 : vector<64xf32> to vector<1x1x64xf32>
    %54 = vector.broadcast %53 : vector<1x1x64xf32> to vector<3x3x64xf32>
    %55 = arith.mulf %54, %52 : vector<3x3x64xf32>
    %56 = arith.addf %49, %55 : vector<3x3x64xf32>
    %c0_7 = arith.constant 0 : index
    %c0_8 = arith.constant 0 : index
    %c1 = arith.constant 1 : index
    %c0_9 = arith.constant 0 : index
    %57 = vector.load %arg1[%c0_7, %c0_8, %c1, %c0_9] : memref<1x9x9x64xf32, #tpu.memory_space<vmem>>, vector<1x9x3x64xf32>
    %58 = vector.shape_cast %57 : vector<1x9x3x64xf32> to vector<9x3x64xf32>
    %59 = vector.extract_strided_slice %0 {offsets = [1, 0], sizes = [1, 64], strides = [1, 1]} : vector<49x64xf32> to vector<1x64xf32>
    %60 = vector.shape_cast %59 : vector<1x64xf32> to vector<64xf32>
    %61 = vector.extract_strided_slice %58 {offsets = [0, 0, 0], sizes = [3, 3, 64], strides = [1, 1, 1]} : vector<9x3x64xf32> to vector<3x3x64xf32>
    %62 = vector.shape_cast %60 : vector<64xf32> to vector<1x1x64xf32>
    %63 = vector.broadcast %62 : vector<1x1x64xf32> to vector<3x3x64xf32>
    %64 = arith.mulf %63, %61 : vector<3x3x64xf32>
    %65 = arith.addf %56, %64 : vector<3x3x64xf32>
    %66 = vector.extract_strided_slice %0 {offsets = [8, 0], sizes = [1, 64], strides = [1, 1]} : vector<49x64xf32> to vector<1x64xf32>
    %67 = vector.shape_cast %66 : vector<1x64xf32> to vector<64xf32>
    %68 = vector.extract_strided_slice %58 {offsets = [1, 0, 0], sizes = [3, 3, 64], strides = [1, 1, 1]} : vector<9x3x64xf32> to vector<3x3x64xf32>
    %69 = vector.shape_cast %67 : vector<64xf32> to vector<1x1x64xf32>
    %70 = vector.broadcast %69 : vector<1x1x64xf32> to vector<3x3x64xf32>
    %71 = arith.mulf %70, %68 : vector<3x3x64xf32>
    %72 = arith.addf %65, %71 : vector<3x3x64xf32>
    %73 = vector.extract_strided_slice %0 {offsets = [15, 0], sizes = [1, 64], strides = [1, 1]} : vector<49x64xf32> to vector<1x64xf32>
    %74 = vector.shape_cast %73 : vector<1x64xf32> to vector<64xf32>
    %75 = vector.extract_strided_slice %58 {offsets = [2, 0, 0], sizes = [3, 3, 64], strides = [1, 1, 1]} : vector<9x3x64xf32> to vector<3x3x64xf32>
    %76 = vector.shape_cast %74 : vector<64xf32> to vector<1x1x64xf32>
    %77 = vector.broadcast %76 : vector<1x1x64xf32> to vector<3x3x64xf32>
    %78 = arith.mulf %77, %75 : vector<3x3x64xf32>
    %79 = arith.addf %72, %78 : vector<3x3x64xf32>
    %80 = vector.extract_strided_slice %0 {offsets = [22, 0], sizes = [1, 64], strides = [1, 1]} : vector<49x64xf32> to vector<1x64xf32>
    %81 = vector.shape_cast %80 : vector<1x64xf32> to vector<64xf32>
    %82 = vector.extract_strided_slice %58 {offsets = [3, 0, 0], sizes = [3, 3, 64], strides = [1, 1, 1]} : vector<9x3x64xf32> to vector<3x3x64xf32>
    %83 = vector.shape_cast %81 : vector<64xf32> to vector<1x1x64xf32>
    %84 = vector.broadcast %83 : vector<1x1x64xf32> to vector<3x3x64xf32>
    %85 = arith.mulf %84, %82 : vector<3x3x64xf32>
    %86 = arith.addf %79, %85 : vector<3x3x64xf32>
    %87 = vector.extract_strided_slice %0 {offsets = [29, 0], sizes = [1, 64], strides = [1, 1]} : vector<49x64xf32> to vector<1x64xf32>
    %88 = vector.shape_cast %87 : vector<1x64xf32> to vector<64xf32>
    %89 = vector.extract_strided_slice %58 {offsets = [4, 0, 0], sizes = [3, 3, 64], strides = [1, 1, 1]} : vector<9x3x64xf32> to vector<3x3x64xf32>
    %90 = vector.shape_cast %88 : vector<64xf32> to vector<1x1x64xf32>
    %91 = vector.broadcast %90 : vector<1x1x64xf32> to vector<3x3x64xf32>
    %92 = arith.mulf %91, %89 : vector<3x3x64xf32>
    %93 = arith.addf %86, %92 : vector<3x3x64xf32>
    %94 = vector.extract_strided_slice %0 {offsets = [36, 0], sizes = [1, 64], strides = [1, 1]} : vector<49x64xf32> to vector<1x64xf32>
    %95 = vector.shape_cast %94 : vector<1x64xf32> to vector<64xf32>
    %96 = vector.extract_strided_slice %58 {offsets = [5, 0, 0], sizes = [3, 3, 64], strides = [1, 1, 1]} : vector<9x3x64xf32> to vector<3x3x64xf32>
    %97 = vector.shape_cast %95 : vector<64xf32> to vector<1x1x64xf32>
    %98 = vector.broadcast %97 : vector<1x1x64xf32> to vector<3x3x64xf32>
    %99 = arith.mulf %98, %96 : vector<3x3x64xf32>
    %100 = arith.addf %93, %99 : vector<3x3x64xf32>
    %101 = vector.extract_strided_slice %0 {offsets = [43, 0], sizes = [1, 64], strides = [1, 1]} : vector<49x64xf32> to vector<1x64xf32>
    %102 = vector.shape_cast %101 : vector<1x64xf32> to vector<64xf32>
    %103 = vector.extract_strided_slice %58 {offsets = [6, 0, 0], sizes = [3, 3, 64], strides = [1, 1, 1]} : vector<9x3x64xf32> to vector<3x3x64xf32>
    %104 = vector.shape_cast %102 : vector<64xf32> to vector<1x1x64xf32>
    %105 = vector.broadcast %104 : vector<1x1x64xf32> to vector<3x3x64xf32>
    %106 = arith.mulf %105, %103 : vector<3x3x64xf32>
    %107 = arith.addf %100, %106 : vector<3x3x64xf32>
    %c0_10 = arith.constant 0 : index
    %c0_11 = arith.constant 0 : index
    %c2 = arith.constant 2 : index
    %c0_12 = arith.constant 0 : index
    %108 = vector.load %arg1[%c0_10, %c0_11, %c2, %c0_12] : memref<1x9x9x64xf32, #tpu.memory_space<vmem>>, vector<1x9x3x64xf32>
    %109 = vector.shape_cast %108 : vector<1x9x3x64xf32> to vector<9x3x64xf32>
    %110 = vector.extract_strided_slice %0 {offsets = [2, 0], sizes = [1, 64], strides = [1, 1]} : vector<49x64xf32> to vector<1x64xf32>
    %111 = vector.shape_cast %110 : vector<1x64xf32> to vector<64xf32>
    %112 = vector.extract_strided_slice %109 {offsets = [0, 0, 0], sizes = [3, 3, 64], strides = [1, 1, 1]} : vector<9x3x64xf32> to vector<3x3x64xf32>
    %113 = vector.shape_cast %111 : vector<64xf32> to vector<1x1x64xf32>
    %114 = vector.broadcast %113 : vector<1x1x64xf32> to vector<3x3x64xf32>
    %115 = arith.mulf %114, %112 : vector<3x3x64xf32>
    %116 = arith.addf %107, %115 : vector<3x3x64xf32>
    %117 = vector.extract_strided_slice %0 {offsets = [9, 0], sizes = [1, 64], strides = [1, 1]} : vector<49x64xf32> to vector<1x64xf32>
    %118 = vector.shape_cast %117 : vector<1x64xf32> to vector<64xf32>
    %119 = vector.extract_strided_slice %109 {offsets = [1, 0, 0], sizes = [3, 3, 64], strides = [1, 1, 1]} : vector<9x3x64xf32> to vector<3x3x64xf32>
    %120 = vector.shape_cast %118 : vector<64xf32> to vector<1x1x64xf32>
    %121 = vector.broadcast %120 : vector<1x1x64xf32> to vector<3x3x64xf32>
    %122 = arith.mulf %121, %119 : vector<3x3x64xf32>
    %123 = arith.addf %116, %122 : vector<3x3x64xf32>
    %124 = vector.extract_strided_slice %0 {offsets = [16, 0], sizes = [1, 64], strides = [1, 1]} : vector<49x64xf32> to vector<1x64xf32>
    %125 = vector.shape_cast %124 : vector<1x64xf32> to vector<64xf32>
    %126 = vector.extract_strided_slice %109 {offsets = [2, 0, 0], sizes = [3, 3, 64], strides = [1, 1, 1]} : vector<9x3x64xf32> to vector<3x3x64xf32>
    %127 = vector.shape_cast %125 : vector<64xf32> to vector<1x1x64xf32>
    %128 = vector.broadcast %127 : vector<1x1x64xf32> to vector<3x3x64xf32>
    %129 = arith.mulf %128, %126 : vector<3x3x64xf32>
    %130 = arith.addf %123, %129 : vector<3x3x64xf32>
    %131 = vector.extract_strided_slice %0 {offsets = [23, 0], sizes = [1, 64], strides = [1, 1]} : vector<49x64xf32> to vector<1x64xf32>
    %132 = vector.shape_cast %131 : vector<1x64xf32> to vector<64xf32>
    %133 = vector.extract_strided_slice %109 {offsets = [3, 0, 0], sizes = [3, 3, 64], strides = [1, 1, 1]} : vector<9x3x64xf32> to vector<3x3x64xf32>
    %134 = vector.shape_cast %132 : vector<64xf32> to vector<1x1x64xf32>
    %135 = vector.broadcast %134 : vector<1x1x64xf32> to vector<3x3x64xf32>
    %136 = arith.mulf %135, %133 : vector<3x3x64xf32>
    %137 = arith.addf %130, %136 : vector<3x3x64xf32>
    %138 = vector.extract_strided_slice %0 {offsets = [30, 0], sizes = [1, 64], strides = [1, 1]} : vector<49x64xf32> to vector<1x64xf32>
    %139 = vector.shape_cast %138 : vector<1x64xf32> to vector<64xf32>
    %140 = vector.extract_strided_slice %109 {offsets = [4, 0, 0], sizes = [3, 3, 64], strides = [1, 1, 1]} : vector<9x3x64xf32> to vector<3x3x64xf32>
    %141 = vector.shape_cast %139 : vector<64xf32> to vector<1x1x64xf32>
    %142 = vector.broadcast %141 : vector<1x1x64xf32> to vector<3x3x64xf32>
    %143 = arith.mulf %142, %140 : vector<3x3x64xf32>
    %144 = arith.addf %137, %143 : vector<3x3x64xf32>
    %145 = vector.extract_strided_slice %0 {offsets = [37, 0], sizes = [1, 64], strides = [1, 1]} : vector<49x64xf32> to vector<1x64xf32>
    %146 = vector.shape_cast %145 : vector<1x64xf32> to vector<64xf32>
    %147 = vector.extract_strided_slice %109 {offsets = [5, 0, 0], sizes = [3, 3, 64], strides = [1, 1, 1]} : vector<9x3x64xf32> to vector<3x3x64xf32>
    %148 = vector.shape_cast %146 : vector<64xf32> to vector<1x1x64xf32>
    %149 = vector.broadcast %148 : vector<1x1x64xf32> to vector<3x3x64xf32>
    %150 = arith.mulf %149, %147 : vector<3x3x64xf32>
    %151 = arith.addf %144, %150 : vector<3x3x64xf32>
    %152 = vector.extract_strided_slice %0 {offsets = [44, 0], sizes = [1, 64], strides = [1, 1]} : vector<49x64xf32> to vector<1x64xf32>
    %153 = vector.shape_cast %152 : vector<1x64xf32> to vector<64xf32>
    %154 = vector.extract_strided_slice %109 {offsets = [6, 0, 0], sizes = [3, 3, 64], strides = [1, 1, 1]} : vector<9x3x64xf32> to vector<3x3x64xf32>
    %155 = vector.shape_cast %153 : vector<64xf32> to vector<1x1x64xf32>
    %156 = vector.broadcast %155 : vector<1x1x64xf32> to vector<3x3x64xf32>
    %157 = arith.mulf %156, %154 : vector<3x3x64xf32>
    %158 = arith.addf %151, %157 : vector<3x3x64xf32>
    %c0_13 = arith.constant 0 : index
    %c0_14 = arith.constant 0 : index
    %c3 = arith.constant 3 : index
    %c0_15 = arith.constant 0 : index
    %159 = vector.load %arg1[%c0_13, %c0_14, %c3, %c0_15] : memref<1x9x9x64xf32, #tpu.memory_space<vmem>>, vector<1x9x3x64xf32>
    %160 = vector.shape_cast %159 : vector<1x9x3x64xf32> to vector<9x3x64xf32>
    %161 = vector.extract_strided_slice %0 {offsets = [3, 0], sizes = [1, 64], strides = [1, 1]} : vector<49x64xf32> to vector<1x64xf32>
    %162 = vector.shape_cast %161 : vector<1x64xf32> to vector<64xf32>
    %163 = vector.extract_strided_slice %160 {offsets = [0, 0, 0], sizes = [3, 3, 64], strides = [1, 1, 1]} : vector<9x3x64xf32> to vector<3x3x64xf32>
    %164 = vector.shape_cast %162 : vector<64xf32> to vector<1x1x64xf32>
    %165 = vector.broadcast %164 : vector<1x1x64xf32> to vector<3x3x64xf32>
    %166 = arith.mulf %165, %163 : vector<3x3x64xf32>
    %167 = arith.addf %158, %166 : vector<3x3x64xf32>
    %168 = vector.extract_strided_slice %0 {offsets = [10, 0], sizes = [1, 64], strides = [1, 1]} : vector<49x64xf32> to vector<1x64xf32>
    %169 = vector.shape_cast %168 : vector<1x64xf32> to vector<64xf32>
    %170 = vector.extract_strided_slice %160 {offsets = [1, 0, 0], sizes = [3, 3, 64], strides = [1, 1, 1]} : vector<9x3x64xf32> to vector<3x3x64xf32>
    %171 = vector.shape_cast %169 : vector<64xf32> to vector<1x1x64xf32>
    %172 = vector.broadcast %171 : vector<1x1x64xf32> to vector<3x3x64xf32>
    %173 = arith.mulf %172, %170 : vector<3x3x64xf32>
    %174 = arith.addf %167, %173 : vector<3x3x64xf32>
    %175 = vector.extract_strided_slice %0 {offsets = [17, 0], sizes = [1, 64], strides = [1, 1]} : vector<49x64xf32> to vector<1x64xf32>
    %176 = vector.shape_cast %175 : vector<1x64xf32> to vector<64xf32>
    %177 = vector.extract_strided_slice %160 {offsets = [2, 0, 0], sizes = [3, 3, 64], strides = [1, 1, 1]} : vector<9x3x64xf32> to vector<3x3x64xf32>
    %178 = vector.shape_cast %176 : vector<64xf32> to vector<1x1x64xf32>
    %179 = vector.broadcast %178 : vector<1x1x64xf32> to vector<3x3x64xf32>
    %180 = arith.mulf %179, %177 : vector<3x3x64xf32>
    %181 = arith.addf %174, %180 : vector<3x3x64xf32>
    %182 = vector.extract_strided_slice %0 {offsets = [24, 0], sizes = [1, 64], strides = [1, 1]} : vector<49x64xf32> to vector<1x64xf32>
    %183 = vector.shape_cast %182 : vector<1x64xf32> to vector<64xf32>
    %184 = vector.extract_strided_slice %160 {offsets = [3, 0, 0], sizes = [3, 3, 64], strides = [1, 1, 1]} : vector<9x3x64xf32> to vector<3x3x64xf32>
    %185 = vector.shape_cast %183 : vector<64xf32> to vector<1x1x64xf32>
    %186 = vector.broadcast %185 : vector<1x1x64xf32> to vector<3x3x64xf32>
    %187 = arith.mulf %186, %184 : vector<3x3x64xf32>
    %188 = arith.addf %181, %187 : vector<3x3x64xf32>
    %189 = vector.extract_strided_slice %0 {offsets = [31, 0], sizes = [1, 64], strides = [1, 1]} : vector<49x64xf32> to vector<1x64xf32>
    %190 = vector.shape_cast %189 : vector<1x64xf32> to vector<64xf32>
    %191 = vector.extract_strided_slice %160 {offsets = [4, 0, 0], sizes = [3, 3, 64], strides = [1, 1, 1]} : vector<9x3x64xf32> to vector<3x3x64xf32>
    %192 = vector.shape_cast %190 : vector<64xf32> to vector<1x1x64xf32>
    %193 = vector.broadcast %192 : vector<1x1x64xf32> to vector<3x3x64xf32>
    %194 = arith.mulf %193, %191 : vector<3x3x64xf32>
    %195 = arith.addf %188, %194 : vector<3x3x64xf32>
    %196 = vector.extract_strided_slice %0 {offsets = [38, 0], sizes = [1, 64], strides = [1, 1]} : vector<49x64xf32> to vector<1x64xf32>
    %197 = vector.shape_cast %196 : vector<1x64xf32> to vector<64xf32>
    %198 = vector.extract_strided_slice %160 {offsets = [5, 0, 0], sizes = [3, 3, 64], strides = [1, 1, 1]} : vector<9x3x64xf32> to vector<3x3x64xf32>
    %199 = vector.shape_cast %197 : vector<64xf32> to vector<1x1x64xf32>
    %200 = vector.broadcast %199 : vector<1x1x64xf32> to vector<3x3x64xf32>
    %201 = arith.mulf %200, %198 : vector<3x3x64xf32>
    %202 = arith.addf %195, %201 : vector<3x3x64xf32>
    %203 = vector.extract_strided_slice %0 {offsets = [45, 0], sizes = [1, 64], strides = [1, 1]} : vector<49x64xf32> to vector<1x64xf32>
    %204 = vector.shape_cast %203 : vector<1x64xf32> to vector<64xf32>
    %205 = vector.extract_strided_slice %160 {offsets = [6, 0, 0], sizes = [3, 3, 64], strides = [1, 1, 1]} : vector<9x3x64xf32> to vector<3x3x64xf32>
    %206 = vector.shape_cast %204 : vector<64xf32> to vector<1x1x64xf32>
    %207 = vector.broadcast %206 : vector<1x1x64xf32> to vector<3x3x64xf32>
    %208 = arith.mulf %207, %205 : vector<3x3x64xf32>
    %209 = arith.addf %202, %208 : vector<3x3x64xf32>
    %c0_16 = arith.constant 0 : index
    %c0_17 = arith.constant 0 : index
    %c4 = arith.constant 4 : index
    %c0_18 = arith.constant 0 : index
    %210 = vector.load %arg1[%c0_16, %c0_17, %c4, %c0_18] : memref<1x9x9x64xf32, #tpu.memory_space<vmem>>, vector<1x9x3x64xf32>
    %211 = vector.shape_cast %210 : vector<1x9x3x64xf32> to vector<9x3x64xf32>
    %212 = vector.extract_strided_slice %0 {offsets = [4, 0], sizes = [1, 64], strides = [1, 1]} : vector<49x64xf32> to vector<1x64xf32>
    %213 = vector.shape_cast %212 : vector<1x64xf32> to vector<64xf32>
    %214 = vector.extract_strided_slice %211 {offsets = [0, 0, 0], sizes = [3, 3, 64], strides = [1, 1, 1]} : vector<9x3x64xf32> to vector<3x3x64xf32>
    %215 = vector.shape_cast %213 : vector<64xf32> to vector<1x1x64xf32>
    %216 = vector.broadcast %215 : vector<1x1x64xf32> to vector<3x3x64xf32>
    %217 = arith.mulf %216, %214 : vector<3x3x64xf32>
    %218 = arith.addf %209, %217 : vector<3x3x64xf32>
    %219 = vector.extract_strided_slice %0 {offsets = [11, 0], sizes = [1, 64], strides = [1, 1]} : vector<49x64xf32> to vector<1x64xf32>
    %220 = vector.shape_cast %219 : vector<1x64xf32> to vector<64xf32>
    %221 = vector.extract_strided_slice %211 {offsets = [1, 0, 0], sizes = [3, 3, 64], strides = [1, 1, 1]} : vector<9x3x64xf32> to vector<3x3x64xf32>
    %222 = vector.shape_cast %220 : vector<64xf32> to vector<1x1x64xf32>
    %223 = vector.broadcast %222 : vector<1x1x64xf32> to vector<3x3x64xf32>
    %224 = arith.mulf %223, %221 : vector<3x3x64xf32>
    %225 = arith.addf %218, %224 : vector<3x3x64xf32>
    %226 = vector.extract_strided_slice %0 {offsets = [18, 0], sizes = [1, 64], strides = [1, 1]} : vector<49x64xf32> to vector<1x64xf32>
    %227 = vector.shape_cast %226 : vector<1x64xf32> to vector<64xf32>
    %228 = vector.extract_strided_slice %211 {offsets = [2, 0, 0], sizes = [3, 3, 64], strides = [1, 1, 1]} : vector<9x3x64xf32> to vector<3x3x64xf32>
    %229 = vector.shape_cast %227 : vector<64xf32> to vector<1x1x64xf32>
    %230 = vector.broadcast %229 : vector<1x1x64xf32> to vector<3x3x64xf32>
    %231 = arith.mulf %230, %228 : vector<3x3x64xf32>
    %232 = arith.addf %225, %231 : vector<3x3x64xf32>
    %233 = vector.extract_strided_slice %0 {offsets = [25, 0], sizes = [1, 64], strides = [1, 1]} : vector<49x64xf32> to vector<1x64xf32>
    %234 = vector.shape_cast %233 : vector<1x64xf32> to vector<64xf32>
    %235 = vector.extract_strided_slice %211 {offsets = [3, 0, 0], sizes = [3, 3, 64], strides = [1, 1, 1]} : vector<9x3x64xf32> to vector<3x3x64xf32>
    %236 = vector.shape_cast %234 : vector<64xf32> to vector<1x1x64xf32>
    %237 = vector.broadcast %236 : vector<1x1x64xf32> to vector<3x3x64xf32>
    %238 = arith.mulf %237, %235 : vector<3x3x64xf32>
    %239 = arith.addf %232, %238 : vector<3x3x64xf32>
    %240 = vector.extract_strided_slice %0 {offsets = [32, 0], sizes = [1, 64], strides = [1, 1]} : vector<49x64xf32> to vector<1x64xf32>
    %241 = vector.shape_cast %240 : vector<1x64xf32> to vector<64xf32>
    %242 = vector.extract_strided_slice %211 {offsets = [4, 0, 0], sizes = [3, 3, 64], strides = [1, 1, 1]} : vector<9x3x64xf32> to vector<3x3x64xf32>
    %243 = vector.shape_cast %241 : vector<64xf32> to vector<1x1x64xf32>
    %244 = vector.broadcast %243 : vector<1x1x64xf32> to vector<3x3x64xf32>
    %245 = arith.mulf %244, %242 : vector<3x3x64xf32>
    %246 = arith.addf %239, %245 : vector<3x3x64xf32>
    %247 = vector.extract_strided_slice %0 {offsets = [39, 0], sizes = [1, 64], strides = [1, 1]} : vector<49x64xf32> to vector<1x64xf32>
    %248 = vector.shape_cast %247 : vector<1x64xf32> to vector<64xf32>
    %249 = vector.extract_strided_slice %211 {offsets = [5, 0, 0], sizes = [3, 3, 64], strides = [1, 1, 1]} : vector<9x3x64xf32> to vector<3x3x64xf32>
    %250 = vector.shape_cast %248 : vector<64xf32> to vector<1x1x64xf32>
    %251 = vector.broadcast %250 : vector<1x1x64xf32> to vector<3x3x64xf32>
    %252 = arith.mulf %251, %249 : vector<3x3x64xf32>
    %253 = arith.addf %246, %252 : vector<3x3x64xf32>
    %254 = vector.extract_strided_slice %0 {offsets = [46, 0], sizes = [1, 64], strides = [1, 1]} : vector<49x64xf32> to vector<1x64xf32>
    %255 = vector.shape_cast %254 : vector<1x64xf32> to vector<64xf32>
    %256 = vector.extract_strided_slice %211 {offsets = [6, 0, 0], sizes = [3, 3, 64], strides = [1, 1, 1]} : vector<9x3x64xf32> to vector<3x3x64xf32>
    %257 = vector.shape_cast %255 : vector<64xf32> to vector<1x1x64xf32>
    %258 = vector.broadcast %257 : vector<1x1x64xf32> to vector<3x3x64xf32>
    %259 = arith.mulf %258, %256 : vector<3x3x64xf32>
    %260 = arith.addf %253, %259 : vector<3x3x64xf32>
    %c0_19 = arith.constant 0 : index
    %c0_20 = arith.constant 0 : index
    %c5 = arith.constant 5 : index
    %c0_21 = arith.constant 0 : index
    %261 = vector.load %arg1[%c0_19, %c0_20, %c5, %c0_21] : memref<1x9x9x64xf32, #tpu.memory_space<vmem>>, vector<1x9x3x64xf32>
    %262 = vector.shape_cast %261 : vector<1x9x3x64xf32> to vector<9x3x64xf32>
    %263 = vector.extract_strided_slice %0 {offsets = [5, 0], sizes = [1, 64], strides = [1, 1]} : vector<49x64xf32> to vector<1x64xf32>
    %264 = vector.shape_cast %263 : vector<1x64xf32> to vector<64xf32>
    %265 = vector.extract_strided_slice %262 {offsets = [0, 0, 0], sizes = [3, 3, 64], strides = [1, 1, 1]} : vector<9x3x64xf32> to vector<3x3x64xf32>
    %266 = vector.shape_cast %264 : vector<64xf32> to vector<1x1x64xf32>
    %267 = vector.broadcast %266 : vector<1x1x64xf32> to vector<3x3x64xf32>
    %268 = arith.mulf %267, %265 : vector<3x3x64xf32>
    %269 = arith.addf %260, %268 : vector<3x3x64xf32>
    %270 = vector.extract_strided_slice %0 {offsets = [12, 0], sizes = [1, 64], strides = [1, 1]} : vector<49x64xf32> to vector<1x64xf32>
    %271 = vector.shape_cast %270 : vector<1x64xf32> to vector<64xf32>
    %272 = vector.extract_strided_slice %262 {offsets = [1, 0, 0], sizes = [3, 3, 64], strides = [1, 1, 1]} : vector<9x3x64xf32> to vector<3x3x64xf32>
    %273 = vector.shape_cast %271 : vector<64xf32> to vector<1x1x64xf32>
    %274 = vector.broadcast %273 : vector<1x1x64xf32> to vector<3x3x64xf32>
    %275 = arith.mulf %274, %272 : vector<3x3x64xf32>
    %276 = arith.addf %269, %275 : vector<3x3x64xf32>
    %277 = vector.extract_strided_slice %0 {offsets = [19, 0], sizes = [1, 64], strides = [1, 1]} : vector<49x64xf32> to vector<1x64xf32>
    %278 = vector.shape_cast %277 : vector<1x64xf32> to vector<64xf32>
    %279 = vector.extract_strided_slice %262 {offsets = [2, 0, 0], sizes = [3, 3, 64], strides = [1, 1, 1]} : vector<9x3x64xf32> to vector<3x3x64xf32>
    %280 = vector.shape_cast %278 : vector<64xf32> to vector<1x1x64xf32>
    %281 = vector.broadcast %280 : vector<1x1x64xf32> to vector<3x3x64xf32>
    %282 = arith.mulf %281, %279 : vector<3x3x64xf32>
    %283 = arith.addf %276, %282 : vector<3x3x64xf32>
    %284 = vector.extract_strided_slice %0 {offsets = [26, 0], sizes = [1, 64], strides = [1, 1]} : vector<49x64xf32> to vector<1x64xf32>
    %285 = vector.shape_cast %284 : vector<1x64xf32> to vector<64xf32>
    %286 = vector.extract_strided_slice %262 {offsets = [3, 0, 0], sizes = [3, 3, 64], strides = [1, 1, 1]} : vector<9x3x64xf32> to vector<3x3x64xf32>
    %287 = vector.shape_cast %285 : vector<64xf32> to vector<1x1x64xf32>
    %288 = vector.broadcast %287 : vector<1x1x64xf32> to vector<3x3x64xf32>
    %289 = arith.mulf %288, %286 : vector<3x3x64xf32>
    %290 = arith.addf %283, %289 : vector<3x3x64xf32>
    %291 = vector.extract_strided_slice %0 {offsets = [33, 0], sizes = [1, 64], strides = [1, 1]} : vector<49x64xf32> to vector<1x64xf32>
    %292 = vector.shape_cast %291 : vector<1x64xf32> to vector<64xf32>
    %293 = vector.extract_strided_slice %262 {offsets = [4, 0, 0], sizes = [3, 3, 64], strides = [1, 1, 1]} : vector<9x3x64xf32> to vector<3x3x64xf32>
    %294 = vector.shape_cast %292 : vector<64xf32> to vector<1x1x64xf32>
    %295 = vector.broadcast %294 : vector<1x1x64xf32> to vector<3x3x64xf32>
    %296 = arith.mulf %295, %293 : vector<3x3x64xf32>
    %297 = arith.addf %290, %296 : vector<3x3x64xf32>
    %298 = vector.extract_strided_slice %0 {offsets = [40, 0], sizes = [1, 64], strides = [1, 1]} : vector<49x64xf32> to vector<1x64xf32>
    %299 = vector.shape_cast %298 : vector<1x64xf32> to vector<64xf32>
    %300 = vector.extract_strided_slice %262 {offsets = [5, 0, 0], sizes = [3, 3, 64], strides = [1, 1, 1]} : vector<9x3x64xf32> to vector<3x3x64xf32>
    %301 = vector.shape_cast %299 : vector<64xf32> to vector<1x1x64xf32>
    %302 = vector.broadcast %301 : vector<1x1x64xf32> to vector<3x3x64xf32>
    %303 = arith.mulf %302, %300 : vector<3x3x64xf32>
    %304 = arith.addf %297, %303 : vector<3x3x64xf32>
    %305 = vector.extract_strided_slice %0 {offsets = [47, 0], sizes = [1, 64], strides = [1, 1]} : vector<49x64xf32> to vector<1x64xf32>
    %306 = vector.shape_cast %305 : vector<1x64xf32> to vector<64xf32>
    %307 = vector.extract_strided_slice %262 {offsets = [6, 0, 0], sizes = [3, 3, 64], strides = [1, 1, 1]} : vector<9x3x64xf32> to vector<3x3x64xf32>
    %308 = vector.shape_cast %306 : vector<64xf32> to vector<1x1x64xf32>
    %309 = vector.broadcast %308 : vector<1x1x64xf32> to vector<3x3x64xf32>
    %310 = arith.mulf %309, %307 : vector<3x3x64xf32>
    %311 = arith.addf %304, %310 : vector<3x3x64xf32>
    %c0_22 = arith.constant 0 : index
    %c0_23 = arith.constant 0 : index
    %c6 = arith.constant 6 : index
    %c0_24 = arith.constant 0 : index
    %312 = vector.load %arg1[%c0_22, %c0_23, %c6, %c0_24] : memref<1x9x9x64xf32, #tpu.memory_space<vmem>>, vector<1x9x3x64xf32>
    %313 = vector.shape_cast %312 : vector<1x9x3x64xf32> to vector<9x3x64xf32>
    %314 = vector.extract_strided_slice %0 {offsets = [6, 0], sizes = [1, 64], strides = [1, 1]} : vector<49x64xf32> to vector<1x64xf32>
    %315 = vector.shape_cast %314 : vector<1x64xf32> to vector<64xf32>
    %316 = vector.extract_strided_slice %313 {offsets = [0, 0, 0], sizes = [3, 3, 64], strides = [1, 1, 1]} : vector<9x3x64xf32> to vector<3x3x64xf32>
    %317 = vector.shape_cast %315 : vector<64xf32> to vector<1x1x64xf32>
    %318 = vector.broadcast %317 : vector<1x1x64xf32> to vector<3x3x64xf32>
    %319 = arith.mulf %318, %316 : vector<3x3x64xf32>
    %320 = arith.addf %311, %319 : vector<3x3x64xf32>
    %321 = vector.extract_strided_slice %0 {offsets = [13, 0], sizes = [1, 64], strides = [1, 1]} : vector<49x64xf32> to vector<1x64xf32>
    %322 = vector.shape_cast %321 : vector<1x64xf32> to vector<64xf32>
    %323 = vector.extract_strided_slice %313 {offsets = [1, 0, 0], sizes = [3, 3, 64], strides = [1, 1, 1]} : vector<9x3x64xf32> to vector<3x3x64xf32>
    %324 = vector.shape_cast %322 : vector<64xf32> to vector<1x1x64xf32>
    %325 = vector.broadcast %324 : vector<1x1x64xf32> to vector<3x3x64xf32>
    %326 = arith.mulf %325, %323 : vector<3x3x64xf32>
    %327 = arith.addf %320, %326 : vector<3x3x64xf32>
    %328 = vector.extract_strided_slice %0 {offsets = [20, 0], sizes = [1, 64], strides = [1, 1]} : vector<49x64xf32> to vector<1x64xf32>
    %329 = vector.shape_cast %328 : vector<1x64xf32> to vector<64xf32>
    %330 = vector.extract_strided_slice %313 {offsets = [2, 0, 0], sizes = [3, 3, 64], strides = [1, 1, 1]} : vector<9x3x64xf32> to vector<3x3x64xf32>
    %331 = vector.shape_cast %329 : vector<64xf32> to vector<1x1x64xf32>
    %332 = vector.broadcast %331 : vector<1x1x64xf32> to vector<3x3x64xf32>
    %333 = arith.mulf %332, %330 : vector<3x3x64xf32>
    %334 = arith.addf %327, %333 : vector<3x3x64xf32>
    %335 = vector.extract_strided_slice %0 {offsets = [27, 0], sizes = [1, 64], strides = [1, 1]} : vector<49x64xf32> to vector<1x64xf32>
    %336 = vector.shape_cast %335 : vector<1x64xf32> to vector<64xf32>
    %337 = vector.extract_strided_slice %313 {offsets = [3, 0, 0], sizes = [3, 3, 64], strides = [1, 1, 1]} : vector<9x3x64xf32> to vector<3x3x64xf32>
    %338 = vector.shape_cast %336 : vector<64xf32> to vector<1x1x64xf32>
    %339 = vector.broadcast %338 : vector<1x1x64xf32> to vector<3x3x64xf32>
    %340 = arith.mulf %339, %337 : vector<3x3x64xf32>
    %341 = arith.addf %334, %340 : vector<3x3x64xf32>
    %342 = vector.extract_strided_slice %0 {offsets = [34, 0], sizes = [1, 64], strides = [1, 1]} : vector<49x64xf32> to vector<1x64xf32>
    %343 = vector.shape_cast %342 : vector<1x64xf32> to vector<64xf32>
    %344 = vector.extract_strided_slice %313 {offsets = [4, 0, 0], sizes = [3, 3, 64], strides = [1, 1, 1]} : vector<9x3x64xf32> to vector<3x3x64xf32>
    %345 = vector.shape_cast %343 : vector<64xf32> to vector<1x1x64xf32>
    %346 = vector.broadcast %345 : vector<1x1x64xf32> to vector<3x3x64xf32>
    %347 = arith.mulf %346, %344 : vector<3x3x64xf32>
    %348 = arith.addf %341, %347 : vector<3x3x64xf32>
    %349 = vector.extract_strided_slice %0 {offsets = [41, 0], sizes = [1, 64], strides = [1, 1]} : vector<49x64xf32> to vector<1x64xf32>
    %350 = vector.shape_cast %349 : vector<1x64xf32> to vector<64xf32>
    %351 = vector.extract_strided_slice %313 {offsets = [5, 0, 0], sizes = [3, 3, 64], strides = [1, 1, 1]} : vector<9x3x64xf32> to vector<3x3x64xf32>
    %352 = vector.shape_cast %350 : vector<64xf32> to vector<1x1x64xf32>
    %353 = vector.broadcast %352 : vector<1x1x64xf32> to vector<3x3x64xf32>
    %354 = arith.mulf %353, %351 : vector<3x3x64xf32>
    %355 = arith.addf %348, %354 : vector<3x3x64xf32>
    %356 = vector.extract_strided_slice %0 {offsets = [48, 0], sizes = [1, 64], strides = [1, 1]} : vector<49x64xf32> to vector<1x64xf32>
    %357 = vector.shape_cast %356 : vector<1x64xf32> to vector<64xf32>
    %358 = vector.extract_strided_slice %313 {offsets = [6, 0, 0], sizes = [3, 3, 64], strides = [1, 1, 1]} : vector<9x3x64xf32> to vector<3x3x64xf32>
    %359 = vector.shape_cast %357 : vector<64xf32> to vector<1x1x64xf32>
    %360 = vector.broadcast %359 : vector<1x1x64xf32> to vector<3x3x64xf32>
    %361 = arith.mulf %360, %358 : vector<3x3x64xf32>
    %362 = arith.addf %355, %361 : vector<3x3x64xf32>
    %c0_25 = arith.constant 0 : index
    %c0_26 = arith.constant 0 : index
    %c0_27 = arith.constant 0 : index
    %c0_28 = arith.constant 0 : index
    %363 = vector.load %arg4[%c0_25, %c0_26, %c0_27, %c0_28] : memref<1x3x3x64xf32, #tpu.memory_space<vmem>>, vector<1x3x3x64xf32>
    %364 = vector.shape_cast %363 : vector<1x3x3x64xf32> to vector<3x3x64xf32>
    %365 = vector.shape_cast %362 : vector<3x3x64xf32> to vector<1x3x3x64xf32>
    tpu.vector_store %arg4[%c0_25, %c0_26, %c0_27, %c0_28], %365 {strides = array<i32>} : memref<1x3x3x64xf32, #tpu.memory_space<vmem>>, vector<1x3x3x64xf32>,
    return
  }
  func.func @transform_0(%arg0: i32) -> (i32, i32, i32, i32) {
    %c0_i32 = arith.constant 0 : i32
    %c0_i32_0 = arith.constant 0 : i32
    %c0_i32_1 = arith.constant 0 : i32
    %c0_i32_2 = arith.constant 0 : i32
    return %arg0, %c0_i32, %c0_i32_0, %c0_i32_1 : i32, i32, i32, i32
  }
  func.func @transform_1(%arg0: i32) -> (i32, i32) {
    %c0_i32 = arith.constant 0 : i32
    %c0_i32_0 = arith.constant 0 : i32
    %c0_i32_1 = arith.constant 0 : i32
    return %c0_i32, %c0_i32_0 : i32, i32
  }
  func.func @transform_2(%arg0: i32) -> (i32, i32) {
    %c0_i32 = arith.constant 0 : i32
    %c0_i32_0 = arith.constant 0 : i32
    %c0_i32_1 = arith.constant 0 : i32
    return %c0_i32, %c0_i32_0 : i32, i32
  }
  func.func @transform_3(%arg0: i32) -> (i32, i32, i32, i32) {
    %c0_i32 = arith.constant 0 : i32
    %c0_i32_0 = arith.constant 0 : i32
    %c0_i32_1 = arith.constant 0 : i32
    %c0_i32_2 = arith.constant 0 : i32
    return %arg0, %c0_i32, %c0_i32_0, %c0_i32_1 : i32, i32, i32, i32
  }
}

</mosaic_0001>

<llo_original>
// kernel: transmil_forward.11
$region0: #{transmil_forward.11}
  #allocation0 [shape = 'u32[]', space=smem, size = 0x4, offset = 0x4, fixed_abs, tag = 'smem constant byte address 0x4 - core index']
  #allocation1 [shape = 'u32[144,128]{1,0:T(1,128)}', space=vmem, size = 0x12000, scoped, tag = 'internal scratch']
  %s0 = inlined_call_operand.vmem [shape: f32[16,48], index: 0, kind: input, shape index: {}]
  %s1 = inlined_call_operand.vmem [shape: bf16[48,64], index: 1, kind: input, shape index: {}]
  %s2 = inlined_call_operand.vmem [shape: f32[1,64], index: 2, kind: input, shape index: {}]
  %s3 = inlined_call_operand.vmem [shape: f32[16,64], index: 3, kind: output, shape index: {}]
  %s4 = sld [smem:[#allocation0]]
  $region22: #{transmil_forward.11} parent=0
    _
  %s6 = ssub.s32 1, %s4
  %s7 = scalar_select 0, %s6, %s4
  // Predicated region
  $region2: #{transmil_forward.11} parent=0 // pred_check
    _
  $region3: #{transmil_forward.11} parent=0 // pred_check_branch
    %9 = sbr.rel (0) target = $region5
  $region4: #{transmil_forward.11} parent=0 // pred_region
    _
  $region5: #{transmil_forward.11} parent=0 // pred_fallthru
    _
  // Predicated region
  $region6: #{transmil_forward.11} parent=0 // pred_check
    _
  $region7: #{transmil_forward.11} parent=0 // pred_check_branch
    %11 = sbr.rel (0) target = $region9
  $region8: #{transmil_forward.11} parent=0 // pred_region
    _
  $region9: #{transmil_forward.11} parent=0 // pred_fallthru
    _
  // Predicated region
  $region10: #{transmil_forward.11} parent=0 // pred_check
    _
  $region11: #{transmil_forward.11} parent=0 // pred_check_branch
    %13 = sbr.rel (0) target = $region13
  $region12: #{transmil_forward.11} parent=0 // pred_region
    _
  $region13: #{transmil_forward.11} parent=0 // pred_fallthru
    _
  %v15 = vld [vmem:[%s0] sm:$0xff]
  %v16 = vld [vmem:[%s0 + $0x8] sm:$0xff]
  %v17 = vpack.c.bf16 %v16, %v15
  %v18 = vld [vmem:[%s1] sm:$0xf]
  %v19 = vld [vmem:[%s1 + $0x4] sm:$0xf]
  %v20 = vld [vmem:[%s1 + $0x8] sm:$0xf]
  %v21 = vld [vmem:[%s1 + $0xc] sm:$0xf]
  %v22 = vld [vmem:[%s1 + $0x10] sm:$0xf]
  %v23 = vld [vmem:[%s1 + $0x14] sm:$0xf]
  %v24 = vld [vmem:[%s2] sm:$0x1]
  %v26 = vlaneseq
  %v27 = vshrl.u32 %v26, 7
  %v28 = vsub.s32 0, %v27
  %v29 = vrot.slane %v24, %v28
  %v37 = vunpack.c.l.b16 %v18
  %v38 = vunpack.c.l.b16 %v19
  %v39 = vunpack.c.l.b16 %v20
  %v40 = vunpack.c.l.b16 %v21
  %v41 = vunpack.c.l.b16 %v22
  %v42 = vunpack.c.l.b16 %v23
  %v43 = vpack.c.b16 %v38, %v37
  %v44 = vpack.c.b16 %v40, %v39
  %v45 = vpack.c.b16 %v42, %v41
  %vm49 = vcmask 392192
  %v51 = vsel %vm49, %v17, 0
  %53 = vmatprep.subr.bf16.mxu0 0
  %54 = vmatpush1.bf16.msra.mxu0 %v43
  %55 = vmatprep.subr.bf16.mxu0 0
  %56 = vmatpush1.bf16.msra.mxu0 %v44
  %57 = vmatprep.subr.bf16.mxu0 0
  %58 = vmatpush1.bf16.msra.mxu0 %v45
  %59 = vmatprep.subr.bf16.mxu0 0
  %60 = vmatpush1.bf16.msra.mxu0 0
  %61 = vmatprep.subr.bf16.mxu0 0
  %62 = vmatpush1.bf16.msra.mxu0 0
  %63 = vmatprep.subr.bf16.mxu0 0
  %64 = vmatpush1.bf16.msra.mxu0 0
  %65 = vmatprep.subr.bf16.mxu0 0
  %66 = vmatpush1.bf16.msra.mxu0 0
  %67 = vmatprep.subr.bf16.mxu0 0
  %68 = vmatpush1.bf16.msra.mxu0 0
  %69 = vmatprep.subr.bf16.mxu0 0
  %70 = vmatpush1.bf16.msra.mxu0 0
  %71 = vmatprep.subr.bf16.mxu0 0
  %72 = vmatpush1.bf16.msra.mxu0 0
  %73 = vmatprep.subr.bf16.mxu0 0
  %74 = vmatpush1.bf16.msra.mxu0 0
  %75 = vmatprep.subr.bf16.mxu0 0
  %76 = vmatpush1.bf16.msra.mxu0 0
  %77 = vmatprep.subr.bf16.mxu0 0
  %78 = vmatpush1.bf16.msra.mxu0 0
  %79 = vmatprep.subr.bf16.mxu0 0
  %80 = vmatpush1.bf16.msra.mxu0 0
  %81 = vmatprep.subr.bf16.mxu0 0
  %82 = vmatpush1.bf16.msra.mxu0 0
  %83 = vmatprep.subr.bf16.mxu0 0
  %84 = vmatpush1.bf16.msra.mxu0 0
  %85 = vmatprep.mubr.bf16.mxu0 0
  %86 = vmatmul.mubr.bf16.gmra.mrb[0].mxu0 %v51
  %v87 = vpop.f32.mrb[0].mxu0
  %v88 = vadd.f32 %v29, %v87
  %v89 = vpop.f32.mrb[0].mxu0
  %v90 = vpop.f32.mrb[0].mxu0
  %v91 = vadd.f32 %v29, %v90
  %v92 = vpop.f32.mrb[0].mxu0
  %93 = vdwg.mxu0
  %v94 = vmax.f32 %v88, 0.0
  %v95 = vmax.f32 %v91, 0.0
  %vm96 = vcmask 523264
  %97 = vst.msk [vmem:[%s3] sm:$0xff] %vm96, %v94
  %98 = vst.msk [vmem:[%s3 + $0x8] sm:$0xff] %vm96, %v95
  // Predicated region
  $region14: #{transmil_forward.11} parent=0 // pred_check
    _
  $region15: #{transmil_forward.11} parent=0 // pred_check_branch
    %100 = sbr.rel (0) target = $region17
  $region16: #{transmil_forward.11} parent=0 // pred_region
    _
  $region17: #{transmil_forward.11} parent=0 // pred_fallthru
    _
  // Predicated region
  $region18: #{transmil_forward.11} parent=0 // pred_check
    _
  $region19: #{transmil_forward.11} parent=0 // pred_check_branch
    %102 = sbr.rel (0) target = $region21
  $region20: #{transmil_forward.11} parent=0 // pred_region
    _
  $region21: #{transmil_forward.11} parent=0 // pred_fallthru
    _

// kernel: transmil_forward.12
$region0: #{transmil_forward.12}
  #allocation0 [shape = 'u32[]', space=smem, size = 0x4, offset = 0x4, fixed_abs, tag = 'smem constant byte address 0x4 - core index']
  #allocation1 [shape = 'u32[144,128]{1,0:T(1,128)}', space=vmem, size = 0x12000, scoped, tag = 'internal scratch']
  %s0 = inlined_call_operand.vmem [shape: f32[20,64], index: 0, kind: input, shape index: {}]
  %s1 = inlined_call_operand.vmem [shape: f32[1,64], index: 1, kind: input, shape index: {}]
  %s2 = inlined_call_operand.vmem [shape: f32[1,64], index: 2, kind: input, shape index: {}]
  %s3 = inlined_call_operand.vmem [shape: bf16[64,192], index: 3, kind: input, shape index: {}]
  %s4 = inlined_call_operand.vmem [shape: bf16[20,192], index: 4, kind: output, shape index: {}]
  %s5 = sld [smem:[#allocation0]]
  $region26: #{transmil_forward.12} parent=0
    _
  %s7 = ssub.s32 1, %s5
  %s8 = scalar_select 0, %s7, %s5
  // Predicated region
  $region2: #{transmil_forward.12} parent=0 // pred_check
    _
  $region3: #{transmil_forward.12} parent=0 // pred_check_branch
    %10 = sbr.rel (0) target = $region5
  $region4: #{transmil_forward.12} parent=0 // pred_region
    _
  $region5: #{transmil_forward.12} parent=0 // pred_fallthru
    _
  // Predicated region
  $region6: #{transmil_forward.12} parent=0 // pred_check
    _
  $region7: #{transmil_forward.12} parent=0 // pred_check_branch
    %12 = sbr.rel (0) target = $region9
  $region8: #{transmil_forward.12} parent=0 // pred_region
    _
  $region9: #{transmil_forward.12} parent=0 // pred_fallthru
    _
  // Predicated region
  $region10: #{transmil_forward.12} parent=0 // pred_check
    _
  $region11: #{transmil_forward.12} parent=0 // pred_check_branch
    %14 = sbr.rel (0) target = $region13
  $region12: #{transmil_forward.12} parent=0 // pred_region
    _
  $region13: #{transmil_forward.12} parent=0 // pred_fallthru
    _
  // Predicated region
  $region14: #{transmil_forward.12} parent=0 // pred_check
    _
  $region15: #{transmil_forward.12} parent=0 // pred_check_branch
    %16 = sbr.rel (0) target = $region17
  $region16: #{transmil_forward.12} parent=0 // pred_region
    _
  $region17: #{transmil_forward.12} parent=0 // pred_fallthru
    _
  %v18 = vld [vmem:[%s0] sm:$0xff]
  %v19 = vld [vmem:[%s0 + $0x8] sm:$0xff]
  %v20 = vld [vmem:[%s0 + $0x10] sm:$0xf]
  %v21 = vld [vmem:[%s1] sm:$0x1]
  %v22 = vld [vmem:[%s2] sm:$0x1]
  %vm23 = vcmask 523264
  %v24 = vsel %vm23, %v18, 0.0
  %25 = vadd.xlane.f32.xlu0 %v24
  %v26 = vpop.xlane.xlu0 %25
  %v27 = vsel %vm23, %v19, 0.0
  %28 = vadd.xlane.f32.xlu0 %v27
  %v29 = vpop.xlane.xlu0 %28
  %vm30 = vcmask 519168
  %v31 = vsel %vm30, %v20, 0.0
  %32 = vadd.xlane.f32.xlu0 %v31
  %v33 = vpop.xlane.xlu0 %32
  %v34 = vrcp.pop 64.0
  %v35 = vmul.f32 %v26, %v34
  %v36 = vmul.f32 %v29, %v34
  %v37 = vmul.f32 %v33, %v34
  %v38 = vsub.f32 %v18, %v35
  %v39 = vsub.f32 %v19, %v36
  %v40 = vsub.f32 %v20, %v37
  %v41 = vmul.f32 %v38, %v38
  %v42 = vmul.f32 %v39, %v39
  %v43 = vmul.f32 %v40, %v40
  %v44 = vsel %vm23, %v41, 0.0
  %45 = vadd.xlane.f32.xlu0 %v44
  %v46 = vpop.xlane.xlu0 %45
  %v47 = vsel %vm23, %v42, 0.0
  %48 = vadd.xlane.f32.xlu0 %v47
  %v49 = vpop.xlane.xlu0 %48
  %v50 = vsel %vm30, %v43, 0.0
  %51 = vadd.xlane.f32.xlu0 %v50
  %v52 = vpop.xlane.xlu0 %51
  %v53 = vmul.f32 %v46, %v34
  %v54 = vmul.f32 %v49, %v34
  %v55 = vmul.f32 %v52, %v34
  %v56 = vadd.f32 %v53, 1e-05
  %v57 = vadd.f32 %v54, 1e-05
  %v58 = vadd.f32 %v55, 1e-05
  %v59 = vrsqrt.pop %v56
  %v60 = vrsqrt.pop %v57
  %v61 = vrsqrt.pop %v58
  %v62 = vmul.f32 %v38, %v59
  %v63 = vmul.f32 %v39, %v60
  %v64 = vmul.f32 %v40, %v61
  %v66 = vlaneseq
  %v67 = vshrl.u32 %v66, 7
  %v68 = vsub.s32 0, %v67
  %v69 = vrot.slane %v21, %v68
  %v71 = vmul.f32 %v62, %v69
  %v72 = vmul.f32 %v63, %v69
  %v73 = vmul.f32 %v64, %v69
  %v75 = vlaneseq
  %v76 = vshrl.u32 %v75, 7
  %v77 = vsub.s32 0, %v76
  %v78 = vrot.slane %v22, %v77
  %v80 = vadd.f32 %v71, %v78
  %v81 = vadd.f32 %v72, %v78
  %v82 = vadd.f32 %v73, %v78
  %v83 = vpack.c.bf16 %v81, %v80
  %v84 = vpack.c.bf16 %v82, %v82
  %v85 = vld [vmem:[%s3] sm:$0xff]
  %v86 = vld [vmem:[%s3 + $0x8] sm:$0xff]
  %v87 = vld [vmem:[%s3 + $0x10] sm:$0xff]
  %v88 = vld [vmem:[%s3 + $0x18] sm:$0xff]
  %v89 = vld [vmem:[%s3 + $0x20] sm:$0xff]
  %v90 = vld [vmem:[%s3 + $0x28] sm:$0xff]
  %v91 = vld [vmem:[%s3 + $0x30] sm:$0xff]
  %v92 = vld [vmem:[%s3 + $0x38] sm:$0xff]
  %v101 = vunpack.c.l.b16 %v85
  %v102 = vunpack.c.h.b16 %v85
  %v103 = vunpack.c.l.b16 %v86
  %v104 = vunpack.c.h.b16 %v86
  %v105 = vunpack.c.l.b16 %v87
  %v106 = vunpack.c.h.b16 %v87
  %v107 = vunpack.c.l.b16 %v88
  %v108 = vunpack.c.h.b16 %v88
  %v109 = vunpack.c.l.b16 %v89
  %v110 = vunpack.c.h.b16 %v89
  %v111 = vunpack.c.l.b16 %v90
  %v112 = vunpack.c.h.b16 %v90
  %v113 = vunpack.c.l.b16 %v91
  %v114 = vunpack.c.h.b16 %v91
  %v115 = vunpack.c.l.b16 %v92
  %v116 = vunpack.c.h.b16 %v92
  %v117 = vpack.c.b16 %v103, %v101
  %v118 = vpack.c.b16 %v104, %v102
  %v119 = vpack.c.b16 %v107, %v105
  %v120 = vpack.c.b16 %v108, %v106
  %v121 = vpack.c.b16 %v111, %v109
  %v122 = vpack.c.b16 %v112, %v110
  %v123 = vpack.c.b16 %v115, %v113
  %v124 = vpack.c.b16 %v116, %v114
  %v134 = vsel %vm23, %v83, 0
  %v137 = vsel %vm23, %v84, 0
  %139 = vmatprep.subr.bf16.mxu0 %v118
  %140 = vmatpush1.bf16.msra.mxu0 %v117
  %141 = vmatprep.subr.bf16.mxu0 %v120
  %142 = vmatpush1.bf16.msra.mxu0 %v119
  %143 = vmatprep.subr.bf16.mxu0 %v122
  %144 = vmatpush1.bf16.msra.mxu0 %v121
  %145 = vmatprep.subr.bf16.mxu0 %v124
  %146 = vmatpush1.bf16.msra.mxu0 %v123
  %147 = vmatprep.subr.bf16.mxu0 0
  %148 = vmatpush1.bf16.msra.mxu0 0
  %149 = vmatprep.subr.bf16.mxu0 0
  %150 = vmatpush1.bf16.msra.mxu0 0
  %151 = vmatprep.subr.bf16.mxu0 0
  %152 = vmatpush1.bf16.msra.mxu0 0
  %153 = vmatprep.subr.bf16.mxu0 0
  %154 = vmatpush1.bf16.msra.mxu0 0
  %155 = vmatprep.subr.bf16.mxu0 0
  %156 = vmatpush1.bf16.msra.mxu0 0
  %157 = vmatprep.subr.bf16.mxu0 0
  %158 = vmatpush1.bf16.msra.mxu0 0
  %159 = vmatprep.subr.bf16.mxu0 0
  %160 = vmatpush1.bf16.msra.mxu0 0
  %161 = vmatprep.subr.bf16.mxu0 0
  %162 = vmatpush1.bf16.msra.mxu0 0
  %163 = vmatprep.subr.bf16.mxu0 0
  %164 = vmatpush1.bf16.msra.mxu0 0
  %165 = vmatprep.subr.bf16.mxu0 0
  %166 = vmatpush1.bf16.msra.mxu0 0
  %167 = vmatprep.subr.bf16.mxu0 0
  %168 = vmatpush1.bf16.msra.mxu0 0
  %169 = vmatprep.subr.bf16.mxu0 0
  %170 = vmatpush1.bf16.msra.mxu0 0
  %171 = vmatprep.mubr.bf16.mxu0 0
  %172 = vmatmul.mubr.bf16.gmra.mrb[0].mxu0 %v134
  %v173 = vpop.f32.mrb[0].mxu0
  %v174 = vadd.f32 0.0, %v173
  %v175 = vpop.f32.mrb[0].mxu0
  %v176 = vadd.f32 0.0, %v175
  %v177 = vpop.f32.mrb[0].mxu0
  %v178 = vadd.f32 0.0, %v177
  %v179 = vpop.f32.mrb[0].mxu0
  %v180 = vadd.f32 0.0, %v179
  %181 = vmatprep.mubr.bf16.mxu0 0
  %182 = vmatmul.mubr.bf16.gmra.mrb[0].mxu0 %v137
  %v183 = vpop.f32.mrb[0].mxu0
  %v184 = vadd.f32 0.0, %v183
  %v185 = vpop.f32.mrb[0].mxu0
  %v186 = vadd.f32 0.0, %v185
  %v187 = vpop.f32.mrb[0].mxu0
  %v188 = vpop.f32.mrb[0].mxu0
  %189 = vdwg.mxu0
  %v190 = vpack.c.bf16 %v178, %v174
  %v191 = vpack.c.bf16 %v180, %v176
  %v192 = vpack.c.bf16 %v184, %v184
  %v193 = vpack.c.bf16 %v186, %v186
  %v198 = vunpack.c.l.b16 %v190
  %v199 = vunpack.c.l.b16 %v191
  %v200 = vunpack.c.h.b16 %v190
  %v201 = vunpack.c.h.b16 %v191
  %v202 = vunpack.c.l.b16 %v192
  %v203 = vunpack.c.l.b16 %v193
  %v204 = vpack.c.b16 %v199, %v198
  %v205 = vpack.c.b16 %v201, %v200
  %v206 = vpack.c.b16 %v203, %v202
  %vm210 = vcmask 1043456
  %vm211 = vcmask 523268
  %vm212 = vmor %vm211, %vm210
  %213 = vst.msk [vmem:[%s4] sm:$0xff] %vm212, %v204
  %214 = vst.msk [vmem:[%s4 + $0x8] sm:$0xff] %vm212, %v205
  %vm215 = vcmask 1041408
  %vm216 = vcmask 521220
  %vm217 = vmor %vm216, %vm215
  %218 = vst.msk [vmem:[%s4 + $0x10] sm:$0x33] %vm217, %v206
  // Predicated region
  $region18: #{transmil_forward.12} parent=0 // pred_check
    _
  $region19: #{transmil_forward.12} parent=0 // pred_check_branch
    %220 = sbr.rel (0) target = $region21
  $region20: #{transmil_forward.12} parent=0 // pred_region
    _
  $region21: #{transmil_forward.12} parent=0 // pred_fallthru
    _
  // Predicated region
  $region22: #{transmil_forward.12} parent=0 // pred_check
    _
  $region23: #{transmil_forward.12} parent=0 // pred_check_branch
    %222 = sbr.rel (0) target = $region25
  $region24: #{transmil_forward.12} parent=0 // pred_region
    _
  $region25: #{transmil_forward.12} parent=0 // pred_fallthru
    _

// kernel: transmil_forward.13
$region0: #{transmil_forward.13}
  #allocation0 [shape = 'u32[]', space=smem, size = 0x4, offset = 0x4, fixed_abs, tag = 'smem constant byte address 0x4 - core index']
  #allocation1 [shape = 'u32[144,128]{1,0:T(1,128)}', space=vmem, size = 0x12000, scoped, tag = 'internal scratch']
  %s0 = inlined_call_operand.hbm [shape: bf16[2,8,32,8], index: 0, kind: input, shape index: {}]
  %s1 = inlined_call_operand.hbm [shape: bf16[2,8,32,8], index: 1, kind: input, shape index: {}]
  %s2 = inlined_call_operand.hbm [shape: bf16[32,32], index: 2, kind: input, shape index: {}]
  %s3 = inlined_call_operand.hbm [shape: bf16[2,8,32,8], index: 3, kind: output, shape index: {0}]
  %s4 = inlined_call_operand.hbm [shape: bf16[2,8,32,8], index: 4, kind: output, shape index: {1}]
  %s5 = inlined_call_operand.hbm [shape: f32[2,8,32,32], index: 5, kind: output, shape index: {2}]
  %6 = xla_tuple %s3, %s4, %s5
  %s7 = sld [smem:[#allocation0]]
  $region73: #{transmil_forward.13} parent=0
    _
  %s9 = ssub.s32 1, %s7
  %s10 = scalar_select 0, %s9, %s7
  $region1: #{transmil_forward.13} parent=0
    #allocation2 [shape = 'u8[16384]{0}', space=vmem, size = 0x4000, scoped, tag = 'input window, operand 0']
    #allocation3 [shape = 's32[2]{0}', space=sflag, size = 0x8, scoped, tag = 'scoped memory for transmil_forward.13']
    #allocation4 [shape = 's32[2]{0}', space=sflag, size = 0x8, scoped, tag = 'scoped memory for transmil_forward.13']
    #allocation5 [shape = 'u8[16384]{0}', space=vmem, size = 0x4000, scoped, tag = 'input window, operand 1']
    #allocation6 [shape = 's32[2]{0}', space=sflag, size = 0x8, scoped, tag = 'scoped memory for transmil_forward.13']
    #allocation7 [shape = 'u8[8192]{0}', space=vmem, size = 0x2000, scoped, tag = 'input window, operand 2, single buffered']
    #allocation8 [shape = 'u8[16384]{0}', space=vmem, size = 0x4000, scoped, tag = 'output window, operand 0']
    #allocation9 [shape = 'u8[16384]{0}', space=vmem, size = 0x4000, scoped, tag = 'output window, operand 1']
    #allocation10 [shape = 's32[2]{0}', space=sflag, size = 0x8, scoped, tag = 'scoped memory for transmil_forward.13']
    #allocation11 [shape = 'u8[32768]{0}', space=vmem, size = 0x8000, scoped, tag = 'output window, operand 2']
    %11 = vsyncpa [#allocation3], 0
    %s12 = scalar_lea.sflag [#allocation3], 1
    %13 = vsyncpa %s12, 0
    %14 = vsyncpa [#allocation6], 0
    %s15 = scalar_lea.sflag [#allocation6], 1
    %16 = vsyncpa %s15, 0
    %17 = vsyncpa [#allocation4], 0
    %s18 = scalar_lea.sflag [#allocation4], 1
    %19 = vsyncpa %s18, 0
    %20 = vsyncpa [#allocation10], 0
    %s21 = scalar_lea.sflag [#allocation10], 1
    %22 = vsyncpa %s21, 0
    loop: start=0, step=1, limit=18
    $region2: #{transmil_forward.13} parent=1 // loop_pre_header
      _
    $region3: #{transmil_forward.13} parent=1 // loop_header
      %s24 = sphi 0, %s28
      %p25 = scmp.ge.s32.totalorder %s24, 18
      %s31 = sphi 0, %s43
      %s32 = sphi 0, %s39
      %s33 = sphi 0, %s31
      %s34 = sphi 0, %s32
      %s35 = sphi 0, %s33
      %s36 = sphi 0, %s34
      %s48 = sphi 0, %s50
      %s51 = sphi 0, %s48
      %s52 = sphi 0, %s51
      %s68 = sphi 0, %s52
      %s76 = sphi 0, %s78
      %s79 = sphi 0, %s76
      %s80 = sphi 0, %s79
      %s96 = sphi 0, %s80
      %s100 = sphi 0, %s100
      %s102 = sphi 0, %s100
      %s103 = sphi 0, %s102
      %s117 = sphi 0, %s103
      %s125 = sphi 0, %s127
      %s128 = sphi 0, %s125
      %s129 = sphi 0, %s128
      %s145 = sphi 0, %s129
      %s153 = sphi 0, %s155
      %s156 = sphi 0, %s153
      %s157 = sphi 0, %s156
      %s173 = sphi 0, %s157
      %s181 = sphi 0, %s183
      %s184 = sphi 0, %s181
      %s185 = sphi 0, %s184
      %s201 = sphi 0, %s185
    $region4: #{transmil_forward.13} parent=1 // loop_header_branch
      %27 = sbr.rel (%p25) target = $region8
    $region5: #{transmil_forward.13} parent=1 // loop_body
      %s29 = ssub.s32 %s24, 1
      %s30 = ssub.s32 %s24, 2
      %s37 = sadd.s32 1, %s32
      %p38 = scmp.ge.s32.totalorder %s37, 8
      %s39 = scalar_select %p38, 0, %s37
      %s40 = sadd.s32 1, %s31
      %s41 = scalar_select %p38, %s40, %s31
      %p42 = scmp.ge.s32.totalorder %s41, 2
      %s43 = scalar_select %p42, 0, %s41
      %s44 = ssub.s32 %s31, %s43
      %s45 = ssub.s32 %s32, %s39
      %s46 = sor.u32 %s44, %s45
      %p47 = scmp.eq.s32.totalorder %s46, 0
      %s49 = sadd.s32 %s48, 1
      %s50 = scalar_select %p47, %s48, %s49
      %p53 = pneg %p47
      %p54 = scmp.eq.s32.totalorder %s24, 15
      %p55 = por %p53, %p54
      %p56 = scmp.ne.s32.totalorder %s48, %s51
      %p57 = scmp.eq.s32.totalorder %s24, 0
      %p58 = por %p56, %p57
      %p59 = scmp.ne.s32.totalorder %s48, %s51
      %p60 = scmp.eq.s32.totalorder %s29, 15
      %p61 = por %p59, %p60
      %p62 = scmp.ne.s32.totalorder %s51, %s52
      %p63 = scmp.eq.s32.totalorder %s29, 0
      %p64 = por %p62, %p63
      %p65 = scmp.ne.s32.totalorder %s51, %s52
      %p66 = scmp.eq.s32.totalorder %s30, 15
      %p67 = por %p65, %p66
      %p69 = scmp.ne.s32.totalorder %s52, %s68
      %p70 = scmp.eq.s32.totalorder %s30, 0
      %p71 = por %p69, %p70
      %s72 = ssub.s32 %s31, %s43
      %s73 = ssub.s32 %s32, %s39
      %s74 = sor.u32 %s72, %s73
      %p75 = scmp.eq.s32.totalorder %s74, 0
      %s77 = sadd.s32 %s76, 1
      %s78 = scalar_select %p75, %s76, %s77
      %p81 = pneg %p75
      %p82 = scmp.eq.s32.totalorder %s24, 15
      %p83 = por %p81, %p82
      %p84 = scmp.ne.s32.totalorder %s76, %s79
      %p85 = scmp.eq.s32.totalorder %s24, 0
      %p86 = por %p84, %p85
      %p87 = scmp.ne.s32.totalorder %s76, %s79
      %p88 = scmp.eq.s32.totalorder %s29, 15
      %p89 = por %p87, %p88
      %p90 = scmp.ne.s32.totalorder %s79, %s80
      %p91 = scmp.eq.s32.totalorder %s29, 0
      %p92 = por %p90, %p91
      %p93 = scmp.ne.s32.totalorder %s79, %s80
      %p94 = scmp.eq.s32.totalorder %s30, 15
      %p95 = por %p93, %p94
      %p97 = scmp.ne.s32.totalorder %s80, %s96
      %p98 = scmp.eq.s32.totalorder %s30, 0
      %p99 = por %p97, %p98
      %s101 = sadd.s32 %s100, 1
      %p104 = scmp.eq.s32.totalorder %s24, 15
      %p105 = scmp.ne.s32.totalorder %s100, %s102
      %p106 = scmp.eq.s32.totalorder %s24, 0
      %p107 = por %p105, %p106
      %p108 = scmp.ne.s32.totalorder %s100, %s102
      %p109 = scmp.eq.s32.totalorder %s29, 15
      %p110 = por %p108, %p109
      %p111 = scmp.ne.s32.totalorder %s102, %s103
      %p112 = scmp.eq.s32.totalorder %s29, 0
      %p113 = por %p111, %p112
      %p114 = scmp.ne.s32.totalorder %s102, %s103
      %p115 = scmp.eq.s32.totalorder %s30, 15
      %p116 = por %p114, %p115
      %p118 = scmp.ne.s32.totalorder %s103, %s117
      %p119 = scmp.eq.s32.totalorder %s30, 0
      %p120 = por %p118, %p119
      %s121 = ssub.s32 %s31, %s43
      %s122 = ssub.s32 %s32, %s39
      %s123 = sor.u32 %s121, %s122
      %p124 = scmp.eq.s32.totalorder %s123, 0
      %s126 = sadd.s32 %s125, 1
      %s127 = scalar_select %p124, %s125, %s126
      %p130 = pneg %p124
      %p131 = scmp.eq.s32.totalorder %s24, 15
      %p132 = por %p130, %p131
      %p133 = scmp.ne.s32.totalorder %s125, %s128
      %p134 = scmp.eq.s32.totalorder %s24, 0
      %p135 = por %p133, %p134
      %p136 = scmp.ne.s32.totalorder %s125, %s128
      %p137 = scmp.eq.s32.totalorder %s29, 15
      %p138 = por %p136, %p137
      %p139 = scmp.ne.s32.totalorder %s128, %s129
      %p140 = scmp.eq.s32.totalorder %s29, 0
      %p141 = por %p139, %p140
      %p142 = scmp.ne.s32.totalorder %s128, %s129
      %p143 = scmp.eq.s32.totalorder %s30, 15
      %p144 = por %p142, %p143
      %p146 = scmp.ne.s32.totalorder %s129, %s145
      %p147 = scmp.eq.s32.totalorder %s30, 0
      %p148 = por %p146, %p147
      %s149 = ssub.s32 %s31, %s43
      %s150 = ssub.s32 %s32, %s39
      %s151 = sor.u32 %s149, %s150
      %p152 = scmp.eq.s32.totalorder %s151, 0
      %s154 = sadd.s32 %s153, 1
      %s155 = scalar_select %p152, %s153, %s154
      %p158 = pneg %p152
      %p159 = scmp.eq.s32.totalorder %s24, 15
      %p160 = por %p158, %p159
      %p161 = scmp.ne.s32.totalorder %s153, %s156
      %p162 = scmp.eq.s32.totalorder %s24, 0
      %p163 = por %p161, %p162
      %p164 = scmp.ne.s32.totalorder %s153, %s156
      %p165 = scmp.eq.s32.totalorder %s29, 15
      %p166 = por %p164, %p165
      %p167 = scmp.ne.s32.totalorder %s156, %s157
      %p168 = scmp.eq.s32.totalorder %s29, 0
      %p169 = por %p167, %p168
      %p170 = scmp.ne.s32.totalorder %s156, %s157
      %p171 = scmp.eq.s32.totalorder %s30, 15
      %p172 = por %p170, %p171
      %p174 = scmp.ne.s32.totalorder %s157, %s173
      %p175 = scmp.eq.s32.totalorder %s30, 0
      %p176 = por %p174, %p175
      %s177 = ssub.s32 %s31, %s43
      %s178 = ssub.s32 %s32, %s39
      %s179 = sor.u32 %s177, %s178
      %p180 = scmp.eq.s32.totalorder %s179, 0
      %s182 = sadd.s32 %s181, 1
      %s183 = scalar_select %p180, %s181, %s182
      %p186 = pneg %p180
      %p187 = scmp.eq.s32.totalorder %s24, 15
      %p188 = por %p186, %p187
      %p189 = scmp.ne.s32.totalorder %s181, %s184
      %p190 = scmp.eq.s32.totalorder %s24, 0
      %p191 = por %p189, %p190
      %p192 = scmp.ne.s32.totalorder %s181, %s184
      %p193 = scmp.eq.s32.totalorder %s29, 15
      %p194 = por %p192, %p193
      %p195 = scmp.ne.s32.totalorder %s184, %s185
      %p196 = scmp.eq.s32.totalorder %s29, 0
      %p197 = por %p195, %p196
      %p198 = scmp.ne.s32.totalorder %s184, %s185
      %p199 = scmp.eq.s32.totalorder %s30, 15
      %p200 = por %p198, %p199
      %p202 = scmp.ne.s32.totalorder %s185, %s201
      %p203 = scmp.eq.s32.totalorder %s30, 0
      %p204 = por %p202, %p203
      %p205 = scmp.le.s32.totalorder 1, %s24
      %p206 = scmp.lt.s32.totalorder %s24, 17
      %p207 = pnand %p205, %p206
      %p208 = pneg %p207
      // Predicated region
      $region9: #{transmil_forward.13} parent=5 // pred_check
        _
      $region10: #{transmil_forward.13} parent=5 // pred_check_branch
        %210 = sbr.rel (%p207) target = $region12
      $region11: #{transmil_forward.13} parent=5 // pred_region
        %s211 = ssub.s32 %s24, 1
        // Predicated region
        $region13: #{transmil_forward.13} parent=11 // pred_check
          %p212 = pneg %p113
        $region14: #{transmil_forward.13} parent=11 // pred_check_branch
          %214 = sbr.rel (%p212) target = $region16
        $region15: #{transmil_forward.13} parent=11 // pred_region
          %s216 = ssub.s32 256, 256
          %217 = vsyncadd [#allocation6], %s216
          %s218 = sshll.u32 [#allocation7], 4
          %s219 = int_to_ptr.vmem [resolvable:$true] %s218
          %224 = dma.hbm_to_vmem [thread:$0]  %s2, 256, %s219, [#allocation6], 64, 64, 4
        $region16: #{transmil_forward.13} parent=11 // pred_fallthru
          _
      $region12: #{transmil_forward.13} parent=5 // pred_fallthru
        _
      %p225 = scmp.lt.s32.totalorder %s24, 16
      // Predicated region
      $region17: #{transmil_forward.13} parent=5 // pred_check
        %p226 = pneg %p225
      $region18: #{transmil_forward.13} parent=5 // pred_check_branch
        %228 = sbr.rel (%p226) target = $region20
      $region19: #{transmil_forward.13} parent=5 // pred_region
        // Predicated region
        $region21: #{transmil_forward.13} parent=19 // pred_check
          %p229 = pneg %p58
        $region22: #{transmil_forward.13} parent=19 // pred_check_branch
          %231 = sbr.rel (%p229) target = $region24
        $region23: #{transmil_forward.13} parent=19 // pred_region
          %s232 = sand.u32 %s48, 1
          %s233 = scalar_lea.sflag [#allocation3], %s232
          %s234 = sand.u32 %s48, 1
          %s235 = smul.addr %s234, 16
          %s236 = scalar_lea.vmem [#allocation2], %s235
          %s238 = ssub.s32 256, 256
          %239 = vsyncadd %s233, %s238
          %s240 = smul.addr %s32, 4
          %s241 = smul.addr %s31, 32
          %s242 = sadd.s32 %s240, %s241
          %s243 = smul.addr %s242, 64
          %s244 = scalar_lea.hbm %s0, %s243
          %s245 = sshll.u32 %s236, 4
          %s246 = int_to_ptr.vmem [resolvable:$true] %s245
          %251 = dma.hbm_to_vmem [thread:$0]  %s244, 256, %s246, %s233, 64, 64, 4
        $region24: #{transmil_forward.13} parent=19 // pred_fallthru
          _
        // Predicated region
        $region25: #{transmil_forward.13} parent=19 // pred_check
          %p252 = pneg %p86
        $region26: #{transmil_forward.13} parent=19 // pred_check_branch
          %254 = sbr.rel (%p252) target = $region28
        $region27: #{transmil_forward.13} parent=19 // pred_region
          %s255 = sand.u32 %s24, 1
          %s256 = scalar_lea.sflag [#allocation6], %s255
          %s257 = sand.u32 %s76, 1
          %s258 = smul.addr %s257, 16
          %s259 = scalar_lea.vmem [#allocation5], %s258
          %s261 = ssub.s32 256, 256
          %262 = vsyncadd %s256, %s261
          %s263 = smul.addr %s32, 4
          %s264 = smul.addr %s31, 32
          %s265 = sadd.s32 %s263, %s264
          %s266 = smul.addr %s265, 64
          %s267 = scalar_lea.hbm %s1, %s266
          %s268 = sshll.u32 %s259, 4
          %s269 = int_to_ptr.vmem [resolvable:$true] %s268
          %274 = dma.hbm_to_vmem [thread:$0]  %s267, 256, %s269, %s256, 64, 64, 4
        $region28: #{transmil_forward.13} parent=19 // pred_fallthru
          _
      $region20: #{transmil_forward.13} parent=5 // pred_fallthru
        _
      %p275 = scmp.le.s32.totalorder 1, %s24
      %p276 = scmp.lt.s32.totalorder %s24, 17
      %p277 = pnand %p275, %p276
      %p278 = pneg %p277
      // Predicated region
      $region29: #{transmil_forward.13} parent=5 // pred_check
        _
      $region30: #{transmil_forward.13} parent=5 // pred_check_branch
        %280 = sbr.rel (%p277) target = $region32
      $region31: #{transmil_forward.13} parent=5 // pred_region
        %s281 = ssub.s32 %s24, 1
        %s282 = sand.u32 %s51, 1
        %s283 = scalar_lea.sflag [#allocation3], %s282
        %s284 = sand.u32 %s51, 1
        %s285 = smul.addr %s284, 16
        %s286 = scalar_lea.vmem [#allocation2], %s285
        // Predicated region
        $region33: #{transmil_forward.13} parent=31 // pred_check
          %p287 = pneg %p64
        $region34: #{transmil_forward.13} parent=31 // pred_check_branch
          %289 = sbr.rel (%p287) target = $region36
        $region35: #{transmil_forward.13} parent=31 // pred_region
          %290 = dma.done %s283, 256
        $region36: #{transmil_forward.13} parent=31 // pred_fallthru
          _
        %s291 = sand.u32 %s29, 1
        %s292 = scalar_lea.sflag [#allocation6], %s291
        %s293 = sand.u32 %s79, 1
        %s294 = smul.addr %s293, 16
        %s295 = scalar_lea.vmem [#allocation5], %s294
        // Predicated region
        $region37: #{transmil_forward.13} parent=31 // pred_check
          %p296 = pneg %p92
        $region38: #{transmil_forward.13} parent=31 // pred_check_branch
          %298 = sbr.rel (%p296) target = $region40
        $region39: #{transmil_forward.13} parent=31 // pred_region
          %299 = dma.done %s292, 256
        $region40: #{transmil_forward.13} parent=31 // pred_fallthru
          _
        // Predicated region
        $region41: #{transmil_forward.13} parent=31 // pred_check
          %p300 = pneg %p113
        $region42: #{transmil_forward.13} parent=31 // pred_check_branch
          %302 = sbr.rel (%p300) target = $region44
        $region43: #{transmil_forward.13} parent=31 // pred_region
          %303 = dma.done [#allocation6], 256
        $region44: #{transmil_forward.13} parent=31 // pred_fallthru
          _
        %s304 = sand.u32 %s51, 1
        %s305 = scalar_lea.sflag [#allocation3], %s304
        %s306 = sand.u32 %s51, 1
        %s307 = smul.addr %s306, 16
        %s308 = scalar_lea.vmem [#allocation2], %s307
        %p309 = pneg %p64
        %p310 = pneg %p61
        %s311 = sand.u32 %s29, 1
        %s312 = scalar_lea.sflag [#allocation6], %s311
        %s313 = sand.u32 %s79, 1
        %s314 = smul.addr %s313, 16
        %s315 = scalar_lea.vmem [#allocation5], %s314
        %p316 = pneg %p92
        %p317 = pneg %p89
        %p318 = pneg %p113
        %p319 = pneg %p110
        %p320 = pneg %p141
        %p321 = pneg %p138
        %s322 = sand.u32 %s128, 1
        %s323 = scalar_lea.sflag [#allocation4], %s322
        %s324 = sand.u32 %s128, 1
        %s325 = smul.addr %s324, 16
        %s326 = scalar_lea.vmem [#allocation8], %s325
        %p327 = pneg %p169
        %p328 = pneg %p166
        %s329 = sand.u32 %s29, 1
        %s330 = scalar_lea.sflag [#allocation10], %s329
        %s331 = sand.u32 %s156, 1
        %s332 = smul.addr %s331, 16
        %s333 = scalar_lea.vmem [#allocation9], %s332
        %p334 = pneg %p197
        %p335 = pneg %p194
        %s336 = sand.u32 %s29, 1
        %s337 = scalar_lea.sflag [#allocation10], %s336
        %s338 = sand.u32 %s184, 1
        %s339 = smul.addr %s338, 32
        %s340 = scalar_lea.vmem [#allocation11], %s339
        %v342 = vld [vmem:[#allocation7] sm:$0xf]
        %v343 = vld [vmem:[#allocation7 + $0x4] sm:$0xf]
        %v344 = vld [vmem:[#allocation7 + $0x8] sm:$0xf]
        %v345 = vld [vmem:[#allocation7 + $0xc] sm:$0xf]
        %v346 = vld [vmem:[%s286] sm:$0xf]
        %v347 = vld [vmem:[%s286 + $0x4] sm:$0xf]
        %v348 = vld [vmem:[%s286 + $0x8] sm:$0xf]
        %v349 = vld [vmem:[%s286 + $0xc] sm:$0xf]
        %v350 = vld [vmem:[%s295] sm:$0xf]
        %v351 = vld [vmem:[%s295 + $0x4] sm:$0xf]
        %v352 = vld [vmem:[%s295 + $0x8] sm:$0xf]
        %v353 = vld [vmem:[%s295 + $0xc] sm:$0xf]
        %v358 = vunpack.c.l.b16 %v342
        %v359 = vunpack.c.l.b16 %v343
        %v360 = vunpack.c.l.b16 %v344
        %v361 = vunpack.c.l.b16 %v345
        %v362 = vpack.c.b16 %v359, %v358
        %v363 = vpack.c.b16 %v361, %v360
        %v368 = vunpack.c.l.b16 %v346
        %v369 = vunpack.c.l.b16 %v347
        %v370 = vunpack.c.l.b16 %v348
        %v371 = vunpack.c.l.b16 %v349
        %v372 = vpack.c.b16 %v369, %v368
        %v373 = vpack.c.b16 %v371, %v370
        %vm376 = vcmask 261120
        %v378 = vsel %vm376, %v362, 0
        %v381 = vsel %vm376, %v363, 0
        %383 = vmatprep.subr.bf16.mxu0 0
        %384 = vmatpush1.bf16.msra.mxu0 %v372
        %385 = vmatprep.subr.bf16.mxu0 0
        %386 = vmatpush1.bf16.msra.mxu0 %v373
        %387 = vmatprep.subr.bf16.mxu0 0
        %388 = vmatpush1.bf16.msra.mxu0 0
        %389 = vmatprep.subr.bf16.mxu0 0
        %390 = vmatpush1.bf16.msra.mxu0 0
        %391 = vmatprep.subr.bf16.mxu0 0
        %392 = vmatpush1.bf16.msra.mxu0 0
        %393 = vmatprep.subr.bf16.mxu0 0
        %394 = vmatpush1.bf16.msra.mxu0 0
        %395 = vmatprep.subr.bf16.mxu0 0
        %396 = vmatpush1.bf16.msra.mxu0 0
        %397 = vmatprep.subr.bf16.mxu0 0
        %398 = vmatpush1.bf16.msra.mxu0 0
        %399 = vmatprep.subr.bf16.mxu0 0
        %400 = vmatpush1.bf16.msra.mxu0 0
        %401 = vmatprep.subr.bf16.mxu0 0
        %402 = vmatpush1.bf16.msra.mxu0 0
        %403 = vmatprep.subr.bf16.mxu0 0
        %404 = vmatpush1.bf16.msra.mxu0 0
        %405 = vmatprep.subr.bf16.mxu0 0
        %406 = vmatpush1.bf16.msra.mxu0 0
        %407 = vmatprep.subr.bf16.mxu0 0
        %408 = vmatpush1.bf16.msra.mxu0 0
        %409 = vmatprep.subr.bf16.mxu0 0
        %410 = vmatpush1.bf16.msra.mxu0 0
        %411 = vmatprep.subr.bf16.mxu0 0
        %412 = vmatpush1.bf16.msra.mxu0 0
        %413 = vmatprep.subr.bf16.mxu0 0
        %414 = vmatpush1.bf16.msra.mxu0 0
        %415 = vmatprep.mubr.bf16.mxu0 0
        %416 = vmatmul.mubr.bf16.gmra.mrb[0].mxu0 %v378
        %v417 = vpop.f32.mrb[0].mxu0
        %v418 = vadd.f32 0.0, %v417
        %v419 = vpop.f32.mrb[0].mxu0
        %v420 = vpop.f32.mrb[0].mxu0
        %v421 = vadd.f32 0.0, %v420
        %v422 = vpop.f32.mrb[0].mxu0
        %423 = vmatprep.mubr.bf16.mxu0 0
        %424 = vmatmul.mubr.bf16.gmra.mrb[0].mxu0 %v381
        %v425 = vpop.f32.mrb[0].mxu0
        %v426 = vadd.f32 0.0, %v425
        %v427 = vpop.f32.mrb[0].mxu0
        %v428 = vpop.f32.mrb[0].mxu0
        %v429 = vadd.f32 0.0, %v428
        %v430 = vpop.f32.mrb[0].mxu0
        %431 = vdwg.mxu0
        %v436 = vunpack.c.l.b16 %v350
        %v437 = vunpack.c.l.b16 %v351
        %v438 = vunpack.c.l.b16 %v352
        %v439 = vunpack.c.l.b16 %v353
        %v440 = vpack.c.b16 %v437, %v436
        %v441 = vpack.c.b16 %v439, %v438
        %444 = vmatprep.subr.bf16.mxu0 0
        %445 = vmatpush1.bf16.msra.mxu0 %v440
        %446 = vmatprep.subr.bf16.mxu0 0
        %447 = vmatpush1.bf16.msra.mxu0 %v441
        %448 = vmatprep.subr.bf16.mxu0 0
        %449 = vmatpush1.bf16.msra.mxu0 0
        %450 = vmatprep.subr.bf16.mxu0 0
        %451 = vmatpush1.bf16.msra.mxu0 0
        %452 = vmatprep.subr.bf16.mxu0 0
        %453 = vmatpush1.bf16.msra.mxu0 0
        %454 = vmatprep.subr.bf16.mxu0 0
        %455 = vmatpush1.bf16.msra.mxu0 0
        %456 = vmatprep.subr.bf16.mxu0 0
        %457 = vmatpush1.bf16.msra.mxu0 0
        %458 = vmatprep.subr.bf16.mxu0 0
        %459 = vmatpush1.bf16.msra.mxu0 0
        %460 = vmatprep.subr.bf16.mxu0 0
        %461 = vmatpush1.bf16.msra.mxu0 0
        %462 = vmatprep.subr.bf16.mxu0 0
        %463 = vmatpush1.bf16.msra.mxu0 0
        %464 = vmatprep.subr.bf16.mxu0 0
        %465 = vmatpush1.bf16.msra.mxu0 0
        %466 = vmatprep.subr.bf16.mxu0 0
        %467 = vmatpush1.bf16.msra.mxu0 0
        %468 = vmatprep.subr.bf16.mxu0 0
        %469 = vmatpush1.bf16.msra.mxu0 0
        %470 = vmatprep.subr.bf16.mxu0 0
        %471 = vmatpush1.bf16.msra.mxu0 0
        %472 = vmatprep.subr.bf16.mxu0 0
        %473 = vmatpush1.bf16.msra.mxu0 0
        %474 = vmatprep.subr.bf16.mxu0 0
        %475 = vmatpush1.bf16.msra.mxu0 0
        %476 = vmatprep.mubr.bf16.mxu0 0
        %477 = vmatmul.mubr.bf16.gmra.mrb[0].mxu0 %v378
        %v478 = vpop.f32.mrb[0].mxu0
        %v479 = vadd.f32 0.0, %v478
        %v480 = vpop.f32.mrb[0].mxu0
        %v481 = vpop.f32.mrb[0].mxu0
        %v482 = vadd.f32 0.0, %v481
        %v483 = vpop.f32.mrb[0].mxu0
        %484 = vmatprep.mubr.bf16.mxu0 0
        %485 = vmatmul.mubr.bf16.gmra.mrb[0].mxu0 %v381
        %v486 = vpop.f32.mrb[0].mxu0
        %v487 = vadd.f32 0.0, %v486
        %v488 = vpop.f32.mrb[0].mxu0
        %v489 = vpop.f32.mrb[0].mxu0
        %v490 = vadd.f32 0.0, %v489
        %v491 = vpop.f32.mrb[0].mxu0
        %492 = vdwg.mxu0
        %v493 = vpack.c.bf16 %v421, %v418
        %v494 = vpack.c.bf16 %v429, %v426
        %v495 = vpack.c.bf16 %v482, %v479
        %v496 = vpack.c.bf16 %v490, %v487
        %v499 = vunpack.c.l.b16 %v493
        %v500 = vunpack.c.h.b16 %v493
        %v501 = vunpack.c.l.b16 %v494
        %v502 = vunpack.c.h.b16 %v494
        %v503 = vpack.c.b16 %v499, %v499
        %v504 = vpack.c.b16 %v500, %v500
        %v505 = vpack.c.b16 %v501, %v501
        %v506 = vpack.c.b16 %v502, %v502
        %vm511 = vcmask 60416
        %512 = vst.msk [vmem:[%s326] sm:$0xf] %vm511, %v503
        %513 = vst.msk [vmem:[%s326 + $0x4] sm:$0xf] %vm511, %v504
        %514 = vst.msk [vmem:[%s326 + $0x8] sm:$0xf] %vm511, %v505
        %515 = vst.msk [vmem:[%s326 + $0xc] sm:$0xf] %vm511, %v506
        %v518 = vunpack.c.l.b16 %v495
        %v519 = vunpack.c.h.b16 %v495
        %v520 = vunpack.c.l.b16 %v496
        %v521 = vunpack.c.h.b16 %v496
        %v522 = vpack.c.b16 %v518, %v518
        %v523 = vpack.c.b16 %v519, %v519
        %v524 = vpack.c.b16 %v520, %v520
        %v525 = vpack.c.b16 %v521, %v521
        %530 = vst.msk [vmem:[%s333] sm:$0xf] %vm511, %v522
        %531 = vst.msk [vmem:[%s333 + $0x4] sm:$0xf] %vm511, %v523
        %532 = vst.msk [vmem:[%s333 + $0x8] sm:$0xf] %vm511, %v524
        %533 = vst.msk [vmem:[%s333 + $0xc] sm:$0xf] %vm511, %v525
        %vm534 = vcmask 64512
        %v536 = vsel %vm534, %v493, 0
        %v539 = vsel %vm534, %v494, 0
        %v542 = vsel %vm534, %v495, 0
        %v545 = vsel %vm534, %v496, 0
        %547 = vmatprep.subr.bf16.mxu0 0
        %548 = vmatpush1.bf16.xpose.msra.mxu0 %v542
        %549 = vmatprep.subr.bf16.mxu0 0
        %550 = vmatpush1.bf16.xpose.msra.mxu0 %v545
        %551 = vmatprep.subr.bf16.mxu0 0
        %552 = vmatpush1.bf16.xpose.msra.mxu0 0
        %553 = vmatprep.subr.bf16.mxu0 0
        %554 = vmatpush1.bf16.xpose.msra.mxu0 0
        %555 = vmatprep.subr.bf16.mxu0 0
        %556 = vmatpush1.bf16.xpose.msra.mxu0 0
        %557 = vmatprep.subr.bf16.mxu0 0
        %558 = vmatpush1.bf16.xpose.msra.mxu0 0
        %559 = vmatprep.subr.bf16.mxu0 0
        %560 = vmatpush1.bf16.xpose.msra.mxu0 0
        %561 = vmatprep.subr.bf16.mxu0 0
        %562 = vmatpush1.bf16.xpose.msra.mxu0 0
        %563 = vmatprep.subr.bf16.mxu0 0
        %564 = vmatpush1.bf16.xpose.msra.mxu0 0
        %565 = vmatprep.subr.bf16.mxu0 0
        %566 = vmatpush1.bf16.xpose.msra.mxu0 0
        %567 = vmatprep.subr.bf16.mxu0 0
        %568 = vmatpush1.bf16.xpose.msra.mxu0 0
        %569 = vmatprep.subr.bf16.mxu0 0
        %570 = vmatpush1.bf16.xpose.msra.mxu0 0
        %571 = vmatprep.subr.bf16.mxu0 0
        %572 = vmatpush1.bf16.xpose.msra.mxu0 0
        %573 = vmatprep.subr.bf16.mxu0 0
        %574 = vmatpush1.bf16.xpose.msra.mxu0 0
        %575 = vmatprep.subr.bf16.mxu0 0
        %576 = vmatpush1.bf16.xpose.msra.mxu0 0
        %577 = vmatprep.subr.bf16.mxu0 0
        %578 = vmatpush1.bf16.xpose.msra.mxu0 0
        %579 = vmatprep.mubr.bf16.mxu0 0
        %580 = vmatmul.mubr.bf16.gmra.mrb[0].mxu0 %v536
        %v581 = vpop.f32.mrb[0].mxu0
        %v582 = vadd.f32 0.0, %v581
        %v583 = vpop.f32.mrb[0].mxu0
        %v584 = vpop.f32.mrb[0].mxu0
        %v585 = vadd.f32 0.0, %v584
        %v586 = vpop.f32.mrb[0].mxu0
        %587 = vmatprep.mubr.bf16.mxu0 0
        %588 = vmatmul.mubr.bf16.gmra.mrb[0].mxu0 %v539
        %v589 = vpop.f32.mrb[0].mxu0
        %v590 = vadd.f32 0.0, %v589
        %v591 = vpop.f32.mrb[0].mxu0
        %v592 = vpop.f32.mrb[0].mxu0
        %v593 = vadd.f32 0.0, %v592
        %v594 = vpop.f32.mrb[0].mxu0
        %595 = vdwg.mxu0
        %v596 = vmul.f32 %v582, 0.35355338
        %v597 = vmul.f32 %v585, 0.35355338
        %v598 = vmul.f32 %v590, 0.35355338
        %v599 = vmul.f32 %v593, 0.35355338
        %v600 = vsel %vm376, %v596, -inf
        %601 = vmax.xlane.f32.xlu0 %v600
        %v602 = vpop.xlane.xlu0 %601
        %v603 = vsel %vm376, %v597, -inf
        %604 = vmax.xlane.f32.xlu0 %v603
        %v605 = vpop.xlane.xlu0 %604
        %v606 = vsel %vm376, %v598, -inf
        %607 = vmax.xlane.f32.xlu0 %v606
        %v608 = vpop.xlane.xlu0 %607
        %v609 = vsel %vm376, %v599, -inf
        %610 = vmax.xlane.f32.xlu0 %v609
        %v611 = vpop.xlane.xlu0 %610
        %v612 = vsub.f32 %v596, %v602
        %v613 = vsub.f32 %v597, %v605
        %v614 = vsub.f32 %v598, %v608
        %v615 = vsub.f32 %v599, %v611
        %v616 = vmul.f32 %v612, 1.442695
        %v617 = vpow.pop %v616
        %v618 = vmul.f32 %v613, 1.442695
        %v619 = vpow.pop %v618
        %v620 = vmul.f32 %v614, 1.442695
        %v621 = vpow.pop %v620
        %v622 = vmul.f32 %v615, 1.442695
        %v623 = vpow.pop %v622
        %v624 = vsel %vm376, %v617, 0.0
        %625 = vadd.xlane.f32.xlu0 %v624
        %v626 = vpop.xlane.xlu0 %625
        %v627 = vsel %vm376, %v619, 0.0
        %628 = vadd.xlane.f32.xlu0 %v627
        %v629 = vpop.xlane.xlu0 %628
        %v630 = vsel %vm376, %v621, 0.0
        %631 = vadd.xlane.f32.xlu0 %v630
        %v632 = vpop.xlane.xlu0 %631
        %v633 = vsel %vm376, %v623, 0.0
        %634 = vadd.xlane.f32.xlu0 %v633
        %v635 = vpop.xlane.xlu0 %634
        %v636 = vrcp.pop %v626
        %v637 = vmul.f32 %v617, %v636
        %v638 = vrcp.pop %v629
        %v639 = vmul.f32 %v619, %v638
        %v640 = vrcp.pop %v632
        %v641 = vmul.f32 %v621, %v640
        %v642 = vrcp.pop %v635
        %v643 = vmul.f32 %v623, %v642
        %644 = vst.msk [vmem:[%s340] sm:$0xff] %vm376, %v637
        %645 = vst.msk [vmem:[%s340 + $0x8] sm:$0xff] %vm376, %v639
        %646 = vst.msk [vmem:[%s340 + $0x10] sm:$0xff] %vm376, %v641
        %647 = vst.msk [vmem:[%s340 + $0x18] sm:$0xff] %vm376, %v643
        %s648 = sand.u32 %s128, 1
        %s649 = scalar_lea.sflag [#allocation4], %s648
        %s650 = sand.u32 %s128, 1
        %s651 = smul.addr %s650, 16
        %s652 = scalar_lea.vmem [#allocation8], %s651
        %s653 = sand.u32 %s29, 1
        %s654 = scalar_lea.sflag [#allocation10], %s653
        %s655 = sand.u32 %s156, 1
        %s656 = smul.addr %s655, 16
        %s657 = scalar_lea.vmem [#allocation9], %s656
        %s658 = sand.u32 %s29, 1
        %s659 = scalar_lea.sflag [#allocation10], %s658
        %s660 = sand.u32 %s184, 1
        %s661 = smul.addr %s660, 32
        %s662 = scalar_lea.vmem [#allocation11], %s661
        // Predicated region
        $region45: #{transmil_forward.13} parent=31 // pred_check
          %p663 = pneg %p138
        $region46: #{transmil_forward.13} parent=31 // pred_check_branch
          %665 = sbr.rel (%p663) target = $region48
        $region47: #{transmil_forward.13} parent=31 // pred_region
          %s667 = ssub.s32 256, 256
          %668 = vsyncadd %s649, %s667
          %s669 = smul.addr %s34, 4
          %s670 = smul.addr %s33, 32
          %s671 = sadd.s32 %s669, %s670
          %s672 = smul.addr %s671, 64
          %s673 = scalar_lea.hbm %s3, %s672
          %s674 = sshll.u32 %s652, 4
          %s675 = int_to_ptr.vmem [resolvable:$true] %s674
          %680 = dma.vmem_to_hbm [thread:$0]  %s675, 256, %s673, %s649, 64, 64, 4
        $region48: #{transmil_forward.13} parent=31 // pred_fallthru
          _
        // Predicated region
        $region49: #{transmil_forward.13} parent=31 // pred_check
          %p681 = pneg %p166
        $region50: #{transmil_forward.13} parent=31 // pred_check_branch
          %683 = sbr.rel (%p681) target = $region52
        $region51: #{transmil_forward.13} parent=31 // pred_region
          %s685 = ssub.s32 256, 256
          %686 = vsyncadd %s654, %s685
          %s687 = smul.addr %s34, 4
          %s688 = smul.addr %s33, 32
          %s689 = sadd.s32 %s687, %s688
          %s690 = smul.addr %s689, 64
          %s691 = scalar_lea.hbm %s4, %s690
          %s692 = sshll.u32 %s657, 4
          %s693 = int_to_ptr.vmem [resolvable:$true] %s692
          %698 = dma.vmem_to_hbm [thread:$0]  %s693, 256, %s691, %s654, 64, 64, 4
        $region52: #{transmil_forward.13} parent=31 // pred_fallthru
          _
        // Predicated region
        $region53: #{transmil_forward.13} parent=31 // pred_check
          %p699 = pneg %p194
        $region54: #{transmil_forward.13} parent=31 // pred_check_branch
          %701 = sbr.rel (%p699) target = $region56
        $region55: #{transmil_forward.13} parent=31 // pred_region
          %s703 = ssub.s32 512, 512
          %704 = vsyncadd %s659, %s703
          %s705 = smul.addr %s34, 4
          %s706 = smul.addr %s33, 32
          %s707 = sadd.s32 %s705, %s706
          %s708 = smul.addr %s707, 128
          %s709 = scalar_lea.hbm %s5, %s708
          %s710 = sshll.u32 %s662, 4
          %s711 = int_to_ptr.vmem [resolvable:$true] %s710
          %716 = dma.vmem_to_hbm [thread:$0]  %s711, 512, %s709, %s659, 128, 128, 8
        $region56: #{transmil_forward.13} parent=31 // pred_fallthru
          _
      $region32: #{transmil_forward.13} parent=5 // pred_fallthru
        _
      %p717 = scmp.le.s32.totalorder 2, %s24
      // Predicated region
      $region57: #{transmil_forward.13} parent=5 // pred_check
        %p718 = pneg %p717
      $region58: #{transmil_forward.13} parent=5 // pred_check_branch
        %720 = sbr.rel (%p718) target = $region60
      $region59: #{transmil_forward.13} parent=5 // pred_region
        %s721 = ssub.s32 %s24, 2
        // Predicated region
        $region61: #{transmil_forward.13} parent=59 // pred_check
          %p722 = pneg %p144
        $region62: #{transmil_forward.13} parent=59 // pred_check_branch
          %724 = sbr.rel (%p722) target = $region64
        $region63: #{transmil_forward.13} parent=59 // pred_region
          %s725 = sand.u32 %s129, 1
          %s726 = scalar_lea.sflag [#allocation4], %s725
          %s727 = sand.u32 %s129, 1
          %s728 = smul.addr %s727, 16
          %s729 = scalar_lea.vmem [#allocation8], %s728
          %730 = dma.done %s726, 256
        $region64: #{transmil_forward.13} parent=59 // pred_fallthru
          _
        // Predicated region
        $region65: #{transmil_forward.13} parent=59 // pred_check
          %p731 = pneg %p172
        $region66: #{transmil_forward.13} parent=59 // pred_check_branch
          %733 = sbr.rel (%p731) target = $region68
        $region67: #{transmil_forward.13} parent=59 // pred_region
          %s734 = sand.u32 %s30, 1
          %s735 = scalar_lea.sflag [#allocation10], %s734
          %s736 = sand.u32 %s157, 1
          %s737 = smul.addr %s736, 16
          %s738 = scalar_lea.vmem [#allocation9], %s737
          %739 = dma.done %s735, 256
        $region68: #{transmil_forward.13} parent=59 // pred_fallthru
          _
        // Predicated region
        $region69: #{transmil_forward.13} parent=59 // pred_check
          %p740 = pneg %p200
        $region70: #{transmil_forward.13} parent=59 // pred_check_branch
          %742 = sbr.rel (%p740) target = $region72
        $region71: #{transmil_forward.13} parent=59 // pred_region
          %s743 = sand.u32 %s30, 1
          %s744 = scalar_lea.sflag [#allocation10], %s743
          %s745 = sand.u32 %s185, 1
          %s746 = smul.addr %s745, 32
          %s747 = scalar_lea.vmem [#allocation11], %s746
          %748 = dma.done %s744, 512
        $region72: #{transmil_forward.13} parent=59 // pred_fallthru
          _
      $region60: #{transmil_forward.13} parent=5 // pred_fallthru
        _
    $region6: #{transmil_forward.13} parent=1 // loop_footer
      %s28 = sadd.s32 1, %s24
    $region7: #{transmil_forward.13} parent=1 // loop_footer_branch
      %23 = sbr.rel target = $region3
    $region8: #{transmil_forward.13} parent=1 // loop_exit
      _
    %749 = vsyncpa [#allocation3], 1
    %s750 = scalar_lea.sflag [#allocation3], 1
    %751 = vsyncpa %s750, 1
    %752 = vsyncpa [#allocation6], 1
    %s753 = scalar_lea.sflag [#allocation6], 1
    %754 = vsyncpa %s753, 1
    %755 = vsyncpa [#allocation4], 1
    %s756 = scalar_lea.sflag [#allocation4], 1
    %757 = vsyncpa %s756, 1
    %758 = vsyncpa [#allocation10], 1
    %s759 = scalar_lea.sflag [#allocation10], 1
    %760 = vsyncpa %s759, 1

// kernel: transmil_forward.14
$region0: #{transmil_forward.14}
  #allocation0 [shape = 'u32[]', space=smem, size = 0x4, offset = 0x4, fixed_abs, tag = 'smem constant byte address 0x4 - core index']
  #allocation1 [shape = 'u32[144,128]{1,0:T(1,128)}', space=vmem, size = 0x12000, scoped, tag = 'internal scratch']
  #allocation2 [shape = 'f32[1,1]{1,0:T(1,128)S(1)}', space=vmem, size = 0x200, scoped, tag = 'scoped memory for transmil_forward.14']
  %s0 = inlined_call_operand.vmem [shape: f32[2,8,32,32], index: 0, kind: input, shape index: {}]
  %s1 = inlined_call_operand.vmem [shape: f32[2,8,32,32], index: 1, kind: input, shape index: {}]
  %s2 = inlined_call_operand.<no memory space> [shape: f32[1,1], index: 2, kind: input, shape index: {}]
  %s3 = inlined_call_operand.hbm [shape: bf16[2,8,32,32], index: 3, kind: output, shape index: {}]
  %s4 = sld [smem:[#allocation0]]
  $region45: #{transmil_forward.14} parent=0
    _
  %s6 = ssub.s32 1, %s4
  %s7 = scalar_select 0, %s6, %s4
  %v8 = vstv %s2
  %9 = vst [vmem:[#allocation2] sm:$0x1] %v8
  $region1: #{transmil_forward.14} parent=0
    #allocation3 [shape = 'u8[16384]{0}', space=vmem, size = 0x4000, scoped, tag = 'output window, operand 0']
    #allocation4 [shape = 's32[2]{0}', space=sflag, size = 0x8, scoped, tag = 'scoped memory for transmil_forward.14']
    %10 = vsyncpa [#allocation4], 0
    %s11 = scalar_lea.sflag [#allocation4], 1
    %12 = vsyncpa %s11, 0
    loop: start=0, step=1, limit=18
    $region2: #{transmil_forward.14} parent=1 // loop_pre_header
      _
    $region3: #{transmil_forward.14} parent=1 // loop_header
      %s14 = sphi 0, %s18
      %p15 = scmp.ge.s32.totalorder %s14, 18
      %s21 = sphi 0, %s33
      %s22 = sphi 0, %s29
      %s23 = sphi 0, %s21
      %s24 = sphi 0, %s22
      %s25 = sphi 0, %s23
      %s26 = sphi 0, %s24
      %s38 = sphi 0, %s40
      %s41 = sphi 0, %s38
      %s42 = sphi 0, %s41
      %s58 = sphi 0, %s42
      %s66 = sphi 0, %s68
      %s69 = sphi 0, %s66
      %s70 = sphi 0, %s69
      %s86 = sphi 0, %s70
      %s90 = sphi 0, %s90
      %s92 = sphi 0, %s90
      %s93 = sphi 0, %s92
      %s107 = sphi 0, %s93
      %s115 = sphi 0, %s117
      %s118 = sphi 0, %s115
      %s119 = sphi 0, %s118
      %s135 = sphi 0, %s119
    $region4: #{transmil_forward.14} parent=1 // loop_header_branch
      %17 = sbr.rel (%p15) target = $region8
    $region5: #{transmil_forward.14} parent=1 // loop_body
      %s19 = ssub.s32 %s14, 1
      %s20 = ssub.s32 %s14, 2
      %s27 = sadd.s32 1, %s22
      %p28 = scmp.ge.s32.totalorder %s27, 8
      %s29 = scalar_select %p28, 0, %s27
      %s30 = sadd.s32 1, %s21
      %s31 = scalar_select %p28, %s30, %s21
      %p32 = scmp.ge.s32.totalorder %s31, 2
      %s33 = scalar_select %p32, 0, %s31
      %s34 = ssub.s32 %s21, %s33
      %s35 = ssub.s32 %s22, %s29
      %s36 = sor.u32 %s34, %s35
      %p37 = scmp.eq.s32.totalorder %s36, 0
      %s39 = sadd.s32 %s38, 1
      %s40 = scalar_select %p37, %s38, %s39
      %p43 = pneg %p37
      %p44 = scmp.eq.s32.totalorder %s14, 15
      %p45 = por %p43, %p44
      %p46 = scmp.ne.s32.totalorder %s38, %s41
      %p47 = scmp.eq.s32.totalorder %s14, 0
      %p48 = por %p46, %p47
      %p49 = scmp.ne.s32.totalorder %s38, %s41
      %p50 = scmp.eq.s32.totalorder %s19, 15
      %p51 = por %p49, %p50
      %p52 = scmp.ne.s32.totalorder %s41, %s42
      %p53 = scmp.eq.s32.totalorder %s19, 0
      %p54 = por %p52, %p53
      %p55 = scmp.ne.s32.totalorder %s41, %s42
      %p56 = scmp.eq.s32.totalorder %s20, 15
      %p57 = por %p55, %p56
      %p59 = scmp.ne.s32.totalorder %s42, %s58
      %p60 = scmp.eq.s32.totalorder %s20, 0
      %p61 = por %p59, %p60
      %s62 = ssub.s32 %s21, %s33
      %s63 = ssub.s32 %s22, %s29
      %s64 = sor.u32 %s62, %s63
      %p65 = scmp.eq.s32.totalorder %s64, 0
      %s67 = sadd.s32 %s66, 1
      %s68 = scalar_select %p65, %s66, %s67
      %p71 = pneg %p65
      %p72 = scmp.eq.s32.totalorder %s14, 15
      %p73 = por %p71, %p72
      %p74 = scmp.ne.s32.totalorder %s66, %s69
      %p75 = scmp.eq.s32.totalorder %s14, 0
      %p76 = por %p74, %p75
      %p77 = scmp.ne.s32.totalorder %s66, %s69
      %p78 = scmp.eq.s32.totalorder %s19, 15
      %p79 = por %p77, %p78
      %p80 = scmp.ne.s32.totalorder %s69, %s70
      %p81 = scmp.eq.s32.totalorder %s19, 0
      %p82 = por %p80, %p81
      %p83 = scmp.ne.s32.totalorder %s69, %s70
      %p84 = scmp.eq.s32.totalorder %s20, 15
      %p85 = por %p83, %p84
      %p87 = scmp.ne.s32.totalorder %s70, %s86
      %p88 = scmp.eq.s32.totalorder %s20, 0
      %p89 = por %p87, %p88
      %s91 = sadd.s32 %s90, 1
      %p94 = scmp.eq.s32.totalorder %s14, 15
      %p95 = scmp.ne.s32.totalorder %s90, %s92
      %p96 = scmp.eq.s32.totalorder %s14, 0
      %p97 = por %p95, %p96
      %p98 = scmp.ne.s32.totalorder %s90, %s92
      %p99 = scmp.eq.s32.totalorder %s19, 15
      %p100 = por %p98, %p99
      %p101 = scmp.ne.s32.totalorder %s92, %s93
      %p102 = scmp.eq.s32.totalorder %s19, 0
      %p103 = por %p101, %p102
      %p104 = scmp.ne.s32.totalorder %s92, %s93
      %p105 = scmp.eq.s32.totalorder %s20, 15
      %p106 = por %p104, %p105
      %p108 = scmp.ne.s32.totalorder %s93, %s107
      %p109 = scmp.eq.s32.totalorder %s20, 0
      %p110 = por %p108, %p109
      %s111 = ssub.s32 %s21, %s33
      %s112 = ssub.s32 %s22, %s29
      %s113 = sor.u32 %s111, %s112
      %p114 = scmp.eq.s32.totalorder %s113, 0
      %s116 = sadd.s32 %s115, 1
      %s117 = scalar_select %p114, %s115, %s116
      %p120 = pneg %p114
      %p121 = scmp.eq.s32.totalorder %s14, 15
      %p122 = por %p120, %p121
      %p123 = scmp.ne.s32.totalorder %s115, %s118
      %p124 = scmp.eq.s32.totalorder %s14, 0
      %p125 = por %p123, %p124
      %p126 = scmp.ne.s32.totalorder %s115, %s118
      %p127 = scmp.eq.s32.totalorder %s19, 15
      %p128 = por %p126, %p127
      %p129 = scmp.ne.s32.totalorder %s118, %s119
      %p130 = scmp.eq.s32.totalorder %s19, 0
      %p131 = por %p129, %p130
      %p132 = scmp.ne.s32.totalorder %s118, %s119
      %p133 = scmp.eq.s32.totalorder %s20, 15
      %p134 = por %p132, %p133
      %p136 = scmp.ne.s32.totalorder %s119, %s135
      %p137 = scmp.eq.s32.totalorder %s20, 0
      %p138 = por %p136, %p137
      %p139 = scmp.le.s32.totalorder 1, %s14
      %p140 = scmp.lt.s32.totalorder %s14, 17
      %p141 = pnand %p139, %p140
      %p142 = pneg %p141
      // Predicated region
      $region9: #{transmil_forward.14} parent=5 // pred_check
        _
      $region10: #{transmil_forward.14} parent=5 // pred_check_branch
        %144 = sbr.rel (%p141) target = $region12
      $region11: #{transmil_forward.14} parent=5 // pred_region
        %s145 = ssub.s32 %s14, 1
        // Predicated region
        $region13: #{transmil_forward.14} parent=11 // pred_check
          %p146 = pneg %p103
        $region14: #{transmil_forward.14} parent=11 // pred_check_branch
          %148 = sbr.rel (%p146) target = $region16
        $region15: #{transmil_forward.14} parent=11 // pred_region
          _
        $region16: #{transmil_forward.14} parent=11 // pred_fallthru
          _
      $region12: #{transmil_forward.14} parent=5 // pred_fallthru
        _
      %p149 = scmp.lt.s32.totalorder %s14, 16
      // Predicated region
      $region17: #{transmil_forward.14} parent=5 // pred_check
        %p150 = pneg %p149
      $region18: #{transmil_forward.14} parent=5 // pred_check_branch
        %152 = sbr.rel (%p150) target = $region20
      $region19: #{transmil_forward.14} parent=5 // pred_region
        // Predicated region
        $region21: #{transmil_forward.14} parent=19 // pred_check
          %p153 = pneg %p48
        $region22: #{transmil_forward.14} parent=19 // pred_check_branch
          %155 = sbr.rel (%p153) target = $region24
        $region23: #{transmil_forward.14} parent=19 // pred_region
          %p156 = scmp.lt.s32.totalorder %s21, 1
          %s157 = scalar_select %p156, %s21, 1
          %p158 = scmp.lt.s32.totalorder %s22, 7
          %s159 = scalar_select %p158, %s22, 7
          %s160 = smul.addr %s159, 4
          %s161 = smul.addr %s157, 32
          %s162 = sadd.s32 %s160, %s161
          %s163 = smul.addr %s162, 8
          %s164 = scalar_lea.vmem %s0, %s163
        $region24: #{transmil_forward.14} parent=19 // pred_fallthru
          _
        // Predicated region
        $region25: #{transmil_forward.14} parent=19 // pred_check
          %p165 = pneg %p76
        $region26: #{transmil_forward.14} parent=19 // pred_check_branch
          %167 = sbr.rel (%p165) target = $region28
        $region27: #{transmil_forward.14} parent=19 // pred_region
          %p168 = scmp.lt.s32.totalorder %s21, 1
          %s169 = scalar_select %p168, %s21, 1
          %p170 = scmp.lt.s32.totalorder %s22, 7
          %s171 = scalar_select %p170, %s22, 7
          %s172 = smul.addr %s171, 4
          %s173 = smul.addr %s169, 32
          %s174 = sadd.s32 %s172, %s173
          %s175 = smul.addr %s174, 8
          %s176 = scalar_lea.vmem %s1, %s175
        $region28: #{transmil_forward.14} parent=19 // pred_fallthru
          _
      $region20: #{transmil_forward.14} parent=5 // pred_fallthru
        _
      %p177 = scmp.le.s32.totalorder 1, %s14
      %p178 = scmp.lt.s32.totalorder %s14, 17
      %p179 = pnand %p177, %p178
      %p180 = pneg %p179
      // Predicated region
      $region29: #{transmil_forward.14} parent=5 // pred_check
        _
      $region30: #{transmil_forward.14} parent=5 // pred_check_branch
        %182 = sbr.rel (%p179) target = $region32
      $region31: #{transmil_forward.14} parent=5 // pred_region
        %s183 = ssub.s32 %s14, 1
        %p184 = scmp.lt.s32.totalorder %s23, 1
        %s185 = scalar_select %p184, %s23, 1
        %p186 = scmp.lt.s32.totalorder %s24, 7
        %s187 = scalar_select %p186, %s24, 7
        %s188 = smul.addr %s187, 4
        %s189 = smul.addr %s185, 32
        %s190 = sadd.s32 %s188, %s189
        %s191 = smul.addr %s190, 8
        %s192 = scalar_lea.vmem %s0, %s191
        %p193 = pneg %p54
        %p194 = pneg %p51
        %p195 = scmp.lt.s32.totalorder %s23, 1
        %s196 = scalar_select %p195, %s23, 1
        %p197 = scmp.lt.s32.totalorder %s24, 7
        %s198 = scalar_select %p197, %s24, 7
        %s199 = smul.addr %s198, 4
        %s200 = smul.addr %s196, 32
        %s201 = sadd.s32 %s199, %s200
        %s202 = smul.addr %s201, 8
        %s203 = scalar_lea.vmem %s1, %s202
        %p204 = pneg %p82
        %p205 = pneg %p79
        %p206 = pneg %p103
        %p207 = pneg %p100
        %p208 = pneg %p131
        %p209 = pneg %p128
        %s210 = sand.u32 %s118, 1
        %s211 = scalar_lea.sflag [#allocation4], %s210
        %s212 = sand.u32 %s118, 1
        %s213 = smul.addr %s212, 16
        %s214 = scalar_lea.vmem [#allocation3], %s213
        %p215 = scmp.lt.s32.totalorder %s23, 1
        %s216 = scalar_select %p215, %s23, 1
        %p217 = scmp.lt.s32.totalorder %s24, 7
        %s218 = scalar_select %p217, %s24, 7
        %s219 = smul.addr %s218, 4
        %s220 = smul.addr %s216, 32
        %s221 = sadd.s32 %s219, %s220
        %s222 = smul.addr %s221, 8
        %s223 = scalar_lea.vmem %s0, %s222
        %p224 = scmp.lt.s32.totalorder %s23, 1
        %s225 = scalar_select %p224, %s23, 1
        %p226 = scmp.lt.s32.totalorder %s24, 7
        %s227 = scalar_select %p226, %s24, 7
        %s228 = smul.addr %s227, 4
        %s229 = smul.addr %s225, 32
        %s230 = sadd.s32 %s228, %s229
        %s231 = smul.addr %s230, 8
        %s232 = scalar_lea.vmem %s1, %s231
        %v234 = vld [vmem:[%s223] sm:$0xff]
        %v235 = vld [vmem:[%s223 + $0x8] sm:$0xff]
        %v236 = vld [vmem:[%s223 + $0x10] sm:$0xff]
        %v237 = vld [vmem:[%s223 + $0x18] sm:$0xff]
        %v238 = vld [vmem:[%s232] sm:$0xff]
        %v239 = vld [vmem:[%s232 + $0x8] sm:$0xff]
        %v240 = vld [vmem:[%s232 + $0x10] sm:$0xff]
        %v241 = vld [vmem:[%s232 + $0x18] sm:$0xff]
        %v242 = vld [vmem:[#allocation2] sm:$0x1]
        %v243 = vrcp.pop %v242
        %v244 = vmul.f32 1.0, %v243
        %v246 = vlaneseq
        %v247 = vshrl.u32 %v246, 7
        %v248 = vsub.s32 0, %v247
        %v249 = vrot.slane %v244, %v248
        %250 = vset.pattern.permute.xlu0 0
        %251 = vperm.xlu0 %250, %v249
        %v252 = vpop.permute.xlu0 %251
        %v254 = vmul.f32 %v238, %v252
        %v255 = vmul.f32 %v239, %v252
        %v256 = vmul.f32 %v240, %v252
        %v257 = vmul.f32 %v241, %v252
        %v258 = vlaneseq
        %v259 = vshrl.u32 %v258, 7
        %v260 = vadd.s32 %v259, 8
        %v261 = vadd.s32 %v259, 16
        %v262 = vadd.s32 %v259, 24
        %v263 = vlaneseq
        %v264 = vand.u32 %v263, 127
        %vm265 = vcmp.eq.s32.totalorder %v259, %v264
        %vm266 = vcmp.eq.s32.totalorder %v260, %v264
        %vm267 = vcmp.eq.s32.totalorder %v261, %v264
        %vm268 = vcmp.eq.s32.totalorder %v262, %v264
        %v269 = vsel %vm265, 1.0, 0.0
        %v270 = vsel %vm266, 1.0, 0.0
        %v271 = vsel %vm267, 1.0, 0.0
        %v272 = vsel %vm268, 1.0, 0.0
        %v273 = vpack.c.bf16 %v235, %v234
        %v274 = vpack.c.bf16 %v237, %v236
        %v275 = vpack.c.bf16 %v255, %v254
        %v276 = vpack.c.bf16 %v257, %v256
        %vm277 = vcmask 261120
        %v279 = vsel %vm277, %v273, 0
        %v282 = vsel %vm277, %v274, 0
        %284 = vmatprep.subr.bf16.mxu0 0
        %285 = vmatpush1.bf16.msra.mxu0 %v275
        %286 = vmatprep.subr.bf16.mxu0 0
        %287 = vmatpush1.bf16.msra.mxu0 %v276
        %288 = vmatprep.subr.bf16.mxu0 0
        %289 = vmatpush1.bf16.msra.mxu0 0
        %290 = vmatprep.subr.bf16.mxu0 0
        %291 = vmatpush1.bf16.msra.mxu0 0
        %292 = vmatprep.subr.bf16.mxu0 0
        %293 = vmatpush1.bf16.msra.mxu0 0
        %294 = vmatprep.subr.bf16.mxu0 0
        %295 = vmatpush1.bf16.msra.mxu0 0
        %296 = vmatprep.subr.bf16.mxu0 0
        %297 = vmatpush1.bf16.msra.mxu0 0
        %298 = vmatprep.subr.bf16.mxu0 0
        %299 = vmatpush1.bf16.msra.mxu0 0
        %300 = vmatprep.subr.bf16.mxu0 0
        %301 = vmatpush1.bf16.msra.mxu0 0
        %302 = vmatprep.subr.bf16.mxu0 0
        %303 = vmatpush1.bf16.msra.mxu0 0
        %304 = vmatprep.subr.bf16.mxu0 0
        %305 = vmatpush1.bf16.msra.mxu0 0
        %306 = vmatprep.subr.bf16.mxu0 0
        %307 = vmatpush1.bf16.msra.mxu0 0
        %308 = vmatprep.subr.bf16.mxu0 0
        %309 = vmatpush1.bf16.msra.mxu0 0
        %310 = vmatprep.subr.bf16.mxu0 0
        %311 = vmatpush1.bf16.msra.mxu0 0
        %312 = vmatprep.subr.bf16.mxu0 0
        %313 = vmatpush1.bf16.msra.mxu0 0
        %314 = vmatprep.subr.bf16.mxu0 0
        %315 = vmatpush1.bf16.msra.mxu0 0
        %316 = vmatprep.mubr.bf16.mxu0 0
        %317 = vmatmul.mubr.bf16.gmra.mrb[0].mxu0 %v279
        %v318 = vpop.f32.mrb[0].mxu0
        %v319 = vadd.f32 0.0, %v318
        %v320 = vpop.f32.mrb[0].mxu0
        %v321 = vpop.f32.mrb[0].mxu0
        %v322 = vadd.f32 0.0, %v321
        %v323 = vpop.f32.mrb[0].mxu0
        %324 = vmatprep.mubr.bf16.mxu0 0
        %325 = vmatmul.mubr.bf16.gmra.mrb[0].mxu0 %v282
        %v326 = vpop.f32.mrb[0].mxu0
        %v327 = vadd.f32 0.0, %v326
        %v328 = vpop.f32.mrb[0].mxu0
        %v329 = vpop.f32.mrb[0].mxu0
        %v330 = vadd.f32 0.0, %v329
        %v331 = vpop.f32.mrb[0].mxu0
        %332 = vdwg.mxu0
        %v333 = vpack.c.bf16 %v322, %v319
        %v334 = vpack.c.bf16 %v330, %v327
        %v335 = vmul.f32 %v269, 7.0
        %v336 = vmul.f32 %v270, 7.0
        %v337 = vmul.f32 %v271, 7.0
        %v338 = vmul.f32 %v272, 7.0
        %v339 = vsub.f32 %v335, %v319
        %v340 = vsub.f32 %v336, %v322
        %v341 = vsub.f32 %v337, %v327
        %v342 = vsub.f32 %v338, %v330
        %v343 = vmul.f32 %v269, 15.0
        %v344 = vmul.f32 %v270, 15.0
        %v345 = vmul.f32 %v271, 15.0
        %v346 = vmul.f32 %v272, 15.0
        %v347 = vpack.c.bf16 %v340, %v339
        %v348 = vpack.c.bf16 %v342, %v341
        %v350 = vsel %vm277, %v333, 0
        %v353 = vsel %vm277, %v334, 0
        %355 = vmatprep.subr.bf16.mxu0 0
        %356 = vmatpush1.bf16.msra.mxu0 %v347
        %357 = vmatprep.subr.bf16.mxu0 0
        %358 = vmatpush1.bf16.msra.mxu0 %v348
        %359 = vmatprep.subr.bf16.mxu0 0
        %360 = vmatpush1.bf16.msra.mxu0 0
        %361 = vmatprep.subr.bf16.mxu0 0
        %362 = vmatpush1.bf16.msra.mxu0 0
        %363 = vmatprep.subr.bf16.mxu0 0
        %364 = vmatpush1.bf16.msra.mxu0 0
        %365 = vmatprep.subr.bf16.mxu0 0
        %366 = vmatpush1.bf16.msra.mxu0 0
        %367 = vmatprep.subr.bf16.mxu0 0
        %368 = vmatpush1.bf16.msra.mxu0 0
        %369 = vmatprep.subr.bf16.mxu0 0
        %370 = vmatpush1.bf16.msra.mxu0 0
        %371 = vmatprep.subr.bf16.mxu0 0
        %372 = vmatpush1.bf16.msra.mxu0 0
        %373 = vmatprep.subr.bf16.mxu0 0
        %374 = vmatpush1.bf16.msra.mxu0 0
        %375 = vmatprep.subr.bf16.mxu0 0
        %376 = vmatpush1.bf16.msra.mxu0 0
        %377 = vmatprep.subr.bf16.mxu0 0
        %378 = vmatpush1.bf16.msra.mxu0 0
        %379 = vmatprep.subr.bf16.mxu0 0
        %380 = vmatpush1.bf16.msra.mxu0 0
        %381 = vmatprep.subr.bf16.mxu0 0
        %382 = vmatpush1.bf16.msra.mxu0 0
        %383 = vmatprep.subr.bf16.mxu0 0
        %384 = vmatpush1.bf16.msra.mxu0 0
        %385 = vmatprep.subr.bf16.mxu0 0
        %386 = vmatpush1.bf16.msra.mxu0 0
        %387 = vmatprep.mubr.bf16.mxu0 0
        %388 = vmatmul.mubr.bf16.gmra.mrb[0].mxu0 %v350
        %v389 = vpop.f32.mrb[0].mxu0
        %v390 = vadd.f32 0.0, %v389
        %v391 = vpop.f32.mrb[0].mxu0
        %v392 = vpop.f32.mrb[0].mxu0
        %v393 = vadd.f32 0.0, %v392
        %v394 = vpop.f32.mrb[0].mxu0
        %395 = vmatprep.mubr.bf16.mxu0 0
        %396 = vmatmul.mubr.bf16.gmra.mrb[0].mxu0 %v353
        %v397 = vpop.f32.mrb[0].mxu0
        %v398 = vadd.f32 0.0, %v397
        %v399 = vpop.f32.mrb[0].mxu0
        %v400 = vpop.f32.mrb[0].mxu0
        %v401 = vadd.f32 0.0, %v400
        %v402 = vpop.f32.mrb[0].mxu0
        %403 = vdwg.mxu0
        %v404 = vsub.f32 %v343, %v390
        %v405 = vsub.f32 %v344, %v393
        %v406 = vsub.f32 %v345, %v398
        %v407 = vsub.f32 %v346, %v401
        %v408 = vmul.f32 %v269, 13.0
        %v409 = vmul.f32 %v270, 13.0
        %v410 = vmul.f32 %v271, 13.0
        %v411 = vmul.f32 %v272, 13.0
        %v412 = vpack.c.bf16 %v405, %v404
        %v413 = vpack.c.bf16 %v407, %v406
        %414 = vmatprep.subr.bf16.mxu0 0
        %415 = vmatpush1.bf16.msra.mxu0 %v412
        %416 = vmatprep.subr.bf16.mxu0 0
        %417 = vmatpush1.bf16.msra.mxu0 %v413
        %418 = vmatprep.subr.bf16.mxu0 0
        %419 = vmatpush1.bf16.msra.mxu0 0
        %420 = vmatprep.subr.bf16.mxu0 0
        %421 = vmatpush1.bf16.msra.mxu0 0
        %422 = vmatprep.subr.bf16.mxu0 0
        %423 = vmatpush1.bf16.msra.mxu0 0
        %424 = vmatprep.subr.bf16.mxu0 0
        %425 = vmatpush1.bf16.msra.mxu0 0
        %426 = vmatprep.subr.bf16.mxu0 0
        %427 = vmatpush1.bf16.msra.mxu0 0
        %428 = vmatprep.subr.bf16.mxu0 0
        %429 = vmatpush1.bf16.msra.mxu0 0
        %430 = vmatprep.subr.bf16.mxu0 0
        %431 = vmatpush1.bf16.msra.mxu0 0
        %432 = vmatprep.subr.bf16.mxu0 0
        %433 = vmatpush1.bf16.msra.mxu0 0
        %434 = vmatprep.subr.bf16.mxu0 0
        %435 = vmatpush1.bf16.msra.mxu0 0
        %436 = vmatprep.subr.bf16.mxu0 0
        %437 = vmatpush1.bf16.msra.mxu0 0
        %438 = vmatprep.subr.bf16.mxu0 0
        %439 = vmatpush1.bf16.msra.mxu0 0
        %440 = vmatprep.subr.bf16.mxu0 0
        %441 = vmatpush1.bf16.msra.mxu0 0
        %442 = vmatprep.subr.bf16.mxu0 0
        %443 = vmatpush1.bf16.msra.mxu0 0
        %444 = vmatprep.subr.bf16.mxu0 0
        %445 = vmatpush1.bf16.msra.mxu0 0
        %446 = vmatprep.mubr.bf16.mxu0 0
        %447 = vmatmul.mubr.bf16.gmra.mrb[0].mxu0 %v350
        %v448 = vpop.f32.mrb[0].mxu0
        %v449 = vadd.f32 0.0, %v448
        %v450 = vpop.f32.mrb[0].mxu0
        %v451 = vpop.f32.mrb[0].mxu0
        %v452 = vadd.f32 0.0, %v451
        %v453 = vpop.f32.mrb[0].mxu0
        %454 = vmatprep.mubr.bf16.mxu0 0
        %455 = vmatmul.mubr.bf16.gmra.mrb[0].mxu0 %v353
        %v456 = vpop.f32.mrb[0].mxu0
        %v457 = vadd.f32 0.0, %v456
        %v458 = vpop.f32.mrb[0].mxu0
        %v459 = vpop.f32.mrb[0].mxu0
        %v460 = vadd.f32 0.0, %v459
        %v461 = vpop.f32.mrb[0].mxu0
        %462 = vdwg.mxu0
        %v463 = vsub.f32 %v408, %v449
        %v464 = vsub.f32 %v409, %v452
        %v465 = vsub.f32 %v410, %v457
        %v466 = vsub.f32 %v411, %v460
        %v467 = vpack.c.bf16 %v464, %v463
        %v468 = vpack.c.bf16 %v466, %v465
        %v470 = vsel %vm277, %v275, 0
        %v473 = vsel %vm277, %v276, 0
        %475 = vmatprep.subr.bf16.mxu0 0
        %476 = vmatpush1.bf16.msra.mxu0 %v467
        %477 = vmatprep.subr.bf16.mxu0 0
        %478 = vmatpush1.bf16.msra.mxu0 %v468
        %479 = vmatprep.subr.bf16.mxu0 0
        %480 = vmatpush1.bf16.msra.mxu0 0
        %481 = vmatprep.subr.bf16.mxu0 0
        %482 = vmatpush1.bf16.msra.mxu0 0
        %483 = vmatprep.subr.bf16.mxu0 0
        %484 = vmatpush1.bf16.msra.mxu0 0
        %485 = vmatprep.subr.bf16.mxu0 0
        %486 = vmatpush1.bf16.msra.mxu0 0
        %487 = vmatprep.subr.bf16.mxu0 0
        %488 = vmatpush1.bf16.msra.mxu0 0
        %489 = vmatprep.subr.bf16.mxu0 0
        %490 = vmatpush1.bf16.msra.mxu0 0
        %491 = vmatprep.subr.bf16.mxu0 0
        %492 = vmatpush1.bf16.msra.mxu0 0
        %493 = vmatprep.subr.bf16.mxu0 0
        %494 = vmatpush1.bf16.msra.mxu0 0
        %495 = vmatprep.subr.bf16.mxu0 0
        %496 = vmatpush1.bf16.msra.mxu0 0
        %497 = vmatprep.subr.bf16.mxu0 0
        %498 = vmatpush1.bf16.msra.mxu0 0
        %499 = vmatprep.subr.bf16.mxu0 0
        %500 = vmatpush1.bf16.msra.mxu0 0
        %501 = vmatprep.subr.bf16.mxu0 0
        %502 = vmatpush1.bf16.msra.mxu0 0
        %503 = vmatprep.subr.bf16.mxu0 0
        %504 = vmatpush1.bf16.msra.mxu0 0
        %505 = vmatprep.subr.bf16.mxu0 0
        %506 = vmatpush1.bf16.msra.mxu0 0
        %507 = vmatprep.mubr.bf16.mxu0 0
        %508 = vmatmul.mubr.bf16.gmra.mrb[0].mxu0 %v470
        %v509 = vpop.f32.mrb[0].mxu0
        %v510 = vadd.f32 0.0, %v509
        %v511 = vpop.f32.mrb[0].mxu0
        %v512 = vpop.f32.mrb[0].mxu0
        %v513 = vadd.f32 0.0, %v512
        %v514 = vpop.f32.mrb[0].mxu0
        %515 = vmatprep.mubr.bf16.mxu0 0
        %516 = vmatmul.mubr.bf16.gmra.mrb[0].mxu0 %v473
        %v517 = vpop.f32.mrb[0].mxu0
        %v518 = vadd.f32 0.0, %v517
        %v519 = vpop.f32.mrb[0].mxu0
        %v520 = vpop.f32.mrb[0].mxu0
        %v521 = vadd.f32 0.0, %v520
        %v522 = vpop.f32.mrb[0].mxu0
        %523 = vdwg.mxu0
        %v524 = vmul.f32 %v510, 0.25
        %v525 = vmul.f32 %v513, 0.25
        %v526 = vmul.f32 %v518, 0.25
        %v527 = vmul.f32 %v521, 0.25
        %v528 = vpack.c.bf16 %v525, %v524
        %v529 = vpack.c.bf16 %v527, %v526
        %530 = vmatprep.subr.bf16.mxu0 0
        %531 = vmatpush1.bf16.msra.mxu0 %v528
        %532 = vmatprep.subr.bf16.mxu0 0
        %533 = vmatpush1.bf16.msra.mxu0 %v529
        %534 = vmatprep.subr.bf16.mxu0 0
        %535 = vmatpush1.bf16.msra.mxu0 0
        %536 = vmatprep.subr.bf16.mxu0 0
        %537 = vmatpush1.bf16.msra.mxu0 0
        %538 = vmatprep.subr.bf16.mxu0 0
        %539 = vmatpush1.bf16.msra.mxu0 0
        %540 = vmatprep.subr.bf16.mxu0 0
        %541 = vmatpush1.bf16.msra.mxu0 0
        %542 = vmatprep.subr.bf16.mxu0 0
        %543 = vmatpush1.bf16.msra.mxu0 0
        %544 = vmatprep.subr.bf16.mxu0 0
        %545 = vmatpush1.bf16.msra.mxu0 0
        %546 = vmatprep.subr.bf16.mxu0 0
        %547 = vmatpush1.bf16.msra.mxu0 0
        %548 = vmatprep.subr.bf16.mxu0 0
        %549 = vmatpush1.bf16.msra.mxu0 0
        %550 = vmatprep.subr.bf16.mxu0 0
        %551 = vmatpush1.bf16.msra.mxu0 0
        %552 = vmatprep.subr.bf16.mxu0 0
        %553 = vmatpush1.bf16.msra.mxu0 0
        %554 = vmatprep.subr.bf16.mxu0 0
        %555 = vmatpush1.bf16.msra.mxu0 0
        %556 = vmatprep.subr.bf16.mxu0 0
        %557 = vmatpush1.bf16.msra.mxu0 0
        %558 = vmatprep.subr.bf16.mxu0 0
        %559 = vmatpush1.bf16.msra.mxu0 0
        %560 = vmatprep.subr.bf16.mxu0 0
        %561 = vmatpush1.bf16.msra.mxu0 0
        %562 = vmatprep.mubr.bf16.mxu0 0
        %563 = vmatmul.mubr.bf16.gmra.mrb[0].mxu0 %v279
        %v564 = vpop.f32.mrb[0].mxu0
        %v565 = vadd.f32 0.0, %v564
        %v566 = vpop.f32.mrb[0].mxu0
        %v567 = vpop.f32.mrb[0].mxu0
        %v568 = vadd.f32 0.0, %v567
        %v569 = vpop.f32.mrb[0].mxu0
        %570 = vmatprep.mubr.bf16.mxu0 0
        %571 = vmatmul.mubr.bf16.gmra.mrb[0].mxu0 %v282
        %v572 = vpop.f32.mrb[0].mxu0
        %v573 = vadd.f32 0.0, %v572
        %v574 = vpop.f32.mrb[0].mxu0
        %v575 = vpop.f32.mrb[0].mxu0
        %v576 = vadd.f32 0.0, %v575
        %v577 = vpop.f32.mrb[0].mxu0
        %578 = vdwg.mxu0
        %v579 = vpack.c.bf16 %v568, %v565
        %v580 = vpack.c.bf16 %v576, %v573
        %v581 = vsub.f32 %v335, %v565
        %v582 = vsub.f32 %v336, %v568
        %v583 = vsub.f32 %v337, %v573
        %v584 = vsub.f32 %v338, %v576
        %v585 = vpack.c.bf16 %v582, %v581
        %v586 = vpack.c.bf16 %v584, %v583
        %v588 = vsel %vm277, %v579, 0
        %v591 = vsel %vm277, %v580, 0
        %593 = vmatprep.subr.bf16.mxu0 0
        %594 = vmatpush1.bf16.msra.mxu0 %v585
        %595 = vmatprep.subr.bf16.mxu0 0
        %596 = vmatpush1.bf16.msra.mxu0 %v586
        %597 = vmatprep.subr.bf16.mxu0 0
        %598 = vmatpush1.bf16.msra.mxu0 0
        %599 = vmatprep.subr.bf16.mxu0 0
        %600 = vmatpush1.bf16.msra.mxu0 0
        %601 = vmatprep.subr.bf16.mxu0 0
        %602 = vmatpush1.bf16.msra.mxu0 0
        %603 = vmatprep.subr.bf16.mxu0 0
        %604 = vmatpush1.bf16.msra.mxu0 0
        %605 = vmatprep.subr.bf16.mxu0 0
        %606 = vmatpush1.bf16.msra.mxu0 0
        %607 = vmatprep.subr.bf16.mxu0 0
        %608 = vmatpush1.bf16.msra.mxu0 0
        %609 = vmatprep.subr.bf16.mxu0 0
        %610 = vmatpush1.bf16.msra.mxu0 0
        %611 = vmatprep.subr.bf16.mxu0 0
        %612 = vmatpush1.bf16.msra.mxu0 0
        %613 = vmatprep.subr.bf16.mxu0 0
        %614 = vmatpush1.bf16.msra.mxu0 0
        %615 = vmatprep.subr.bf16.mxu0 0
        %616 = vmatpush1.bf16.msra.mxu0 0
        %617 = vmatprep.subr.bf16.mxu0 0
        %618 = vmatpush1.bf16.msra.mxu0 0
        %619 = vmatprep.subr.bf16.mxu0 0
        %620 = vmatpush1.bf16.msra.mxu0 0
        %621 = vmatprep.subr.bf16.mxu0 0
        %622 = vmatpush1.bf16.msra.mxu0 0
        %623 = vmatprep.subr.bf16.mxu0 0
        %624 = vmatpush1.bf16.msra.mxu0 0
        %625 = vmatprep.mubr.bf16.mxu0 0
        %626 = vmatmul.mubr.bf16.gmra.mrb[0].mxu0 %v588
        %v627 = vpop.f32.mrb[0].mxu0
        %v628 = vadd.f32 0.0, %v627
        %v629 = vpop.f32.mrb[0].mxu0
        %v630 = vpop.f32.mrb[0].mxu0
        %v631 = vadd.f32 0.0, %v630
        %v632 = vpop.f32.mrb[0].mxu0
        %633 = vmatprep.mubr.bf16.mxu0 0
        %634 = vmatmul.mubr.bf16.gmra.mrb[0].mxu0 %v591
        %v635 = vpop.f32.mrb[0].mxu0
        %v636 = vadd.f32 0.0, %v635
        %v637 = vpop.f32.mrb[0].mxu0
        %v638 = vpop.f32.mrb[0].mxu0
        %v639 = vadd.f32 0.0, %v638
        %v640 = vpop.f32.mrb[0].mxu0
        %641 = vdwg.mxu0
        %v642 = vsub.f32 %v343, %v628
        %v643 = vsub.f32 %v344, %v631
        %v644 = vsub.f32 %v345, %v636
        %v645 = vsub.f32 %v346, %v639
        %v646 = vpack.c.bf16 %v643, %v642
        %v647 = vpack.c.bf16 %v645, %v644
        %648 = vmatprep.subr.bf16.mxu0 0
        %649 = vmatpush1.bf16.msra.mxu0 %v646
        %650 = vmatprep.subr.bf16.mxu0 0
        %651 = vmatpush1.bf16.msra.mxu0 %v647
        %652 = vmatprep.subr.bf16.mxu0 0
        %653 = vmatpush1.bf16.msra.mxu0 0
        %654 = vmatprep.subr.bf16.mxu0 0
        %655 = vmatpush1.bf16.msra.mxu0 0
        %656 = vmatprep.subr.bf16.mxu0 0
        %657 = vmatpush1.bf16.msra.mxu0 0
        %658 = vmatprep.subr.bf16.mxu0 0
        %659 = vmatpush1.bf16.msra.mxu0 0
        %660 = vmatprep.subr.bf16.mxu0 0
        %661 = vmatpush1.bf16.msra.mxu0 0
        %662 = vmatprep.subr.bf16.mxu0 0
        %663 = vmatpush1.bf16.msra.mxu0 0
        %664 = vmatprep.subr.bf16.mxu0 0
        %665 = vmatpush1.bf16.msra.mxu0 0
        %666 = vmatprep.subr.bf16.mxu0 0
        %667 = vmatpush1.bf16.msra.mxu0 0
        %668 = vmatprep.subr.bf16.mxu0 0
        %669 = vmatpush1.bf16.msra.mxu0 0
        %670 = vmatprep.subr.bf16.mxu0 0
        %671 = vmatpush1.bf16.msra.mxu0 0
        %672 = vmatprep.subr.bf16.mxu0 0
        %673 = vmatpush1.bf16.msra.mxu0 0
        %674 = vmatprep.subr.bf16.mxu0 0
        %675 = vmatpush1.bf16.msra.mxu0 0
        %676 = vmatprep.subr.bf16.mxu0 0
        %677 = vmatpush1.bf16.msra.mxu0 0
        %678 = vmatprep.subr.bf16.mxu0 0
        %679 = vmatpush1.bf16.msra.mxu0 0
        %680 = vmatprep.mubr.bf16.mxu0 0
        %681 = vmatmul.mubr.bf16.gmra.mrb[0].mxu0 %v588
        %v682 = vpop.f32.mrb[0].mxu0
        %v683 = vadd.f32 0.0, %v682
        %v684 = vpop.f32.mrb[0].mxu0
        %v685 = vpop.f32.mrb[0].mxu0
        %v686 = vadd.f32 0.0, %v685
        %v687 = vpop.f32.mrb[0].mxu0
        %688 = vmatprep.mubr.bf16.mxu0 0
        %689 = vmatmul.mubr.bf16.gmra.mrb[0].mxu0 %v591
        %v690 = vpop.f32.mrb[0].mxu0
        %v691 = vadd.f32 0.0, %v690
        %v692 = vpop.f32.mrb[0].mxu0
        %v693 = vpop.f32.mrb[0].mxu0
        %v694 = vadd.f32 0.0, %v693
        %v695 = vpop.f32.mrb[0].mxu0
        %696 = vdwg.mxu0
        %v697 = vsub.f32 %v408, %v683
        %v698 = vsub.f32 %v409, %v686
        %v699 = vsub.f32 %v410, %v691
        %v700 = vsub.f32 %v411, %v694
        %v701 = vpack.c.bf16 %v698, %v697
        %v702 = vpack.c.bf16 %v700, %v699
        %v704 = vsel %vm277, %v528, 0
        %v707 = vsel %vm277, %v529, 0
        %709 = vmatprep.subr.bf16.mxu0 0
        %710 = vmatpush1.bf16.msra.mxu0 %v701
        %711 = vmatprep.subr.bf16.mxu0 0
        %712 = vmatpush1.bf16.msra.mxu0 %v702
        %713 = vmatprep.subr.bf16.mxu0 0
        %714 = vmatpush1.bf16.msra.mxu0 0
        %715 = vmatprep.subr.bf16.mxu0 0
        %716 = vmatpush1.bf16.msra.mxu0 0
        %717 = vmatprep.subr.bf16.mxu0 0
        %718 = vmatpush1.bf16.msra.mxu0 0
        %719 = vmatprep.subr.bf16.mxu0 0
        %720 = vmatpush1.bf16.msra.mxu0 0
        %721 = vmatprep.subr.bf16.mxu0 0
        %722 = vmatpush1.bf16.msra.mxu0 0
        %723 = vmatprep.subr.bf16.mxu0 0
        %724 = vmatpush1.bf16.msra.mxu0 0
        %725 = vmatprep.subr.bf16.mxu0 0
        %726 = vmatpush1.bf16.msra.mxu0 0
        %727 = vmatprep.subr.bf16.mxu0 0
        %728 = vmatpush1.bf16.msra.mxu0 0
        %729 = vmatprep.subr.bf16.mxu0 0
        %730 = vmatpush1.bf16.msra.mxu0 0
        %731 = vmatprep.subr.bf16.mxu0 0
        %732 = vmatpush1.bf16.msra.mxu0 0
        %733 = vmatprep.subr.bf16.mxu0 0
        %734 = vmatpush1.bf16.msra.mxu0 0
        %735 = vmatprep.subr.bf16.mxu0 0
        %736 = vmatpush1.bf16.msra.mxu0 0
        %737 = vmatprep.subr.bf16.mxu0 0
        %738 = vmatpush1.bf16.msra.mxu0 0
        %739 = vmatprep.subr.bf16.mxu0 0
        %740 = vmatpush1.bf16.msra.mxu0 0
        %741 = vmatprep.mubr.bf16.mxu0 0
        %742 = vmatmul.mubr.bf16.gmra.mrb[0].mxu0 %v704
        %v743 = vpop.f32.mrb[0].mxu0
        %v744 = vadd.f32 0.0, %v743
        %v745 = vpop.f32.mrb[0].mxu0
        %v746 = vpop.f32.mrb[0].mxu0
        %v747 = vadd.f32 0.0, %v746
        %v748 = vpop.f32.mrb[0].mxu0
        %749 = vmatprep.mubr.bf16.mxu0 0
        %750 = vmatmul.mubr.bf16.gmra.mrb[0].mxu0 %v707
        %v751 = vpop.f32.mrb[0].mxu0
        %v752 = vadd.f32 0.0, %v751
        %v753 = vpop.f32.mrb[0].mxu0
        %v754 = vpop.f32.mrb[0].mxu0
        %v755 = vadd.f32 0.0, %v754
        %v756 = vpop.f32.mrb[0].mxu0
        %757 = vdwg.mxu0
        %v758 = vmul.f32 %v744, 0.25
        %v759 = vmul.f32 %v747, 0.25
        %v760 = vmul.f32 %v752, 0.25
        %v761 = vmul.f32 %v755, 0.25
        %v762 = vpack.c.bf16 %v759, %v758
        %v763 = vpack.c.bf16 %v761, %v760
        %764 = vmatprep.subr.bf16.mxu0 0
        %765 = vmatpush1.bf16.msra.mxu0 %v762
        %766 = vmatprep.subr.bf16.mxu0 0
        %767 = vmatpush1.bf16.msra.mxu0 %v763
        %768 = vmatprep.subr.bf16.mxu0 0
        %769 = vmatpush1.bf16.msra.mxu0 0
        %770 = vmatprep.subr.bf16.mxu0 0
        %771 = vmatpush1.bf16.msra.mxu0 0
        %772 = vmatprep.subr.bf16.mxu0 0
        %773 = vmatpush1.bf16.msra.mxu0 0
        %774 = vmatprep.subr.bf16.mxu0 0
        %775 = vmatpush1.bf16.msra.mxu0 0
        %776 = vmatprep.subr.bf16.mxu0 0
        %777 = vmatpush1.bf16.msra.mxu0 0
        %778 = vmatprep.subr.bf16.mxu0 0
        %779 = vmatpush1.bf16.msra.mxu0 0
        %780 = vmatprep.subr.bf16.mxu0 0
        %781 = vmatpush1.bf16.msra.mxu0 0
        %782 = vmatprep.subr.bf16.mxu0 0
        %783 = vmatpush1.bf16.msra.mxu0 0
        %784 = vmatprep.subr.bf16.mxu0 0
        %785 = vmatpush1.bf16.msra.mxu0 0
        %786 = vmatprep.subr.bf16.mxu0 0
        %787 = vmatpush1.bf16.msra.mxu0 0
        %788 = vmatprep.subr.bf16.mxu0 0
        %789 = vmatpush1.bf16.msra.mxu0 0
        %790 = vmatprep.subr.bf16.mxu0 0
        %791 = vmatpush1.bf16.msra.mxu0 0
        %792 = vmatprep.subr.bf16.mxu0 0
        %793 = vmatpush1.bf16.msra.mxu0 0
        %794 = vmatprep.subr.bf16.mxu0 0
        %795 = vmatpush1.bf16.msra.mxu0 0
        %796 = vmatprep.mubr.bf16.mxu0 0
        %797 = vmatmul.mubr.bf16.gmra.mrb[0].mxu0 %v279
        %v798 = vpop.f32.mrb[0].mxu0
        %v799 = vadd.f32 0.0, %v798
        %v800 = vpop.f32.mrb[0].mxu0
        %v801 = vpop.f32.mrb[0].mxu0
        %v802 = vadd.f32 0.0, %v801
        %v803 = vpop.f32.mrb[0].mxu0
        %804 = vmatprep.mubr.bf16.mxu0 0
        %805 = vmatmul.mubr.bf16.gmra.mrb[0].mxu0 %v282
        %v806 = vpop.f32.mrb[0].mxu0
        %v807 = vadd.f32 0.0, %v806
        %v808 = vpop.f32.mrb[0].mxu0
        %v809 = vpop.f32.mrb[0].mxu0
        %v810 = vadd.f32 0.0, %v809
        %v811 = vpop.f32.mrb[0].mxu0
        %812 = vdwg.mxu0
        %v813 = vpack.c.bf16 %v802, %v799
        %v814 = vpack.c.bf16 %v810, %v807
        %v815 = vsub.f32 %v335, %v799
        %v816 = vsub.f32 %v336, %v802
        %v817 = vsub.f32 %v337, %v807
        %v818 = vsub.f32 %v338, %v810
        %v819 = vpack.c.bf16 %v816, %v815
        %v820 = vpack.c.bf16 %v818, %v817
        %v822 = vsel %vm277, %v813, 0
        %v825 = vsel %vm277, %v814, 0
        %827 = vmatprep.subr.bf16.mxu0 0
        %828 = vmatpush1.bf16.msra.mxu0 %v819
        %829 = vmatprep.subr.bf16.mxu0 0
        %830 = vmatpush1.bf16.msra.mxu0 %v820
        %831 = vmatprep.subr.bf16.mxu0 0
        %832 = vmatpush1.bf16.msra.mxu0 0
        %833 = vmatprep.subr.bf16.mxu0 0
        %834 = vmatpush1.bf16.msra.mxu0 0
        %835 = vmatprep.subr.bf16.mxu0 0
        %836 = vmatpush1.bf16.msra.mxu0 0
        %837 = vmatprep.subr.bf16.mxu0 0
        %838 = vmatpush1.bf16.msra.mxu0 0
        %839 = vmatprep.subr.bf16.mxu0 0
        %840 = vmatpush1.bf16.msra.mxu0 0
        %841 = vmatprep.subr.bf16.mxu0 0
        %842 = vmatpush1.bf16.msra.mxu0 0
        %843 = vmatprep.subr.bf16.mxu0 0
        %844 = vmatpush1.bf16.msra.mxu0 0
        %845 = vmatprep.subr.bf16.mxu0 0
        %846 = vmatpush1.bf16.msra.mxu0 0
        %847 = vmatprep.subr.bf16.mxu0 0
        %848 = vmatpush1.bf16.msra.mxu0 0
        %849 = vmatprep.subr.bf16.mxu0 0
        %850 = vmatpush1.bf16.msra.mxu0 0
        %851 = vmatprep.subr.bf16.mxu0 0
        %852 = vmatpush1.bf16.msra.mxu0 0
        %853 = vmatprep.subr.bf16.mxu0 0
        %854 = vmatpush1.bf16.msra.mxu0 0
        %855 = vmatprep.subr.bf16.mxu0 0
        %856 = vmatpush1.bf16.msra.mxu0 0
        %857 = vmatprep.subr.bf16.mxu0 0
        %858 = vmatpush1.bf16.msra.mxu0 0
        %859 = vmatprep.mubr.bf16.mxu0 0
        %860 = vmatmul.mubr.bf16.gmra.mrb[0].mxu0 %v822
        %v861 = vpop.f32.mrb[0].mxu0
        %v862 = vadd.f32 0.0, %v861
        %v863 = vpop.f32.mrb[0].mxu0
        %v864 = vpop.f32.mrb[0].mxu0
        %v865 = vadd.f32 0.0, %v864
        %v866 = vpop.f32.mrb[0].mxu0
        %867 = vmatprep.mubr.bf16.mxu0 0
        %868 = vmatmul.mubr.bf16.gmra.mrb[0].mxu0 %v825
        %v869 = vpop.f32.mrb[0].mxu0
        %v870 = vadd.f32 0.0, %v869
        %v871 = vpop.f32.mrb[0].mxu0
        %v872 = vpop.f32.mrb[0].mxu0
        %v873 = vadd.f32 0.0, %v872
        %v874 = vpop.f32.mrb[0].mxu0
        %875 = vdwg.mxu0
        %v876 = vsub.f32 %v343, %v862
        %v877 = vsub.f32 %v344, %v865
        %v878 = vsub.f32 %v345, %v870
        %v879 = vsub.f32 %v346, %v873
        %v880 = vpack.c.bf16 %v877, %v876
        %v881 = vpack.c.bf16 %v879, %v878
        %882 = vmatprep.subr.bf16.mxu0 0
        %883 = vmatpush1.bf16.msra.mxu0 %v880
        %884 = vmatprep.subr.bf16.mxu0 0
        %885 = vmatpush1.bf16.msra.mxu0 %v881
        %886 = vmatprep.subr.bf16.mxu0 0
        %887 = vmatpush1.bf16.msra.mxu0 0
        %888 = vmatprep.subr.bf16.mxu0 0
        %889 = vmatpush1.bf16.msra.mxu0 0
        %890 = vmatprep.subr.bf16.mxu0 0
        %891 = vmatpush1.bf16.msra.mxu0 0
        %892 = vmatprep.subr.bf16.mxu0 0
        %893 = vmatpush1.bf16.msra.mxu0 0
        %894 = vmatprep.subr.bf16.mxu0 0
        %895 = vmatpush1.bf16.msra.mxu0 0
        %896 = vmatprep.subr.bf16.mxu0 0
        %897 = vmatpush1.bf16.msra.mxu0 0
        %898 = vmatprep.subr.bf16.mxu0 0
        %899 = vmatpush1.bf16.msra.mxu0 0
        %900 = vmatprep.subr.bf16.mxu0 0
        %901 = vmatpush1.bf16.msra.mxu0 0
        %902 = vmatprep.subr.bf16.mxu0 0
        %903 = vmatpush1.bf16.msra.mxu0 0
        %904 = vmatprep.subr.bf16.mxu0 0
        %905 = vmatpush1.bf16.msra.mxu0 0
        %906 = vmatprep.subr.bf16.mxu0 0
        %907 = vmatpush1.bf16.msra.mxu0 0
        %908 = vmatprep.subr.bf16.mxu0 0
        %909 = vmatpush1.bf16.msra.mxu0 0
        %910 = vmatprep.subr.bf16.mxu0 0
        %911 = vmatpush1.bf16.msra.mxu0 0
        %912 = vmatprep.subr.bf16.mxu0 0
        %913 = vmatpush1.bf16.msra.mxu0 0
        %914 = vmatprep.mubr.bf16.mxu0 0
        %915 = vmatmul.mubr.bf16.gmra.mrb[0].mxu0 %v822
        %v916 = vpop.f32.mrb[0].mxu0
        %v917 = vadd.f32 0.0, %v916
        %v918 = vpop.f32.mrb[0].mxu0
        %v919 = vpop.f32.mrb[0].mxu0
        %v920 = vadd.f32 0.0, %v919
        %v921 = vpop.f32.mrb[0].mxu0
        %922 = vmatprep.mubr.bf16.mxu0 0
        %923 = vmatmul.mubr.bf16.gmra.mrb[0].mxu0 %v825
        %v924 = vpop.f32.mrb[0].mxu0
        %v925 = vadd.f32 0.0, %v924
        %v926 = vpop.f32.mrb[0].mxu0
        %v927 = vpop.f32.mrb[0].mxu0
        %v928 = vadd.f32 0.0, %v927
        %v929 = vpop.f32.mrb[0].mxu0
        %930 = vdwg.mxu0
        %v931 = vsub.f32 %v408, %v917
        %v932 = vsub.f32 %v409, %v920
        %v933 = vsub.f32 %v410, %v925
        %v934 = vsub.f32 %v411, %v928
        %v935 = vpack.c.bf16 %v932, %v931
        %v936 = vpack.c.bf16 %v934, %v933
        %v938 = vsel %vm277, %v762, 0
        %v941 = vsel %vm277, %v763, 0
        %943 = vmatprep.subr.bf16.mxu0 0
        %944 = vmatpush1.bf16.msra.mxu0 %v935
        %945 = vmatprep.subr.bf16.mxu0 0
        %946 = vmatpush1.bf16.msra.mxu0 %v936
        %947 = vmatprep.subr.bf16.mxu0 0
        %948 = vmatpush1.bf16.msra.mxu0 0
        %949 = vmatprep.subr.bf16.mxu0 0
        %950 = vmatpush1.bf16.msra.mxu0 0
        %951 = vmatprep.subr.bf16.mxu0 0
        %952 = vmatpush1.bf16.msra.mxu0 0
        %953 = vmatprep.subr.bf16.mxu0 0
        %954 = vmatpush1.bf16.msra.mxu0 0
        %955 = vmatprep.subr.bf16.mxu0 0
        %956 = vmatpush1.bf16.msra.mxu0 0
        %957 = vmatprep.subr.bf16.mxu0 0
        %958 = vmatpush1.bf16.msra.mxu0 0
        %959 = vmatprep.subr.bf16.mxu0 0
        %960 = vmatpush1.bf16.msra.mxu0 0
        %961 = vmatprep.subr.bf16.mxu0 0
        %962 = vmatpush1.bf16.msra.mxu0 0
        %963 = vmatprep.subr.bf16.mxu0 0
        %964 = vmatpush1.bf16.msra.mxu0 0
        %965 = vmatprep.subr.bf16.mxu0 0
        %966 = vmatpush1.bf16.msra.mxu0 0
        %967 = vmatprep.subr.bf16.mxu0 0
        %968 = vmatpush1.bf16.msra.mxu0 0
        %969 = vmatprep.subr.bf16.mxu0 0
        %970 = vmatpush1.bf16.msra.mxu0 0
        %971 = vmatprep.subr.bf16.mxu0 0
        %972 = vmatpush1.bf16.msra.mxu0 0
        %973 = vmatprep.subr.bf16.mxu0 0
        %974 = vmatpush1.bf16.msra.mxu0 0
        %975 = vmatprep.mubr.bf16.mxu0 0
        %976 = vmatmul.mubr.bf16.gmra.mrb[0].mxu0 %v938
        %v977 = vpop.f32.mrb[0].mxu0
        %v978 = vadd.f32 0.0, %v977
        %v979 = vpop.f32.mrb[0].mxu0
        %v980 = vpop.f32.mrb[0].mxu0
        %v981 = vadd.f32 0.0, %v980
        %v982 = vpop.f32.mrb[0].mxu0
        %983 = vmatprep.mubr.bf16.mxu0 0
        %984 = vmatmul.mubr.bf16.gmra.mrb[0].mxu0 %v941
        %v985 = vpop.f32.mrb[0].mxu0
        %v986 = vadd.f32 0.0, %v985
        %v987 = vpop.f32.mrb[0].mxu0
        %v988 = vpop.f32.mrb[0].mxu0
        %v989 = vadd.f32 0.0, %v988
        %v990 = vpop.f32.mrb[0].mxu0
        %991 = vdwg.mxu0
        %v992 = vmul.f32 %v978, 0.25
        %v993 = vmul.f32 %v981, 0.25
        %v994 = vmul.f32 %v986, 0.25
        %v995 = vmul.f32 %v989, 0.25
        %v996 = vpack.c.bf16 %v993, %v992
        %v997 = vpack.c.bf16 %v995, %v994
        %998 = vmatprep.subr.bf16.mxu0 0
        %999 = vmatpush1.bf16.msra.mxu0 %v996
        %1000 = vmatprep.subr.bf16.mxu0 0
        %1001 = vmatpush1.bf16.msra.mxu0 %v997
        %1002 = vmatprep.subr.bf16.mxu0 0
        %1003 = vmatpush1.bf16.msra.mxu0 0
        %1004 = vmatprep.subr.bf16.mxu0 0
        %1005 = vmatpush1.bf16.msra.mxu0 0
        %1006 = vmatprep.subr.bf16.mxu0 0
        %1007 = vmatpush1.bf16.msra.mxu0 0
        %1008 = vmatprep.subr.bf16.mxu0 0
        %1009 = vmatpush1.bf16.msra.mxu0 0
        %1010 = vmatprep.subr.bf16.mxu0 0
        %1011 = vmatpush1.bf16.msra.mxu0 0
        %1012 = vmatprep.subr.bf16.mxu0 0
        %1013 = vmatpush1.bf16.msra.mxu0 0
        %1014 = vmatprep.subr.bf16.mxu0 0
        %1015 = vmatpush1.bf16.msra.mxu0 0
        %1016 = vmatprep.subr.bf16.mxu0 0
        %1017 = vmatpush1.bf16.msra.mxu0 0
        %1018 = vmatprep.subr.bf16.mxu0 0
        %1019 = vmatpush1.bf16.msra.mxu0 0
        %1020 = vmatprep.subr.bf16.mxu0 0
        %1021 = vmatpush1.bf16.msra.mxu0 0
        %1022 = vmatprep.subr.bf16.mxu0 0
        %1023 = vmatpush1.bf16.msra.mxu0 0
        %1024 = vmatprep.subr.bf16.mxu0 0
        %1025 = vmatpush1.bf16.msra.mxu0 0
        %1026 = vmatprep.subr.bf16.mxu0 0
        %1027 = vmatpush1.bf16.msra.mxu0 0
        %1028 = vmatprep.subr.bf16.mxu0 0
        %1029 = vmatpush1.bf16.msra.mxu0 0
        %1030 = vmatprep.mubr.bf16.mxu0 0
        %1031 = vmatmul.mubr.bf16.gmra.mrb[0].mxu0 %v279
        %v1032 = vpop.f32.mrb[0].mxu0
        %v1033 = vadd.f32 0.0, %v1032
        %v1034 = vpop.f32.mrb[0].mxu0
        %v1035 = vpop.f32.mrb[0].mxu0
        %v1036 = vadd.f32 0.0, %v1035
        %v1037 = vpop.f32.mrb[0].mxu0
        %1038 = vmatprep.mubr.bf16.mxu0 0
        %1039 = vmatmul.mubr.bf16.gmra.mrb[0].mxu0 %v282
        %v1040 = vpop.f32.mrb[0].mxu0
        %v1041 = vadd.f32 0.0, %v1040
        %v1042 = vpop.f32.mrb[0].mxu0
        %v1043 = vpop.f32.mrb[0].mxu0
        %v1044 = vadd.f32 0.0, %v1043
        %v1045 = vpop.f32.mrb[0].mxu0
        %1046 = vdwg.mxu0
        %v1047 = vpack.c.bf16 %v1036, %v1033
        %v1048 = vpack.c.bf16 %v1044, %v1041
        %v1049 = vsub.f32 %v335, %v1033
        %v1050 = vsub.f32 %v336, %v1036
        %v1051 = vsub.f32 %v337, %v1041
        %v1052 = vsub.f32 %v338, %v1044
        %v1053 = vpack.c.bf16 %v1050, %v1049
        %v1054 = vpack.c.bf16 %v1052, %v1051
        %v1056 = vsel %vm277, %v1047, 0
        %v1059 = vsel %vm277, %v1048, 0
        %1061 = vmatprep.subr.bf16.mxu0 0
        %1062 = vmatpush1.bf16.msra.mxu0 %v1053
        %1063 = vmatprep.subr.bf16.mxu0 0
        %1064 = vmatpush1.bf16.msra.mxu0 %v1054
        %1065 = vmatprep.subr.bf16.mxu0 0
        %1066 = vmatpush1.bf16.msra.mxu0 0
        %1067 = vmatprep.subr.bf16.mxu0 0
        %1068 = vmatpush1.bf16.msra.mxu0 0
        %1069 = vmatprep.subr.bf16.mxu0 0
        %1070 = vmatpush1.bf16.msra.mxu0 0
        %1071 = vmatprep.subr.bf16.mxu0 0
        %1072 = vmatpush1.bf16.msra.mxu0 0
        %1073 = vmatprep.subr.bf16.mxu0 0
        %1074 = vmatpush1.bf16.msra.mxu0 0
        %1075 = vmatprep.subr.bf16.mxu0 0
        %1076 = vmatpush1.bf16.msra.mxu0 0
        %1077 = vmatprep.subr.bf16.mxu0 0
        %1078 = vmatpush1.bf16.msra.mxu0 0
        %1079 = vmatprep.subr.bf16.mxu0 0
        %1080 = vmatpush1.bf16.msra.mxu0 0
        %1081 = vmatprep.subr.bf16.mxu0 0
        %1082 = vmatpush1.bf16.msra.mxu0 0
        %1083 = vmatprep.subr.bf16.mxu0 0
        %1084 = vmatpush1.bf16.msra.mxu0 0
        %1085 = vmatprep.subr.bf16.mxu0 0
        %1086 = vmatpush1.bf16.msra.mxu0 0
        %1087 = vmatprep.subr.bf16.mxu0 0
        %1088 = vmatpush1.bf16.msra.mxu0 0
        %1089 = vmatprep.subr.bf16.mxu0 0
        %1090 = vmatpush1.bf16.msra.mxu0 0
        %1091 = vmatprep.subr.bf16.mxu0 0
        %1092 = vmatpush1.bf16.msra.mxu0 0
        %1093 = vmatprep.mubr.bf16.mxu0 0
        %1094 = vmatmul.mubr.bf16.gmra.mrb[0].mxu0 %v1056
        %v1095 = vpop.f32.mrb[0].mxu0
        %v1096 = vadd.f32 0.0, %v1095
        %v1097 = vpop.f32.mrb[0].mxu0
        %v1098 = vpop.f32.mrb[0].mxu0
        %v1099 = vadd.f32 0.0, %v1098
        %v1100 = vpop.f32.mrb[0].mxu0
        %1101 = vmatprep.mubr.bf16.mxu0 0
        %1102 = vmatmul.mubr.bf16.gmra.mrb[0].mxu0 %v1059
        %v1103 = vpop.f32.mrb[0].mxu0
        %v1104 = vadd.f32 0.0, %v1103
        %v1105 = vpop.f32.mrb[0].mxu0
        %v1106 = vpop.f32.mrb[0].mxu0
        %v1107 = vadd.f32 0.0, %v1106
        %v1108 = vpop.f32.mrb[0].mxu0
        %1109 = vdwg.mxu0
        %v1110 = vsub.f32 %v343, %v1096
        %v1111 = vsub.f32 %v344, %v1099
        %v1112 = vsub.f32 %v345, %v1104
        %v1113 = vsub.f32 %v346, %v1107
        %v1114 = vpack.c.bf16 %v1111, %v1110
        %v1115 = vpack.c.bf16 %v1113, %v1112
        %1116 = vmatprep.subr.bf16.mxu0 0
        %1117 = vmatpush1.bf16.msra.mxu0 %v1114
        %1118 = vmatprep.subr.bf16.mxu0 0
        %1119 = vmatpush1.bf16.msra.mxu0 %v1115
        %1120 = vmatprep.subr.bf16.mxu0 0
        %1121 = vmatpush1.bf16.msra.mxu0 0
        %1122 = vmatprep.subr.bf16.mxu0 0
        %1123 = vmatpush1.bf16.msra.mxu0 0
        %1124 = vmatprep.subr.bf16.mxu0 0
        %1125 = vmatpush1.bf16.msra.mxu0 0
        %1126 = vmatprep.subr.bf16.mxu0 0
        %1127 = vmatpush1.bf16.msra.mxu0 0
        %1128 = vmatprep.subr.bf16.mxu0 0
        %1129 = vmatpush1.bf16.msra.mxu0 0
        %1130 = vmatprep.subr.bf16.mxu0 0
        %1131 = vmatpush1.bf16.msra.mxu0 0
        %1132 = vmatprep.subr.bf16.mxu0 0
        %1133 = vmatpush1.bf16.msra.mxu0 0
        %1134 = vmatprep.subr.bf16.mxu0 0
        %1135 = vmatpush1.bf16.msra.mxu0 0
        %1136 = vmatprep.subr.bf16.mxu0 0
        %1137 = vmatpush1.bf16.msra.mxu0 0
        %1138 = vmatprep.subr.bf16.mxu0 0
        %1139 = vmatpush1.bf16.msra.mxu0 0
        %1140 = vmatprep.subr.bf16.mxu0 0
        %1141 = vmatpush1.bf16.msra.mxu0 0
        %1142 = vmatprep.subr.bf16.mxu0 0
        %1143 = vmatpush1.bf16.msra.mxu0 0
        %1144 = vmatprep.subr.bf16.mxu0 0
        %1145 = vmatpush1.bf16.msra.mxu0 0
        %1146 = vmatprep.subr.bf16.mxu0 0
        %1147 = vmatpush1.bf16.msra.mxu0 0
        %1148 = vmatprep.mubr.bf16.mxu0 0
        %1149 = vmatmul.mubr.bf16.gmra.mrb[0].mxu0 %v1056
        %v1150 = vpop.f32.mrb[0].mxu0
        %v1151 = vadd.f32 0.0, %v1150
        %v1152 = vpop.f32.mrb[0].mxu0
        %v1153 = vpop.f32.mrb[0].mxu0
        %v1154 = vadd.f32 0.0, %v1153
        %v1155 = vpop.f32.mrb[0].mxu0
        %1156 = vmatprep.mubr.bf16.mxu0 0
        %1157 = vmatmul.mubr.bf16.gmra.mrb[0].mxu0 %v1059
        %v1158 = vpop.f32.mrb[0].mxu0
        %v1159 = vadd.f32 0.0, %v1158
        %v1160 = vpop.f32.mrb[0].mxu0
        %v1161 = vpop.f32.mrb[0].mxu0
        %v1162 = vadd.f32 0.0, %v1161
        %v1163 = vpop.f32.mrb[0].mxu0
        %1164 = vdwg.mxu0
        %v1165 = vsub.f32 %v408, %v1151
        %v1166 = vsub.f32 %v409, %v1154
        %v1167 = vsub.f32 %v410, %v1159
        %v1168 = vsub.f32 %v411, %v1162
        %v1169 = vpack.c.bf16 %v1166, %v1165
        %v1170 = vpack.c.bf16 %v1168, %v1167
        %v1172 = vsel %vm277, %v996, 0
        %v1175 = vsel %vm277, %v997, 0
        %1177 = vmatprep.subr.bf16.mxu0 0
        %1178 = vmatpush1.bf16.msra.mxu0 %v1169
        %1179 = vmatprep.subr.bf16.mxu0 0
        %1180 = vmatpush1.bf16.msra.mxu0 %v1170
        %1181 = vmatprep.subr.bf16.mxu0 0
        %1182 = vmatpush1.bf16.msra.mxu0 0
        %1183 = vmatprep.subr.bf16.mxu0 0
        %1184 = vmatpush1.bf16.msra.mxu0 0
        %1185 = vmatprep.subr.bf16.mxu0 0
        %1186 = vmatpush1.bf16.msra.mxu0 0
        %1187 = vmatprep.subr.bf16.mxu0 0
        %1188 = vmatpush1.bf16.msra.mxu0 0
        %1189 = vmatprep.subr.bf16.mxu0 0
        %1190 = vmatpush1.bf16.msra.mxu0 0
        %1191 = vmatprep.subr.bf16.mxu0 0
        %1192 = vmatpush1.bf16.msra.mxu0 0
        %1193 = vmatprep.subr.bf16.mxu0 0
        %1194 = vmatpush1.bf16.msra.mxu0 0
        %1195 = vmatprep.subr.bf16.mxu0 0
        %1196 = vmatpush1.bf16.msra.mxu0 0
        %1197 = vmatprep.subr.bf16.mxu0 0
        %1198 = vmatpush1.bf16.msra.mxu0 0
        %1199 = vmatprep.subr.bf16.mxu0 0
        %1200 = vmatpush1.bf16.msra.mxu0 0
        %1201 = vmatprep.subr.bf16.mxu0 0
        %1202 = vmatpush1.bf16.msra.mxu0 0
        %1203 = vmatprep.subr.bf16.mxu0 0
        %1204 = vmatpush1.bf16.msra.mxu0 0
        %1205 = vmatprep.subr.bf16.mxu0 0
        %1206 = vmatpush1.bf16.msra.mxu0 0
        %1207 = vmatprep.subr.bf16.mxu0 0
        %1208 = vmatpush1.bf16.msra.mxu0 0
        %1209 = vmatprep.mubr.bf16.mxu0 0
        %1210 = vmatmul.mubr.bf16.gmra.mrb[0].mxu0 %v1172
        %v1211 = vpop.f32.mrb[0].mxu0
        %v1212 = vadd.f32 0.0, %v1211
        %v1213 = vpop.f32.mrb[0].mxu0
        %v1214 = vpop.f32.mrb[0].mxu0
        %v1215 = vadd.f32 0.0, %v1214
        %v1216 = vpop.f32.mrb[0].mxu0
        %1217 = vmatprep.mubr.bf16.mxu0 0
        %1218 = vmatmul.mubr.bf16.gmra.mrb[0].mxu0 %v1175
        %v1219 = vpop.f32.mrb[0].mxu0
        %v1220 = vadd.f32 0.0, %v1219
        %v1221 = vpop.f32.mrb[0].mxu0
        %v1222 = vpop.f32.mrb[0].mxu0
        %v1223 = vadd.f32 0.0, %v1222
        %v1224 = vpop.f32.mrb[0].mxu0
        %1225 = vdwg.mxu0
        %v1226 = vmul.f32 %v1212, 0.25
        %v1227 = vmul.f32 %v1215, 0.25
        %v1228 = vmul.f32 %v1220, 0.25
        %v1229 = vmul.f32 %v1223, 0.25
        %v1230 = vpack.c.bf16 %v1227, %v1226
        %v1231 = vpack.c.bf16 %v1229, %v1228
        %1232 = vmatprep.subr.bf16.mxu0 0
        %1233 = vmatpush1.bf16.msra.mxu0 %v1230
        %1234 = vmatprep.subr.bf16.mxu0 0
        %1235 = vmatpush1.bf16.msra.mxu0 %v1231
        %1236 = vmatprep.subr.bf16.mxu0 0
        %1237 = vmatpush1.bf16.msra.mxu0 0
        %1238 = vmatprep.subr.bf16.mxu0 0
        %1239 = vmatpush1.bf16.msra.mxu0 0
        %1240 = vmatprep.subr.bf16.mxu0 0
        %1241 = vmatpush1.bf16.msra.mxu0 0
        %1242 = vmatprep.subr.bf16.mxu0 0
        %1243 = vmatpush1.bf16.msra.mxu0 0
        %1244 = vmatprep.subr.bf16.mxu0 0
        %1245 = vmatpush1.bf16.msra.mxu0 0
        %1246 = vmatprep.subr.bf16.mxu0 0
        %1247 = vmatpush1.bf16.msra.mxu0 0
        %1248 = vmatprep.subr.bf16.mxu0 0
        %1249 = vmatpush1.bf16.msra.mxu0 0
        %1250 = vmatprep.subr.bf16.mxu0 0
        %1251 = vmatpush1.bf16.msra.mxu0 0
        %1252 = vmatprep.subr.bf16.mxu0 0
        %1253 = vmatpush1.bf16.msra.mxu0 0
        %1254 = vmatprep.subr.bf16.mxu0 0
        %1255 = vmatpush1.bf16.msra.mxu0 0
        %1256 = vmatprep.subr.bf16.mxu0 0
        %1257 = vmatpush1.bf16.msra.mxu0 0
        %1258 = vmatprep.subr.bf16.mxu0 0
        %1259 = vmatpush1.bf16.msra.mxu0 0
        %1260 = vmatprep.subr.bf16.mxu0 0
        %1261 = vmatpush1.bf16.msra.mxu0 0
        %1262 = vmatprep.subr.bf16.mxu0 0
        %1263 = vmatpush1.bf16.msra.mxu0 0
        %1264 = vmatprep.mubr.bf16.mxu0 0
        %1265 = vmatmul.mubr.bf16.gmra.mrb[0].mxu0 %v279
        %v1266 = vpop.f32.mrb[0].mxu0
        %v1267 = vadd.f32 0.0, %v1266
        %v1268 = vpop.f32.mrb[0].mxu0
        %v1269 = vpop.f32.mrb[0].mxu0
        %v1270 = vadd.f32 0.0, %v1269
        %v1271 = vpop.f32.mrb[0].mxu0
        %1272 = vmatprep.mubr.bf16.mxu0 0
        %1273 = vmatmul.mubr.bf16.gmra.mrb[0].mxu0 %v282
        %v1274 = vpop.f32.mrb[0].mxu0
        %v1275 = vadd.f32 0.0, %v1274
        %v1276 = vpop.f32.mrb[0].mxu0
        %v1277 = vpop.f32.mrb[0].mxu0
        %v1278 = vadd.f32 0.0, %v1277
        %v1279 = vpop.f32.mrb[0].mxu0
        %1280 = vdwg.mxu0
        %v1281 = vpack.c.bf16 %v1270, %v1267
        %v1282 = vpack.c.bf16 %v1278, %v1275
        %v1283 = vsub.f32 %v335, %v1267
        %v1284 = vsub.f32 %v336, %v1270
        %v1285 = vsub.f32 %v337, %v1275
        %v1286 = vsub.f32 %v338, %v1278
        %v1287 = vpack.c.bf16 %v1284, %v1283
        %v1288 = vpack.c.bf16 %v1286, %v1285
        %v1290 = vsel %vm277, %v1281, 0
        %v1293 = vsel %vm277, %v1282, 0
        %1295 = vmatprep.subr.bf16.mxu0 0
        %1296 = vmatpush1.bf16.msra.mxu0 %v1287
        %1297 = vmatprep.subr.bf16.mxu0 0
        %1298 = vmatpush1.bf16.msra.mxu0 %v1288
        %1299 = vmatprep.subr.bf16.mxu0 0
        %1300 = vmatpush1.bf16.msra.mxu0 0
        %1301 = vmatprep.subr.bf16.mxu0 0
        %1302 = vmatpush1.bf16.msra.mxu0 0
        %1303 = vmatprep.subr.bf16.mxu0 0
        %1304 = vmatpush1.bf16.msra.mxu0 0
        %1305 = vmatprep.subr.bf16.mxu0 0
        %1306 = vmatpush1.bf16.msra.mxu0 0
        %1307 = vmatprep.subr.bf16.mxu0 0
        %1308 = vmatpush1.bf16.msra.mxu0 0
        %1309 = vmatprep.subr.bf16.mxu0 0
        %1310 = vmatpush1.bf16.msra.mxu0 0
        %1311 = vmatprep.subr.bf16.mxu0 0
        %1312 = vmatpush1.bf16.msra.mxu0 0
        %1313 = vmatprep.subr.bf16.mxu0 0
        %1314 = vmatpush1.bf16.msra.mxu0 0
        %1315 = vmatprep.subr.bf16.mxu0 0
        %1316 = vmatpush1.bf16.msra.mxu0 0
        %1317 = vmatprep.subr.bf16.mxu0 0
        %1318 = vmatpush1.bf16.msra.mxu0 0
        %1319 = vmatprep.subr.bf16.mxu0 0
        %1320 = vmatpush1.bf16.msra.mxu0 0
        %1321 = vmatprep.subr.bf16.mxu0 0
        %1322 = vmatpush1.bf16.msra.mxu0 0
        %1323 = vmatprep.subr.bf16.mxu0 0
        %1324 = vmatpush1.bf16.msra.mxu0 0
        %1325 = vmatprep.subr.bf16.mxu0 0
        %1326 = vmatpush1.bf16.msra.mxu0 0
        %1327 = vmatprep.mubr.bf16.mxu0 0
        %1328 = vmatmul.mubr.bf16.gmra.mrb[0].mxu0 %v1290
        %v1329 = vpop.f32.mrb[0].mxu0
        %v1330 = vadd.f32 0.0, %v1329
        %v1331 = vpop.f32.mrb[0].mxu0
        %v1332 = vpop.f32.mrb[0].mxu0
        %v1333 = vadd.f32 0.0, %v1332
        %v1334 = vpop.f32.mrb[0].mxu0
        %1335 = vmatprep.mubr.bf16.mxu0 0
        %1336 = vmatmul.mubr.bf16.gmra.mrb[0].mxu0 %v1293
        %v1337 = vpop.f32.mrb[0].mxu0
        %v1338 = vadd.f32 0.0, %v1337
        %v1339 = vpop.f32.mrb[0].mxu0
        %v1340 = vpop.f32.mrb[0].mxu0
        %v1341 = vadd.f32 0.0, %v1340
        %v1342 = vpop.f32.mrb[0].mxu0
        %1343 = vdwg.mxu0
        %v1344 = vsub.f32 %v343, %v1330
        %v1345 = vsub.f32 %v344, %v1333
        %v1346 = vsub.f32 %v345, %v1338
        %v1347 = vsub.f32 %v346, %v1341
        %v1348 = vpack.c.bf16 %v1345, %v1344
        %v1349 = vpack.c.bf16 %v1347, %v1346
        %1350 = vmatprep.subr.bf16.mxu0 0
        %1351 = vmatpush1.bf16.msra.mxu0 %v1348
        %1352 = vmatprep.subr.bf16.mxu0 0
        %1353 = vmatpush1.bf16.msra.mxu0 %v1349
        %1354 = vmatprep.subr.bf16.mxu0 0
        %1355 = vmatpush1.bf16.msra.mxu0 0
        %1356 = vmatprep.subr.bf16.mxu0 0
        %1357 = vmatpush1.bf16.msra.mxu0 0
        %1358 = vmatprep.subr.bf16.mxu0 0
        %1359 = vmatpush1.bf16.msra.mxu0 0
        %1360 = vmatprep.subr.bf16.mxu0 0
        %1361 = vmatpush1.bf16.msra.mxu0 0
        %1362 = vmatprep.subr.bf16.mxu0 0
        %1363 = vmatpush1.bf16.msra.mxu0 0
        %1364 = vmatprep.subr.bf16.mxu0 0
        %1365 = vmatpush1.bf16.msra.mxu0 0
        %1366 = vmatprep.subr.bf16.mxu0 0
        %1367 = vmatpush1.bf16.msra.mxu0 0
        %1368 = vmatprep.subr.bf16.mxu0 0
        %1369 = vmatpush1.bf16.msra.mxu0 0
        %1370 = vmatprep.subr.bf16.mxu0 0
        %1371 = vmatpush1.bf16.msra.mxu0 0
        %1372 = vmatprep.subr.bf16.mxu0 0
        %1373 = vmatpush1.bf16.msra.mxu0 0
        %1374 = vmatprep.subr.bf16.mxu0 0
        %1375 = vmatpush1.bf16.msra.mxu0 0
        %1376 = vmatprep.subr.bf16.mxu0 0
        %1377 = vmatpush1.bf16.msra.mxu0 0
        %1378 = vmatprep.subr.bf16.mxu0 0
        %1379 = vmatpush1.bf16.msra.mxu0 0
        %1380 = vmatprep.subr.bf16.mxu0 0
        %1381 = vmatpush1.bf16.msra.mxu0 0
        %1382 = vmatprep.mubr.bf16.mxu0 0
        %1383 = vmatmul.mubr.bf16.gmra.mrb[0].mxu0 %v1290
        %v1384 = vpop.f32.mrb[0].mxu0
        %v1385 = vadd.f32 0.0, %v1384
        %v1386 = vpop.f32.mrb[0].mxu0
        %v1387 = vpop.f32.mrb[0].mxu0
        %v1388 = vadd.f32 0.0, %v1387
        %v1389 = vpop.f32.mrb[0].mxu0
        %1390 = vmatprep.mubr.bf16.mxu0 0
        %1391 = vmatmul.mubr.bf16.gmra.mrb[0].mxu0 %v1293
        %v1392 = vpop.f32.mrb[0].mxu0
        %v1393 = vadd.f32 0.0, %v1392
        %v1394 = vpop.f32.mrb[0].mxu0
        %v1395 = vpop.f32.mrb[0].mxu0
        %v1396 = vadd.f32 0.0, %v1395
        %v1397 = vpop.f32.mrb[0].mxu0
        %1398 = vdwg.mxu0
        %v1399 = vsub.f32 %v408, %v1385
        %v1400 = vsub.f32 %v409, %v1388
        %v1401 = vsub.f32 %v410, %v1393
        %v1402 = vsub.f32 %v411, %v1396
        %v1403 = vpack.c.bf16 %v1400, %v1399
        %v1404 = vpack.c.bf16 %v1402, %v1401
        %v1406 = vsel %vm277, %v1230, 0
        %v1409 = vsel %vm277, %v1231, 0
        %1411 = vmatprep.subr.bf16.mxu0 0
        %1412 = vmatpush1.bf16.msra.mxu0 %v1403
        %1413 = vmatprep.subr.bf16.mxu0 0
        %1414 = vmatpush1.bf16.msra.mxu0 %v1404
        %1415 = vmatprep.subr.bf16.mxu0 0
        %1416 = vmatpush1.bf16.msra.mxu0 0
        %1417 = vmatprep.subr.bf16.mxu0 0
        %1418 = vmatpush1.bf16.msra.mxu0 0
        %1419 = vmatprep.subr.bf16.mxu0 0
        %1420 = vmatpush1.bf16.msra.mxu0 0
        %1421 = vmatprep.subr.bf16.mxu0 0
        %1422 = vmatpush1.bf16.msra.mxu0 0
        %1423 = vmatprep.subr.bf16.mxu0 0
        %1424 = vmatpush1.bf16.msra.mxu0 0
        %1425 = vmatprep.subr.bf16.mxu0 0
        %1426 = vmatpush1.bf16.msra.mxu0 0
        %1427 = vmatprep.subr.bf16.mxu0 0
        %1428 = vmatpush1.bf16.msra.mxu0 0
        %1429 = vmatprep.subr.bf16.mxu0 0
        %1430 = vmatpush1.bf16.msra.mxu0 0
        %1431 = vmatprep.subr.bf16.mxu0 0
        %1432 = vmatpush1.bf16.msra.mxu0 0
        %1433 = vmatprep.subr.bf16.mxu0 0
        %1434 = vmatpush1.bf16.msra.mxu0 0
        %1435 = vmatprep.subr.bf16.mxu0 0
        %1436 = vmatpush1.bf16.msra.mxu0 0
        %1437 = vmatprep.subr.bf16.mxu0 0
        %1438 = vmatpush1.bf16.msra.mxu0 0
        %1439 = vmatprep.subr.bf16.mxu0 0
        %1440 = vmatpush1.bf16.msra.mxu0 0
        %1441 = vmatprep.subr.bf16.mxu0 0
        %1442 = vmatpush1.bf16.msra.mxu0 0
        %1443 = vmatprep.mubr.bf16.mxu0 0
        %1444 = vmatmul.mubr.bf16.gmra.mrb[0].mxu0 %v1406
        %v1445 = vpop.f32.mrb[0].mxu0
        %v1446 = vadd.f32 0.0, %v1445
        %v1447 = vpop.f32.mrb[0].mxu0
        %v1448 = vpop.f32.mrb[0].mxu0
        %v1449 = vadd.f32 0.0, %v1448
        %v1450 = vpop.f32.mrb[0].mxu0
        %1451 = vmatprep.mubr.bf16.mxu0 0
        %1452 = vmatmul.mubr.bf16.gmra.mrb[0].mxu0 %v1409
        %v1453 = vpop.f32.mrb[0].mxu0
        %v1454 = vadd.f32 0.0, %v1453
        %v1455 = vpop.f32.mrb[0].mxu0
        %v1456 = vpop.f32.mrb[0].mxu0
        %v1457 = vadd.f32 0.0, %v1456
        %v1458 = vpop.f32.mrb[0].mxu0
        %1459 = vdwg.mxu0
        %v1460 = vmul.f32 %v1446, 0.25
        %v1461 = vmul.f32 %v1449, 0.25
        %v1462 = vmul.f32 %v1454, 0.25
        %v1463 = vmul.f32 %v1457, 0.25
        %v1464 = vpack.c.bf16 %v1461, %v1460
        %v1465 = vpack.c.bf16 %v1463, %v1462
        %1466 = vmatprep.subr.bf16.mxu0 0
        %1467 = vmatpush1.bf16.msra.mxu0 %v1464
        %1468 = vmatprep.subr.bf16.mxu0 0
        %1469 = vmatpush1.bf16.msra.mxu0 %v1465
        %1470 = vmatprep.subr.bf16.mxu0 0
        %1471 = vmatpush1.bf16.msra.mxu0 0
        %1472 = vmatprep.subr.bf16.mxu0 0
        %1473 = vmatpush1.bf16.msra.mxu0 0
        %1474 = vmatprep.subr.bf16.mxu0 0
        %1475 = vmatpush1.bf16.msra.mxu0 0
        %1476 = vmatprep.subr.bf16.mxu0 0
        %1477 = vmatpush1.bf16.msra.mxu0 0
        %1478 = vmatprep.subr.bf16.mxu0 0
        %1479 = vmatpush1.bf16.msra.mxu0 0
        %1480 = vmatprep.subr.bf16.mxu0 0
        %1481 = vmatpush1.bf16.msra.mxu0 0
        %1482 = vmatprep.subr.bf16.mxu0 0
        %1483 = vmatpush1.bf16.msra.mxu0 0
        %1484 = vmatprep.subr.bf16.mxu0 0
        %1485 = vmatpush1.bf16.msra.mxu0 0
        %1486 = vmatprep.subr.bf16.mxu0 0
        %1487 = vmatpush1.bf16.msra.mxu0 0
        %1488 = vmatprep.subr.bf16.mxu0 0
        %1489 = vmatpush1.bf16.msra.mxu0 0
        %1490 = vmatprep.subr.bf16.mxu0 0
        %1491 = vmatpush1.bf16.msra.mxu0 0
        %1492 = vmatprep.subr.bf16.mxu0 0
        %1493 = vmatpush1.bf16.msra.mxu0 0
        %1494 = vmatprep.subr.bf16.mxu0 0
        %1495 = vmatpush1.bf16.msra.mxu0 0
        %1496 = vmatprep.subr.bf16.mxu0 0
        %1497 = vmatpush1.bf16.msra.mxu0 0
        %1498 = vmatprep.mubr.bf16.mxu0 0
        %1499 = vmatmul.mubr.bf16.gmra.mrb[0].mxu0 %v279
        %v1500 = vpop.f32.mrb[0].mxu0
        %v1501 = vadd.f32 0.0, %v1500
        %v1502 = vpop.f32.mrb[0].mxu0
        %v1503 = vpop.f32.mrb[0].mxu0
        %v1504 = vadd.f32 0.0, %v1503
        %v1505 = vpop.f32.mrb[0].mxu0
        %1506 = vmatprep.mubr.bf16.mxu0 0
        %1507 = vmatmul.mubr.bf16.gmra.mrb[0].mxu0 %v282
        %v1508 = vpop.f32.mrb[0].mxu0
        %v1509 = vadd.f32 0.0, %v1508
        %v1510 = vpop.f32.mrb[0].mxu0
        %v1511 = vpop.f32.mrb[0].mxu0
        %v1512 = vadd.f32 0.0, %v1511
        %v1513 = vpop.f32.mrb[0].mxu0
        %1514 = vdwg.mxu0
        %v1515 = vpack.c.bf16 %v1504, %v1501
        %v1516 = vpack.c.bf16 %v1512, %v1509
        %v1517 = vsub.f32 %v335, %v1501
        %v1518 = vsub.f32 %v336, %v1504
        %v1519 = vsub.f32 %v337, %v1509
        %v1520 = vsub.f32 %v338, %v1512
        %v1521 = vpack.c.bf16 %v1518, %v1517
        %v1522 = vpack.c.bf16 %v1520, %v1519
        %v1524 = vsel %vm277, %v1515, 0
        %v1527 = vsel %vm277, %v1516, 0
        %1529 = vmatprep.subr.bf16.mxu0 0
        %1530 = vmatpush1.bf16.msra.mxu0 %v1521
        %1531 = vmatprep.subr.bf16.mxu0 0
        %1532 = vmatpush1.bf16.msra.mxu0 %v1522
        %1533 = vmatprep.subr.bf16.mxu0 0
        %1534 = vmatpush1.bf16.msra.mxu0 0
        %1535 = vmatprep.subr.bf16.mxu0 0
        %1536 = vmatpush1.bf16.msra.mxu0 0
        %1537 = vmatprep.subr.bf16.mxu0 0
        %1538 = vmatpush1.bf16.msra.mxu0 0
        %1539 = vmatprep.subr.bf16.mxu0 0
        %1540 = vmatpush1.bf16.msra.mxu0 0
        %1541 = vmatprep.subr.bf16.mxu0 0
        %1542 = vmatpush1.bf16.msra.mxu0 0
        %1543 = vmatprep.subr.bf16.mxu0 0
        %1544 = vmatpush1.bf16.msra.mxu0 0
        %1545 = vmatprep.subr.bf16.mxu0 0
        %1546 = vmatpush1.bf16.msra.mxu0 0
        %1547 = vmatprep.subr.bf16.mxu0 0
        %1548 = vmatpush1.bf16.msra.mxu0 0
        %1549 = vmatprep.subr.bf16.mxu0 0
        %1550 = vmatpush1.bf16.msra.mxu0 0
        %1551 = vmatprep.subr.bf16.mxu0 0
        %1552 = vmatpush1.bf16.msra.mxu0 0
        %1553 = vmatprep.subr.bf16.mxu0 0
        %1554 = vmatpush1.bf16.msra.mxu0 0
        %1555 = vmatprep.subr.bf16.mxu0 0
        %1556 = vmatpush1.bf16.msra.mxu0 0
        %1557 = vmatprep.subr.bf16.mxu0 0
        %1558 = vmatpush1.bf16.msra.mxu0 0
        %1559 = vmatprep.subr.bf16.mxu0 0
        %1560 = vmatpush1.bf16.msra.mxu0 0
        %1561 = vmatprep.mubr.bf16.mxu0 0
        %1562 = vmatmul.mubr.bf16.gmra.mrb[0].mxu0 %v1524
        %v1563 = vpop.f32.mrb[0].mxu0
        %v1564 = vadd.f32 0.0, %v1563
        %v1565 = vpop.f32.mrb[0].mxu0
        %v1566 = vpop.f32.mrb[0].mxu0
        %v1567 = vadd.f32 0.0, %v1566
        %v1568 = vpop.f32.mrb[0].mxu0
        %1569 = vmatprep.mubr.bf16.mxu0 0
        %1570 = vmatmul.mubr.bf16.gmra.mrb[0].mxu0 %v1527
        %v1571 = vpop.f32.mrb[0].mxu0
        %v1572 = vadd.f32 0.0, %v1571
        %v1573 = vpop.f32.mrb[0].mxu0
        %v1574 = vpop.f32.mrb[0].mxu0
        %v1575 = vadd.f32 0.0, %v1574
        %v1576 = vpop.f32.mrb[0].mxu0
        %1577 = vdwg.mxu0
        %v1578 = vsub.f32 %v343, %v1564
        %v1579 = vsub.f32 %v344, %v1567
        %v1580 = vsub.f32 %v345, %v1572
        %v1581 = vsub.f32 %v346, %v1575
        %v1582 = vpack.c.bf16 %v1579, %v1578
        %v1583 = vpack.c.bf16 %v1581, %v1580
        %1584 = vmatprep.subr.bf16.mxu0 0
        %1585 = vmatpush1.bf16.msra.mxu0 %v1582
        %1586 = vmatprep.subr.bf16.mxu0 0
        %1587 = vmatpush1.bf16.msra.mxu0 %v1583
        %1588 = vmatprep.subr.bf16.mxu0 0
        %1589 = vmatpush1.bf16.msra.mxu0 0
        %1590 = vmatprep.subr.bf16.mxu0 0
        %1591 = vmatpush1.bf16.msra.mxu0 0
        %1592 = vmatprep.subr.bf16.mxu0 0
        %1593 = vmatpush1.bf16.msra.mxu0 0
        %1594 = vmatprep.subr.bf16.mxu0 0
        %1595 = vmatpush1.bf16.msra.mxu0 0
        %1596 = vmatprep.subr.bf16.mxu0 0
        %1597 = vmatpush1.bf16.msra.mxu0 0
        %1598 = vmatprep.subr.bf16.mxu0 0
        %1599 = vmatpush1.bf16.msra.mxu0 0
        %1600 = vmatprep.subr.bf16.mxu0 0
        %1601 = vmatpush1.bf16.msra.mxu0 0
        %1602 = vmatprep.subr.bf16.mxu0 0
        %1603 = vmatpush1.bf16.msra.mxu0 0
        %1604 = vmatprep.subr.bf16.mxu0 0
        %1605 = vmatpush1.bf16.msra.mxu0 0
        %1606 = vmatprep.subr.bf16.mxu0 0
        %1607 = vmatpush1.bf16.msra.mxu0 0
        %1608 = vmatprep.subr.bf16.mxu0 0
        %1609 = vmatpush1.bf16.msra.mxu0 0
        %1610 = vmatprep.subr.bf16.mxu0 0
        %1611 = vmatpush1.bf16.msra.mxu0 0
        %1612 = vmatprep.subr.bf16.mxu0 0
        %1613 = vmatpush1.bf16.msra.mxu0 0
        %1614 = vmatprep.subr.bf16.mxu0 0
        %1615 = vmatpush1.bf16.msra.mxu0 0
        %1616 = vmatprep.mubr.bf16.mxu0 0
        %1617 = vmatmul.mubr.bf16.gmra.mrb[0].mxu0 %v1524
        %v1618 = vpop.f32.mrb[0].mxu0
        %v1619 = vadd.f32 0.0, %v1618
        %v1620 = vpop.f32.mrb[0].mxu0
        %v1621 = vpop.f32.mrb[0].mxu0
        %v1622 = vadd.f32 0.0, %v1621
        %v1623 = vpop.f32.mrb[0].mxu0
        %1624 = vmatprep.mubr.bf16.mxu0 0
        %1625 = vmatmul.mubr.bf16.gmra.mrb[0].mxu0 %v1527
        %v1626 = vpop.f32.mrb[0].mxu0
        %v1627 = vadd.f32 0.0, %v1626
        %v1628 = vpop.f32.mrb[0].mxu0
        %v1629 = vpop.f32.mrb[0].mxu0
        %v1630 = vadd.f32 0.0, %v1629
        %v1631 = vpop.f32.mrb[0].mxu0
        %1632 = vdwg.mxu0
        %v1633 = vsub.f32 %v408, %v1619
        %v1634 = vsub.f32 %v409, %v1622
        %v1635 = vsub.f32 %v410, %v1627
        %v1636 = vsub.f32 %v411, %v1630
        %v1637 = vpack.c.bf16 %v1634, %v1633
        %v1638 = vpack.c.bf16 %v1636, %v1635
        %v1640 = vsel %vm277, %v1464, 0
        %v1643 = vsel %vm277, %v1465, 0
        %1645 = vmatprep.subr.bf16.mxu0 0
        %1646 = vmatpush1.bf16.msra.mxu0 %v1637
        %1647 = vmatprep.subr.bf16.mxu0 0
        %1648 = vmatpush1.bf16.msra.mxu0 %v1638
        %1649 = vmatprep.subr.bf16.mxu0 0
        %1650 = vmatpush1.bf16.msra.mxu0 0
        %1651 = vmatprep.subr.bf16.mxu0 0
        %1652 = vmatpush1.bf16.msra.mxu0 0
        %1653 = vmatprep.subr.bf16.mxu0 0
        %1654 = vmatpush1.bf16.msra.mxu0 0
        %1655 = vmatprep.subr.bf16.mxu0 0
        %1656 = vmatpush1.bf16.msra.mxu0 0
        %1657 = vmatprep.subr.bf16.mxu0 0
        %1658 = vmatpush1.bf16.msra.mxu0 0
        %1659 = vmatprep.subr.bf16.mxu0 0
        %1660 = vmatpush1.bf16.msra.mxu0 0
        %1661 = vmatprep.subr.bf16.mxu0 0
        %1662 = vmatpush1.bf16.msra.mxu0 0
        %1663 = vmatprep.subr.bf16.mxu0 0
        %1664 = vmatpush1.bf16.msra.mxu0 0
        %1665 = vmatprep.subr.bf16.mxu0 0
        %1666 = vmatpush1.bf16.msra.mxu0 0
        %1667 = vmatprep.subr.bf16.mxu0 0
        %1668 = vmatpush1.bf16.msra.mxu0 0
        %1669 = vmatprep.subr.bf16.mxu0 0
        %1670 = vmatpush1.bf16.msra.mxu0 0
        %1671 = vmatprep.subr.bf16.mxu0 0
        %1672 = vmatpush1.bf16.msra.mxu0 0
        %1673 = vmatprep.subr.bf16.mxu0 0
        %1674 = vmatpush1.bf16.msra.mxu0 0
        %1675 = vmatprep.subr.bf16.mxu0 0
        %1676 = vmatpush1.bf16.msra.mxu0 0
        %1677 = vmatprep.mubr.bf16.mxu0 0
        %1678 = vmatmul.mubr.bf16.gmra.mrb[0].mxu0 %v1640
        %v1679 = vpop.f32.mrb[0].mxu0
        %v1680 = vadd.f32 0.0, %v1679
        %v1681 = vpop.f32.mrb[0].mxu0
        %v1682 = vpop.f32.mrb[0].mxu0
        %v1683 = vadd.f32 0.0, %v1682
        %v1684 = vpop.f32.mrb[0].mxu0
        %1685 = vmatprep.mubr.bf16.mxu0 0
        %1686 = vmatmul.mubr.bf16.gmra.mrb[0].mxu0 %v1643
        %v1687 = vpop.f32.mrb[0].mxu0
        %v1688 = vadd.f32 0.0, %v1687
        %v1689 = vpop.f32.mrb[0].mxu0
        %v1690 = vpop.f32.mrb[0].mxu0
        %v1691 = vadd.f32 0.0, %v1690
        %v1692 = vpop.f32.mrb[0].mxu0
        %1693 = vdwg.mxu0
        %v1694 = vmul.f32 %v1680, 0.25
        %v1695 = vmul.f32 %v1683, 0.25
        %v1696 = vmul.f32 %v1688, 0.25
        %v1697 = vmul.f32 %v1691, 0.25
        %v1698 = vpack.c.bf16 %v1695, %v1694
        %v1699 = vpack.c.bf16 %v1697, %v1696
        %v1702 = vunpack.c.l.b16 %v1698
        %v1703 = vunpack.c.h.b16 %v1698
        %v1704 = vunpack.c.l.b16 %v1699
        %v1705 = vunpack.c.h.b16 %v1699
        %v1706 = vpack.c.b16 %v1702, %v1702
        %v1707 = vpack.c.b16 %v1703, %v1703
        %v1708 = vpack.c.b16 %v1704, %v1704
        %v1709 = vpack.c.b16 %v1705, %v1705
        %vm1714 = vcmask 257024
        %1715 = vst.msk [vmem:[%s214] sm:$0xf] %vm1714, %v1706
        %1716 = vst.msk [vmem:[%s214 + $0x4] sm:$0xf] %vm1714, %v1707
        %1717 = vst.msk [vmem:[%s214 + $0x8] sm:$0xf] %vm1714, %v1708
        %1718 = vst.msk [vmem:[%s214 + $0xc] sm:$0xf] %vm1714, %v1709
        %s1719 = sand.u32 %s118, 1
        %s1720 = scalar_lea.sflag [#allocation4], %s1719
        %s1721 = sand.u32 %s118, 1
        %s1722 = smul.addr %s1721, 16
        %s1723 = scalar_lea.vmem [#allocation3], %s1722
        // Predicated region
        $region33: #{transmil_forward.14} parent=31 // pred_check
          %p1724 = pneg %p128
        $region34: #{transmil_forward.14} parent=31 // pred_check_branch
          %1726 = sbr.rel (%p1724) target = $region36
        $region35: #{transmil_forward.14} parent=31 // pred_region
          %s1728 = ssub.s32 256, 256
          %1729 = vsyncadd %s1720, %s1728
          %s1730 = smul.addr %s24, 4
          %s1731 = smul.addr %s23, 32
          %s1732 = sadd.s32 %s1730, %s1731
          %s1733 = smul.addr %s1732, 64
          %s1734 = scalar_lea.hbm %s3, %s1733
          %s1735 = sshll.u32 %s1723, 4
          %s1736 = int_to_ptr.vmem [resolvable:$true] %s1735
          %1741 = dma.vmem_to_hbm [thread:$0]  %s1736, 256, %s1734, %s1720, 64, 64, 4
        $region36: #{transmil_forward.14} parent=31 // pred_fallthru
          _
      $region32: #{transmil_forward.14} parent=5 // pred_fallthru
        _
      %p1742 = scmp.le.s32.totalorder 2, %s14
      // Predicated region
      $region37: #{transmil_forward.14} parent=5 // pred_check
        %p1743 = pneg %p1742
      $region38: #{transmil_forward.14} parent=5 // pred_check_branch
        %1745 = sbr.rel (%p1743) target = $region40
      $region39: #{transmil_forward.14} parent=5 // pred_region
        %s1746 = ssub.s32 %s14, 2
        // Predicated region
        $region41: #{transmil_forward.14} parent=39 // pred_check
          %p1747 = pneg %p134
        $region42: #{transmil_forward.14} parent=39 // pred_check_branch
          %1749 = sbr.rel (%p1747) target = $region44
        $region43: #{transmil_forward.14} parent=39 // pred_region
          %s1750 = sand.u32 %s119, 1
          %s1751 = scalar_lea.sflag [#allocation4], %s1750
          %s1752 = sand.u32 %s119, 1
          %s1753 = smul.addr %s1752, 16
          %s1754 = scalar_lea.vmem [#allocation3], %s1753
          %1755 = dma.done %s1751, 256
        $region44: #{transmil_forward.14} parent=39 // pred_fallthru
          _
      $region40: #{transmil_forward.14} parent=5 // pred_fallthru
        _
    $region6: #{transmil_forward.14} parent=1 // loop_footer
      %s18 = sadd.s32 1, %s14
    $region7: #{transmil_forward.14} parent=1 // loop_footer_branch
      %13 = sbr.rel target = $region3
    $region8: #{transmil_forward.14} parent=1 // loop_exit
      _
    %1756 = vsyncpa [#allocation4], 1
    %s1757 = scalar_lea.sflag [#allocation4], 1
    %1758 = vsyncpa %s1757, 1

// kernel: transmil_forward.15
$region0: #{transmil_forward.15}
  #allocation0 [shape = 'u32[]', space=smem, size = 0x4, offset = 0x4, fixed_abs, tag = 'smem constant byte address 0x4 - core index']
  #allocation1 [shape = 'u32[144,128]{1,0:T(1,128)}', space=vmem, size = 0x12000, scoped, tag = 'internal scratch']
  #allocation2 [shape = 'f32[32,64]{1,0:T(8,128)}', space=vmem, size = 0x4000, scoped, tag = 'scratch operand']
  %s0 = inlined_call_operand.hbm [shape: bf16[2,8,32,8], index: 0, kind: input, shape index: {}]
  %s1 = inlined_call_operand.hbm [shape: bf16[2,8,32,8], index: 1, kind: input, shape index: {}]
  %s2 = inlined_call_operand.hbm [shape: bf16[2,8,64,8], index: 2, kind: input, shape index: {}]
  %s3 = inlined_call_operand.hbm [shape: bf16[2,8,32,8], index: 3, kind: input, shape index: {}]
  %s4 = inlined_call_operand.hbm [shape: bf16[2,8,32,8], index: 4, kind: input, shape index: {}]
  %s5 = inlined_call_operand.hbm [shape: bf16[2,8,32,32], index: 5, kind: input, shape index: {}]
  %s6 = inlined_call_operand.hbm [shape: bf16[8,32,64], index: 6, kind: input, shape index: {}]
  %s7 = inlined_call_operand.hbm [shape: bf16[8,8,64], index: 7, kind: input, shape index: {}]
  %s8 = inlined_call_operand.hbm [shape: f32[1,64], index: 8, kind: input, shape index: {}]
  %s9 = inlined_call_operand.hbm [shape: f32[2,10,64], index: 9, kind: output, shape index: {}]
  %s10 = sld [smem:[#allocation0]]
  $region113: #{transmil_forward.15} parent=0
    _
  %s12 = ssub.s32 1, %s10
  %s13 = scalar_select 0, %s12, %s10
  $region1: #{transmil_forward.15} parent=0
    #allocation3 [shape = 'u8[16384]{0}', space=vmem, size = 0x4000, scoped, tag = 'input window, operand 0']
    #allocation4 [shape = 's32[2]{0}', space=sflag, size = 0x8, scoped, tag = 'scoped memory for transmil_forward.15']
    #allocation5 [shape = 's32[2]{0}', space=sflag, size = 0x8, scoped, tag = 'scoped memory for transmil_forward.15']
    #allocation6 [shape = 'u8[16384]{0}', space=vmem, size = 0x4000, scoped, tag = 'input window, operand 1']
    #allocation7 [shape = 's32[2]{0}', space=sflag, size = 0x8, scoped, tag = 'scoped memory for transmil_forward.15']
    #allocation8 [shape = 'u8[32768]{0}', space=vmem, size = 0x8000, scoped, tag = 'input window, operand 2']
    #allocation9 [shape = 'u8[16384]{0}', space=vmem, size = 0x4000, scoped, tag = 'input window, operand 3']
    #allocation10 [shape = 's32[2]{0}', space=sflag, size = 0x8, scoped, tag = 'scoped memory for transmil_forward.15']
    #allocation11 [shape = 'u8[16384]{0}', space=vmem, size = 0x4000, scoped, tag = 'input window, operand 4']
    #allocation12 [shape = 'u8[16384]{0}', space=vmem, size = 0x4000, scoped, tag = 'input window, operand 5']
    #allocation13 [shape = 's32[2]{0}', space=sflag, size = 0x8, scoped, tag = 'scoped memory for transmil_forward.15']
    #allocation14 [shape = 'u8[16384]{0}', space=vmem, size = 0x4000, scoped, tag = 'input window, operand 6']
    #allocation15 [shape = 'u8[4096]{0}', space=vmem, size = 0x1000, scoped, tag = 'input window, operand 7']
    #allocation16 [shape = 's32[2]{0}', space=sflag, size = 0x8, scoped, tag = 'scoped memory for transmil_forward.15']
    #allocation17 [shape = 'u8[512]{0}', space=vmem, size = 0x400, scoped, tag = 'input window, operand 8, single buffered']
    #allocation18 [shape = 'u8[16384]{0}', space=vmem, size = 0x4000, scoped, tag = 'output window, operand 0']
    %14 = vsyncpa [#allocation4], 0
    %s15 = scalar_lea.sflag [#allocation4], 1
    %16 = vsyncpa %s15, 0
    %17 = vsyncpa [#allocation7], 0
    %s18 = scalar_lea.sflag [#allocation7], 1
    %19 = vsyncpa %s18, 0
    %20 = vsyncpa [#allocation10], 0
    %s21 = scalar_lea.sflag [#allocation10], 1
    %22 = vsyncpa %s21, 0
    %23 = vsyncpa [#allocation13], 0
    %s24 = scalar_lea.sflag [#allocation13], 1
    %25 = vsyncpa %s24, 0
    %26 = vsyncpa [#allocation16], 0
    %s27 = scalar_lea.sflag [#allocation16], 1
    %28 = vsyncpa %s27, 0
    %29 = vsyncpa [#allocation5], 0
    %s30 = scalar_lea.sflag [#allocation5], 1
    %31 = vsyncpa %s30, 0
    loop: start=0, step=1, limit=18
    $region2: #{transmil_forward.15} parent=1 // loop_pre_header
      _
    $region3: #{transmil_forward.15} parent=1 // loop_header
      %s33 = sphi 0, %s37
      %p34 = scmp.ge.s32.totalorder %s33, 18
      %s40 = sphi 0, %s52
      %s41 = sphi 0, %s48
      %s42 = sphi 0, %s40
      %s43 = sphi 0, %s41
      %s44 = sphi 0, %s42
      %s45 = sphi 0, %s43
      %s57 = sphi 0, %s59
      %s60 = sphi 0, %s57
      %s61 = sphi 0, %s60
      %s77 = sphi 0, %s61
      %s85 = sphi 0, %s87
      %s88 = sphi 0, %s85
      %s89 = sphi 0, %s88
      %s105 = sphi 0, %s89
      %s113 = sphi 0, %s115
      %s116 = sphi 0, %s113
      %s117 = sphi 0, %s116
      %s133 = sphi 0, %s117
      %s141 = sphi 0, %s143
      %s144 = sphi 0, %s141
      %s145 = sphi 0, %s144
      %s161 = sphi 0, %s145
      %s169 = sphi 0, %s171
      %s172 = sphi 0, %s169
      %s173 = sphi 0, %s172
      %s189 = sphi 0, %s173
      %s197 = sphi 0, %s199
      %s200 = sphi 0, %s197
      %s201 = sphi 0, %s200
      %s217 = sphi 0, %s201
      %s223 = sphi 0, %s225
      %s226 = sphi 0, %s223
      %s227 = sphi 0, %s226
      %s243 = sphi 0, %s227
      %s249 = sphi 0, %s251
      %s252 = sphi 0, %s249
      %s253 = sphi 0, %s252
      %s269 = sphi 0, %s253
      %s273 = sphi 0, %s273
      %s275 = sphi 0, %s273
      %s276 = sphi 0, %s275
      %s290 = sphi 0, %s276
      %s296 = sphi 0, %s298
      %s299 = sphi 0, %s296
      %s300 = sphi 0, %s299
      %s316 = sphi 0, %s300
    $region4: #{transmil_forward.15} parent=1 // loop_header_branch
      %36 = sbr.rel (%p34) target = $region8
    $region5: #{transmil_forward.15} parent=1 // loop_body
      %s38 = ssub.s32 %s33, 1
      %s39 = ssub.s32 %s33, 2
      %s46 = sadd.s32 1, %s41
      %p47 = scmp.ge.s32.totalorder %s46, 8
      %s48 = scalar_select %p47, 0, %s46
      %s49 = sadd.s32 1, %s40
      %s50 = scalar_select %p47, %s49, %s40
      %p51 = scmp.ge.s32.totalorder %s50, 2
      %s52 = scalar_select %p51, 0, %s50
      %s53 = ssub.s32 %s40, %s52
      %s54 = ssub.s32 %s41, %s48
      %s55 = sor.u32 %s53, %s54
      %p56 = scmp.eq.s32.totalorder %s55, 0
      %s58 = sadd.s32 %s57, 1
      %s59 = scalar_select %p56, %s57, %s58
      %p62 = pneg %p56
      %p63 = scmp.eq.s32.totalorder %s33, 15
      %p64 = por %p62, %p63
      %p65 = scmp.ne.s32.totalorder %s57, %s60
      %p66 = scmp.eq.s32.totalorder %s33, 0
      %p67 = por %p65, %p66
      %p68 = scmp.ne.s32.totalorder %s57, %s60
      %p69 = scmp.eq.s32.totalorder %s38, 15
      %p70 = por %p68, %p69
      %p71 = scmp.ne.s32.totalorder %s60, %s61
      %p72 = scmp.eq.s32.totalorder %s38, 0
      %p73 = por %p71, %p72
      %p74 = scmp.ne.s32.totalorder %s60, %s61
      %p75 = scmp.eq.s32.totalorder %s39, 15
      %p76 = por %p74, %p75
      %p78 = scmp.ne.s32.totalorder %s61, %s77
      %p79 = scmp.eq.s32.totalorder %s39, 0
      %p80 = por %p78, %p79
      %s81 = ssub.s32 %s40, %s52
      %s82 = ssub.s32 %s41, %s48
      %s83 = sor.u32 %s81, %s82
      %p84 = scmp.eq.s32.totalorder %s83, 0
      %s86 = sadd.s32 %s85, 1
      %s87 = scalar_select %p84, %s85, %s86
      %p90 = pneg %p84
      %p91 = scmp.eq.s32.totalorder %s33, 15
      %p92 = por %p90, %p91
      %p93 = scmp.ne.s32.totalorder %s85, %s88
      %p94 = scmp.eq.s32.totalorder %s33, 0
      %p95 = por %p93, %p94
      %p96 = scmp.ne.s32.totalorder %s85, %s88
      %p97 = scmp.eq.s32.totalorder %s38, 15
      %p98 = por %p96, %p97
      %p99 = scmp.ne.s32.totalorder %s88, %s89
      %p100 = scmp.eq.s32.totalorder %s38, 0
      %p101 = por %p99, %p100
      %p102 = scmp.ne.s32.totalorder %s88, %s89
      %p103 = scmp.eq.s32.totalorder %s39, 15
      %p104 = por %p102, %p103
      %p106 = scmp.ne.s32.totalorder %s89, %s105
      %p107 = scmp.eq.s32.totalorder %s39, 0
      %p108 = por %p106, %p107
      %s109 = ssub.s32 %s40, %s52
      %s110 = ssub.s32 %s41, %s48
      %s111 = sor.u32 %s109, %s110
      %p112 = scmp.eq.s32.totalorder %s111, 0
      %s114 = sadd.s32 %s113, 1
      %s115 = scalar_select %p112, %s113, %s114
      %p118 = pneg %p112
      %p119 = scmp.eq.s32.totalorder %s33, 15
      %p120 = por %p118, %p119
      %p121 = scmp.ne.s32.totalorder %s113, %s116
      %p122 = scmp.eq.s32.totalorder %s33, 0
      %p123 = por %p121, %p122
      %p124 = scmp.ne.s32.totalorder %s113, %s116
      %p125 = scmp.eq.s32.totalorder %s38, 15
      %p126 = por %p124, %p125
      %p127 = scmp.ne.s32.totalorder %s116, %s117
      %p128 = scmp.eq.s32.totalorder %s38, 0
      %p129 = por %p127, %p128
      %p130 = scmp.ne.s32.totalorder %s116, %s117
      %p131 = scmp.eq.s32.totalorder %s39, 15
      %p132 = por %p130, %p131
      %p134 = scmp.ne.s32.totalorder %s117, %s133
      %p135 = scmp.eq.s32.totalorder %s39, 0
      %p136 = por %p134, %p135
      %s137 = ssub.s32 %s40, %s52
      %s138 = ssub.s32 %s41, %s48
      %s139 = sor.u32 %s137, %s138
      %p140 = scmp.eq.s32.totalorder %s139, 0
      %s142 = sadd.s32 %s141, 1
      %s143 = scalar_select %p140, %s141, %s142
      %p146 = pneg %p140
      %p147 = scmp.eq.s32.totalorder %s33, 15
      %p148 = por %p146, %p147
      %p149 = scmp.ne.s32.totalorder %s141, %s144
      %p150 = scmp.eq.s32.totalorder %s33, 0
      %p151 = por %p149, %p150
      %p152 = scmp.ne.s32.totalorder %s141, %s144
      %p153 = scmp.eq.s32.totalorder %s38, 15
      %p154 = por %p152, %p153
      %p155 = scmp.ne.s32.totalorder %s144, %s145
      %p156 = scmp.eq.s32.totalorder %s38, 0
      %p157 = por %p155, %p156
      %p158 = scmp.ne.s32.totalorder %s144, %s145
      %p159 = scmp.eq.s32.totalorder %s39, 15
      %p160 = por %p158, %p159
      %p162 = scmp.ne.s32.totalorder %s145, %s161
      %p163 = scmp.eq.s32.totalorder %s39, 0
      %p164 = por %p162, %p163
      %s165 = ssub.s32 %s40, %s52
      %s166 = ssub.s32 %s41, %s48
      %s167 = sor.u32 %s165, %s166
      %p168 = scmp.eq.s32.totalorder %s167, 0
      %s170 = sadd.s32 %s169, 1
      %s171 = scalar_select %p168, %s169, %s170
      %p174 = pneg %p168
      %p175 = scmp.eq.s32.totalorder %s33, 15
      %p176 = por %p174, %p175
      %p177 = scmp.ne.s32.totalorder %s169, %s172
      %p178 = scmp.eq.s32.totalorder %s33, 0
      %p179 = por %p177, %p178
      %p180 = scmp.ne.s32.totalorder %s169, %s172
      %p181 = scmp.eq.s32.totalorder %s38, 15
      %p182 = por %p180, %p181
      %p183 = scmp.ne.s32.totalorder %s172, %s173
      %p184 = scmp.eq.s32.totalorder %s38, 0
      %p185 = por %p183, %p184
      %p186 = scmp.ne.s32.totalorder %s172, %s173
      %p187 = scmp.eq.s32.totalorder %s39, 15
      %p188 = por %p186, %p187
      %p190 = scmp.ne.s32.totalorder %s173, %s189
      %p191 = scmp.eq.s32.totalorder %s39, 0
      %p192 = por %p190, %p191
      %s193 = ssub.s32 %s40, %s52
      %s194 = ssub.s32 %s41, %s48
      %s195 = sor.u32 %s193, %s194
      %p196 = scmp.eq.s32.totalorder %s195, 0
      %s198 = sadd.s32 %s197, 1
      %s199 = scalar_select %p196, %s197, %s198
      %p202 = pneg %p196
      %p203 = scmp.eq.s32.totalorder %s33, 15
      %p204 = por %p202, %p203
      %p205 = scmp.ne.s32.totalorder %s197, %s200
      %p206 = scmp.eq.s32.totalorder %s33, 0
      %p207 = por %p205, %p206
      %p208 = scmp.ne.s32.totalorder %s197, %s200
      %p209 = scmp.eq.s32.totalorder %s38, 15
      %p210 = por %p208, %p209
      %p211 = scmp.ne.s32.totalorder %s200, %s201
      %p212 = scmp.eq.s32.totalorder %s38, 0
      %p213 = por %p211, %p212
      %p214 = scmp.ne.s32.totalorder %s200, %s201
      %p215 = scmp.eq.s32.totalorder %s39, 15
      %p216 = por %p214, %p215
      %p218 = scmp.ne.s32.totalorder %s201, %s217
      %p219 = scmp.eq.s32.totalorder %s39, 0
      %p220 = por %p218, %p219
      %s221 = ssub.s32 %s41, %s48
      %p222 = scmp.eq.s32.totalorder %s221, 0
      %s224 = sadd.s32 %s223, 1
      %s225 = scalar_select %p222, %s223, %s224
      %p228 = pneg %p222
      %p229 = scmp.eq.s32.totalorder %s33, 15
      %p230 = por %p228, %p229
      %p231 = scmp.ne.s32.totalorder %s223, %s226
      %p232 = scmp.eq.s32.totalorder %s33, 0
      %p233 = por %p231, %p232
      %p234 = scmp.ne.s32.totalorder %s223, %s226
      %p235 = scmp.eq.s32.totalorder %s38, 15
      %p236 = por %p234, %p235
      %p237 = scmp.ne.s32.totalorder %s226, %s227
      %p238 = scmp.eq.s32.totalorder %s38, 0
      %p239 = por %p237, %p238
      %p240 = scmp.ne.s32.totalorder %s226, %s227
      %p241 = scmp.eq.s32.totalorder %s39, 15
      %p242 = por %p240, %p241
      %p244 = scmp.ne.s32.totalorder %s227, %s243
      %p245 = scmp.eq.s32.totalorder %s39, 0
      %p246 = por %p244, %p245
      %s247 = ssub.s32 %s41, %s48
      %p248 = scmp.eq.s32.totalorder %s247, 0
      %s250 = sadd.s32 %s249, 1
      %s251 = scalar_select %p248, %s249, %s250
      %p254 = pneg %p248
      %p255 = scmp.eq.s32.totalorder %s33, 15
      %p256 = por %p254, %p255
      %p257 = scmp.ne.s32.totalorder %s249, %s252
      %p258 = scmp.eq.s32.totalorder %s33, 0
      %p259 = por %p257, %p258
      %p260 = scmp.ne.s32.totalorder %s249, %s252
      %p261 = scmp.eq.s32.totalorder %s38, 15
      %p262 = por %p260, %p261
      %p263 = scmp.ne.s32.totalorder %s252, %s253
      %p264 = scmp.eq.s32.totalorder %s38, 0
      %p265 = por %p263, %p264
      %p266 = scmp.ne.s32.totalorder %s252, %s253
      %p267 = scmp.eq.s32.totalorder %s39, 15
      %p268 = por %p266, %p267
      %p270 = scmp.ne.s32.totalorder %s253, %s269
      %p271 = scmp.eq.s32.totalorder %s39, 0
      %p272 = por %p270, %p271
      %s274 = sadd.s32 %s273, 1
      %p277 = scmp.eq.s32.totalorder %s33, 15
      %p278 = scmp.ne.s32.totalorder %s273, %s275
      %p279 = scmp.eq.s32.totalorder %s33, 0
      %p280 = por %p278, %p279
      %p281 = scmp.ne.s32.totalorder %s273, %s275
      %p282 = scmp.eq.s32.totalorder %s38, 15
      %p283 = por %p281, %p282
      %p284 = scmp.ne.s32.totalorder %s275, %s276
      %p285 = scmp.eq.s32.totalorder %s38, 0
      %p286 = por %p284, %p285
      %p287 = scmp.ne.s32.totalorder %s275, %s276
      %p288 = scmp.eq.s32.totalorder %s39, 15
      %p289 = por %p287, %p288
      %p291 = scmp.ne.s32.totalorder %s276, %s290
      %p292 = scmp.eq.s32.totalorder %s39, 0
      %p293 = por %p291, %p292
      %s294 = ssub.s32 %s40, %s52
      %p295 = scmp.eq.s32.totalorder %s294, 0
      %s297 = sadd.s32 %s296, 1
      %s298 = scalar_select %p295, %s296, %s297
      %p301 = pneg %p295
      %p302 = scmp.eq.s32.totalorder %s33, 15
      %p303 = por %p301, %p302
      %p304 = scmp.ne.s32.totalorder %s296, %s299
      %p305 = scmp.eq.s32.totalorder %s33, 0
      %p306 = por %p304, %p305
      %p307 = scmp.ne.s32.totalorder %s296, %s299
      %p308 = scmp.eq.s32.totalorder %s38, 15
      %p309 = por %p307, %p308
      %p310 = scmp.ne.s32.totalorder %s299, %s300
      %p311 = scmp.eq.s32.totalorder %s38, 0
      %p312 = por %p310, %p311
      %p313 = scmp.ne.s32.totalorder %s299, %s300
      %p314 = scmp.eq.s32.totalorder %s39, 15
      %p315 = por %p313, %p314
      %p317 = scmp.ne.s32.totalorder %s300, %s316
      %p318 = scmp.eq.s32.totalorder %s39, 0
      %p319 = por %p317, %p318
      %p320 = scmp.le.s32.totalorder 1, %s33
      %p321 = scmp.lt.s32.totalorder %s33, 17
      %p322 = pnand %p320, %p321
      %p323 = pneg %p322
      // Predicated region
      $region9: #{transmil_forward.15} parent=5 // pred_check
        _
      $region10: #{transmil_forward.15} parent=5 // pred_check_branch
        %325 = sbr.rel (%p322) target = $region12
      $region11: #{transmil_forward.15} parent=5 // pred_region
        %s326 = ssub.s32 %s33, 1
        // Predicated region
        $region13: #{transmil_forward.15} parent=11 // pred_check
          %p327 = pneg %p286
        $region14: #{transmil_forward.15} parent=11 // pred_check_branch
          %329 = sbr.rel (%p327) target = $region16
        $region15: #{transmil_forward.15} parent=11 // pred_region
          %s331 = ssub.s32 16, 16
          %332 = vsyncadd [#allocation16], %s331
          %s334 = sshll.u32 [#allocation17], 4
          %s335 = int_to_ptr.vmem [resolvable:$true] %s334
          %337 = dma.hbm_to_vmem [thread:$0]  %s8, 16, %s335, [#allocation16]
        $region16: #{transmil_forward.15} parent=11 // pred_fallthru
          _
      $region12: #{transmil_forward.15} parent=5 // pred_fallthru
        _
      %p338 = scmp.lt.s32.totalorder %s33, 16
      // Predicated region
      $region17: #{transmil_forward.15} parent=5 // pred_check
        %p339 = pneg %p338
      $region18: #{transmil_forward.15} parent=5 // pred_check_branch
        %341 = sbr.rel (%p339) target = $region20
      $region19: #{transmil_forward.15} parent=5 // pred_region
        // Predicated region
        $region21: #{transmil_forward.15} parent=19 // pred_check
          %p342 = pneg %p67
        $region22: #{transmil_forward.15} parent=19 // pred_check_branch
          %344 = sbr.rel (%p342) target = $region24
        $region23: #{transmil_forward.15} parent=19 // pred_region
          %s345 = sand.u32 %s57, 1
          %s346 = scalar_lea.sflag [#allocation4], %s345
          %s347 = sand.u32 %s57, 1
          %s348 = smul.addr %s347, 16
          %s349 = scalar_lea.vmem [#allocation3], %s348
          %s351 = ssub.s32 256, 256
          %352 = vsyncadd %s346, %s351
          %s353 = smul.addr %s41, 4
          %s354 = smul.addr %s40, 32
          %s355 = sadd.s32 %s353, %s354
          %s356 = smul.addr %s355, 64
          %s357 = scalar_lea.hbm %s0, %s356
          %s358 = sshll.u32 %s349, 4
          %s359 = int_to_ptr.vmem [resolvable:$true] %s358
          %364 = dma.hbm_to_vmem [thread:$0]  %s357, 256, %s359, %s346, 64, 64, 4
        $region24: #{transmil_forward.15} parent=19 // pred_fallthru
          _
        // Predicated region
        $region25: #{transmil_forward.15} parent=19 // pred_check
          %p365 = pneg %p95
        $region26: #{transmil_forward.15} parent=19 // pred_check_branch
          %367 = sbr.rel (%p365) target = $region28
        $region27: #{transmil_forward.15} parent=19 // pred_region
          %s368 = sand.u32 %s33, 1
          %s369 = scalar_lea.sflag [#allocation7], %s368
          %s370 = sand.u32 %s85, 1
          %s371 = smul.addr %s370, 16
          %s372 = scalar_lea.vmem [#allocation6], %s371
          %s374 = ssub.s32 256, 256
          %375 = vsyncadd %s369, %s374
          %s376 = smul.addr %s41, 4
          %s377 = smul.addr %s40, 32
          %s378 = sadd.s32 %s376, %s377
          %s379 = smul.addr %s378, 64
          %s380 = scalar_lea.hbm %s1, %s379
          %s381 = sshll.u32 %s372, 4
          %s382 = int_to_ptr.vmem [resolvable:$true] %s381
          %387 = dma.hbm_to_vmem [thread:$0]  %s380, 256, %s382, %s369, 64, 64, 4
        $region28: #{transmil_forward.15} parent=19 // pred_fallthru
          _
        // Predicated region
        $region29: #{transmil_forward.15} parent=19 // pred_check
          %p388 = pneg %p123
        $region30: #{transmil_forward.15} parent=19 // pred_check_branch
          %390 = sbr.rel (%p388) target = $region32
        $region31: #{transmil_forward.15} parent=19 // pred_region
          %s391 = sand.u32 %s33, 1
          %s392 = scalar_lea.sflag [#allocation7], %s391
          %s393 = sand.u32 %s113, 1
          %s394 = smul.addr %s393, 32
          %s395 = scalar_lea.vmem [#allocation8], %s394
          %s397 = ssub.s32 512, 512
          %398 = vsyncadd %s392, %s397
          %s399 = smul.addr %s41, 8
          %s400 = smul.addr %s40, 64
          %s401 = sadd.s32 %s399, %s400
          %s402 = smul.addr %s401, 64
          %s403 = scalar_lea.hbm %s2, %s402
          %s404 = sshll.u32 %s395, 4
          %s405 = int_to_ptr.vmem [resolvable:$true] %s404
          %410 = dma.hbm_to_vmem [thread:$0]  %s403, 512, %s405, %s392, 64, 64, 4
        $region32: #{transmil_forward.15} parent=19 // pred_fallthru
          _
        // Predicated region
        $region33: #{transmil_forward.15} parent=19 // pred_check
          %p411 = pneg %p151
        $region34: #{transmil_forward.15} parent=19 // pred_check_branch
          %413 = sbr.rel (%p411) target = $region36
        $region35: #{transmil_forward.15} parent=19 // pred_region
          %s414 = sand.u32 %s33, 1
          %s415 = scalar_lea.sflag [#allocation10], %s414
          %s416 = sand.u32 %s141, 1
          %s417 = smul.addr %s416, 16
          %s418 = scalar_lea.vmem [#allocation9], %s417
          %s420 = ssub.s32 256, 256
          %421 = vsyncadd %s415, %s420
          %s422 = smul.addr %s41, 4
          %s423 = smul.addr %s40, 32
          %s424 = sadd.s32 %s422, %s423
          %s425 = smul.addr %s424, 64
          %s426 = scalar_lea.hbm %s3, %s425
          %s427 = sshll.u32 %s418, 4
          %s428 = int_to_ptr.vmem [resolvable:$true] %s427
          %433 = dma.hbm_to_vmem [thread:$0]  %s426, 256, %s428, %s415, 64, 64, 4
        $region36: #{transmil_forward.15} parent=19 // pred_fallthru
          _
        // Predicated region
        $region37: #{transmil_forward.15} parent=19 // pred_check
          %p434 = pneg %p179
        $region38: #{transmil_forward.15} parent=19 // pred_check_branch
          %436 = sbr.rel (%p434) target = $region40
        $region39: #{transmil_forward.15} parent=19 // pred_region
          %s437 = sand.u32 %s33, 1
          %s438 = scalar_lea.sflag [#allocation10], %s437
          %s439 = sand.u32 %s169, 1
          %s440 = smul.addr %s439, 16
          %s441 = scalar_lea.vmem [#allocation11], %s440
          %s443 = ssub.s32 256, 256
          %444 = vsyncadd %s438, %s443
          %s445 = smul.addr %s41, 4
          %s446 = smul.addr %s40, 32
          %s447 = sadd.s32 %s445, %s446
          %s448 = smul.addr %s447, 64
          %s449 = scalar_lea.hbm %s4, %s448
          %s450 = sshll.u32 %s441, 4
          %s451 = int_to_ptr.vmem [resolvable:$true] %s450
          %456 = dma.hbm_to_vmem [thread:$0]  %s449, 256, %s451, %s438, 64, 64, 4
        $region40: #{transmil_forward.15} parent=19 // pred_fallthru
          _
        // Predicated region
        $region41: #{transmil_forward.15} parent=19 // pred_check
          %p457 = pneg %p207
        $region42: #{transmil_forward.15} parent=19 // pred_check_branch
          %459 = sbr.rel (%p457) target = $region44
        $region43: #{transmil_forward.15} parent=19 // pred_region
          %s460 = sand.u32 %s33, 1
          %s461 = scalar_lea.sflag [#allocation13], %s460
          %s462 = sand.u32 %s197, 1
          %s463 = smul.addr %s462, 16
          %s464 = scalar_lea.vmem [#allocation12], %s463
          %s466 = ssub.s32 256, 256
          %467 = vsyncadd %s461, %s466
          %s468 = smul.addr %s41, 4
          %s469 = smul.addr %s40, 32
          %s470 = sadd.s32 %s468, %s469
          %s471 = smul.addr %s470, 64
          %s472 = scalar_lea.hbm %s5, %s471
          %s473 = sshll.u32 %s464, 4
          %s474 = int_to_ptr.vmem [resolvable:$true] %s473
          %479 = dma.hbm_to_vmem [thread:$0]  %s472, 256, %s474, %s461, 64, 64, 4
        $region44: #{transmil_forward.15} parent=19 // pred_fallthru
          _
        // Predicated region
        $region45: #{transmil_forward.15} parent=19 // pred_check
          %p480 = pneg %p233
        $region46: #{transmil_forward.15} parent=19 // pred_check_branch
          %482 = sbr.rel (%p480) target = $region48
        $region47: #{transmil_forward.15} parent=19 // pred_region
          %s483 = sand.u32 %s33, 1
          %s484 = scalar_lea.sflag [#allocation13], %s483
          %s485 = sand.u32 %s223, 1
          %s486 = smul.addr %s485, 16
          %s487 = scalar_lea.vmem [#allocation14], %s486
          %s489 = ssub.s32 256, 256
          %490 = vsyncadd %s484, %s489
          %s491 = smul.addr %s41, 4
          %s492 = smul.addr %s491, 64
          %s493 = scalar_lea.hbm %s6, %s492
          %s494 = sshll.u32 %s487, 4
          %s495 = int_to_ptr.vmem [resolvable:$true] %s494
          %500 = dma.hbm_to_vmem [thread:$0]  %s493, 256, %s495, %s484, 64, 64, 4
        $region48: #{transmil_forward.15} parent=19 // pred_fallthru
          _
        // Predicated region
        $region49: #{transmil_forward.15} parent=19 // pred_check
          %p501 = pneg %p259
        $region50: #{transmil_forward.15} parent=19 // pred_check_branch
          %503 = sbr.rel (%p501) target = $region52
        $region51: #{transmil_forward.15} parent=19 // pred_region
          %s504 = sand.u32 %s33, 1
          %s505 = scalar_lea.sflag [#allocation16], %s504
          %s506 = sand.u32 %s249, 1
          %s507 = smul.addr %s506, 4
          %s508 = scalar_lea.vmem [#allocation15], %s507
          %s510 = ssub.s32 64, 64
          %511 = vsyncadd %s505, %s510
          %s512 = smul.addr %s41, 64
          %s513 = scalar_lea.hbm %s7, %s512
          %s515 = sshll.u32 %s508, 4
          %s516 = int_to_ptr.vmem [resolvable:$true] %s515
          %518 = dma.hbm_to_vmem [thread:$0]  %s513, 64, %s516, %s505
        $region52: #{transmil_forward.15} parent=19 // pred_fallthru
          _
      $region20: #{transmil_forward.15} parent=5 // pred_fallthru
        _
      %p519 = scmp.le.s32.totalorder 1, %s33
      %p520 = scmp.lt.s32.totalorder %s33, 17
      %p521 = pnand %p519, %p520
      %p522 = pneg %p521
      // Predicated region
      $region53: #{transmil_forward.15} parent=5 // pred_check
        _
      $region54: #{transmil_forward.15} parent=5 // pred_check_branch
        %524 = sbr.rel (%p521) target = $region56
      $region55: #{transmil_forward.15} parent=5 // pred_region
        %s525 = ssub.s32 %s33, 1
        %s526 = sand.u32 %s60, 1
        %s527 = scalar_lea.sflag [#allocation4], %s526
        %s528 = sand.u32 %s60, 1
        %s529 = smul.addr %s528, 16
        %s530 = scalar_lea.vmem [#allocation3], %s529
        // Predicated region
        $region57: #{transmil_forward.15} parent=55 // pred_check
          %p531 = pneg %p73
        $region58: #{transmil_forward.15} parent=55 // pred_check_branch
          %533 = sbr.rel (%p531) target = $region60
        $region59: #{transmil_forward.15} parent=55 // pred_region
          %534 = dma.done %s527, 256
        $region60: #{transmil_forward.15} parent=55 // pred_fallthru
          _
        %s535 = sand.u32 %s38, 1
        %s536 = scalar_lea.sflag [#allocation7], %s535
        %s537 = sand.u32 %s88, 1
        %s538 = smul.addr %s537, 16
        %s539 = scalar_lea.vmem [#allocation6], %s538
        // Predicated region
        $region61: #{transmil_forward.15} parent=55 // pred_check
          %p540 = pneg %p101
        $region62: #{transmil_forward.15} parent=55 // pred_check_branch
          %542 = sbr.rel (%p540) target = $region64
        $region63: #{transmil_forward.15} parent=55 // pred_region
          %543 = dma.done %s536, 256
        $region64: #{transmil_forward.15} parent=55 // pred_fallthru
          _
        %s544 = sand.u32 %s38, 1
        %s545 = scalar_lea.sflag [#allocation7], %s544
        %s546 = sand.u32 %s116, 1
        %s547 = smul.addr %s546, 32
        %s548 = scalar_lea.vmem [#allocation8], %s547
        // Predicated region
        $region65: #{transmil_forward.15} parent=55 // pred_check
          %p549 = pneg %p129
        $region66: #{transmil_forward.15} parent=55 // pred_check_branch
          %551 = sbr.rel (%p549) target = $region68
        $region67: #{transmil_forward.15} parent=55 // pred_region
          %552 = dma.done %s545, 512
        $region68: #{transmil_forward.15} parent=55 // pred_fallthru
          _
        %s553 = sand.u32 %s38, 1
        %s554 = scalar_lea.sflag [#allocation10], %s553
        %s555 = sand.u32 %s144, 1
        %s556 = smul.addr %s555, 16
        %s557 = scalar_lea.vmem [#allocation9], %s556
        // Predicated region
        $region69: #{transmil_forward.15} parent=55 // pred_check
          %p558 = pneg %p157
        $region70: #{transmil_forward.15} parent=55 // pred_check_branch
          %560 = sbr.rel (%p558) target = $region72
        $region71: #{transmil_forward.15} parent=55 // pred_region
          %561 = dma.done %s554, 256
        $region72: #{transmil_forward.15} parent=55 // pred_fallthru
          _
        %s562 = sand.u32 %s38, 1
        %s563 = scalar_lea.sflag [#allocation10], %s562
        %s564 = sand.u32 %s172, 1
        %s565 = smul.addr %s564, 16
        %s566 = scalar_lea.vmem [#allocation11], %s565
        // Predicated region
        $region73: #{transmil_forward.15} parent=55 // pred_check
          %p567 = pneg %p185
        $region74: #{transmil_forward.15} parent=55 // pred_check_branch
          %569 = sbr.rel (%p567) target = $region76
        $region75: #{transmil_forward.15} parent=55 // pred_region
          %570 = dma.done %s563, 256
        $region76: #{transmil_forward.15} parent=55 // pred_fallthru
          _
        %s571 = sand.u32 %s38, 1
        %s572 = scalar_lea.sflag [#allocation13], %s571
        %s573 = sand.u32 %s200, 1
        %s574 = smul.addr %s573, 16
        %s575 = scalar_lea.vmem [#allocation12], %s574
        // Predicated region
        $region77: #{transmil_forward.15} parent=55 // pred_check
          %p576 = pneg %p213
        $region78: #{transmil_forward.15} parent=55 // pred_check_branch
          %578 = sbr.rel (%p576) target = $region80
        $region79: #{transmil_forward.15} parent=55 // pred_region
          %579 = dma.done %s572, 256
        $region80: #{transmil_forward.15} parent=55 // pred_fallthru
          _
        %s580 = sand.u32 %s38, 1
        %s581 = scalar_lea.sflag [#allocation13], %s580
        %s582 = sand.u32 %s226, 1
        %s583 = smul.addr %s582, 16
        %s584 = scalar_lea.vmem [#allocation14], %s583
        // Predicated region
        $region81: #{transmil_forward.15} parent=55 // pred_check
          %p585 = pneg %p239
        $region82: #{transmil_forward.15} parent=55 // pred_check_branch
          %587 = sbr.rel (%p585) target = $region84
        $region83: #{transmil_forward.15} parent=55 // pred_region
          %588 = dma.done %s581, 256
        $region84: #{transmil_forward.15} parent=55 // pred_fallthru
          _
        %s589 = sand.u32 %s38, 1
        %s590 = scalar_lea.sflag [#allocation16], %s589
        %s591 = sand.u32 %s252, 1
        %s592 = smul.addr %s591, 4
        %s593 = scalar_lea.vmem [#allocation15], %s592
        // Predicated region
        $region85: #{transmil_forward.15} parent=55 // pred_check
          %p594 = pneg %p265
        $region86: #{transmil_forward.15} parent=55 // pred_check_branch
          %596 = sbr.rel (%p594) target = $region88
        $region87: #{transmil_forward.15} parent=55 // pred_region
          %597 = dma.done %s590, 64
        $region88: #{transmil_forward.15} parent=55 // pred_fallthru
          _
        // Predicated region
        $region89: #{transmil_forward.15} parent=55 // pred_check
          %p598 = pneg %p286
        $region90: #{transmil_forward.15} parent=55 // pred_check_branch
          %600 = sbr.rel (%p598) target = $region92
        $region91: #{transmil_forward.15} parent=55 // pred_region
          %601 = dma.done [#allocation16], 16
        $region92: #{transmil_forward.15} parent=55 // pred_fallthru
          _
        %s602 = sand.u32 %s60, 1
        %s603 = scalar_lea.sflag [#allocation4], %s602
        %s604 = sand.u32 %s60, 1
        %s605 = smul.addr %s604, 16
        %s606 = scalar_lea.vmem [#allocation3], %s605
        %p607 = pneg %p73
        %p608 = pneg %p70
        %s609 = sand.u32 %s38, 1
        %s610 = scalar_lea.sflag [#allocation7], %s609
        %s611 = sand.u32 %s88, 1
        %s612 = smul.addr %s611, 16
        %s613 = scalar_lea.vmem [#allocation6], %s612
        %p614 = pneg %p101
        %p615 = pneg %p98
        %s616 = sand.u32 %s38, 1
        %s617 = scalar_lea.sflag [#allocation7], %s616
        %s618 = sand.u32 %s116, 1
        %s619 = smul.addr %s618, 32
        %s620 = scalar_lea.vmem [#allocation8], %s619
        %p621 = pneg %p129
        %p622 = pneg %p126
        %s623 = sand.u32 %s38, 1
        %s624 = scalar_lea.sflag [#allocation10], %s623
        %s625 = sand.u32 %s144, 1
        %s626 = smul.addr %s625, 16
        %s627 = scalar_lea.vmem [#allocation9], %s626
        %p628 = pneg %p157
        %p629 = pneg %p154
        %s630 = sand.u32 %s38, 1
        %s631 = scalar_lea.sflag [#allocation10], %s630
        %s632 = sand.u32 %s172, 1
        %s633 = smul.addr %s632, 16
        %s634 = scalar_lea.vmem [#allocation11], %s633
        %p635 = pneg %p185
        %p636 = pneg %p182
        %s637 = sand.u32 %s38, 1
        %s638 = scalar_lea.sflag [#allocation13], %s637
        %s639 = sand.u32 %s200, 1
        %s640 = smul.addr %s639, 16
        %s641 = scalar_lea.vmem [#allocation12], %s640
        %p642 = pneg %p213
        %p643 = pneg %p210
        %s644 = sand.u32 %s38, 1
        %s645 = scalar_lea.sflag [#allocation13], %s644
        %s646 = sand.u32 %s226, 1
        %s647 = smul.addr %s646, 16
        %s648 = scalar_lea.vmem [#allocation14], %s647
        %p649 = pneg %p239
        %p650 = pneg %p236
        %s651 = sand.u32 %s38, 1
        %s652 = scalar_lea.sflag [#allocation16], %s651
        %s653 = sand.u32 %s252, 1
        %s654 = smul.addr %s653, 4
        %s655 = scalar_lea.vmem [#allocation15], %s654
        %p656 = pneg %p265
        %p657 = pneg %p262
        %p658 = pneg %p286
        %p659 = pneg %p283
        %p660 = pneg %p312
        %p661 = pneg %p309
        %s662 = sand.u32 %s299, 1
        %s663 = scalar_lea.sflag [#allocation5], %s662
        %s664 = sand.u32 %s299, 1
        %s665 = smul.addr %s664, 16
        %s666 = scalar_lea.vmem [#allocation18], %s665
        %p668 = scmp.eq.s32.totalorder %s43, 0
        // Predicated region
        $region93: #{transmil_forward.15} parent=55 // pred_check
          %p669 = pneg %p668
        $region94: #{transmil_forward.15} parent=55 // pred_check_branch
          %671 = sbr.rel (%p669) target = $region96
        $region95: #{transmil_forward.15} parent=55 // pred_region
          %vm672 = vcmask 523264
          %673 = vst.msk [vmem:[#allocation2] sm:$0xff] %vm672, 0.0
          %674 = vst.msk [vmem:[#allocation2 + $0x8] sm:$0xff] %vm672, 0.0
          %675 = vst.msk [vmem:[#allocation2 + $0x10] sm:$0xff] %vm672, 0.0
          %676 = vst.msk [vmem:[#allocation2 + $0x18] sm:$0xff] %vm672, 0.0
        $region96: #{transmil_forward.15} parent=55 // pred_fallthru
          _
        %v677 = vld [vmem:[%s530] sm:$0xf]
        %v678 = vld [vmem:[%s530 + $0x4] sm:$0xf]
        %v679 = vld [vmem:[%s530 + $0x8] sm:$0xf]
        %v680 = vld [vmem:[%s530 + $0xc] sm:$0xf]
        %v681 = vld [vmem:[%s539] sm:$0xf]
        %v682 = vld [vmem:[%s539 + $0x4] sm:$0xf]
        %v683 = vld [vmem:[%s539 + $0x8] sm:$0xf]
        %v684 = vld [vmem:[%s539 + $0xc] sm:$0xf]
        %v685 = vld [vmem:[%s557] sm:$0xf]
        %v686 = vld [vmem:[%s557 + $0x4] sm:$0xf]
        %v687 = vld [vmem:[%s557 + $0x8] sm:$0xf]
        %v688 = vld [vmem:[%s557 + $0xc] sm:$0xf]
        %v689 = vld [vmem:[%s566] sm:$0xf]
        %v690 = vld [vmem:[%s566 + $0x4] sm:$0xf]
        %v691 = vld [vmem:[%s566 + $0x8] sm:$0xf]
        %v692 = vld [vmem:[%s566 + $0xc] sm:$0xf]
        %v693 = vld [vmem:[%s548 + $0x8] sm:$0xf]
        %v694 = vld [vmem:[%s548 + $0xc] sm:$0xf]
        %v695 = vld [vmem:[%s548 + $0x10] sm:$0xf]
        %v696 = vld [vmem:[%s548 + $0x14] sm:$0xf]
        %v701 = vunpack.c.l.b16 %v677
        %v702 = vunpack.c.l.b16 %v678
        %v703 = vunpack.c.l.b16 %v679
        %v704 = vunpack.c.l.b16 %v680
        %v705 = vpack.c.b16 %v702, %v701
        %v706 = vpack.c.b16 %v704, %v703
        %v711 = vunpack.c.l.b16 %v689
        %v712 = vunpack.c.l.b16 %v690
        %v713 = vunpack.c.l.b16 %v691
        %v714 = vunpack.c.l.b16 %v692
        %v715 = vpack.c.b16 %v712, %v711
        %v716 = vpack.c.b16 %v714, %v713
        %vm717 = vcmask 64512
        %v719 = vsel %vm717, %v705, 0
        %v722 = vsel %vm717, %v706, 0
        %v725 = vsel %vm717, %v715, 0
        %v728 = vsel %vm717, %v716, 0
        %730 = vmatprep.subr.bf16.mxu0 0
        %731 = vmatpush1.bf16.xpose.msra.mxu0 %v725
        %732 = vmatprep.subr.bf16.mxu0 0
        %733 = vmatpush1.bf16.xpose.msra.mxu0 %v728
        %734 = vmatprep.subr.bf16.mxu0 0
        %735 = vmatpush1.bf16.xpose.msra.mxu0 0
        %736 = vmatprep.subr.bf16.mxu0 0
        %737 = vmatpush1.bf16.xpose.msra.mxu0 0
        %738 = vmatprep.subr.bf16.mxu0 0
        %739 = vmatpush1.bf16.xpose.msra.mxu0 0
        %740 = vmatprep.subr.bf16.mxu0 0
        %741 = vmatpush1.bf16.xpose.msra.mxu0 0
        %742 = vmatprep.subr.bf16.mxu0 0
        %743 = vmatpush1.bf16.xpose.msra.mxu0 0
        %744 = vmatprep.subr.bf16.mxu0 0
        %745 = vmatpush1.bf16.xpose.msra.mxu0 0
        %746 = vmatprep.subr.bf16.mxu0 0
        %747 = vmatpush1.bf16.xpose.msra.mxu0 0
        %748 = vmatprep.subr.bf16.mxu0 0
        %749 = vmatpush1.bf16.xpose.msra.mxu0 0
        %750 = vmatprep.subr.bf16.mxu0 0
        %751 = vmatpush1.bf16.xpose.msra.mxu0 0
        %752 = vmatprep.subr.bf16.mxu0 0
        %753 = vmatpush1.bf16.xpose.msra.mxu0 0
        %754 = vmatprep.subr.bf16.mxu0 0
        %755 = vmatpush1.bf16.xpose.msra.mxu0 0
        %756 = vmatprep.subr.bf16.mxu0 0
        %757 = vmatpush1.bf16.xpose.msra.mxu0 0
        %758 = vmatprep.subr.bf16.mxu0 0
        %759 = vmatpush1.bf16.xpose.msra.mxu0 0
        %760 = vmatprep.subr.bf16.mxu0 0
        %761 = vmatpush1.bf16.xpose.msra.mxu0 0
        %762 = vmatprep.mubr.bf16.mxu0 0
        %763 = vmatmul.mubr.bf16.gmra.mrb[0].mxu0 %v719
        %v764 = vpop.f32.mrb[0].mxu0
        %v765 = vadd.f32 0.0, %v764
        %v766 = vpop.f32.mrb[0].mxu0
        %v767 = vpop.f32.mrb[0].mxu0
        %v768 = vadd.f32 0.0, %v767
        %v769 = vpop.f32.mrb[0].mxu0
        %770 = vmatprep.mubr.bf16.mxu0 0
        %771 = vmatmul.mubr.bf16.gmra.mrb[0].mxu0 %v722
        %v772 = vpop.f32.mrb[0].mxu0
        %v773 = vadd.f32 0.0, %v772
        %v774 = vpop.f32.mrb[0].mxu0
        %v775 = vpop.f32.mrb[0].mxu0
        %v776 = vadd.f32 0.0, %v775
        %v777 = vpop.f32.mrb[0].mxu0
        %778 = vdwg.mxu0
        %v779 = vmul.f32 %v765, 0.35355338
        %v780 = vmul.f32 %v768, 0.35355338
        %v781 = vmul.f32 %v773, 0.35355338
        %v782 = vmul.f32 %v776, 0.35355338
        %vm783 = vcmask 261120
        %v784 = vsel %vm783, %v779, -inf
        %785 = vmax.xlane.f32.xlu0 %v784
        %v786 = vpop.xlane.xlu0 %785
        %v787 = vsel %vm783, %v780, -inf
        %788 = vmax.xlane.f32.xlu0 %v787
        %v789 = vpop.xlane.xlu0 %788
        %v790 = vsel %vm783, %v781, -inf
        %791 = vmax.xlane.f32.xlu0 %v790
        %v792 = vpop.xlane.xlu0 %791
        %v793 = vsel %vm783, %v782, -inf
        %794 = vmax.xlane.f32.xlu0 %v793
        %v795 = vpop.xlane.xlu0 %794
        %v796 = vsub.f32 %v779, %v786
        %v797 = vsub.f32 %v780, %v789
        %v798 = vsub.f32 %v781, %v792
        %v799 = vsub.f32 %v782, %v795
        %v800 = vmul.f32 %v796, 1.442695
        %v801 = vpow.pop %v800
        %v802 = vmul.f32 %v797, 1.442695
        %v803 = vpow.pop %v802
        %v804 = vmul.f32 %v798, 1.442695
        %v805 = vpow.pop %v804
        %v806 = vmul.f32 %v799, 1.442695
        %v807 = vpow.pop %v806
        %v808 = vsel %vm783, %v801, 0.0
        %809 = vadd.xlane.f32.xlu0 %v808
        %v810 = vpop.xlane.xlu0 %809
        %v811 = vsel %vm783, %v803, 0.0
        %812 = vadd.xlane.f32.xlu0 %v811
        %v813 = vpop.xlane.xlu0 %812
        %v814 = vsel %vm783, %v805, 0.0
        %815 = vadd.xlane.f32.xlu0 %v814
        %v816 = vpop.xlane.xlu0 %815
        %v817 = vsel %vm783, %v807, 0.0
        %818 = vadd.xlane.f32.xlu0 %v817
        %v819 = vpop.xlane.xlu0 %818
        %v820 = vrcp.pop %v810
        %v821 = vmul.f32 %v801, %v820
        %v822 = vrcp.pop %v813
        %v823 = vmul.f32 %v803, %v822
        %v824 = vrcp.pop %v816
        %v825 = vmul.f32 %v805, %v824
        %v826 = vrcp.pop %v819
        %v827 = vmul.f32 %v807, %v826
        %v828 = vpack.c.bf16 %v823, %v821
        %v829 = vpack.c.bf16 %v827, %v825
        %v834 = vunpack.c.l.b16 %v685
        %v835 = vunpack.c.l.b16 %v686
        %v836 = vunpack.c.l.b16 %v687
        %v837 = vunpack.c.l.b16 %v688
        %v838 = vpack.c.b16 %v835, %v834
        %v839 = vpack.c.b16 %v837, %v836
        %v844 = vunpack.c.l.b16 %v681
        %v845 = vunpack.c.l.b16 %v682
        %v846 = vunpack.c.l.b16 %v683
        %v847 = vunpack.c.l.b16 %v684
        %v848 = vpack.c.b16 %v845, %v844
        %v849 = vpack.c.b16 %v847, %v846
        %v851 = vsel %vm717, %v838, 0
        %v854 = vsel %vm717, %v839, 0
        %v857 = vsel %vm717, %v848, 0
        %v860 = vsel %vm717, %v849, 0
        %862 = vmatprep.subr.bf16.mxu0 0
        %863 = vmatpush1.bf16.xpose.msra.mxu0 %v857
        %864 = vmatprep.subr.bf16.mxu0 0
        %865 = vmatpush1.bf16.xpose.msra.mxu0 %v860
        %866 = vmatprep.subr.bf16.mxu0 0
        %867 = vmatpush1.bf16.xpose.msra.mxu0 0
        %868 = vmatprep.subr.bf16.mxu0 0
        %869 = vmatpush1.bf16.xpose.msra.mxu0 0
        %870 = vmatprep.subr.bf16.mxu0 0
        %871 = vmatpush1.bf16.xpose.msra.mxu0 0
        %872 = vmatprep.subr.bf16.mxu0 0
        %873 = vmatpush1.bf16.xpose.msra.mxu0 0
        %874 = vmatprep.subr.bf16.mxu0 0
        %875 = vmatpush1.bf16.xpose.msra.mxu0 0
        %876 = vmatprep.subr.bf16.mxu0 0
        %877 = vmatpush1.bf16.xpose.msra.mxu0 0
        %878 = vmatprep.subr.bf16.mxu0 0
        %879 = vmatpush1.bf16.xpose.msra.mxu0 0
        %880 = vmatprep.subr.bf16.mxu0 0
        %881 = vmatpush1.bf16.xpose.msra.mxu0 0
        %882 = vmatprep.subr.bf16.mxu0 0
        %883 = vmatpush1.bf16.xpose.msra.mxu0 0
        %884 = vmatprep.subr.bf16.mxu0 0
        %885 = vmatpush1.bf16.xpose.msra.mxu0 0
        %886 = vmatprep.subr.bf16.mxu0 0
        %887 = vmatpush1.bf16.xpose.msra.mxu0 0
        %888 = vmatprep.subr.bf16.mxu0 0
        %889 = vmatpush1.bf16.xpose.msra.mxu0 0
        %890 = vmatprep.subr.bf16.mxu0 0
        %891 = vmatpush1.bf16.xpose.msra.mxu0 0
        %892 = vmatprep.subr.bf16.mxu0 0
        %893 = vmatpush1.bf16.xpose.msra.mxu0 0
        %894 = vmatprep.mubr.bf16.mxu0 0
        %895 = vmatmul.mubr.bf16.gmra.mrb[0].mxu0 %v851
        %v896 = vpop.f32.mrb[0].mxu0
        %v897 = vadd.f32 0.0, %v896
        %v898 = vpop.f32.mrb[0].mxu0
        %v899 = vpop.f32.mrb[0].mxu0
        %v900 = vadd.f32 0.0, %v899
        %v901 = vpop.f32.mrb[0].mxu0
        %902 = vmatprep.mubr.bf16.mxu0 0
        %903 = vmatmul.mubr.bf16.gmra.mrb[0].mxu0 %v854
        %v904 = vpop.f32.mrb[0].mxu0
        %v905 = vadd.f32 0.0, %v904
        %v906 = vpop.f32.mrb[0].mxu0
        %v907 = vpop.f32.mrb[0].mxu0
        %v908 = vadd.f32 0.0, %v907
        %v909 = vpop.f32.mrb[0].mxu0
        %910 = vdwg.mxu0
        %v911 = vmul.f32 %v897, 0.35355338
        %v912 = vmul.f32 %v900, 0.35355338
        %v913 = vmul.f32 %v905, 0.35355338
        %v914 = vmul.f32 %v908, 0.35355338
        %v915 = vsel %vm783, %v911, -inf
        %916 = vmax.xlane.f32.xlu0 %v915
        %v917 = vpop.xlane.xlu0 %916
        %v918 = vsel %vm783, %v912, -inf
        %919 = vmax.xlane.f32.xlu0 %v918
        %v920 = vpop.xlane.xlu0 %919
        %v921 = vsel %vm783, %v913, -inf
        %922 = vmax.xlane.f32.xlu0 %v921
        %v923 = vpop.xlane.xlu0 %922
        %v924 = vsel %vm783, %v914, -inf
        %925 = vmax.xlane.f32.xlu0 %v924
        %v926 = vpop.xlane.xlu0 %925
        %v927 = vsub.f32 %v911, %v917
        %v928 = vsub.f32 %v912, %v920
        %v929 = vsub.f32 %v913, %v923
        %v930 = vsub.f32 %v914, %v926
        %v931 = vmul.f32 %v927, 1.442695
        %v932 = vpow.pop %v931
        %v933 = vmul.f32 %v928, 1.442695
        %v934 = vpow.pop %v933
        %v935 = vmul.f32 %v929, 1.442695
        %v936 = vpow.pop %v935
        %v937 = vmul.f32 %v930, 1.442695
        %v938 = vpow.pop %v937
        %v939 = vsel %vm783, %v932, 0.0
        %940 = vadd.xlane.f32.xlu0 %v939
        %v941 = vpop.xlane.xlu0 %940
        %v942 = vsel %vm783, %v934, 0.0
        %943 = vadd.xlane.f32.xlu0 %v942
        %v944 = vpop.xlane.xlu0 %943
        %v945 = vsel %vm783, %v936, 0.0
        %946 = vadd.xlane.f32.xlu0 %v945
        %v947 = vpop.xlane.xlu0 %946
        %v948 = vsel %vm783, %v938, 0.0
        %949 = vadd.xlane.f32.xlu0 %v948
        %v950 = vpop.xlane.xlu0 %949
        %v951 = vrcp.pop %v941
        %v952 = vmul.f32 %v932, %v951
        %v953 = vrcp.pop %v944
        %v954 = vmul.f32 %v934, %v953
        %v955 = vrcp.pop %v947
        %v956 = vmul.f32 %v936, %v955
        %v957 = vrcp.pop %v950
        %v958 = vmul.f32 %v938, %v957
        %v959 = vpack.c.bf16 %v954, %v952
        %v960 = vpack.c.bf16 %v958, %v956
        %v965 = vunpack.c.l.b16 %v693
        %v966 = vunpack.c.l.b16 %v694
        %v967 = vunpack.c.l.b16 %v695
        %v968 = vunpack.c.l.b16 %v696
        %v969 = vpack.c.b16 %v966, %v965
        %v970 = vpack.c.b16 %v968, %v967
        %v974 = vsel %vm783, %v959, 0
        %v977 = vsel %vm783, %v960, 0
        %979 = vmatprep.subr.bf16.mxu0 0
        %980 = vmatpush1.bf16.msra.mxu0 %v969
        %981 = vmatprep.subr.bf16.mxu0 0
        %982 = vmatpush1.bf16.msra.mxu0 %v970
        %983 = vmatprep.subr.bf16.mxu0 0
        %984 = vmatpush1.bf16.msra.mxu0 0
        %985 = vmatprep.subr.bf16.mxu0 0
        %986 = vmatpush1.bf16.msra.mxu0 0
        %987 = vmatprep.subr.bf16.mxu0 0
        %988 = vmatpush1.bf16.msra.mxu0 0
        %989 = vmatprep.subr.bf16.mxu0 0
        %990 = vmatpush1.bf16.msra.mxu0 0
        %991 = vmatprep.subr.bf16.mxu0 0
        %992 = vmatpush1.bf16.msra.mxu0 0
        %993 = vmatprep.subr.bf16.mxu0 0
        %994 = vmatpush1.bf16.msra.mxu0 0
        %995 = vmatprep.subr.bf16.mxu0 0
        %996 = vmatpush1.bf16.msra.mxu0 0
        %997 = vmatprep.subr.bf16.mxu0 0
        %998 = vmatpush1.bf16.msra.mxu0 0
        %999 = vmatprep.subr.bf16.mxu0 0
        %1000 = vmatpush1.bf16.msra.mxu0 0
        %1001 = vmatprep.subr.bf16.mxu0 0
        %1002 = vmatpush1.bf16.msra.mxu0 0
        %1003 = vmatprep.subr.bf16.mxu0 0
        %1004 = vmatpush1.bf16.msra.mxu0 0
        %1005 = vmatprep.subr.bf16.mxu0 0
        %1006 = vmatpush1.bf16.msra.mxu0 0
        %1007 = vmatprep.subr.bf16.mxu0 0
        %1008 = vmatpush1.bf16.msra.mxu0 0
        %1009 = vmatprep.subr.bf16.mxu0 0
        %1010 = vmatpush1.bf16.msra.mxu0 0
        %1011 = vmatprep.mubr.bf16.mxu0 0
        %1012 = vmatmul.mubr.bf16.gmra.mrb[0].mxu0 %v974
        %v1013 = vpop.f32.mrb[0].mxu0
        %v1014 = vadd.f32 0.0, %v1013
        %v1015 = vpop.f32.mrb[0].mxu0
        %v1016 = vpop.f32.mrb[0].mxu0
        %v1017 = vadd.f32 0.0, %v1016
        %v1018 = vpop.f32.mrb[0].mxu0
        %1019 = vmatprep.mubr.bf16.mxu0 0
        %1020 = vmatmul.mubr.bf16.gmra.mrb[0].mxu0 %v977
        %v1021 = vpop.f32.mrb[0].mxu0
        %v1022 = vadd.f32 0.0, %v1021
        %v1023 = vpop.f32.mrb[0].mxu0
        %v1024 = vpop.f32.mrb[0].mxu0
        %v1025 = vadd.f32 0.0, %v1024
        %v1026 = vpop.f32.mrb[0].mxu0
        %1027 = vdwg.mxu0
        %v1028 = vld [vmem:[%s575] sm:$0xf]
        %v1029 = vld [vmem:[%s575 + $0x4] sm:$0xf]
        %v1030 = vld [vmem:[%s575 + $0x8] sm:$0xf]
        %v1031 = vld [vmem:[%s575 + $0xc] sm:$0xf]
        %v1036 = vunpack.c.l.b16 %v1028
        %v1037 = vunpack.c.l.b16 %v1029
        %v1038 = vunpack.c.l.b16 %v1030
        %v1039 = vunpack.c.l.b16 %v1031
        %v1040 = vpack.c.b16 %v1037, %v1036
        %v1041 = vpack.c.b16 %v1039, %v1038
        %v1045 = vsel %vm783, %v828, 0
        %v1048 = vsel %vm783, %v829, 0
        %1050 = vmatprep.subr.bf16.mxu0 0
        %1051 = vmatpush1.bf16.msra.mxu0 %v1040
        %1052 = vmatprep.subr.bf16.mxu0 0
        %1053 = vmatpush1.bf16.msra.mxu0 %v1041
        %1054 = vmatprep.subr.bf16.mxu0 0
        %1055 = vmatpush1.bf16.msra.mxu0 0
        %1056 = vmatprep.subr.bf16.mxu0 0
        %1057 = vmatpush1.bf16.msra.mxu0 0
        %1058 = vmatprep.subr.bf16.mxu0 0
        %1059 = vmatpush1.bf16.msra.mxu0 0
        %1060 = vmatprep.subr.bf16.mxu0 0
        %1061 = vmatpush1.bf16.msra.mxu0 0
        %1062 = vmatprep.subr.bf16.mxu0 0
        %1063 = vmatpush1.bf16.msra.mxu0 0
        %1064 = vmatprep.subr.bf16.mxu0 0
        %1065 = vmatpush1.bf16.msra.mxu0 0
        %1066 = vmatprep.subr.bf16.mxu0 0
        %1067 = vmatpush1.bf16.msra.mxu0 0
        %1068 = vmatprep.subr.bf16.mxu0 0
        %1069 = vmatpush1.bf16.msra.mxu0 0
        %1070 = vmatprep.subr.bf16.mxu0 0
        %1071 = vmatpush1.bf16.msra.mxu0 0
        %1072 = vmatprep.subr.bf16.mxu0 0
        %1073 = vmatpush1.bf16.msra.mxu0 0
        %1074 = vmatprep.subr.bf16.mxu0 0
        %1075 = vmatpush1.bf16.msra.mxu0 0
        %1076 = vmatprep.subr.bf16.mxu0 0
        %1077 = vmatpush1.bf16.msra.mxu0 0
        %1078 = vmatprep.subr.bf16.mxu0 0
        %1079 = vmatpush1.bf16.msra.mxu0 0
        %1080 = vmatprep.subr.bf16.mxu0 0
        %1081 = vmatpush1.bf16.msra.mxu0 0
        %1082 = vmatprep.mubr.bf16.mxu0 0
        %1083 = vmatmul.mubr.bf16.gmra.mrb[0].mxu0 %v1045
        %v1084 = vpop.f32.mrb[0].mxu0
        %v1085 = vadd.f32 0.0, %v1084
        %v1086 = vpop.f32.mrb[0].mxu0
        %v1087 = vpop.f32.mrb[0].mxu0
        %v1088 = vadd.f32 0.0, %v1087
        %v1089 = vpop.f32.mrb[0].mxu0
        %1090 = vmatprep.mubr.bf16.mxu0 0
        %1091 = vmatmul.mubr.bf16.gmra.mrb[0].mxu0 %v1048
        %v1092 = vpop.f32.mrb[0].mxu0
        %v1093 = vadd.f32 0.0, %v1092
        %v1094 = vpop.f32.mrb[0].mxu0
        %v1095 = vpop.f32.mrb[0].mxu0
        %v1096 = vadd.f32 0.0, %v1095
        %v1097 = vpop.f32.mrb[0].mxu0
        %1098 = vdwg.mxu0
        %v1099 = vpack.c.bf16 %v1088, %v1085
        %v1100 = vpack.c.bf16 %v1096, %v1093
        %v1101 = vpack.c.bf16 %v1017, %v1014
        %v1102 = vpack.c.bf16 %v1025, %v1022
        %v1103 = vld [vmem:[%s584] sm:$0xf]
        %v1104 = vld [vmem:[%s584 + $0x4] sm:$0xf]
        %v1105 = vld [vmem:[%s584 + $0x8] sm:$0xf]
        %v1106 = vld [vmem:[%s584 + $0xc] sm:$0xf]
        %v1107 = vld [vmem:[%s548] sm:$0xf]
        %v1108 = vld [vmem:[%s548 + $0x4] sm:$0xf]
        %v1109 = vld [vmem:[%s548 + $0x8] sm:$0xf]
        %v1110 = vld [vmem:[%s548 + $0xc] sm:$0xf]
        %v1111 = vld [vmem:[%s548 + $0x10] sm:$0xf]
        %v1112 = vld [vmem:[%s548 + $0x14] sm:$0xf]
        %v1113 = vld [vmem:[%s548 + $0x18] sm:$0xf]
        %v1114 = vld [vmem:[%s548 + $0x1c] sm:$0xf]
        %v1119 = vunpack.c.l.b16 %v1103
        %v1120 = vunpack.c.l.b16 %v1104
        %v1121 = vunpack.c.l.b16 %v1105
        %v1122 = vunpack.c.l.b16 %v1106
        %v1123 = vpack.c.b16 %v1120, %v1119
        %v1124 = vpack.c.b16 %v1122, %v1121
        %v1133 = vunpack.c.l.b16 %v1107
        %v1134 = vunpack.c.l.b16 %v1108
        %v1135 = vunpack.c.l.b16 %v1109
        %v1136 = vunpack.c.l.b16 %v1110
        %v1137 = vunpack.c.l.b16 %v1111
        %v1138 = vunpack.c.l.b16 %v1112
        %v1139 = vunpack.c.l.b16 %v1113
        %v1140 = vunpack.c.l.b16 %v1114
        %v1141 = vpack.c.b16 %v1134, %v1133
        %v1142 = vpack.c.b16 %v1136, %v1135
        %v1143 = vpack.c.b16 %v1138, %v1137
        %v1144 = vpack.c.b16 %v1140, %v1139
        %vm1149 = vcmask 523264
        %v1151 = vsel %vm1149, %v1123, 0
        %v1154 = vsel %vm1149, %v1124, 0
        %1156 = vmatprep.subr.bf16.mxu0 0
        %1157 = vmatpush1.bf16.msra.mxu0 %v1141
        %1158 = vmatprep.subr.bf16.mxu0 0
        %1159 = vmatpush1.bf16.msra.mxu0 %v1142
        %1160 = vmatprep.subr.bf16.mxu0 0
        %1161 = vmatpush1.bf16.msra.mxu0 %v1143
        %1162 = vmatprep.subr.bf16.mxu0 0
        %1163 = vmatpush1.bf16.msra.mxu0 %v1144
        %1164 = vmatprep.subr.bf16.mxu0 0
        %1165 = vmatpush1.bf16.msra.mxu0 0
        %1166 = vmatprep.subr.bf16.mxu0 0
        %1167 = vmatpush1.bf16.msra.mxu0 0
        %1168 = vmatprep.subr.bf16.mxu0 0
        %1169 = vmatpush1.bf16.msra.mxu0 0
        %1170 = vmatprep.subr.bf16.mxu0 0
        %1171 = vmatpush1.bf16.msra.mxu0 0
        %1172 = vmatprep.subr.bf16.mxu0 0
        %1173 = vmatpush1.bf16.msra.mxu0 0
        %1174 = vmatprep.subr.bf16.mxu0 0
        %1175 = vmatpush1.bf16.msra.mxu0 0
        %1176 = vmatprep.subr.bf16.mxu0 0
        %1177 = vmatpush1.bf16.msra.mxu0 0
        %1178 = vmatprep.subr.bf16.mxu0 0
        %1179 = vmatpush1.bf16.msra.mxu0 0
        %1180 = vmatprep.subr.bf16.mxu0 0
        %1181 = vmatpush1.bf16.msra.mxu0 0
        %1182 = vmatprep.subr.bf16.mxu0 0
        %1183 = vmatpush1.bf16.msra.mxu0 0
        %1184 = vmatprep.subr.bf16.mxu0 0
        %1185 = vmatpush1.bf16.msra.mxu0 0
        %1186 = vmatprep.subr.bf16.mxu0 0
        %1187 = vmatpush1.bf16.msra.mxu0 0
        %1188 = vmatprep.mubr.bf16.mxu0 0
        %1189 = vmatmul.mubr.bf16.gmra.mrb[0].mxu0 %v1151
        %v1190 = vpop.f32.mrb[0].mxu0
        %v1191 = vadd.f32 0.0, %v1190
        %v1192 = vpop.f32.mrb[0].mxu0
        %v1193 = vpop.f32.mrb[0].mxu0
        %v1194 = vadd.f32 0.0, %v1193
        %v1195 = vpop.f32.mrb[0].mxu0
        %1196 = vmatprep.mubr.bf16.mxu0 0
        %1197 = vmatmul.mubr.bf16.gmra.mrb[0].mxu0 %v1154
        %v1198 = vpop.f32.mrb[0].mxu0
        %v1199 = vadd.f32 0.0, %v1198
        %v1200 = vpop.f32.mrb[0].mxu0
        %v1201 = vpop.f32.mrb[0].mxu0
        %v1202 = vadd.f32 0.0, %v1201
        %v1203 = vpop.f32.mrb[0].mxu0
        %1204 = vdwg.mxu0
        %v1206 = vsel %vm783, %v1099, 0
        %v1209 = vsel %vm783, %v1100, 0
        %1211 = vmatprep.subr.bf16.mxu0 0
        %1212 = vmatpush1.bf16.msra.mxu0 %v1101
        %1213 = vmatprep.subr.bf16.mxu0 0
        %1214 = vmatpush1.bf16.msra.mxu0 %v1102
        %1215 = vmatprep.subr.bf16.mxu0 0
        %1216 = vmatpush1.bf16.msra.mxu0 0
        %1217 = vmatprep.subr.bf16.mxu0 0
        %1218 = vmatpush1.bf16.msra.mxu0 0
        %1219 = vmatprep.subr.bf16.mxu0 0
        %1220 = vmatpush1.bf16.msra.mxu0 0
        %1221 = vmatprep.subr.bf16.mxu0 0
        %1222 = vmatpush1.bf16.msra.mxu0 0
        %1223 = vmatprep.subr.bf16.mxu0 0
        %1224 = vmatpush1.bf16.msra.mxu0 0
        %1225 = vmatprep.subr.bf16.mxu0 0
        %1226 = vmatpush1.bf16.msra.mxu0 0
        %1227 = vmatprep.subr.bf16.mxu0 0
        %1228 = vmatpush1.bf16.msra.mxu0 0
        %1229 = vmatprep.subr.bf16.mxu0 0
        %1230 = vmatpush1.bf16.msra.mxu0 0
        %1231 = vmatprep.subr.bf16.mxu0 0
        %1232 = vmatpush1.bf16.msra.mxu0 0
        %1233 = vmatprep.subr.bf16.mxu0 0
        %1234 = vmatpush1.bf16.msra.mxu0 0
        %1235 = vmatprep.subr.bf16.mxu0 0
        %1236 = vmatpush1.bf16.msra.mxu0 0
        %1237 = vmatprep.subr.bf16.mxu0 0
        %1238 = vmatpush1.bf16.msra.mxu0 0
        %1239 = vmatprep.subr.bf16.mxu0 0
        %1240 = vmatpush1.bf16.msra.mxu0 0
        %1241 = vmatprep.subr.bf16.mxu0 0
        %1242 = vmatpush1.bf16.msra.mxu0 0
        %1243 = vmatprep.mubr.bf16.mxu0 0
        %1244 = vmatmul.mubr.bf16.gmra.mrb[0].mxu0 %v1206
        %v1245 = vpop.f32.mrb[0].mxu0
        %v1246 = vadd.f32 %v1191, %v1245
        %v1247 = vpop.f32.mrb[0].mxu0
        %v1248 = vpop.f32.mrb[0].mxu0
        %v1249 = vadd.f32 %v1194, %v1248
        %v1250 = vpop.f32.mrb[0].mxu0
        %1251 = vmatprep.mubr.bf16.mxu0 0
        %1252 = vmatmul.mubr.bf16.gmra.mrb[0].mxu0 %v1209
        %v1253 = vpop.f32.mrb[0].mxu0
        %v1254 = vadd.f32 %v1199, %v1253
        %v1255 = vpop.f32.mrb[0].mxu0
        %v1256 = vpop.f32.mrb[0].mxu0
        %v1257 = vadd.f32 %v1202, %v1256
        %v1258 = vpop.f32.mrb[0].mxu0
        %1259 = vdwg.mxu0
        %v1260 = vld [vmem:[#allocation2] sm:$0xff]
        %v1261 = vld [vmem:[#allocation2 + $0x8] sm:$0xff]
        %v1262 = vld [vmem:[#allocation2 + $0x10] sm:$0xff]
        %v1263 = vld [vmem:[#allocation2 + $0x18] sm:$0xff]
        %v1264 = vpack.c.bf16 %v1249, %v1246
        %v1265 = vpack.c.bf16 %v1257, %v1254
        %v1266 = vld [vmem:[%s593] sm:$0xf]
        %v1268 = vsel %vm717, %v1264, 0
        %v1271 = vsel %vm717, %v1265, 0
        %vm1273 = vcmask 1043456
        %v1275 = vsel %vm1273, %v1266, 0
        %1277 = vmatprep.subr.bf16.mxu0 0
        %1278 = vmatpush1.bf16.msra.mxu0 %v1275
        %1279 = vmatprep.subr.bf16.mxu0 0
        %1280 = vmatpush1.bf16.msra.mxu0 0
        %1281 = vmatprep.subr.bf16.mxu0 0
        %1282 = vmatpush1.bf16.msra.mxu0 0
        %1283 = vmatprep.subr.bf16.mxu0 0
        %1284 = vmatpush1.bf16.msra.mxu0 0
        %1285 = vmatprep.subr.bf16.mxu0 0
        %1286 = vmatpush1.bf16.msra.mxu0 0
        %1287 = vmatprep.subr.bf16.mxu0 0
        %1288 = vmatpush1.bf16.msra.mxu0 0
        %1289 = vmatprep.subr.bf16.mxu0 0
        %1290 = vmatpush1.bf16.msra.mxu0 0
        %1291 = vmatprep.subr.bf16.mxu0 0
        %1292 = vmatpush1.bf16.msra.mxu0 0
        %1293 = vmatprep.subr.bf16.mxu0 0
        %1294 = vmatpush1.bf16.msra.mxu0 0
        %1295 = vmatprep.subr.bf16.mxu0 0
        %1296 = vmatpush1.bf16.msra.mxu0 0
        %1297 = vmatprep.subr.bf16.mxu0 0
        %1298 = vmatpush1.bf16.msra.mxu0 0
        %1299 = vmatprep.subr.bf16.mxu0 0
        %1300 = vmatpush1.bf16.msra.mxu0 0
        %1301 = vmatprep.subr.bf16.mxu0 0
        %1302 = vmatpush1.bf16.msra.mxu0 0
        %1303 = vmatprep.subr.bf16.mxu0 0
        %1304 = vmatpush1.bf16.msra.mxu0 0
        %1305 = vmatprep.subr.bf16.mxu0 0
        %1306 = vmatpush1.bf16.msra.mxu0 0
        %1307 = vmatprep.subr.bf16.mxu0 0
        %1308 = vmatpush1.bf16.msra.mxu0 0
        %1309 = vmatprep.mubr.bf16.mxu0 0
        %1310 = vmatmul.mubr.bf16.gmra.mrb[0].mxu0 %v1268
        %v1311 = vpop.f32.mrb[0].mxu0
        %v1312 = vadd.f32 0.0, %v1311
        %v1313 = vpop.f32.mrb[0].mxu0
        %v1314 = vpop.f32.mrb[0].mxu0
        %v1315 = vadd.f32 0.0, %v1314
        %v1316 = vpop.f32.mrb[0].mxu0
        %1317 = vmatprep.mubr.bf16.mxu0 0
        %1318 = vmatmul.mubr.bf16.gmra.mrb[0].mxu0 %v1271
        %v1319 = vpop.f32.mrb[0].mxu0
        %v1320 = vadd.f32 0.0, %v1319
        %v1321 = vpop.f32.mrb[0].mxu0
        %v1322 = vpop.f32.mrb[0].mxu0
        %v1323 = vadd.f32 0.0, %v1322
        %v1324 = vpop.f32.mrb[0].mxu0
        %1325 = vdwg.mxu0
        %v1326 = vadd.f32 %v1260, %v1312
        %v1327 = vadd.f32 %v1261, %v1315
        %v1328 = vadd.f32 %v1262, %v1320
        %v1329 = vadd.f32 %v1263, %v1323
        %1330 = vst.msk [vmem:[#allocation2] sm:$0xff] %vm1149, %v1326
        %1331 = vst.msk [vmem:[#allocation2 + $0x8] sm:$0xff] %vm1149, %v1327
        %1332 = vst.msk [vmem:[#allocation2 + $0x10] sm:$0xff] %vm1149, %v1328
        %1333 = vst.msk [vmem:[#allocation2 + $0x18] sm:$0xff] %vm1149, %v1329
        %p1334 = scmp.eq.s32.totalorder %s43, 7
        // Predicated region
        $region97: #{transmil_forward.15} parent=55 // pred_check
          %p1335 = pneg %p1334
        $region98: #{transmil_forward.15} parent=55 // pred_check_branch
          %1337 = sbr.rel (%p1335) target = $region100
        $region99: #{transmil_forward.15} parent=55 // pred_region
          %v1338 = vld [vmem:[#allocation2 + $0x16] sm:$0xff]
          %v1339 = vld [vmem:[#allocation2 + $0x1e] sm:$0x3]
          %v1340 = vld [vmem:[#allocation17] sm:$0x1]
          %v1342 = vlaneseq
          %v1343 = vshrl.u32 %v1342, 7
          %v1344 = vsub.s32 0, %v1343
          %v1345 = vrot.slane %v1340, %v1344
          %v1347 = vadd.f32 %v1338, %v1345
          %v1348 = vadd.f32 %v1339, %v1345
          %1349 = vst.msk [vmem:[%s666] sm:$0xff] %vm1149, %v1347
          %vm1350 = vcmask 517120
          %1351 = vst.msk [vmem:[%s666 + $0x8] sm:$0x3] %vm1350, %v1348
        $region100: #{transmil_forward.15} parent=55 // pred_fallthru
          _
        %s1352 = sand.u32 %s299, 1
        %s1353 = scalar_lea.sflag [#allocation5], %s1352
        %s1354 = sand.u32 %s299, 1
        %s1355 = smul.addr %s1354, 16
        %s1356 = scalar_lea.vmem [#allocation18], %s1355
        // Predicated region
        $region101: #{transmil_forward.15} parent=55 // pred_check
          %p1357 = pneg %p309
        $region102: #{transmil_forward.15} parent=55 // pred_check_branch
          %1359 = sbr.rel (%p1357) target = $region104
        $region103: #{transmil_forward.15} parent=55 // pred_region
          %s1361 = ssub.s32 256, 256
          %1362 = vsyncadd %s1353, %s1361
          %s1363 = smul.addr %s42, 2
          %s1364 = smul.addr %s1363, 128
          %s1365 = scalar_lea.hbm %s9, %s1364
          %s1366 = sshll.u32 %s1356, 4
          %s1367 = int_to_ptr.vmem [resolvable:$true] %s1366
          %1372 = dma.vmem_to_hbm [thread:$0]  %s1367, 256, %s1365, %s1353, 128, 128, 8
        $region104: #{transmil_forward.15} parent=55 // pred_fallthru
          _
      $region56: #{transmil_forward.15} parent=5 // pred_fallthru
        _
      %p1373 = scmp.le.s32.totalorder 2, %s33
      // Predicated region
      $region105: #{transmil_forward.15} parent=5 // pred_check
        %p1374 = pneg %p1373
      $region106: #{transmil_forward.15} parent=5 // pred_check_branch
        %1376 = sbr.rel (%p1374) target = $region108
      $region107: #{transmil_forward.15} parent=5 // pred_region
        %s1377 = ssub.s32 %s33, 2
        // Predicated region
        $region109: #{transmil_forward.15} parent=107 // pred_check
          %p1378 = pneg %p315
        $region110: #{transmil_forward.15} parent=107 // pred_check_branch
          %1380 = sbr.rel (%p1378) target = $region112
        $region111: #{transmil_forward.15} parent=107 // pred_region
          %s1381 = sand.u32 %s300, 1
          %s1382 = scalar_lea.sflag [#allocation5], %s1381
          %s1383 = sand.u32 %s300, 1
          %s1384 = smul.addr %s1383, 16
          %s1385 = scalar_lea.vmem [#allocation18], %s1384
          %1386 = dma.done %s1382, 256
        $region112: #{transmil_forward.15} parent=107 // pred_fallthru
          _
      $region108: #{transmil_forward.15} parent=5 // pred_fallthru
        _
    $region6: #{transmil_forward.15} parent=1 // loop_footer
      %s37 = sadd.s32 1, %s33
    $region7: #{transmil_forward.15} parent=1 // loop_footer_branch
      %32 = sbr.rel target = $region3
    $region8: #{transmil_forward.15} parent=1 // loop_exit
      _
    %1387 = vsyncpa [#allocation4], 1
    %s1388 = scalar_lea.sflag [#allocation4], 1
    %1389 = vsyncpa %s1388, 1
    %1390 = vsyncpa [#allocation7], 1
    %s1391 = scalar_lea.sflag [#allocation7], 1
    %1392 = vsyncpa %s1391, 1
    %1393 = vsyncpa [#allocation10], 1
    %s1394 = scalar_lea.sflag [#allocation10], 1
    %1395 = vsyncpa %s1394, 1
    %1396 = vsyncpa [#allocation13], 1
    %s1397 = scalar_lea.sflag [#allocation13], 1
    %1398 = vsyncpa %s1397, 1
    %1399 = vsyncpa [#allocation16], 1
    %s1400 = scalar_lea.sflag [#allocation16], 1
    %1401 = vsyncpa %s1400, 1
    %1402 = vsyncpa [#allocation5], 1
    %s1403 = scalar_lea.sflag [#allocation5], 1
    %1404 = vsyncpa %s1403, 1

// kernel: transmil_forward.21
$region0: #{transmil_forward.21}
  #allocation0 [shape = 'u32[]', space=smem, size = 0x4, offset = 0x4, fixed_abs, tag = 'smem constant byte address 0x4 - core index']
  #allocation1 [shape = 'u32[144,128]{1,0:T(1,128)}', space=vmem, size = 0x12000, scoped, tag = 'internal scratch']
  %s0 = inlined_call_operand.vmem [shape: f32[2,64], index: 0, kind: input, shape index: {}]
  %s1 = inlined_call_operand.vmem [shape: f32[1,64], index: 1, kind: input, shape index: {}]
  %s2 = inlined_call_operand.vmem [shape: f32[1,64], index: 2, kind: input, shape index: {}]
  %s3 = inlined_call_operand.vmem [shape: bf16[64,4], index: 3, kind: input, shape index: {}]
  %s4 = inlined_call_operand.vmem [shape: f32[1,4], index: 4, kind: input, shape index: {}]
  %s5 = inlined_call_operand.hbm [shape: f32[2,64], index: 5, kind: output, shape index: {0}]
  %s6 = inlined_call_operand.vmem [shape: f32[2,4], index: 6, kind: output, shape index: {1}]
  %7 = xla_tuple %s5, %s6
  %s8 = sld [smem:[#allocation0]]
  $region38: #{transmil_forward.21} parent=0
    _
  %s10 = ssub.s32 1, %s8
  %s11 = scalar_select 0, %s10, %s8
  $region1: #{transmil_forward.21} parent=0
    #allocation2 [shape = 'u8[1024]{0}', space=vmem, size = 0x400, scoped, tag = 'output window, operand 0, single buffered']
    #allocation3 [shape = 's32[1]{0}', space=sflag, size = 0x4, scoped, tag = 'scoped memory for transmil_forward.21']
    %12 = vsyncpa [#allocation3], 0
    // Predicated region
    $region2: #{transmil_forward.21} parent=1 // pred_check
      _
    $region3: #{transmil_forward.21} parent=1 // pred_check_branch
      %14 = sbr.rel (0) target = $region5
    $region4: #{transmil_forward.21} parent=1 // pred_region
      _
    $region5: #{transmil_forward.21} parent=1 // pred_fallthru
      _
    // Predicated region
    $region6: #{transmil_forward.21} parent=1 // pred_check
      _
    $region7: #{transmil_forward.21} parent=1 // pred_check_branch
      %16 = sbr.rel (0) target = $region9
    $region8: #{transmil_forward.21} parent=1 // pred_region
      _
    $region9: #{transmil_forward.21} parent=1 // pred_fallthru
      _
    // Predicated region
    $region10: #{transmil_forward.21} parent=1 // pred_check
      _
    $region11: #{transmil_forward.21} parent=1 // pred_check_branch
      %18 = sbr.rel (0) target = $region13
    $region12: #{transmil_forward.21} parent=1 // pred_region
      _
    $region13: #{transmil_forward.21} parent=1 // pred_fallthru
      _
    // Predicated region
    $region14: #{transmil_forward.21} parent=1 // pred_check
      _
    $region15: #{transmil_forward.21} parent=1 // pred_check_branch
      %20 = sbr.rel (0) target = $region17
    $region16: #{transmil_forward.21} parent=1 // pred_region
      _
    $region17: #{transmil_forward.21} parent=1 // pred_fallthru
      _
    // Predicated region
    $region18: #{transmil_forward.21} parent=1 // pred_check
      _
    $region19: #{transmil_forward.21} parent=1 // pred_check_branch
      %22 = sbr.rel (0) target = $region21
    $region20: #{transmil_forward.21} parent=1 // pred_region
      _
    $region21: #{transmil_forward.21} parent=1 // pred_fallthru
      _
    %v24 = vld [vmem:[%s0] sm:$0x3]
    %v25 = vld [vmem:[%s1] sm:$0x1]
    %v26 = vld [vmem:[%s2] sm:$0x1]
    %vm27 = vcmask 517120
    %v28 = vsel %vm27, %v24, 0.0
    %29 = vadd.xlane.f32.xlu0 %v28
    %v30 = vpop.xlane.xlu0 %29
    %v31 = vrcp.pop 64.0
    %v32 = vmul.f32 %v30, %v31
    %v33 = vsub.f32 %v24, %v32
    %v34 = vmul.f32 %v33, %v33
    %v35 = vsel %vm27, %v34, 0.0
    %36 = vadd.xlane.f32.xlu0 %v35
    %v37 = vpop.xlane.xlu0 %36
    %v38 = vmul.f32 %v37, %v31
    %v39 = vadd.f32 %v38, 1e-05
    %v40 = vrsqrt.pop %v39
    %v41 = vmul.f32 %v33, %v40
    %v43 = vlaneseq
    %v44 = vshrl.u32 %v43, 7
    %v45 = vsub.s32 0, %v44
    %v46 = vrot.slane %v25, %v45
    %v48 = vmul.f32 %v41, %v46
    %v50 = vlaneseq
    %v51 = vshrl.u32 %v50, 7
    %v52 = vsub.s32 0, %v51
    %v53 = vrot.slane %v26, %v52
    %v55 = vadd.f32 %v48, %v53
    %56 = vst.msk [vmem:[#allocation2] sm:$0x3] %vm27, %v55
    %v57 = vpack.c.bf16 %v55, %v55
    %v58 = vld [vmem:[%s3] sm:$0xf]
    %v59 = vld [vmem:[%s3 + $0x4] sm:$0xf]
    %v60 = vld [vmem:[%s3 + $0x8] sm:$0xf]
    %v61 = vld [vmem:[%s3 + $0xc] sm:$0xf]
    %v62 = vld [vmem:[%s3 + $0x10] sm:$0xf]
    %v63 = vld [vmem:[%s3 + $0x14] sm:$0xf]
    %v64 = vld [vmem:[%s3 + $0x18] sm:$0xf]
    %v65 = vld [vmem:[%s3 + $0x1c] sm:$0xf]
    %v66 = vld [vmem:[%s4] sm:$0x1]
    %v68 = vlaneseq
    %v69 = vshrl.u32 %v68, 7
    %v70 = vsub.s32 0, %v69
    %v71 = vrot.slane %v66, %v70
    %v81 = vunpack.c.l.b16 %v58
    %v82 = vunpack.c.l.b16 %v59
    %v83 = vunpack.c.l.b16 %v60
    %v84 = vunpack.c.l.b16 %v61
    %v85 = vunpack.c.l.b16 %v62
    %v86 = vunpack.c.l.b16 %v63
    %v87 = vunpack.c.l.b16 %v64
    %v88 = vunpack.c.l.b16 %v65
    %v89 = vpack.c.b16 %v82, %v81
    %v90 = vpack.c.b16 %v84, %v83
    %v91 = vpack.c.b16 %v86, %v85
    %v92 = vpack.c.b16 %v88, %v87
    %vm97 = vcmask 523264
    %v99 = vsel %vm97, %v57, 0
    %101 = vmatprep.subr.bf16.mxu0 0
    %102 = vmatpush1.bf16.msra.mxu0 %v89
    %103 = vmatprep.subr.bf16.mxu0 0
    %104 = vmatpush1.bf16.msra.mxu0 %v90
    %105 = vmatprep.subr.bf16.mxu0 0
    %106 = vmatpush1.bf16.msra.mxu0 %v91
    %107 = vmatprep.subr.bf16.mxu0 0
    %108 = vmatpush1.bf16.msra.mxu0 %v92
    %109 = vmatprep.subr.bf16.mxu0 0
    %110 = vmatpush1.bf16.msra.mxu0 0
    %111 = vmatprep.subr.bf16.mxu0 0
    %112 = vmatpush1.bf16.msra.mxu0 0
    %113 = vmatprep.subr.bf16.mxu0 0
    %114 = vmatpush1.bf16.msra.mxu0 0
    %115 = vmatprep.subr.bf16.mxu0 0
    %116 = vmatpush1.bf16.msra.mxu0 0
    %117 = vmatprep.subr.bf16.mxu0 0
    %118 = vmatpush1.bf16.msra.mxu0 0
    %119 = vmatprep.subr.bf16.mxu0 0
    %120 = vmatpush1.bf16.msra.mxu0 0
    %121 = vmatprep.subr.bf16.mxu0 0
    %122 = vmatpush1.bf16.msra.mxu0 0
    %123 = vmatprep.subr.bf16.mxu0 0
    %124 = vmatpush1.bf16.msra.mxu0 0
    %125 = vmatprep.subr.bf16.mxu0 0
    %126 = vmatpush1.bf16.msra.mxu0 0
    %127 = vmatprep.subr.bf16.mxu0 0
    %128 = vmatpush1.bf16.msra.mxu0 0
    %129 = vmatprep.subr.bf16.mxu0 0
    %130 = vmatpush1.bf16.msra.mxu0 0
    %131 = vmatprep.subr.bf16.mxu0 0
    %132 = vmatpush1.bf16.msra.mxu0 0
    %133 = vmatprep.mubr.bf16.mxu0 0
    %134 = vmatmul.mubr.bf16.gmra.mrb[0].mxu0 %v99
    %v135 = vpop.f32.mrb[0].mxu0
    %v136 = vadd.f32 %v71, %v135
    %v137 = vpop.f32.mrb[0].mxu0
    %v138 = vpop.f32.mrb[0].mxu0
    %v139 = vpop.f32.mrb[0].mxu0
    %140 = vdwg.mxu0
    %vm141 = vcmask 25600
    %142 = vst.msk [vmem:[%s6] sm:$0x3] %vm141, %v136
    // Predicated region
    $region22: #{transmil_forward.21} parent=1 // pred_check
      _
    $region23: #{transmil_forward.21} parent=1 // pred_check_branch
      %144 = sbr.rel (0) target = $region25
    $region24: #{transmil_forward.21} parent=1 // pred_region
      %s146 = ssub.s32 32, 32
      %147 = vsyncadd [#allocation3], %s146
      %s149 = sshll.u32 [#allocation2], 4
      %s150 = int_to_ptr.vmem [resolvable:$true] %s149
      %152 = dma.vmem_to_hbm [thread:$0]  %s150, 32, %s5, [#allocation3]
    $region25: #{transmil_forward.21} parent=1 // pred_fallthru
      _
    // Predicated region
    $region26: #{transmil_forward.21} parent=1 // pred_check
      _
    $region27: #{transmil_forward.21} parent=1 // pred_check_branch
      %154 = sbr.rel (0) target = $region29
    $region28: #{transmil_forward.21} parent=1 // pred_region
      _
    $region29: #{transmil_forward.21} parent=1 // pred_fallthru
      _
    // Predicated region
    $region30: #{transmil_forward.21} parent=1 // pred_check
      _
    $region31: #{transmil_forward.21} parent=1 // pred_check_branch
      %156 = sbr.rel (0) target = $region33
    $region32: #{transmil_forward.21} parent=1 // pred_region
      %157 = dma.done [#allocation3], 32
    $region33: #{transmil_forward.21} parent=1 // pred_fallthru
      _
    // Predicated region
    $region34: #{transmil_forward.21} parent=1 // pred_check
      _
    $region35: #{transmil_forward.21} parent=1 // pred_check_branch
      %159 = sbr.rel (0) target = $region37
    $region36: #{transmil_forward.21} parent=1 // pred_region
      _
    $region37: #{transmil_forward.21} parent=1 // pred_fallthru
      _
    %160 = vsyncpa [#allocation3], 1

// kernel: transmil_forward.16
$region0: #{transmil_forward.16}
  #allocation0 [shape = 'u32[]', space=smem, size = 0x4, offset = 0x4, fixed_abs, tag = 'smem constant byte address 0x4 - core index']
  #allocation1 [shape = 'u32[144,128]{1,0:T(1,128)}', space=vmem, size = 0x12000, scoped, tag = 'internal scratch']
  %s0 = inlined_call_operand.hbm [shape: f32[2,9,9,64], index: 0, kind: input, shape index: {}]
  %s1 = inlined_call_operand.hbm [shape: f32[49,64], index: 1, kind: input, shape index: {}]
  %s2 = inlined_call_operand.hbm [shape: f32[1,64], index: 2, kind: input, shape index: {}]
  %s3 = inlined_call_operand.hbm [shape: f32[2,3,3,64], index: 3, kind: output, shape index: {}]
  %s4 = sld [smem:[#allocation0]]
  $region57: #{transmil_forward.16} parent=0
    _
  %s6 = ssub.s32 1, %s4
  %s7 = scalar_select 0, %s6, %s4
  $region1: #{transmil_forward.16} parent=0
    #allocation2 [shape = 'u8[147456]{0}', space=vmem, size = 0x24000, scoped, tag = 'input window, operand 0']
    #allocation3 [shape = 's32[2]{0}', space=sflag, size = 0x8, scoped, tag = 'scoped memory for transmil_forward.16']
    #allocation4 [shape = 's32[2]{0}', space=sflag, size = 0x8, scoped, tag = 'scoped memory for transmil_forward.16']
    #allocation5 [shape = 'u8[28672]{0}', space=vmem, size = 0x7000, scoped, tag = 'input window, operand 1, single buffered']
    #allocation6 [shape = 's32[1]{0}', space=sflag, size = 0x4, scoped, tag = 'scoped memory for transmil_forward.16']
    #allocation7 [shape = 'u8[512]{0}', space=vmem, size = 0x400, scoped, tag = 'input window, operand 2, single buffered']
    #allocation8 [shape = 'u8[12288]{0}', space=vmem, size = 0x3000, scoped, tag = 'output window, operand 0']
    %8 = vsyncpa [#allocation3], 0
    %s9 = scalar_lea.sflag [#allocation3], 1
    %10 = vsyncpa %s9, 0
    %11 = vsyncpa [#allocation6], 0
    %12 = vsyncpa [#allocation4], 0
    %s13 = scalar_lea.sflag [#allocation4], 1
    %14 = vsyncpa %s13, 0
    loop: start=0, step=1, limit=4
    $region2: #{transmil_forward.16} parent=1 // loop_pre_header
      _
    $region3: #{transmil_forward.16} parent=1 // loop_header
      %s16 = sphi 0, %s20
      %p17 = scmp.ge.s32.totalorder %s16, 4
      %s26 = sphi 0, %s28
      %s29 = sphi 0, %s26
      %s30 = sphi 0, %s29
      %s46 = sphi 0, %s30
      %s50 = sphi 0, %s50
      %s52 = sphi 0, %s50
      %s53 = sphi 0, %s52
      %s67 = sphi 0, %s53
      %s71 = sphi 0, %s71
      %s73 = sphi 0, %s71
      %s74 = sphi 0, %s73
      %s88 = sphi 0, %s74
      %s94 = sphi 0, %s96
      %s97 = sphi 0, %s94
      %s98 = sphi 0, %s97
      %s114 = sphi 0, %s98
    $region4: #{transmil_forward.16} parent=1 // loop_header_branch
      %19 = sbr.rel (%p17) target = $region8
    $region5: #{transmil_forward.16} parent=1 // loop_body
      %s21 = ssub.s32 %s16, 1
      %s22 = ssub.s32 %s16, 2
      %s23 = sadd.s32 %s16, 1
      %s24 = ssub.s32 %s16, %s23
      %p25 = scmp.eq.s32.totalorder %s24, 0
      %s27 = sadd.s32 %s26, 1
      %s28 = scalar_select %p25, %s26, %s27
      %p31 = pneg %p25
      %p32 = scmp.eq.s32.totalorder %s16, 1
      %p33 = por %p31, %p32
      %p34 = scmp.ne.s32.totalorder %s26, %s29
      %p35 = scmp.eq.s32.totalorder %s16, 0
      %p36 = por %p34, %p35
      %p37 = scmp.ne.s32.totalorder %s26, %s29
      %p38 = scmp.eq.s32.totalorder %s21, 1
      %p39 = por %p37, %p38
      %p40 = scmp.ne.s32.totalorder %s29, %s30
      %p41 = scmp.eq.s32.totalorder %s21, 0
      %p42 = por %p40, %p41
      %p43 = scmp.ne.s32.totalorder %s29, %s30
      %p44 = scmp.eq.s32.totalorder %s22, 1
      %p45 = por %p43, %p44
      %p47 = scmp.ne.s32.totalorder %s30, %s46
      %p48 = scmp.eq.s32.totalorder %s22, 0
      %p49 = por %p47, %p48
      %s51 = sadd.s32 %s50, 1
      %p54 = scmp.eq.s32.totalorder %s16, 1
      %p55 = scmp.ne.s32.totalorder %s50, %s52
      %p56 = scmp.eq.s32.totalorder %s16, 0
      %p57 = por %p55, %p56
      %p58 = scmp.ne.s32.totalorder %s50, %s52
      %p59 = scmp.eq.s32.totalorder %s21, 1
      %p60 = por %p58, %p59
      %p61 = scmp.ne.s32.totalorder %s52, %s53
      %p62 = scmp.eq.s32.totalorder %s21, 0
      %p63 = por %p61, %p62
      %p64 = scmp.ne.s32.totalorder %s52, %s53
      %p65 = scmp.eq.s32.totalorder %s22, 1
      %p66 = por %p64, %p65
      %p68 = scmp.ne.s32.totalorder %s53, %s67
      %p69 = scmp.eq.s32.totalorder %s22, 0
      %p70 = por %p68, %p69
      %s72 = sadd.s32 %s71, 1
      %p75 = scmp.eq.s32.totalorder %s16, 1
      %p76 = scmp.ne.s32.totalorder %s71, %s73
      %p77 = scmp.eq.s32.totalorder %s16, 0
      %p78 = por %p76, %p77
      %p79 = scmp.ne.s32.totalorder %s71, %s73
      %p80 = scmp.eq.s32.totalorder %s21, 1
      %p81 = por %p79, %p80
      %p82 = scmp.ne.s32.totalorder %s73, %s74
      %p83 = scmp.eq.s32.totalorder %s21, 0
      %p84 = por %p82, %p83
      %p85 = scmp.ne.s32.totalorder %s73, %s74
      %p86 = scmp.eq.s32.totalorder %s22, 1
      %p87 = por %p85, %p86
      %p89 = scmp.ne.s32.totalorder %s74, %s88
      %p90 = scmp.eq.s32.totalorder %s22, 0
      %p91 = por %p89, %p90
      %s92 = ssub.s32 %s16, %s23
      %p93 = scmp.eq.s32.totalorder %s92, 0
      %s95 = sadd.s32 %s94, 1
      %s96 = scalar_select %p93, %s94, %s95
      %p99 = pneg %p93
      %p100 = scmp.eq.s32.totalorder %s16, 1
      %p101 = por %p99, %p100
      %p102 = scmp.ne.s32.totalorder %s94, %s97
      %p103 = scmp.eq.s32.totalorder %s16, 0
      %p104 = por %p102, %p103
      %p105 = scmp.ne.s32.totalorder %s94, %s97
      %p106 = scmp.eq.s32.totalorder %s21, 1
      %p107 = por %p105, %p106
      %p108 = scmp.ne.s32.totalorder %s97, %s98
      %p109 = scmp.eq.s32.totalorder %s21, 0
      %p110 = por %p108, %p109
      %p111 = scmp.ne.s32.totalorder %s97, %s98
      %p112 = scmp.eq.s32.totalorder %s22, 1
      %p113 = por %p111, %p112
      %p115 = scmp.ne.s32.totalorder %s98, %s114
      %p116 = scmp.eq.s32.totalorder %s22, 0
      %p117 = por %p115, %p116
      %p118 = scmp.le.s32.totalorder 1, %s16
      %p119 = scmp.lt.s32.totalorder %s16, 3
      %p120 = pnand %p118, %p119
      %p121 = pneg %p120
      // Predicated region
      $region9: #{transmil_forward.16} parent=5 // pred_check
        _
      $region10: #{transmil_forward.16} parent=5 // pred_check_branch
        %123 = sbr.rel (%p120) target = $region12
      $region11: #{transmil_forward.16} parent=5 // pred_region
        %s124 = ssub.s32 %s16, 1
        // Predicated region
        $region13: #{transmil_forward.16} parent=11 // pred_check
          %p125 = pneg %p63
        $region14: #{transmil_forward.16} parent=11 // pred_check_branch
          %127 = sbr.rel (%p125) target = $region16
        $region15: #{transmil_forward.16} parent=11 // pred_region
          %s129 = ssub.s32 896, 896
          %130 = vsyncadd [#allocation6], %s129
          %s131 = sshll.u32 [#allocation5], 4
          %s132 = int_to_ptr.vmem [resolvable:$true] %s131
          %137 = dma.hbm_to_vmem [thread:$0]  %s1, 896, %s132, [#allocation6], 128, 128, 8
        $region16: #{transmil_forward.16} parent=11 // pred_fallthru
          _
        // Predicated region
        $region17: #{transmil_forward.16} parent=11 // pred_check
          %p138 = pneg %p84
        $region18: #{transmil_forward.16} parent=11 // pred_check_branch
          %140 = sbr.rel (%p138) target = $region20
        $region19: #{transmil_forward.16} parent=11 // pred_region
          %s142 = ssub.s32 16, 16
          %143 = vsyncadd [#allocation6], %s142
          %s145 = sshll.u32 [#allocation7], 4
          %s146 = int_to_ptr.vmem [resolvable:$true] %s145
          %148 = dma.hbm_to_vmem [thread:$0]  %s2, 16, %s146, [#allocation6]
        $region20: #{transmil_forward.16} parent=11 // pred_fallthru
          _
      $region12: #{transmil_forward.16} parent=5 // pred_fallthru
        _
      %p149 = scmp.lt.s32.totalorder %s16, 2
      // Predicated region
      $region21: #{transmil_forward.16} parent=5 // pred_check
        %p150 = pneg %p149
      $region22: #{transmil_forward.16} parent=5 // pred_check_branch
        %152 = sbr.rel (%p150) target = $region24
      $region23: #{transmil_forward.16} parent=5 // pred_region
        // Predicated region
        $region25: #{transmil_forward.16} parent=23 // pred_check
          %p153 = pneg %p36
        $region26: #{transmil_forward.16} parent=23 // pred_check_branch
          %155 = sbr.rel (%p153) target = $region28
        $region27: #{transmil_forward.16} parent=23 // pred_region
          %s156 = sand.u32 %s26, 1
          %s157 = scalar_lea.sflag [#allocation3], %s156
          %s158 = sand.u32 %s26, 1
          %s159 = smul.addr %s158, 144
          %s160 = scalar_lea.vmem [#allocation2], %s159
          %s162 = ssub.s32 2304, 2304
          %163 = vsyncadd %s157, %s162
          %s164 = smul.addr %s16, 18
          %s165 = smul.addr %s164, 128
          %s166 = scalar_lea.hbm %s0, %s165
          %s167 = sshll.u32 %s160, 4
          %s168 = int_to_ptr.vmem [resolvable:$true] %s167
          %173 = dma.hbm_to_vmem [thread:$0]  %s166, 2304, %s168, %s157, 128, 128, 8
        $region28: #{transmil_forward.16} parent=23 // pred_fallthru
          _
      $region24: #{transmil_forward.16} parent=5 // pred_fallthru
        _
      %p174 = scmp.le.s32.totalorder 1, %s16
      %p175 = scmp.lt.s32.totalorder %s16, 3
      %p176 = pnand %p174, %p175
      %p177 = pneg %p176
      // Predicated region
      $region29: #{transmil_forward.16} parent=5 // pred_check
        _
      $region30: #{transmil_forward.16} parent=5 // pred_check_branch
        %179 = sbr.rel (%p176) target = $region32
      $region31: #{transmil_forward.16} parent=5 // pred_region
        %s180 = ssub.s32 %s16, 1
        %s181 = sand.u32 %s29, 1
        %s182 = scalar_lea.sflag [#allocation3], %s181
        %s183 = sand.u32 %s29, 1
        %s184 = smul.addr %s183, 144
        %s185 = scalar_lea.vmem [#allocation2], %s184
        // Predicated region
        $region33: #{transmil_forward.16} parent=31 // pred_check
          %p186 = pneg %p42
        $region34: #{transmil_forward.16} parent=31 // pred_check_branch
          %188 = sbr.rel (%p186) target = $region36
        $region35: #{transmil_forward.16} parent=31 // pred_region
          %189 = dma.done %s182, 2304
        $region36: #{transmil_forward.16} parent=31 // pred_fallthru
          _
        // Predicated region
        $region37: #{transmil_forward.16} parent=31 // pred_check
          %p190 = pneg %p63
        $region38: #{transmil_forward.16} parent=31 // pred_check_branch
          %192 = sbr.rel (%p190) target = $region40
        $region39: #{transmil_forward.16} parent=31 // pred_region
          %193 = dma.done [#allocation6], 896
        $region40: #{transmil_forward.16} parent=31 // pred_fallthru
          _
        // Predicated region
        $region41: #{transmil_forward.16} parent=31 // pred_check
          %p194 = pneg %p84
        $region42: #{transmil_forward.16} parent=31 // pred_check_branch
          %196 = sbr.rel (%p194) target = $region44
        $region43: #{transmil_forward.16} parent=31 // pred_region
          %197 = dma.done [#allocation6], 16
        $region44: #{transmil_forward.16} parent=31 // pred_fallthru
          _
        %s198 = sand.u32 %s29, 1
        %s199 = scalar_lea.sflag [#allocation3], %s198
        %s200 = sand.u32 %s29, 1
        %s201 = smul.addr %s200, 144
        %s202 = scalar_lea.vmem [#allocation2], %s201
        %p203 = pneg %p42
        %p204 = pneg %p39
        %p205 = pneg %p63
        %p206 = pneg %p60
        %p207 = pneg %p84
        %p208 = pneg %p81
        %p209 = pneg %p110
        %p210 = pneg %p107
        %s211 = sand.u32 %s97, 1
        %s212 = scalar_lea.sflag [#allocation4], %s211
        %s213 = sand.u32 %s97, 1
        %s214 = smul.addr %s213, 12
        %s215 = scalar_lea.vmem [#allocation8], %s214
        %v216 = vld [vmem:[#allocation5] sm:$0xff]
        %v217 = vld [vmem:[#allocation5 + $0x8] sm:$0xff]
        %v218 = vld [vmem:[#allocation5 + $0x10] sm:$0xff]
        %v219 = vld [vmem:[#allocation5 + $0x18] sm:$0xff]
        %v220 = vld [vmem:[#allocation5 + $0x20] sm:$0xff]
        %v221 = vld [vmem:[#allocation5 + $0x28] sm:$0xff]
        %v222 = vld [vmem:[#allocation5 + $0x30] sm:$0x1]
        %v223 = vld [vmem:[#allocation7] sm:$0x1]
        %v225 = vlaneseq
        %v226 = vshrl.u32 %v225, 7
        %v227 = vsub.s32 0, %v226
        %v228 = vrot.slane %v223, %v227
        %v230 = vadd.f32 %v228, 0.0
        %v231 = vld [vmem:[%s185] sm:$0x7]
        %v232 = vld [vmem:[%s185 + $0x10] sm:$0x7]
        %v233 = vld [vmem:[%s185 + $0x20] sm:$0x7]
        %v234 = vld [vmem:[%s185 + $0x30] sm:$0x7]
        %v235 = vld [vmem:[%s185 + $0x40] sm:$0x7]
        %v236 = vld [vmem:[%s185 + $0x50] sm:$0x7]
        %v237 = vld [vmem:[%s185 + $0x60] sm:$0x7]
        %v238 = vld [vmem:[%s185 + $0x70] sm:$0x7]
        %v239 = vld [vmem:[%s185 + $0x80] sm:$0x7]
        %v240 = vlaneseq
        %v241 = vshrl.u32 %v240, 7
        %v242 = vsub.s32 0, %v241
        %v243 = vrot.slane %v216, %v242
        %v244 = vmul.f32 %v243, %v231
        %v245 = vmul.f32 %v243, %v232
        %v246 = vmul.f32 %v243, %v233
        %v247 = vadd.f32 %v230, %v244
        %v248 = vadd.f32 %v230, %v245
        %v249 = vadd.f32 %v230, %v246
        %v250 = vlaneseq
        %v251 = vshrl.u32 %v250, 7
        %v252 = vsub.s32 7, %v251
        %v253 = vrot.slane %v216, %v252
        %v254 = vmul.f32 %v253, %v232
        %v255 = vmul.f32 %v253, %v233
        %v256 = vmul.f32 %v253, %v234
        %v257 = vadd.f32 %v247, %v254
        %v258 = vadd.f32 %v248, %v255
        %v259 = vadd.f32 %v249, %v256
        %v260 = vlaneseq
        %v261 = vshrl.u32 %v260, 7
        %v262 = vsub.s32 6, %v261
        %v263 = vrot.slane %v217, %v262
        %v264 = vmul.f32 %v263, %v233
        %v265 = vmul.f32 %v263, %v234
        %v266 = vmul.f32 %v263, %v235
        %v267 = vadd.f32 %v257, %v264
        %v268 = vadd.f32 %v258, %v265
        %v269 = vadd.f32 %v259, %v266
        %v270 = vlaneseq
        %v271 = vshrl.u32 %v270, 7
        %v272 = vsub.s32 5, %v271
        %v273 = vrot.slane %v218, %v272
        %v274 = vmul.f32 %v273, %v234
        %v275 = vmul.f32 %v273, %v235
        %v276 = vmul.f32 %v273, %v236
        %v277 = vadd.f32 %v267, %v274
        %v278 = vadd.f32 %v268, %v275
        %v279 = vadd.f32 %v269, %v276
        %v280 = vlaneseq
        %v281 = vshrl.u32 %v280, 7
        %v282 = vsub.s32 4, %v281
        %v283 = vrot.slane %v219, %v282
        %v284 = vmul.f32 %v283, %v235
        %v285 = vmul.f32 %v283, %v236
        %v286 = vmul.f32 %v283, %v237
        %v287 = vadd.f32 %v277, %v284
        %v288 = vadd.f32 %v278, %v285
        %v289 = vadd.f32 %v279, %v286
        %v290 = vlaneseq
        %v291 = vshrl.u32 %v290, 7
        %v292 = vsub.s32 3, %v291
        %v293 = vrot.slane %v220, %v292
        %v294 = vmul.f32 %v293, %v236
        %v295 = vmul.f32 %v293, %v237
        %v296 = vmul.f32 %v293, %v238
        %v297 = vadd.f32 %v287, %v294
        %v298 = vadd.f32 %v288, %v295
        %v299 = vadd.f32 %v289, %v296
        %v300 = vlaneseq
        %v301 = vshrl.u32 %v300, 7
        %v302 = vsub.s32 2, %v301
        %v303 = vrot.slane %v221, %v302
        %v304 = vmul.f32 %v303, %v237
        %v305 = vmul.f32 %v303, %v238
        %v306 = vmul.f32 %v303, %v239
        %v307 = vadd.f32 %v297, %v304
        %v308 = vadd.f32 %v298, %v305
        %v309 = vadd.f32 %v299, %v306
        %v310 = vld [vmem:[%s185 + $0x1] sm:$0x7]
        %v311 = vld [vmem:[%s185 + $0x11] sm:$0x7]
        %v312 = vld [vmem:[%s185 + $0x21] sm:$0x7]
        %v313 = vld [vmem:[%s185 + $0x31] sm:$0x7]
        %v314 = vld [vmem:[%s185 + $0x41] sm:$0x7]
        %v315 = vld [vmem:[%s185 + $0x51] sm:$0x7]
        %v316 = vld [vmem:[%s185 + $0x61] sm:$0x7]
        %v317 = vld [vmem:[%s185 + $0x71] sm:$0x7]
        %v318 = vld [vmem:[%s185 + $0x81] sm:$0x7]
        %v319 = vlaneseq
        %v320 = vshrl.u32 %v319, 7
        %v321 = vsub.s32 1, %v320
        %v322 = vrot.slane %v216, %v321
        %v323 = vmul.f32 %v322, %v310
        %v324 = vmul.f32 %v322, %v311
        %v325 = vmul.f32 %v322, %v312
        %v326 = vadd.f32 %v307, %v323
        %v327 = vadd.f32 %v308, %v324
        %v328 = vadd.f32 %v309, %v325
        %v329 = vlaneseq
        %v330 = vshrl.u32 %v329, 7
        %v331 = vsub.s32 0, %v330
        %v332 = vrot.slane %v217, %v331
        %v333 = vmul.f32 %v332, %v311
        %v334 = vmul.f32 %v332, %v312
        %v335 = vmul.f32 %v332, %v313
        %v336 = vadd.f32 %v326, %v333
        %v337 = vadd.f32 %v327, %v334
        %v338 = vadd.f32 %v328, %v335
        %v339 = vlaneseq
        %v340 = vshrl.u32 %v339, 7
        %v341 = vsub.s32 7, %v340
        %v342 = vrot.slane %v217, %v341
        %v343 = vmul.f32 %v342, %v312
        %v344 = vmul.f32 %v342, %v313
        %v345 = vmul.f32 %v342, %v314
        %v346 = vadd.f32 %v336, %v343
        %v347 = vadd.f32 %v337, %v344
        %v348 = vadd.f32 %v338, %v345
        %v349 = vlaneseq
        %v350 = vshrl.u32 %v349, 7
        %v351 = vsub.s32 6, %v350
        %v352 = vrot.slane %v218, %v351
        %v353 = vmul.f32 %v352, %v313
        %v354 = vmul.f32 %v352, %v314
        %v355 = vmul.f32 %v352, %v315
        %v356 = vadd.f32 %v346, %v353
        %v357 = vadd.f32 %v347, %v354
        %v358 = vadd.f32 %v348, %v355
        %v359 = vlaneseq
        %v360 = vshrl.u32 %v359, 7
        %v361 = vsub.s32 5, %v360
        %v362 = vrot.slane %v219, %v361
        %v363 = vmul.f32 %v362, %v314
        %v364 = vmul.f32 %v362, %v315
        %v365 = vmul.f32 %v362, %v316
        %v366 = vadd.f32 %v356, %v363
        %v367 = vadd.f32 %v357, %v364
        %v368 = vadd.f32 %v358, %v365
        %v369 = vlaneseq
        %v370 = vshrl.u32 %v369, 7
        %v371 = vsub.s32 4, %v370
        %v372 = vrot.slane %v220, %v371
        %v373 = vmul.f32 %v372, %v315
        %v374 = vmul.f32 %v372, %v316
        %v375 = vmul.f32 %v372, %v317
        %v376 = vadd.f32 %v366, %v373
        %v377 = vadd.f32 %v367, %v374
        %v378 = vadd.f32 %v368, %v375
        %v379 = vlaneseq
        %v380 = vshrl.u32 %v379, 7
        %v381 = vsub.s32 3, %v380
        %v382 = vrot.slane %v221, %v381
        %v383 = vmul.f32 %v382, %v316
        %v384 = vmul.f32 %v382, %v317
        %v385 = vmul.f32 %v382, %v318
        %v386 = vadd.f32 %v376, %v383
        %v387 = vadd.f32 %v377, %v384
        %v388 = vadd.f32 %v378, %v385
        %v389 = vld [vmem:[%s185 + $0x2] sm:$0x7]
        %v390 = vld [vmem:[%s185 + $0x12] sm:$0x7]
        %v391 = vld [vmem:[%s185 + $0x22] sm:$0x7]
        %v392 = vld [vmem:[%s185 + $0x32] sm:$0x7]
        %v393 = vld [vmem:[%s185 + $0x42] sm:$0x7]
        %v394 = vld [vmem:[%s185 + $0x52] sm:$0x7]
        %v395 = vld [vmem:[%s185 + $0x62] sm:$0x7]
        %v396 = vld [vmem:[%s185 + $0x72] sm:$0x7]
        %v397 = vld [vmem:[%s185 + $0x82] sm:$0x7]
        %v398 = vlaneseq
        %v399 = vshrl.u32 %v398, 7
        %v400 = vsub.s32 2, %v399
        %v401 = vrot.slane %v216, %v400
        %v402 = vmul.f32 %v401, %v389
        %v403 = vmul.f32 %v401, %v390
        %v404 = vmul.f32 %v401, %v391
        %v405 = vadd.f32 %v386, %v402
        %v406 = vadd.f32 %v387, %v403
        %v407 = vadd.f32 %v388, %v404
        %v408 = vlaneseq
        %v409 = vshrl.u32 %v408, 7
        %v410 = vsub.s32 1, %v409
        %v411 = vrot.slane %v217, %v410
        %v412 = vmul.f32 %v411, %v390
        %v413 = vmul.f32 %v411, %v391
        %v414 = vmul.f32 %v411, %v392
        %v415 = vadd.f32 %v405, %v412
        %v416 = vadd.f32 %v406, %v413
        %v417 = vadd.f32 %v407, %v414
        %v418 = vlaneseq
        %v419 = vshrl.u32 %v418, 7
        %v420 = vsub.s32 0, %v419
        %v421 = vrot.slane %v218, %v420
        %v422 = vmul.f32 %v421, %v391
        %v423 = vmul.f32 %v421, %v392
        %v424 = vmul.f32 %v421, %v393
        %v425 = vadd.f32 %v415, %v422
        %v426 = vadd.f32 %v416, %v423
        %v427 = vadd.f32 %v417, %v424
        %v428 = vlaneseq
        %v429 = vshrl.u32 %v428, 7
        %v430 = vsub.s32 7, %v429
        %v431 = vrot.slane %v218, %v430
        %v432 = vmul.f32 %v431, %v392
        %v433 = vmul.f32 %v431, %v393
        %v434 = vmul.f32 %v431, %v394
        %v435 = vadd.f32 %v425, %v432
        %v436 = vadd.f32 %v426, %v433
        %v437 = vadd.f32 %v427, %v434
        %v438 = vlaneseq
        %v439 = vshrl.u32 %v438, 7
        %v440 = vsub.s32 6, %v439
        %v441 = vrot.slane %v219, %v440
        %v442 = vmul.f32 %v441, %v393
        %v443 = vmul.f32 %v441, %v394
        %v444 = vmul.f32 %v441, %v395
        %v445 = vadd.f32 %v435, %v442
        %v446 = vadd.f32 %v436, %v443
        %v447 = vadd.f32 %v437, %v444
        %v448 = vlaneseq
        %v449 = vshrl.u32 %v448, 7
        %v450 = vsub.s32 5, %v449
        %v451 = vrot.slane %v220, %v450
        %v452 = vmul.f32 %v451, %v394
        %v453 = vmul.f32 %v451, %v395
        %v454 = vmul.f32 %v451, %v396
        %v455 = vadd.f32 %v445, %v452
        %v456 = vadd.f32 %v446, %v453
        %v457 = vadd.f32 %v447, %v454
        %v458 = vlaneseq
        %v459 = vshrl.u32 %v458, 7
        %v460 = vsub.s32 4, %v459
        %v461 = vrot.slane %v221, %v460
        %v462 = vmul.f32 %v461, %v395
        %v463 = vmul.f32 %v461, %v396
        %v464 = vmul.f32 %v461, %v397
        %v465 = vadd.f32 %v455, %v462
        %v466 = vadd.f32 %v456, %v463
        %v467 = vadd.f32 %v457, %v464
        %v468 = vld [vmem:[%s185 + $0x3] sm:$0x7]
        %v469 = vld [vmem:[%s185 + $0x13] sm:$0x7]
        %v470 = vld [vmem:[%s185 + $0x23] sm:$0x7]
        %v471 = vld [vmem:[%s185 + $0x33] sm:$0x7]
        %v472 = vld [vmem:[%s185 + $0x43] sm:$0x7]
        %v473 = vld [vmem:[%s185 + $0x53] sm:$0x7]
        %v474 = vld [vmem:[%s185 + $0x63] sm:$0x7]
        %v475 = vld [vmem:[%s185 + $0x73] sm:$0x7]
        %v476 = vld [vmem:[%s185 + $0x83] sm:$0x7]
        %v477 = vlaneseq
        %v478 = vshrl.u32 %v477, 7
        %v479 = vsub.s32 3, %v478
        %v480 = vrot.slane %v216, %v479
        %v481 = vmul.f32 %v480, %v468
        %v482 = vmul.f32 %v480, %v469
        %v483 = vmul.f32 %v480, %v470
        %v484 = vadd.f32 %v465, %v481
        %v485 = vadd.f32 %v466, %v482
        %v486 = vadd.f32 %v467, %v483
        %v487 = vlaneseq
        %v488 = vshrl.u32 %v487, 7
        %v489 = vsub.s32 2, %v488
        %v490 = vrot.slane %v217, %v489
        %v491 = vmul.f32 %v490, %v469
        %v492 = vmul.f32 %v490, %v470
        %v493 = vmul.f32 %v490, %v471
        %v494 = vadd.f32 %v484, %v491
        %v495 = vadd.f32 %v485, %v492
        %v496 = vadd.f32 %v486, %v493
        %v497 = vlaneseq
        %v498 = vshrl.u32 %v497, 7
        %v499 = vsub.s32 1, %v498
        %v500 = vrot.slane %v218, %v499
        %v501 = vmul.f32 %v500, %v470
        %v502 = vmul.f32 %v500, %v471
        %v503 = vmul.f32 %v500, %v472
        %v504 = vadd.f32 %v494, %v501
        %v505 = vadd.f32 %v495, %v502
        %v506 = vadd.f32 %v496, %v503
        %v507 = vlaneseq
        %v508 = vshrl.u32 %v507, 7
        %v509 = vsub.s32 0, %v508
        %v510 = vrot.slane %v219, %v509
        %v511 = vmul.f32 %v510, %v471
        %v512 = vmul.f32 %v510, %v472
        %v513 = vmul.f32 %v510, %v473
        %v514 = vadd.f32 %v504, %v511
        %v515 = vadd.f32 %v505, %v512
        %v516 = vadd.f32 %v506, %v513
        %v517 = vlaneseq
        %v518 = vshrl.u32 %v517, 7
        %v519 = vsub.s32 7, %v518
        %v520 = vrot.slane %v219, %v519
        %v521 = vmul.f32 %v520, %v472
        %v522 = vmul.f32 %v520, %v473
        %v523 = vmul.f32 %v520, %v474
        %v524 = vadd.f32 %v514, %v521
        %v525 = vadd.f32 %v515, %v522
        %v526 = vadd.f32 %v516, %v523
        %v527 = vlaneseq
        %v528 = vshrl.u32 %v527, 7
        %v529 = vsub.s32 6, %v528
        %v530 = vrot.slane %v220, %v529
        %v531 = vmul.f32 %v530, %v473
        %v532 = vmul.f32 %v530, %v474
        %v533 = vmul.f32 %v530, %v475
        %v534 = vadd.f32 %v524, %v531
        %v535 = vadd.f32 %v525, %v532
        %v536 = vadd.f32 %v526, %v533
        %v537 = vlaneseq
        %v538 = vshrl.u32 %v537, 7
        %v539 = vsub.s32 5, %v538
        %v540 = vrot.slane %v221, %v539
        %v541 = vmul.f32 %v540, %v474
        %v542 = vmul.f32 %v540, %v475
        %v543 = vmul.f32 %v540, %v476
        %v544 = vadd.f32 %v534, %v541
        %v545 = vadd.f32 %v535, %v542
        %v546 = vadd.f32 %v536, %v543
        %v547 = vld [vmem:[%s185 + $0x4] sm:$0x7]
        %v548 = vld [vmem:[%s185 + $0x14] sm:$0x7]
        %v549 = vld [vmem:[%s185 + $0x24] sm:$0x7]
        %v550 = vld [vmem:[%s185 + $0x34] sm:$0x7]
        %v551 = vld [vmem:[%s185 + $0x44] sm:$0x7]
        %v552 = vld [vmem:[%s185 + $0x54] sm:$0x7]
        %v553 = vld [vmem:[%s185 + $0x64] sm:$0x7]
        %v554 = vld [vmem:[%s185 + $0x74] sm:$0x7]
        %v555 = vld [vmem:[%s185 + $0x84] sm:$0x7]
        %v556 = vlaneseq
        %v557 = vshrl.u32 %v556, 7
        %v558 = vsub.s32 4, %v557
        %v559 = vrot.slane %v216, %v558
        %v560 = vmul.f32 %v559, %v547
        %v561 = vmul.f32 %v559, %v548
        %v562 = vmul.f32 %v559, %v549
        %v563 = vadd.f32 %v544, %v560
        %v564 = vadd.f32 %v545, %v561
        %v565 = vadd.f32 %v546, %v562
        %v566 = vlaneseq
        %v567 = vshrl.u32 %v566, 7
        %v568 = vsub.s32 3, %v567
        %v569 = vrot.slane %v217, %v568
        %v570 = vmul.f32 %v569, %v548
        %v571 = vmul.f32 %v569, %v549
        %v572 = vmul.f32 %v569, %v550
        %v573 = vadd.f32 %v563, %v570
        %v574 = vadd.f32 %v564, %v571
        %v575 = vadd.f32 %v565, %v572
        %v576 = vlaneseq
        %v577 = vshrl.u32 %v576, 7
        %v578 = vsub.s32 2, %v577
        %v579 = vrot.slane %v218, %v578
        %v580 = vmul.f32 %v579, %v549
        %v581 = vmul.f32 %v579, %v550
        %v582 = vmul.f32 %v579, %v551
        %v583 = vadd.f32 %v573, %v580
        %v584 = vadd.f32 %v574, %v581
        %v585 = vadd.f32 %v575, %v582
        %v586 = vlaneseq
        %v587 = vshrl.u32 %v586, 7
        %v588 = vsub.s32 1, %v587
        %v589 = vrot.slane %v219, %v588
        %v590 = vmul.f32 %v589, %v550
        %v591 = vmul.f32 %v589, %v551
        %v592 = vmul.f32 %v589, %v552
        %v593 = vadd.f32 %v583, %v590
        %v594 = vadd.f32 %v584, %v591
        %v595 = vadd.f32 %v585, %v592
        %v596 = vlaneseq
        %v597 = vshrl.u32 %v596, 7
        %v598 = vsub.s32 0, %v597
        %v599 = vrot.slane %v220, %v598
        %v600 = vmul.f32 %v599, %v551
        %v601 = vmul.f32 %v599, %v552
        %v602 = vmul.f32 %v599, %v553
        %v603 = vadd.f32 %v593, %v600
        %v604 = vadd.f32 %v594, %v601
        %v605 = vadd.f32 %v595, %v602
        %v606 = vlaneseq
        %v607 = vshrl.u32 %v606, 7
        %v608 = vsub.s32 7, %v607
        %v609 = vrot.slane %v220, %v608
        %v610 = vmul.f32 %v609, %v552
        %v611 = vmul.f32 %v609, %v553
        %v612 = vmul.f32 %v609, %v554
        %v613 = vadd.f32 %v603, %v610
        %v614 = vadd.f32 %v604, %v611
        %v615 = vadd.f32 %v605, %v612
        %v616 = vlaneseq
        %v617 = vshrl.u32 %v616, 7
        %v618 = vsub.s32 6, %v617
        %v619 = vrot.slane %v221, %v618
        %v620 = vmul.f32 %v619, %v553
        %v621 = vmul.f32 %v619, %v554
        %v622 = vmul.f32 %v619, %v555
        %v623 = vadd.f32 %v613, %v620
        %v624 = vadd.f32 %v614, %v621
        %v625 = vadd.f32 %v615, %v622
        %v626 = vld [vmem:[%s185 + $0x5] sm:$0x7]
        %v627 = vld [vmem:[%s185 + $0x15] sm:$0x7]
        %v628 = vld [vmem:[%s185 + $0x25] sm:$0x7]
        %v629 = vld [vmem:[%s185 + $0x35] sm:$0x7]
        %v630 = vld [vmem:[%s185 + $0x45] sm:$0x7]
        %v631 = vld [vmem:[%s185 + $0x55] sm:$0x7]
        %v632 = vld [vmem:[%s185 + $0x65] sm:$0x7]
        %v633 = vld [vmem:[%s185 + $0x75] sm:$0x7]
        %v634 = vld [vmem:[%s185 + $0x85] sm:$0x7]
        %v635 = vlaneseq
        %v636 = vshrl.u32 %v635, 7
        %v637 = vsub.s32 5, %v636
        %v638 = vrot.slane %v216, %v637
        %v639 = vmul.f32 %v638, %v626
        %v640 = vmul.f32 %v638, %v627
        %v641 = vmul.f32 %v638, %v628
        %v642 = vadd.f32 %v623, %v639
        %v643 = vadd.f32 %v624, %v640
        %v644 = vadd.f32 %v625, %v641
        %v645 = vlaneseq
        %v646 = vshrl.u32 %v645, 7
        %v647 = vsub.s32 4, %v646
        %v648 = vrot.slane %v217, %v647
        %v649 = vmul.f32 %v648, %v627
        %v650 = vmul.f32 %v648, %v628
        %v651 = vmul.f32 %v648, %v629
        %v652 = vadd.f32 %v642, %v649
        %v653 = vadd.f32 %v643, %v650
        %v654 = vadd.f32 %v644, %v651
        %v655 = vlaneseq
        %v656 = vshrl.u32 %v655, 7
        %v657 = vsub.s32 3, %v656
        %v658 = vrot.slane %v218, %v657
        %v659 = vmul.f32 %v658, %v628
        %v660 = vmul.f32 %v658, %v629
        %v661 = vmul.f32 %v658, %v630
        %v662 = vadd.f32 %v652, %v659
        %v663 = vadd.f32 %v653, %v660
        %v664 = vadd.f32 %v654, %v661
        %v665 = vlaneseq
        %v666 = vshrl.u32 %v665, 7
        %v667 = vsub.s32 2, %v666
        %v668 = vrot.slane %v219, %v667
        %v669 = vmul.f32 %v668, %v629
        %v670 = vmul.f32 %v668, %v630
        %v671 = vmul.f32 %v668, %v631
        %v672 = vadd.f32 %v662, %v669
        %v673 = vadd.f32 %v663, %v670
        %v674 = vadd.f32 %v664, %v671
        %v675 = vlaneseq
        %v676 = vshrl.u32 %v675, 7
        %v677 = vsub.s32 1, %v676
        %v678 = vrot.slane %v220, %v677
        %v679 = vmul.f32 %v678, %v630
        %v680 = vmul.f32 %v678, %v631
        %v681 = vmul.f32 %v678, %v632
        %v682 = vadd.f32 %v672, %v679
        %v683 = vadd.f32 %v673, %v680
        %v684 = vadd.f32 %v674, %v681
        %v685 = vlaneseq
        %v686 = vshrl.u32 %v685, 7
        %v687 = vsub.s32 0, %v686
        %v688 = vrot.slane %v221, %v687
        %v689 = vmul.f32 %v688, %v631
        %v690 = vmul.f32 %v688, %v632
        %v691 = vmul.f32 %v688, %v633
        %v692 = vadd.f32 %v682, %v689
        %v693 = vadd.f32 %v683, %v690
        %v694 = vadd.f32 %v684, %v691
        %v695 = vlaneseq
        %v696 = vshrl.u32 %v695, 7
        %v697 = vsub.s32 7, %v696
        %v698 = vrot.slane %v221, %v697
        %v699 = vmul.f32 %v698, %v632
        %v700 = vmul.f32 %v698, %v633
        %v701 = vmul.f32 %v698, %v634
        %v702 = vadd.f32 %v692, %v699
        %v703 = vadd.f32 %v693, %v700
        %v704 = vadd.f32 %v694, %v701
        %v705 = vld [vmem:[%s185 + $0x6] sm:$0x7]
        %v706 = vld [vmem:[%s185 + $0x16] sm:$0x7]
        %v707 = vld [vmem:[%s185 + $0x26] sm:$0x7]
        %v708 = vld [vmem:[%s185 + $0x36] sm:$0x7]
        %v709 = vld [vmem:[%s185 + $0x46] sm:$0x7]
        %v710 = vld [vmem:[%s185 + $0x56] sm:$0x7]
        %v711 = vld [vmem:[%s185 + $0x66] sm:$0x7]
        %v712 = vld [vmem:[%s185 + $0x76] sm:$0x7]
        %v713 = vld [vmem:[%s185 + $0x86] sm:$0x7]
        %v714 = vlaneseq
        %v715 = vshrl.u32 %v714, 7
        %v716 = vsub.s32 6, %v715
        %v717 = vrot.slane %v216, %v716
        %v718 = vmul.f32 %v717, %v705
        %v719 = vmul.f32 %v717, %v706
        %v720 = vmul.f32 %v717, %v707
        %v721 = vadd.f32 %v702, %v718
        %v722 = vadd.f32 %v703, %v719
        %v723 = vadd.f32 %v704, %v720
        %v724 = vlaneseq
        %v725 = vshrl.u32 %v724, 7
        %v726 = vsub.s32 5, %v725
        %v727 = vrot.slane %v217, %v726
        %v728 = vmul.f32 %v727, %v706
        %v729 = vmul.f32 %v727, %v707
        %v730 = vmul.f32 %v727, %v708
        %v731 = vadd.f32 %v721, %v728
        %v732 = vadd.f32 %v722, %v729
        %v733 = vadd.f32 %v723, %v730
        %v734 = vlaneseq
        %v735 = vshrl.u32 %v734, 7
        %v736 = vsub.s32 4, %v735
        %v737 = vrot.slane %v218, %v736
        %v738 = vmul.f32 %v737, %v707
        %v739 = vmul.f32 %v737, %v708
        %v740 = vmul.f32 %v737, %v709
        %v741 = vadd.f32 %v731, %v738
        %v742 = vadd.f32 %v732, %v739
        %v743 = vadd.f32 %v733, %v740
        %v744 = vlaneseq
        %v745 = vshrl.u32 %v744, 7
        %v746 = vsub.s32 3, %v745
        %v747 = vrot.slane %v219, %v746
        %v748 = vmul.f32 %v747, %v708
        %v749 = vmul.f32 %v747, %v709
        %v750 = vmul.f32 %v747, %v710
        %v751 = vadd.f32 %v741, %v748
        %v752 = vadd.f32 %v742, %v749
        %v753 = vadd.f32 %v743, %v750
        %v754 = vlaneseq
        %v755 = vshrl.u32 %v754, 7
        %v756 = vsub.s32 2, %v755
        %v757 = vrot.slane %v220, %v756
        %v758 = vmul.f32 %v757, %v709
        %v759 = vmul.f32 %v757, %v710
        %v760 = vmul.f32 %v757, %v711
        %v761 = vadd.f32 %v751, %v758
        %v762 = vadd.f32 %v752, %v759
        %v763 = vadd.f32 %v753, %v760
        %v764 = vlaneseq
        %v765 = vshrl.u32 %v764, 7
        %v766 = vsub.s32 1, %v765
        %v767 = vrot.slane %v221, %v766
        %v768 = vmul.f32 %v767, %v710
        %v769 = vmul.f32 %v767, %v711
        %v770 = vmul.f32 %v767, %v712
        %v771 = vadd.f32 %v761, %v768
        %v772 = vadd.f32 %v762, %v769
        %v773 = vadd.f32 %v763, %v770
        %v774 = vlaneseq
        %v775 = vshrl.u32 %v774, 7
        %v776 = vsub.s32 0, %v775
        %v777 = vrot.slane %v222, %v776
        %v778 = vmul.f32 %v777, %v711
        %v779 = vmul.f32 %v777, %v712
        %v780 = vmul.f32 %v777, %v713
        %v781 = vadd.f32 %v771, %v778
        %v782 = vadd.f32 %v772, %v779
        %v783 = vadd.f32 %v773, %v780
        %vm784 = vcmask 518144
        %785 = vst.msk [vmem:[%s215] sm:$0x7] %vm784, %v781
        %786 = vst.msk [vmem:[%s215 + $0x4] sm:$0x7] %vm784, %v782
        %787 = vst.msk [vmem:[%s215 + $0x8] sm:$0x7] %vm784, %v783
        %s788 = sand.u32 %s97, 1
        %s789 = scalar_lea.sflag [#allocation4], %s788
        %s790 = sand.u32 %s97, 1
        %s791 = smul.addr %s790, 12
        %s792 = scalar_lea.vmem [#allocation8], %s791
        // Predicated region
        $region45: #{transmil_forward.16} parent=31 // pred_check
          %p793 = pneg %p107
        $region46: #{transmil_forward.16} parent=31 // pred_check_branch
          %795 = sbr.rel (%p793) target = $region48
        $region47: #{transmil_forward.16} parent=31 // pred_region
          %s797 = ssub.s32 192, 192
          %798 = vsyncadd %s789, %s797
          %s799 = smul.addr %s21, 3
          %s800 = smul.addr %s799, 64
          %s801 = scalar_lea.hbm %s3, %s800
          %s802 = sshll.u32 %s792, 4
          %s803 = int_to_ptr.vmem [resolvable:$true] %s802
          %808 = dma.vmem_to_hbm [thread:$0]  %s803, 192, %s801, %s789, 64, 64, 4
        $region48: #{transmil_forward.16} parent=31 // pred_fallthru
          _
      $region32: #{transmil_forward.16} parent=5 // pred_fallthru
        _
      %p809 = scmp.le.s32.totalorder 2, %s16
      // Predicated region
      $region49: #{transmil_forward.16} parent=5 // pred_check
        %p810 = pneg %p809
      $region50: #{transmil_forward.16} parent=5 // pred_check_branch
        %812 = sbr.rel (%p810) target = $region52
      $region51: #{transmil_forward.16} parent=5 // pred_region
        %s813 = ssub.s32 %s16, 2
        // Predicated region
        $region53: #{transmil_forward.16} parent=51 // pred_check
          %p814 = pneg %p113
        $region54: #{transmil_forward.16} parent=51 // pred_check_branch
          %816 = sbr.rel (%p814) target = $region56
        $region55: #{transmil_forward.16} parent=51 // pred_region
          %s817 = sand.u32 %s98, 1
          %s818 = scalar_lea.sflag [#allocation4], %s817
          %s819 = sand.u32 %s98, 1
          %s820 = smul.addr %s819, 12
          %s821 = scalar_lea.vmem [#allocation8], %s820
          %822 = dma.done %s818, 192
        $region56: #{transmil_forward.16} parent=51 // pred_fallthru
          _
      $region52: #{transmil_forward.16} parent=5 // pred_fallthru
        _
    $region6: #{transmil_forward.16} parent=1 // loop_footer
      %s20 = sadd.s32 1, %s16
    $region7: #{transmil_forward.16} parent=1 // loop_footer_branch
      %15 = sbr.rel target = $region3
    $region8: #{transmil_forward.16} parent=1 // loop_exit
      _
    %823 = vsyncpa [#allocation3], 1
    %s824 = scalar_lea.sflag [#allocation3], 1
    %825 = vsyncpa %s824, 1
    %826 = vsyncpa [#allocation6], 1
    %827 = vsyncpa [#allocation4], 1
    %s828 = scalar_lea.sflag [#allocation4], 1
    %829 = vsyncpa %s828, 1

</llo_original>
